<compile_context>
chip_gen: v7x
topology: tpu7x:2x2x1
jax: 0.10.0
libtpu: 0.0.40
codegen_flags: <defaults>
</compile_context>

<pallas_src>
import jax
import jax.numpy as jnp
from jax.experimental import pallas as pl
from jax.experimental.pallas import tpu as pltpu


# ----------------------------------------------------------------------------
# Shared in-kernel helpers
# ----------------------------------------------------------------------------

def _round_up(x, m):
    return (x + m - 1) // m * m


def _edge_masks(HW, W):
    """0/1 masks (HW,1) killing W-edge wrap-around of the +-1 column taps."""
    wo = jax.lax.broadcasted_iota(jnp.int32, (HW, 1), 0) % W
    lmask = (wo != 0).astype(jnp.bfloat16)        # tap kx=0 invalid at wo==0
    rmask = (wo != (W - 1)).astype(jnp.bfloat16)  # tap kx=2 invalid at wo==W-1
    return lmask, rmask


def _conv3x3_accum(read, w_ref, HW, W, cout, lmask, rmask, fuse_k):
    """3x3 / stride-1 conv as shifted-slice matmuls, f32 accumulation.

    The source image lives in an H-padded (2 zero rows top/bottom),
    row-flattened VMEM scratch; tap (dy, kx) reads the contiguous slice
    starting at (dy+1)*W + (kx-1).  No im2col materialization.

    fuse_k=False: 9 tap matmuls with K = Cin   (any Cin; used for tests).
    fuse_k=True : 3 matmuls   with K = 3*Cin   (Cin % 128 == 0) -> 3x deeper
                  MXU contraction, 3x fewer matmul issues.
    """
    acc = jnp.zeros((HW, cout), jnp.float32)
    if fuse_k:
        for dy in range(3):
            base = (dy + 1) * W
            lhs = jnp.concatenate(
                [read(base - 1) * lmask, read(base), read(base + 1) * rmask],
                axis=1)                                   # (HW, 3*Cin) bf16
            acc = acc + jnp.dot(lhs, w_ref[dy],
                                preferred_element_type=jnp.float32)
    else:
        for dy in range(3):
            for kx in range(3):
                lhs = read((dy + 1) * W + (kx - 1))       # (HW, Cin) bf16
                if kx == 0:
                    lhs = lhs * lmask
                elif kx == 2:
                    lhs = lhs * rmask
                acc = acc + jnp.dot(lhs, w_ref[dy * 3 + kx],
                                    preferred_element_type=jnp.float32)
    return acc


def _prep_conv_w(w_hwio):
    """(3,3,Cin,Cout) -> (3, 3*Cin, Cout) if Cin%128==0 else (9, Cin, Cout)."""
    _, _, cin, cout = w_hwio.shape
    fuse_k = (cin % 128 == 0)
    wr = (w_hwio.reshape(3, 3 * cin, cout) if fuse_k
          else w_hwio.reshape(9, cin, cout))
    return wr.astype(jnp.bfloat16), fuse_k


# ----------------------------------------------------------------------------
# Kernel 1: fully fused BasicBlock (stride=1, identity shortcut) — one call
# ----------------------------------------------------------------------------

def _make_fused_block_kernel(H, W, C, fuse1, fuse2):
    HW, RP = H * W, (H + 4) * W

    def kernel(x_ref, w1_ref, s1_ref, b1_ref, w2_ref, s2_ref, b2_ref,
               o_ref, xpad_ref, y1pad_ref):
        # Zero the 2-row top/bottom borders of both padded scratches ONCE;
        # scratch persists across grid steps and interiors are overwritten.
        @pl.when(pl.program_id(0) == 0)
        def _():
            z = jnp.zeros((2 * W, C), jnp.bfloat16)
            xpad_ref[0:2 * W, :] = z
            xpad_ref[2 * W + HW:RP, :] = z
            y1pad_ref[0:2 * W, :] = z
            y1pad_ref[2 * W + HW:RP, :] = z

        lmask, rmask = _edge_masks(HW, W)

        xin = x_ref[0]                                    # (HW, C) bf16
        xpad_ref[2 * W:2 * W + HW, :] = xin               # in-kernel H-pad

        # conv1 + bn1 + relu  (bf16 operands, f32 accumulation)
        acc1 = _conv3x3_accum(lambda s: xpad_ref[s:s + HW, :], w1_ref,
                              HW, W, C, lmask, rmask, fuse1)
        y1 = jnp.maximum(acc1 * s1_ref[...] + b1_ref[...], 0.0)
        y1pad_ref[2 * W:2 * W + HW, :] = y1.astype(jnp.bfloat16)

        # conv2 + bn2 + residual (bf16 identity, f32 add) + relu
        acc2 = _conv3x3_accum(lambda s: y1pad_ref[s:s + HW, :], w2_ref,
                              HW, W, C, lmask, rmask, fuse2)
        y2 = acc2 * s2_ref[...] + b2_ref[...] + xin.astype(jnp.float32)
        o_ref[0] = jnp.maximum(y2, 0.0).astype(o_ref.dtype)

    return kernel


def fused_basic_block_s1(x_nhwc, c1, c2, out_dtype=jnp.float32):
    """Whole BasicBlock (stride=1, Cin==Cout, identity shortcut) in one call."""
    N, H, W, C = x_nhwc.shape
    assert c1['w'].shape == (3, 3, C, C) and c2['w'].shape == (3, 3, C, C)
    HW, RP = H * W, (H + 4) * W

    x = x_nhwc.astype(jnp.bfloat16).reshape(N, HW, C)     # no HBM pad copy
    w1, fuse1 = _prep_conv_w(c1['w'])
    w2, fuse2 = _prep_conv_w(c2['w'])

    flops = 4 * N * HW * 9 * C * C                        # two 3x3 convs
    bytes_acc = (x.size + w1.size + w2.size) * 2 + 4 * C * 4 \
        + N * HW * C * jnp.dtype(out_dtype).itemsize

    out = pl.pallas_call(
        _make_fused_block_kernel(H, W, C, fuse1, fuse2),
        out_shape=jax.ShapeDtypeStruct((N, HW, C), out_dtype),
        grid=(N,),                                        # megacore-splittable
        in_specs=[
            pl.BlockSpec((1, HW, C), lambda n: (n, 0, 0)),
            pl.BlockSpec(w1.shape, lambda n: (0, 0, 0)),
            pl.BlockSpec((1, C), lambda n: (0, 0)),
            pl.BlockSpec((1, C), lambda n: (0, 0)),
            pl.BlockSpec(w2.shape, lambda n: (0, 0, 0)),
            pl.BlockSpec((1, C), lambda n: (0, 0)),
            pl.BlockSpec((1, C), lambda n: (0, 0)),
        ],
        out_specs=pl.BlockSpec((1, HW, C), lambda n: (n, 0, 0)),
        scratch_shapes=[pltpu.VMEM((RP, C), jnp.bfloat16),
                        pltpu.VMEM((RP, C), jnp.bfloat16)],
        compiler_params=pltpu.CompilerParams(dimension_semantics=("parallel",)),
        cost_estimate=pl.CostEstimate(flops=flops, transcendentals=0,
                                      bytes_accessed=bytes_acc),
    )(x, w1, c1['s'], c1['b'], w2, c2['s'], c2['b'])
    return out.reshape(N, H, W, C)


# ----------------------------------------------------------------------------
# Kernel 2: conv2 + bn2 + residual + relu (stride-1 tail of downsample blocks)
# ----------------------------------------------------------------------------

def _make_conv3x3_res_kernel(H, W, C, fuse_k):
    HW, RP = H * W, (H + 4) * W

    def kernel(y_ref, w_ref, s_ref, b_ref, r_ref, o_ref, ypad_ref):
        @pl.when(pl.program_id(0) == 0)
        def _():
            z = jnp.zeros((2 * W, C), jnp.bfloat16)
            ypad_ref[0:2 * W, :] = z
            ypad_ref[2 * W + HW:RP, :] = z

        lmask, rmask = _edge_masks(HW, W)
        ypad_ref[2 * W:2 * W + HW, :] = y_ref[0]          # in-kernel H-pad

        acc = _conv3x3_accum(lambda s: ypad_ref[s:s + HW, :], w_ref,
                             HW, W, C, lmask, rmask, fuse_k)
        out = acc * s_ref[...] + b_ref[...] + r_ref[0].astype(jnp.float32)
        o_ref[0] = jnp.maximum(out, 0.0).astype(o_ref.dtype)

    return kernel


def conv3x3_s1_bn_add_relu(y_nhwc, w, scale, bias, res, out_dtype=jnp.float32):
    """3x3/s1 conv + BN + residual add + ReLU.  y, res consumed as bf16."""
    N, H, W, C = y_nhwc.shape
    HW, RP = H * W, (H + 4) * W
    y = y_nhwc.astype(jnp.bfloat16).reshape(N, HW, C)
    r = res.astype(jnp.bfloat16).reshape(N, HW, C)
    wr, fuse_k = _prep_conv_w(w)

    out = pl.pallas_call(
        _make_conv3x3_res_kernel(H, W, C, fuse_k),
        out_shape=jax.ShapeDtypeStruct((N, HW, C), out_dtype),
        grid=(N,),
        in_specs=[
            pl.BlockSpec((1, HW, C), lambda n: (n, 0, 0)),
            pl.BlockSpec(wr.shape, lambda n: (0, 0, 0)),
            pl.BlockSpec((1, C), lambda n: (0, 0)),
            pl.BlockSpec((1, C), lambda n: (0, 0)),
            pl.BlockSpec((1, HW, C), lambda n: (n, 0, 0)),
        ],
        out_specs=pl.BlockSpec((1, HW, C), lambda n: (n, 0, 0)),
        scratch_shapes=[pltpu.VMEM((RP, C), jnp.bfloat16)],
        compiler_params=pltpu.CompilerParams(dimension_semantics=("parallel",)),
        cost_estimate=pl.CostEstimate(
            flops=2 * N * HW * 9 * C * C, transcendentals=0,
            bytes_accessed=(y.size + r.size + wr.size) * 2 + 2 * C * 4
            + N * HW * C * jnp.dtype(out_dtype).itemsize),
    )(y, wr, scale, bias, r)
    return out.reshape(N, H, W, C)


# ----------------------------------------------------------------------------
# Kernel 3: fused matmul + BN (+ReLU), M x Cout tiled, bf16 operands.
#           Used for the stride-2 conv1 (light im2col) and the 1x1 downsample.
# ----------------------------------------------------------------------------

def _make_matmul_bn_kernel(relu):
    def kernel(x_ref, w_ref, s_ref, b_ref, o_ref):
        acc = jnp.dot(x_ref[...], w_ref[...], preferred_element_type=jnp.float32)
        y = acc * s_ref[...] + b_ref[...]
        if relu:
            y = jnp.maximum(y, 0.0)
        o_ref[...] = y.astype(o_ref.dtype)
    return kernel


def fused_matmul_bn(x2d, w2d, scale, bias, relu=False, out_dtype=jnp.float32):
    """y = act((x @ w) * scale + bias); bf16 operands, f32 accumulation.

    M and Cout are zero-padded to multiples of 128 so every tile is pipelined
    and lane-dense (no giant single block, no masked partial stores)."""
    M, K = x2d.shape
    Cout = w2d.shape[1]
    Mp, Cp = _round_up(M, 128), _round_up(Cout, 128)

    xb = x2d.astype(jnp.bfloat16)
    wb = w2d.astype(jnp.bfloat16)
    sb = scale.astype(jnp.float32)
    bb = bias.astype(jnp.float32)
    if Mp != M:
        xb = jnp.pad(xb, ((0, Mp - M), (0, 0)))
    if Cp != Cout:
        wb = jnp.pad(wb, ((0, 0), (0, Cp - Cout)))
        sb = jnp.pad(sb, ((0, 0), (0, Cp - Cout)))
        bb = jnp.pad(bb, ((0, 0), (0, Cp - Cout)))

    tm = 512 if Mp % 512 == 0 else (256 if Mp % 256 == 0 else 128)
    tn = 256 if Cp % 256 == 0 else 128
    grid = (Mp // tm, Cp // tn)

    out = pl.pallas_call(
        _make_matmul_bn_kernel(relu),
        out_shape=jax.ShapeDtypeStruct((Mp, Cp), out_dtype),
        grid=grid,
        in_specs=[
            pl.BlockSpec((tm, K), lambda i, j: (i, 0)),
            pl.BlockSpec((K, tn), lambda i, j: (0, j)),
            pl.BlockSpec((1, tn), lambda i, j: (0, j)),
            pl.BlockSpec((1, tn), lambda i, j: (0, j)),
        ],
        out_specs=pl.BlockSpec((tm, tn), lambda i, j: (i, j)),
        compiler_params=pltpu.CompilerParams(
            dimension_semantics=("parallel", "parallel")),
        cost_estimate=pl.CostEstimate(
            flops=2 * Mp * K * Cp, transcendentals=0,
            bytes_accessed=(Mp * K + K * Cp) * 2 + 2 * Cp * 4
            + Mp * Cp * jnp.dtype(out_dtype).itemsize),
    )(xb, wb, sb, bb)
    if Mp != M or Cp != Cout:
        out = out[:M, :Cout]
    return out


# ----------------------------------------------------------------------------
# Glue: light bf16 im2col (only for the stride-2 conv1 of downsample blocks)
# ----------------------------------------------------------------------------

def _extract_patches(x, kh, kw, stride, pad):
    """x: (N,H,W,C) bf16 -> (N*Ho*Wo, kh*kw*C) bf16."""
    N, H, W, C = x.shape
    xp = jnp.pad(x, ((0, 0), (pad, pad), (pad, pad), (0, 0)))
    Ho = (H + 2 * pad - kh) // stride + 1
    Wo = (W + 2 * pad - kw) // stride + 1
    cols = []
    for dy in range(kh):
        for dx in range(kw):
            cols.append(xp[:, dy:dy + stride * (Ho - 1) + 1:stride,
                           dx:dx + stride * (Wo - 1) + 1:stride, :])
    patches = jnp.stack(cols, axis=3)                      # (N,Ho,Wo,kh*kw,C)
    return patches.reshape(N * Ho * Wo, kh * kw * C), (N, Ho, Wo)


# ----------------------------------------------------------------------------
# BasicBlock forward (NCHW in / NCHW out, matching the PyTorch module)
# ----------------------------------------------------------------------------

def basic_block_forward(x_nchw, p, out_dtype=jnp.float32):
    # Cast to bf16 ONCE, before any wrapper-side reshape/pad/slice.
    # NOTE: residual path therefore carries bf16 precision (vs f32 in PyTorch).
    x = jnp.transpose(x_nchw, (0, 2, 3, 1)).astype(jnp.bfloat16)   # NHWC
    if p['down'] is None:
        assert p['stride'] == 1
        y = fused_basic_block_s1(x, p['conv1'], p['conv2'], out_dtype=out_dtype)
    else:
        stride = p['stride']
        cin = x.shape[-1]
        cout = p['conv1']['w'].shape[-1]
        # conv1: 3x3 / stride + bn1 + relu  (bf16 im2col + fused matmul, bf16 out)
        patches, (N, Ho, Wo) = _extract_patches(x, 3, 3, stride, 1)
        y1 = fused_matmul_bn(patches, p['conv1']['w'].reshape(9 * cin, cout),
                             p['conv1']['s'], p['conv1']['b'], relu=True,
                             out_dtype=jnp.bfloat16)
        y1 = y1.reshape(N, Ho, Wo, cout)
        # downsample: 1x1 / stride conv + bn (pure subsample, bf16 out)
        xd = x[:, ::stride, ::stride, :].reshape(N * Ho * Wo, cin)
        idn = fused_matmul_bn(xd, p['down']['w'].reshape(cin, cout),
                              p['down']['s'], p['down']['b'], relu=False,
                              out_dtype=jnp.bfloat16)
        idn = idn.reshape(N, Ho, Wo, cout)
        # conv2 + bn2 + residual + relu (fused tap-accumulation kernel)
        y = conv3x3_s1_bn_add_relu(y1, p['conv2']['w'], p['conv2']['s'],
                                   p['conv2']['b'], idn, out_dtype=out_dtype)
    return jnp.transpose(y, (0, 3, 1, 2))                          # NCHW


# ----------------------------------------------------------------------------
# Parameter construction (BN folded to inference-form scale/bias)
# ----------------------------------------------------------------------------

def _bn_affine(key, c, eps=1e-5):
    k1, k2, k3, k4 = jax.random.split(key, 4)
    gamma = 1.0 + 0.1 * jax.random.normal(k1, (c,), jnp.float32)
    beta = 0.1 * jax.random.normal(k2, (c,), jnp.float32)
    mean = 0.1 * jax.random.normal(k3, (c,), jnp.float32)
    var = 1.0 + jnp.abs(0.1 * jax.random.normal(k4, (c,), jnp.float32))
    s = gamma * jax.lax.rsqrt(var + eps)
    b = beta - mean * s
    return s.reshape(1, c), b.reshape(1, c)


def _conv_w(key, kh, kw, cin, cout):
    return jax.random.normal(key, (kh, kw, cin, cout), jnp.float32) / jnp.sqrt(kh * kw * cin)


def init_basic_block(key, cin, cout, stride):
    ks = jax.random.split(key, 6)
    s1, b1 = _bn_affine(ks[0], cout)
    s2, b2 = _bn_affine(ks[1], cout)
    p = {'stride': stride,
         'conv1': {'w': _conv_w(ks[2], 3, 3, cin, cout), 's': s1, 'b': b1},
         'conv2': {'w': _conv_w(ks[3], 3, 3, cout, cout), 's': s2, 'b': b2}}
    if stride != 1 or cin != cout:
        sd, bd = _bn_affine(ks[4], cout)
        p['down'] = {'w': _conv_w(ks[5], 1, 1, cin, cout), 's': sd, 'b': bd}
    else:
        p['down'] = None
    return p


# ----------------------------------------------------------------------------
# Pure-JAX reference (f32, HIGHEST precision)
# ----------------------------------------------------------------------------

def _conv_ref(x_nhwc, w_hwio, stride, pad):
    return jax.lax.conv_general_dilated(
        x_nhwc, w_hwio, window_strides=(stride, stride),
        padding=((pad, pad), (pad, pad)),
        dimension_numbers=('NHWC', 'HWIO', 'NHWC'),
        precision=jax.lax.Precision.HIGHEST)


def basic_block_reference(x_nchw, p):
    x = jnp.transpose(x_nchw, (0, 2, 3, 1)).astype(jnp.float32)
    if p['down'] is not None:
        idn = _conv_ref(x, p['down']['w'], p['stride'], 0) * p['down']['s'] + p['down']['b']
    else:
        idn = x
    y = jnp.maximum(_conv_ref(x, p['conv1']['w'], p['stride'], 1)
                    * p['conv1']['s'] + p['conv1']['b'], 0.0)
    y = _conv_ref(y, p['conv2']['w'], 1, 1) * p['conv2']['s'] + p['conv2']['b'] + idn
    return jnp.transpose(jnp.maximum(y, 0.0), (0, 3, 1, 2))


# ----------------------------------------------------------------------------
# main
# ----------------------------------------------------------------------------

if __name__ == "__main__":
    key = jax.random.PRNGKey(0)
    kx, ka, kb = jax.random.split(key, 3)

    N, Cin, H, W = 2, 4, 16, 16
    x = jax.random.normal(kx, (N, Cin, H, W), jnp.float32)

    # Block A: stride=1, no downsample (fully fused single pallas_call).
    blkA = init_basic_block(ka, Cin, Cin, stride=1)
    # Block B: stride=2, channel change, 1x1-conv downsample path.
    blkB = init_basic_block(kb, Cin, 8, stride=2)

    # Block A's output feeds block B, so keep it bf16 (no f32 HBM writeback);
    # the final block emits f32 like the PyTorch module.
    fwd = jax.jit(lambda xx: basic_block_forward(
        basic_block_forward(xx, blkA, out_dtype=jnp.bfloat16), blkB))
    out = fwd(x)
    jax.block_until_ready(out)

    ref = basic_block_reference(basic_block_reference(x, blkA), blkB)
    assert out.shape == (N, 8, H // 2, W // 2)
    assert bool(jnp.all(jnp.isfinite(out)))
    assert bool(jnp.allclose(out, ref, atol=1e-1, rtol=1e-1)), \
        float(jnp.max(jnp.abs(out - ref)))
    print("KERNEL_OK")
</pallas_src>

<mosaic_0001>
module attributes {stable_mosaic.version = 11 : i64} {
  func.func @kernel(%arg0: i32, %arg1: memref<1x256x4xbf16, #tpu.memory_space<vmem>>, %arg2: memref<9x4x4xbf16, #tpu.memory_space<vmem>>, %arg3: memref<1x4xf32, #tpu.memory_space<vmem>>, %arg4: memref<1x4xf32, #tpu.memory_space<vmem>>, %arg5: memref<9x4x4xbf16, #tpu.memory_space<vmem>>, %arg6: memref<1x4xf32, #tpu.memory_space<vmem>>, %arg7: memref<1x4xf32, #tpu.memory_space<vmem>>, %arg8: memref<1x256x4xbf16, #tpu.memory_space<vmem>>, %arg9: memref<320x4xbf16, #tpu.memory_space<vmem>>, %arg10: memref<320x4xbf16, #tpu.memory_space<vmem>>) attributes {dimension_semantics = [#tpu.dimension_semantics<parallel>], iteration_bounds = array<i64: 2>, scalar_prefetch = 0 : i64, scratch_operands = 2 : i64, tpu.core_type = #tpu.core_type<tc>, window_params = [{transform_indices = @transform_0, window_bounds = array<i64: 1, 256, 4>}, {pipeline_mode = #tpu.pipeline_mode<synchronous>, transform_indices = @transform_1, window_bounds = array<i64: 9, 4, 4>}, {pipeline_mode = #tpu.pipeline_mode<synchronous>, transform_indices = @transform_2, window_bounds = array<i64: 1, 4>}, {pipeline_mode = #tpu.pipeline_mode<synchronous>, transform_indices = @transform_3, window_bounds = array<i64: 1, 4>}, {pipeline_mode = #tpu.pipeline_mode<synchronous>, transform_indices = @transform_4, window_bounds = array<i64: 9, 4, 4>}, {pipeline_mode = #tpu.pipeline_mode<synchronous>, transform_indices = @transform_5, window_bounds = array<i64: 1, 4>}, {pipeline_mode = #tpu.pipeline_mode<synchronous>, transform_indices = @transform_6, window_bounds = array<i64: 1, 4>}, {transform_indices = @transform_7, window_bounds = array<i64: 1, 256, 4>}]} {
    %c0_i32 = arith.constant 0 : i32
    %0 = arith.cmpi eq, %arg0, %c0_i32 : i32
    %1 = arith.extui %0 : i1 to i32
    %c0_i32_0 = arith.constant 0 : i32
    %2 = arith.cmpi ne, %1, %c0_i32_0 : i32
    scf.if %2 {
      %cst_117 = arith.constant 0.000000e+00 : bf16
      %173 = vector.broadcast %cst_117 : bf16 to vector<32x4xbf16>
      %c0_118 = arith.constant 0 : index
      %c0_119 = arith.constant 0 : index
      %174 = vector.load %arg9[%c0_118, %c0_119] : memref<320x4xbf16, #tpu.memory_space<vmem>>, vector<32x4xbf16>
      tpu.vector_store %arg9[%c0_118, %c0_119], %173 {strides = array<i32>} : memref<320x4xbf16, #tpu.memory_space<vmem>>, vector<32x4xbf16>,
      %c288 = arith.constant 288 : index
      %c0_120 = arith.constant 0 : index
      %175 = vector.load %arg9[%c288, %c0_120] : memref<320x4xbf16, #tpu.memory_space<vmem>>, vector<32x4xbf16>
      tpu.vector_store %arg9[%c288, %c0_120], %173 {strides = array<i32>} : memref<320x4xbf16, #tpu.memory_space<vmem>>, vector<32x4xbf16>,
      %c0_121 = arith.constant 0 : index
      %c0_122 = arith.constant 0 : index
      %176 = vector.load %arg10[%c0_121, %c0_122] : memref<320x4xbf16, #tpu.memory_space<vmem>>, vector<32x4xbf16>
      tpu.vector_store %arg10[%c0_121, %c0_122], %173 {strides = array<i32>} : memref<320x4xbf16, #tpu.memory_space<vmem>>, vector<32x4xbf16>,
      %c288_123 = arith.constant 288 : index
      %c0_124 = arith.constant 0 : index
      %177 = vector.load %arg10[%c288_123, %c0_124] : memref<320x4xbf16, #tpu.memory_space<vmem>>, vector<32x4xbf16>
      tpu.vector_store %arg10[%c288_123, %c0_124], %173 {strides = array<i32>} : memref<320x4xbf16, #tpu.memory_space<vmem>>, vector<32x4xbf16>,
    } else {
    }
    %3 = tpu.iota {dimensions = array<i32: 0>} : vector<256x1xi32>
    %c16_i32 = arith.constant 16 : i32
    %c0_i32_1 = arith.constant 0 : i32
    %4 = arith.cmpi eq, %c16_i32, %c0_i32_1 : i32
    %c1_i32 = arith.constant 1 : i32
    %5 = arith.select %4, %c1_i32, %c16_i32 : i32
    %6 = vector.broadcast %5 : i32 to vector<256x1xi32>
    %7 = arith.remsi %3, %6 : vector<256x1xi32>
    %c0_i32_2 = arith.constant 0 : i32
    %8 = vector.broadcast %c0_i32_2 : i32 to vector<256x1xi32>
    %9 = arith.cmpi ne, %7, %8 : vector<256x1xi32>
    %c0_i32_3 = arith.constant 0 : i32
    %10 = vector.broadcast %c0_i32_3 : i32 to vector<256x1xi32>
    %11 = arith.cmpi slt, %7, %10 : vector<256x1xi32>
    %c0_i32_4 = arith.constant 0 : i32
    %12 = arith.cmpi slt, %5, %c0_i32_4 : i32
    %13 = vector.broadcast %12 : i1 to vector<256x1xi1>
    %14 = vector.broadcast %13 : vector<256x1xi1> to vector<256x1xi1>
    %15 = arith.xori %11, %14 : vector<256x1xi1>
    %16 = arith.andi %15, %9 : vector<256x1xi1>
    %17 = vector.broadcast %5 : i32 to vector<256x1xi32>
    %18 = arith.addi %7, %17 : vector<256x1xi32>
    %19 = arith.select %16, %18, %7 : vector<256x1xi1>, vector<256x1xi32>
    %c0_i32_5 = arith.constant 0 : i32
    %20 = vector.broadcast %c0_i32_5 : i32 to vector<256x1xi32>
    %21 = arith.cmpi ne, %19, %20 : vector<256x1xi32>
    %22 = arith.extui %21 : vector<256x1xi1> to vector<256x1xi32>
    %23 = arith.sitofp %22 : vector<256x1xi32> to vector<256x1xf32>
    %24 = arith.truncf %23 : vector<256x1xf32> to vector<256x1xbf16>
    %c15_i32 = arith.constant 15 : i32
    %25 = vector.broadcast %c15_i32 : i32 to vector<256x1xi32>
    %26 = arith.cmpi ne, %19, %25 : vector<256x1xi32>
    %27 = arith.extui %26 : vector<256x1xi1> to vector<256x1xi32>
    %28 = arith.sitofp %27 : vector<256x1xi32> to vector<256x1xf32>
    %29 = arith.truncf %28 : vector<256x1xf32> to vector<256x1xbf16>
    %c0 = arith.constant 0 : index
    %c0_6 = arith.constant 0 : index
    %c0_7 = arith.constant 0 : index
    %30 = vector.load %arg1[%c0, %c0_6, %c0_7] : memref<1x256x4xbf16, #tpu.memory_space<vmem>>, vector<1x256x4xbf16>
    %31 = vector.shape_cast %30 : vector<1x256x4xbf16> to vector<256x4xbf16>
    %c32 = arith.constant 32 : index
    %c0_8 = arith.constant 0 : index
    %32 = vector.load %arg9[%c32, %c0_8] : memref<320x4xbf16, #tpu.memory_space<vmem>>, vector<256x4xbf16>
    tpu.vector_store %arg9[%c32, %c0_8], %31 {strides = array<i32>} : memref<320x4xbf16, #tpu.memory_space<vmem>>, vector<256x4xbf16>,
    %cst = arith.constant 0.000000e+00 : f32
    %33 = vector.broadcast %cst : f32 to vector<256x4xf32>
    %c15 = arith.constant 15 : index
    %c0_9 = arith.constant 0 : index
    %34 = vector.load %arg9[%c15, %c0_9] : memref<320x4xbf16, #tpu.memory_space<vmem>>, vector<256x4xbf16>
    %35 = vector.broadcast %24 : vector<256x1xbf16> to vector<256x4xbf16>
    %36 = arith.mulf %34, %35 : vector<256x4xbf16>
    %c0_10 = arith.constant 0 : index
    %c0_11 = arith.constant 0 : index
    %c0_12 = arith.constant 0 : index
    %37 = vector.load %arg2[%c0_10, %c0_11, %c0_12] : memref<9x4x4xbf16, #tpu.memory_space<vmem>>, vector<1x4x4xbf16>
    %38 = vector.shape_cast %37 : vector<1x4x4xbf16> to vector<4x4xbf16>
    %cst_13 = arith.constant dense<0.000000e+00> : vector<256x4xf32>
    %39 = tpu.matmul %36, %38, %cst_13 {dimension_numbers = #tpu.dot_dimension_numbers<[1], [0], [0], [1], [0, 0, 1, 1], [], []>} : vector<256x4xbf16>, vector<4x4xbf16>, vector<256x4xf32> -> vector<256x4xf32>
    %40 = arith.addf %33, %39 : vector<256x4xf32>
    %c16 = arith.constant 16 : index
    %c0_14 = arith.constant 0 : index
    %41 = vector.load %arg9[%c16, %c0_14] : memref<320x4xbf16, #tpu.memory_space<vmem>>, vector<256x4xbf16>
    %c1 = arith.constant 1 : index
    %c0_15 = arith.constant 0 : index
    %c0_16 = arith.constant 0 : index
    %42 = vector.load %arg2[%c1, %c0_15, %c0_16] : memref<9x4x4xbf16, #tpu.memory_space<vmem>>, vector<1x4x4xbf16>
    %43 = vector.shape_cast %42 : vector<1x4x4xbf16> to vector<4x4xbf16>
    %cst_17 = arith.constant dense<0.000000e+00> : vector<256x4xf32>
    %44 = tpu.matmul %41, %43, %cst_17 {dimension_numbers = #tpu.dot_dimension_numbers<[1], [0], [0], [1], [0, 0, 1, 1], [], []>} : vector<256x4xbf16>, vector<4x4xbf16>, vector<256x4xf32> -> vector<256x4xf32>
    %45 = arith.addf %40, %44 : vector<256x4xf32>
    %c17 = arith.constant 17 : index
    %c0_18 = arith.constant 0 : index
    %46 = vector.load %arg9[%c17, %c0_18] : memref<320x4xbf16, #tpu.memory_space<vmem>>, vector<256x4xbf16>
    %47 = vector.broadcast %29 : vector<256x1xbf16> to vector<256x4xbf16>
    %48 = arith.mulf %46, %47 : vector<256x4xbf16>
    %c2 = arith.constant 2 : index
    %c0_19 = arith.constant 0 : index
    %c0_20 = arith.constant 0 : index
    %49 = vector.load %arg2[%c2, %c0_19, %c0_20] : memref<9x4x4xbf16, #tpu.memory_space<vmem>>, vector<1x4x4xbf16>
    %50 = vector.shape_cast %49 : vector<1x4x4xbf16> to vector<4x4xbf16>
    %cst_21 = arith.constant dense<0.000000e+00> : vector<256x4xf32>
    %51 = tpu.matmul %48, %50, %cst_21 {dimension_numbers = #tpu.dot_dimension_numbers<[1], [0], [0], [1], [0, 0, 1, 1], [], []>} : vector<256x4xbf16>, vector<4x4xbf16>, vector<256x4xf32> -> vector<256x4xf32>
    %52 = arith.addf %45, %51 : vector<256x4xf32>
    %c31 = arith.constant 31 : index
    %c0_22 = arith.constant 0 : index
    %53 = vector.load %arg9[%c31, %c0_22] : memref<320x4xbf16, #tpu.memory_space<vmem>>, vector<256x4xbf16>
    %54 = vector.broadcast %24 : vector<256x1xbf16> to vector<256x4xbf16>
    %55 = arith.mulf %53, %54 : vector<256x4xbf16>
    %c3 = arith.constant 3 : index
    %c0_23 = arith.constant 0 : index
    %c0_24 = arith.constant 0 : index
    %56 = vector.load %arg2[%c3, %c0_23, %c0_24] : memref<9x4x4xbf16, #tpu.memory_space<vmem>>, vector<1x4x4xbf16>
    %57 = vector.shape_cast %56 : vector<1x4x4xbf16> to vector<4x4xbf16>
    %cst_25 = arith.constant dense<0.000000e+00> : vector<256x4xf32>
    %58 = tpu.matmul %55, %57, %cst_25 {dimension_numbers = #tpu.dot_dimension_numbers<[1], [0], [0], [1], [0, 0, 1, 1], [], []>} : vector<256x4xbf16>, vector<4x4xbf16>, vector<256x4xf32> -> vector<256x4xf32>
    %59 = arith.addf %52, %58 : vector<256x4xf32>
    %c32_26 = arith.constant 32 : index
    %c0_27 = arith.constant 0 : index
    %60 = vector.load %arg9[%c32_26, %c0_27] : memref<320x4xbf16, #tpu.memory_space<vmem>>, vector<256x4xbf16>
    %c4 = arith.constant 4 : index
    %c0_28 = arith.constant 0 : index
    %c0_29 = arith.constant 0 : index
    %61 = vector.load %arg2[%c4, %c0_28, %c0_29] : memref<9x4x4xbf16, #tpu.memory_space<vmem>>, vector<1x4x4xbf16>
    %62 = vector.shape_cast %61 : vector<1x4x4xbf16> to vector<4x4xbf16>
    %cst_30 = arith.constant dense<0.000000e+00> : vector<256x4xf32>
    %63 = tpu.matmul %60, %62, %cst_30 {dimension_numbers = #tpu.dot_dimension_numbers<[1], [0], [0], [1], [0, 0, 1, 1], [], []>} : vector<256x4xbf16>, vector<4x4xbf16>, vector<256x4xf32> -> vector<256x4xf32>
    %64 = arith.addf %59, %63 : vector<256x4xf32>
    %c33 = arith.constant 33 : index
    %c0_31 = arith.constant 0 : index
    %65 = vector.load %arg9[%c33, %c0_31] : memref<320x4xbf16, #tpu.memory_space<vmem>>, vector<256x4xbf16>
    %66 = vector.broadcast %29 : vector<256x1xbf16> to vector<256x4xbf16>
    %67 = arith.mulf %65, %66 : vector<256x4xbf16>
    %c5 = arith.constant 5 : index
    %c0_32 = arith.constant 0 : index
    %c0_33 = arith.constant 0 : index
    %68 = vector.load %arg2[%c5, %c0_32, %c0_33] : memref<9x4x4xbf16, #tpu.memory_space<vmem>>, vector<1x4x4xbf16>
    %69 = vector.shape_cast %68 : vector<1x4x4xbf16> to vector<4x4xbf16>
    %cst_34 = arith.constant dense<0.000000e+00> : vector<256x4xf32>
    %70 = tpu.matmul %67, %69, %cst_34 {dimension_numbers = #tpu.dot_dimension_numbers<[1], [0], [0], [1], [0, 0, 1, 1], [], []>} : vector<256x4xbf16>, vector<4x4xbf16>, vector<256x4xf32> -> vector<256x4xf32>
    %71 = arith.addf %64, %70 : vector<256x4xf32>
    %c47 = arith.constant 47 : index
    %c0_35 = arith.constant 0 : index
    %72 = vector.load %arg9[%c47, %c0_35] : memref<320x4xbf16, #tpu.memory_space<vmem>>, vector<256x4xbf16>
    %73 = vector.broadcast %24 : vector<256x1xbf16> to vector<256x4xbf16>
    %74 = arith.mulf %72, %73 : vector<256x4xbf16>
    %c6 = arith.constant 6 : index
    %c0_36 = arith.constant 0 : index
    %c0_37 = arith.constant 0 : index
    %75 = vector.load %arg2[%c6, %c0_36, %c0_37] : memref<9x4x4xbf16, #tpu.memory_space<vmem>>, vector<1x4x4xbf16>
    %76 = vector.shape_cast %75 : vector<1x4x4xbf16> to vector<4x4xbf16>
    %cst_38 = arith.constant dense<0.000000e+00> : vector<256x4xf32>
    %77 = tpu.matmul %74, %76, %cst_38 {dimension_numbers = #tpu.dot_dimension_numbers<[1], [0], [0], [1], [0, 0, 1, 1], [], []>} : vector<256x4xbf16>, vector<4x4xbf16>, vector<256x4xf32> -> vector<256x4xf32>
    %78 = arith.addf %71, %77 : vector<256x4xf32>
    %c48 = arith.constant 48 : index
    %c0_39 = arith.constant 0 : index
    %79 = vector.load %arg9[%c48, %c0_39] : memref<320x4xbf16, #tpu.memory_space<vmem>>, vector<256x4xbf16>
    %c7 = arith.constant 7 : index
    %c0_40 = arith.constant 0 : index
    %c0_41 = arith.constant 0 : index
    %80 = vector.load %arg2[%c7, %c0_40, %c0_41] : memref<9x4x4xbf16, #tpu.memory_space<vmem>>, vector<1x4x4xbf16>
    %81 = vector.shape_cast %80 : vector<1x4x4xbf16> to vector<4x4xbf16>
    %cst_42 = arith.constant dense<0.000000e+00> : vector<256x4xf32>
    %82 = tpu.matmul %79, %81, %cst_42 {dimension_numbers = #tpu.dot_dimension_numbers<[1], [0], [0], [1], [0, 0, 1, 1], [], []>} : vector<256x4xbf16>, vector<4x4xbf16>, vector<256x4xf32> -> vector<256x4xf32>
    %83 = arith.addf %78, %82 : vector<256x4xf32>
    %c49 = arith.constant 49 : index
    %c0_43 = arith.constant 0 : index
    %84 = vector.load %arg9[%c49, %c0_43] : memref<320x4xbf16, #tpu.memory_space<vmem>>, vector<256x4xbf16>
    %85 = vector.broadcast %29 : vector<256x1xbf16> to vector<256x4xbf16>
    %86 = arith.mulf %84, %85 : vector<256x4xbf16>
    %c8 = arith.constant 8 : index
    %c0_44 = arith.constant 0 : index
    %c0_45 = arith.constant 0 : index
    %87 = vector.load %arg2[%c8, %c0_44, %c0_45] : memref<9x4x4xbf16, #tpu.memory_space<vmem>>, vector<1x4x4xbf16>
    %88 = vector.shape_cast %87 : vector<1x4x4xbf16> to vector<4x4xbf16>
    %cst_46 = arith.constant dense<0.000000e+00> : vector<256x4xf32>
    %89 = tpu.matmul %86, %88, %cst_46 {dimension_numbers = #tpu.dot_dimension_numbers<[1], [0], [0], [1], [0, 0, 1, 1], [], []>} : vector<256x4xbf16>, vector<4x4xbf16>, vector<256x4xf32> -> vector<256x4xf32>
    %90 = arith.addf %83, %89 : vector<256x4xf32>
    %c0_47 = arith.constant 0 : index
    %c0_48 = arith.constant 0 : index
    %91 = vector.load %arg3[%c0_47, %c0_48] : memref<1x4xf32, #tpu.memory_space<vmem>>, vector<1x4xf32>
    %92 = vector.broadcast %91 : vector<1x4xf32> to vector<256x4xf32>
    %93 = arith.mulf %90, %92 : vector<256x4xf32>
    %c0_49 = arith.constant 0 : index
    %c0_50 = arith.constant 0 : index
    %94 = vector.load %arg4[%c0_49, %c0_50] : memref<1x4xf32, #tpu.memory_space<vmem>>, vector<1x4xf32>
    %95 = vector.broadcast %94 : vector<1x4xf32> to vector<256x4xf32>
    %96 = arith.addf %93, %95 : vector<256x4xf32>
    %cst_51 = arith.constant 0.000000e+00 : f32
    %97 = vector.broadcast %cst_51 : f32 to vector<256x4xf32>
    %98 = arith.maximumf %96, %97 : vector<256x4xf32>
    %99 = arith.truncf %98 : vector<256x4xf32> to vector<256x4xbf16>
    %c32_52 = arith.constant 32 : index
    %c0_53 = arith.constant 0 : index
    %100 = vector.load %arg10[%c32_52, %c0_53] : memref<320x4xbf16, #tpu.memory_space<vmem>>, vector<256x4xbf16>
    tpu.vector_store %arg10[%c32_52, %c0_53], %99 {strides = array<i32>} : memref<320x4xbf16, #tpu.memory_space<vmem>>, vector<256x4xbf16>,
    %cst_54 = arith.constant 0.000000e+00 : f32
    %101 = vector.broadcast %cst_54 : f32 to vector<256x4xf32>
    %c15_55 = arith.constant 15 : index
    %c0_56 = arith.constant 0 : index
    %102 = vector.load %arg10[%c15_55, %c0_56] : memref<320x4xbf16, #tpu.memory_space<vmem>>, vector<256x4xbf16>
    %103 = vector.broadcast %24 : vector<256x1xbf16> to vector<256x4xbf16>
    %104 = arith.mulf %102, %103 : vector<256x4xbf16>
    %c0_57 = arith.constant 0 : index
    %c0_58 = arith.constant 0 : index
    %c0_59 = arith.constant 0 : index
    %105 = vector.load %arg5[%c0_57, %c0_58, %c0_59] : memref<9x4x4xbf16, #tpu.memory_space<vmem>>, vector<1x4x4xbf16>
    %106 = vector.shape_cast %105 : vector<1x4x4xbf16> to vector<4x4xbf16>
    %cst_60 = arith.constant dense<0.000000e+00> : vector<256x4xf32>
    %107 = tpu.matmul %104, %106, %cst_60 {dimension_numbers = #tpu.dot_dimension_numbers<[1], [0], [0], [1], [0, 0, 1, 1], [], []>} : vector<256x4xbf16>, vector<4x4xbf16>, vector<256x4xf32> -> vector<256x4xf32>
    %108 = arith.addf %101, %107 : vector<256x4xf32>
    %c16_61 = arith.constant 16 : index
    %c0_62 = arith.constant 0 : index
    %109 = vector.load %arg10[%c16_61, %c0_62] : memref<320x4xbf16, #tpu.memory_space<vmem>>, vector<256x4xbf16>
    %c1_63 = arith.constant 1 : index
    %c0_64 = arith.constant 0 : index
    %c0_65 = arith.constant 0 : index
    %110 = vector.load %arg5[%c1_63, %c0_64, %c0_65] : memref<9x4x4xbf16, #tpu.memory_space<vmem>>, vector<1x4x4xbf16>
    %111 = vector.shape_cast %110 : vector<1x4x4xbf16> to vector<4x4xbf16>
    %cst_66 = arith.constant dense<0.000000e+00> : vector<256x4xf32>
    %112 = tpu.matmul %109, %111, %cst_66 {dimension_numbers = #tpu.dot_dimension_numbers<[1], [0], [0], [1], [0, 0, 1, 1], [], []>} : vector<256x4xbf16>, vector<4x4xbf16>, vector<256x4xf32> -> vector<256x4xf32>
    %113 = arith.addf %108, %112 : vector<256x4xf32>
    %c17_67 = arith.constant 17 : index
    %c0_68 = arith.constant 0 : index
    %114 = vector.load %arg10[%c17_67, %c0_68] : memref<320x4xbf16, #tpu.memory_space<vmem>>, vector<256x4xbf16>
    %115 = vector.broadcast %29 : vector<256x1xbf16> to vector<256x4xbf16>
    %116 = arith.mulf %114, %115 : vector<256x4xbf16>
    %c2_69 = arith.constant 2 : index
    %c0_70 = arith.constant 0 : index
    %c0_71 = arith.constant 0 : index
    %117 = vector.load %arg5[%c2_69, %c0_70, %c0_71] : memref<9x4x4xbf16, #tpu.memory_space<vmem>>, vector<1x4x4xbf16>
    %118 = vector.shape_cast %117 : vector<1x4x4xbf16> to vector<4x4xbf16>
    %cst_72 = arith.constant dense<0.000000e+00> : vector<256x4xf32>
    %119 = tpu.matmul %116, %118, %cst_72 {dimension_numbers = #tpu.dot_dimension_numbers<[1], [0], [0], [1], [0, 0, 1, 1], [], []>} : vector<256x4xbf16>, vector<4x4xbf16>, vector<256x4xf32> -> vector<256x4xf32>
    %120 = arith.addf %113, %119 : vector<256x4xf32>
    %c31_73 = arith.constant 31 : index
    %c0_74 = arith.constant 0 : index
    %121 = vector.load %arg10[%c31_73, %c0_74] : memref<320x4xbf16, #tpu.memory_space<vmem>>, vector<256x4xbf16>
    %122 = vector.broadcast %24 : vector<256x1xbf16> to vector<256x4xbf16>
    %123 = arith.mulf %121, %122 : vector<256x4xbf16>
    %c3_75 = arith.constant 3 : index
    %c0_76 = arith.constant 0 : index
    %c0_77 = arith.constant 0 : index
    %124 = vector.load %arg5[%c3_75, %c0_76, %c0_77] : memref<9x4x4xbf16, #tpu.memory_space<vmem>>, vector<1x4x4xbf16>
    %125 = vector.shape_cast %124 : vector<1x4x4xbf16> to vector<4x4xbf16>
    %cst_78 = arith.constant dense<0.000000e+00> : vector<256x4xf32>
    %126 = tpu.matmul %123, %125, %cst_78 {dimension_numbers = #tpu.dot_dimension_numbers<[1], [0], [0], [1], [0, 0, 1, 1], [], []>} : vector<256x4xbf16>, vector<4x4xbf16>, vector<256x4xf32> -> vector<256x4xf32>
    %127 = arith.addf %120, %126 : vector<256x4xf32>
    %c32_79 = arith.constant 32 : index
    %c0_80 = arith.constant 0 : index
    %128 = vector.load %arg10[%c32_79, %c0_80] : memref<320x4xbf16, #tpu.memory_space<vmem>>, vector<256x4xbf16>
    %c4_81 = arith.constant 4 : index
    %c0_82 = arith.constant 0 : index
    %c0_83 = arith.constant 0 : index
    %129 = vector.load %arg5[%c4_81, %c0_82, %c0_83] : memref<9x4x4xbf16, #tpu.memory_space<vmem>>, vector<1x4x4xbf16>
    %130 = vector.shape_cast %129 : vector<1x4x4xbf16> to vector<4x4xbf16>
    %cst_84 = arith.constant dense<0.000000e+00> : vector<256x4xf32>
    %131 = tpu.matmul %128, %130, %cst_84 {dimension_numbers = #tpu.dot_dimension_numbers<[1], [0], [0], [1], [0, 0, 1, 1], [], []>} : vector<256x4xbf16>, vector<4x4xbf16>, vector<256x4xf32> -> vector<256x4xf32>
    %132 = arith.addf %127, %131 : vector<256x4xf32>
    %c33_85 = arith.constant 33 : index
    %c0_86 = arith.constant 0 : index
    %133 = vector.load %arg10[%c33_85, %c0_86] : memref<320x4xbf16, #tpu.memory_space<vmem>>, vector<256x4xbf16>
    %134 = vector.broadcast %29 : vector<256x1xbf16> to vector<256x4xbf16>
    %135 = arith.mulf %133, %134 : vector<256x4xbf16>
    %c5_87 = arith.constant 5 : index
    %c0_88 = arith.constant 0 : index
    %c0_89 = arith.constant 0 : index
    %136 = vector.load %arg5[%c5_87, %c0_88, %c0_89] : memref<9x4x4xbf16, #tpu.memory_space<vmem>>, vector<1x4x4xbf16>
    %137 = vector.shape_cast %136 : vector<1x4x4xbf16> to vector<4x4xbf16>
    %cst_90 = arith.constant dense<0.000000e+00> : vector<256x4xf32>
    %138 = tpu.matmul %135, %137, %cst_90 {dimension_numbers = #tpu.dot_dimension_numbers<[1], [0], [0], [1], [0, 0, 1, 1], [], []>} : vector<256x4xbf16>, vector<4x4xbf16>, vector<256x4xf32> -> vector<256x4xf32>
    %139 = arith.addf %132, %138 : vector<256x4xf32>
    %c47_91 = arith.constant 47 : index
    %c0_92 = arith.constant 0 : index
    %140 = vector.load %arg10[%c47_91, %c0_92] : memref<320x4xbf16, #tpu.memory_space<vmem>>, vector<256x4xbf16>
    %141 = vector.broadcast %24 : vector<256x1xbf16> to vector<256x4xbf16>
    %142 = arith.mulf %140, %141 : vector<256x4xbf16>
    %c6_93 = arith.constant 6 : index
    %c0_94 = arith.constant 0 : index
    %c0_95 = arith.constant 0 : index
    %143 = vector.load %arg5[%c6_93, %c0_94, %c0_95] : memref<9x4x4xbf16, #tpu.memory_space<vmem>>, vector<1x4x4xbf16>
    %144 = vector.shape_cast %143 : vector<1x4x4xbf16> to vector<4x4xbf16>
    %cst_96 = arith.constant dense<0.000000e+00> : vector<256x4xf32>
    %145 = tpu.matmul %142, %144, %cst_96 {dimension_numbers = #tpu.dot_dimension_numbers<[1], [0], [0], [1], [0, 0, 1, 1], [], []>} : vector<256x4xbf16>, vector<4x4xbf16>, vector<256x4xf32> -> vector<256x4xf32>
    %146 = arith.addf %139, %145 : vector<256x4xf32>
    %c48_97 = arith.constant 48 : index
    %c0_98 = arith.constant 0 : index
    %147 = vector.load %arg10[%c48_97, %c0_98] : memref<320x4xbf16, #tpu.memory_space<vmem>>, vector<256x4xbf16>
    %c7_99 = arith.constant 7 : index
    %c0_100 = arith.constant 0 : index
    %c0_101 = arith.constant 0 : index
    %148 = vector.load %arg5[%c7_99, %c0_100, %c0_101] : memref<9x4x4xbf16, #tpu.memory_space<vmem>>, vector<1x4x4xbf16>
    %149 = vector.shape_cast %148 : vector<1x4x4xbf16> to vector<4x4xbf16>
    %cst_102 = arith.constant dense<0.000000e+00> : vector<256x4xf32>
    %150 = tpu.matmul %147, %149, %cst_102 {dimension_numbers = #tpu.dot_dimension_numbers<[1], [0], [0], [1], [0, 0, 1, 1], [], []>} : vector<256x4xbf16>, vector<4x4xbf16>, vector<256x4xf32> -> vector<256x4xf32>
    %151 = arith.addf %146, %150 : vector<256x4xf32>
    %c49_103 = arith.constant 49 : index
    %c0_104 = arith.constant 0 : index
    %152 = vector.load %arg10[%c49_103, %c0_104] : memref<320x4xbf16, #tpu.memory_space<vmem>>, vector<256x4xbf16>
    %153 = vector.broadcast %29 : vector<256x1xbf16> to vector<256x4xbf16>
    %154 = arith.mulf %152, %153 : vector<256x4xbf16>
    %c8_105 = arith.constant 8 : index
    %c0_106 = arith.constant 0 : index
    %c0_107 = arith.constant 0 : index
    %155 = vector.load %arg5[%c8_105, %c0_106, %c0_107] : memref<9x4x4xbf16, #tpu.memory_space<vmem>>, vector<1x4x4xbf16>
    %156 = vector.shape_cast %155 : vector<1x4x4xbf16> to vector<4x4xbf16>
    %cst_108 = arith.constant dense<0.000000e+00> : vector<256x4xf32>
    %157 = tpu.matmul %154, %156, %cst_108 {dimension_numbers = #tpu.dot_dimension_numbers<[1], [0], [0], [1], [0, 0, 1, 1], [], []>} : vector<256x4xbf16>, vector<4x4xbf16>, vector<256x4xf32> -> vector<256x4xf32>
    %158 = arith.addf %151, %157 : vector<256x4xf32>
    %c0_109 = arith.constant 0 : index
    %c0_110 = arith.constant 0 : index
    %159 = vector.load %arg6[%c0_109, %c0_110] : memref<1x4xf32, #tpu.memory_space<vmem>>, vector<1x4xf32>
    %160 = vector.broadcast %159 : vector<1x4xf32> to vector<256x4xf32>
    %161 = arith.mulf %158, %160 : vector<256x4xf32>
    %c0_111 = arith.constant 0 : index
    %c0_112 = arith.constant 0 : index
    %162 = vector.load %arg7[%c0_111, %c0_112] : memref<1x4xf32, #tpu.memory_space<vmem>>, vector<1x4xf32>
    %163 = vector.broadcast %162 : vector<1x4xf32> to vector<256x4xf32>
    %164 = arith.addf %161, %163 : vector<256x4xf32>
    %165 = arith.extf %31 : vector<256x4xbf16> to vector<256x4xf32>
    %166 = arith.addf %164, %165 : vector<256x4xf32>
    %cst_113 = arith.constant 0.000000e+00 : f32
    %167 = vector.broadcast %cst_113 : f32 to vector<256x4xf32>
    %168 = arith.maximumf %166, %167 : vector<256x4xf32>
    %169 = arith.truncf %168 : vector<256x4xf32> to vector<256x4xbf16>
    %c0_114 = arith.constant 0 : index
    %c0_115 = arith.constant 0 : index
    %c0_116 = arith.constant 0 : index
    %170 = vector.load %arg8[%c0_114, %c0_115, %c0_116] : memref<1x256x4xbf16, #tpu.memory_space<vmem>>, vector<1x256x4xbf16>
    %171 = vector.shape_cast %170 : vector<1x256x4xbf16> to vector<256x4xbf16>
    %172 = vector.shape_cast %169 : vector<256x4xbf16> to vector<1x256x4xbf16>
    tpu.vector_store %arg8[%c0_114, %c0_115, %c0_116], %172 {strides = array<i32>} : memref<1x256x4xbf16, #tpu.memory_space<vmem>>, vector<1x256x4xbf16>,
    return
  }
  func.func @transform_0(%arg0: i32) -> (i32, i32, i32) {
    %c0_i32 = arith.constant 0 : i32
    %c0_i32_0 = arith.constant 0 : i32
    %c0_i32_1 = arith.constant 0 : i32
    return %arg0, %c0_i32, %c0_i32_0 : i32, i32, i32
  }
  func.func @transform_1(%arg0: i32) -> (i32, i32, i32) {
    %c0_i32 = arith.constant 0 : i32
    %c0_i32_0 = arith.constant 0 : i32
    %c0_i32_1 = arith.constant 0 : i32
    %c0_i32_2 = arith.constant 0 : i32
    return %c0_i32, %c0_i32_0, %c0_i32_1 : i32, i32, i32
  }
  func.func @transform_2(%arg0: i32) -> (i32, i32) {
    %c0_i32 = arith.constant 0 : i32
    %c0_i32_0 = arith.constant 0 : i32
    %c0_i32_1 = arith.constant 0 : i32
    return %c0_i32, %c0_i32_0 : i32, i32
  }
  func.func @transform_3(%arg0: i32) -> (i32, i32) {
    %c0_i32 = arith.constant 0 : i32
    %c0_i32_0 = arith.constant 0 : i32
    %c0_i32_1 = arith.constant 0 : i32
    return %c0_i32, %c0_i32_0 : i32, i32
  }
  func.func @transform_4(%arg0: i32) -> (i32, i32, i32) {
    %c0_i32 = arith.constant 0 : i32
    %c0_i32_0 = arith.constant 0 : i32
    %c0_i32_1 = arith.constant 0 : i32
    %c0_i32_2 = arith.constant 0 : i32
    return %c0_i32, %c0_i32_0, %c0_i32_1 : i32, i32, i32
  }
  func.func @transform_5(%arg0: i32) -> (i32, i32) {
    %c0_i32 = arith.constant 0 : i32
    %c0_i32_0 = arith.constant 0 : i32
    %c0_i32_1 = arith.constant 0 : i32
    return %c0_i32, %c0_i32_0 : i32, i32
  }
  func.func @transform_6(%arg0: i32) -> (i32, i32) {
    %c0_i32 = arith.constant 0 : i32
    %c0_i32_0 = arith.constant 0 : i32
    %c0_i32_1 = arith.constant 0 : i32
    return %c0_i32, %c0_i32_0 : i32, i32
  }
  func.func @transform_7(%arg0: i32) -> (i32, i32, i32) {
    %c0_i32 = arith.constant 0 : i32
    %c0_i32_0 = arith.constant 0 : i32
    %c0_i32_1 = arith.constant 0 : i32
    return %arg0, %c0_i32, %c0_i32_0 : i32, i32, i32
  }
}

module attributes {stable_mosaic.version = 11 : i64} {
  func.func @kernel(%arg0: i32, %arg1: i32, %arg2: memref<128x4xbf16, #tpu.memory_space<vmem>>, %arg3: memref<4x128xbf16, #tpu.memory_space<vmem>>, %arg4: memref<1x128xf32, #tpu.memory_space<vmem>>, %arg5: memref<1x128xf32, #tpu.memory_space<vmem>>, %arg6: memref<128x128xbf16, #tpu.memory_space<vmem>>) attributes {dimension_semantics = [#tpu.dimension_semantics<parallel>, #tpu.dimension_semantics<parallel>], iteration_bounds = array<i64: 1, 1>, scalar_prefetch = 0 : i64, scratch_operands = 0 : i64, tpu.core_type = #tpu.core_type<tc>, window_params = [{transform_indices = @transform_0, window_bounds = array<i64: 128, 4>}, {transform_indices = @transform_1, window_bounds = array<i64: 4, 128>}, {transform_indices = @transform_2, window_bounds = array<i64: 1, 128>}, {transform_indices = @transform_3, window_bounds = array<i64: 1, 128>}, {transform_indices = @transform_4, window_bounds = array<i64: 128, 128>}]} {
    %c0 = arith.constant 0 : index
    %c0_0 = arith.constant 0 : index
    %0 = vector.load %arg2[%c0, %c0_0] : memref<128x4xbf16, #tpu.memory_space<vmem>>, vector<128x4xbf16>
    %c0_1 = arith.constant 0 : index
    %c0_2 = arith.constant 0 : index
    %1 = vector.load %arg3[%c0_1, %c0_2] : memref<4x128xbf16, #tpu.memory_space<vmem>>, vector<4x128xbf16>
    %cst = arith.constant dense<0.000000e+00> : vector<128x128xf32>
    %2 = tpu.matmul %0, %1, %cst {dimension_numbers = #tpu.dot_dimension_numbers<[1], [0], [0], [1], [0, 0, 1, 1], [], []>} : vector<128x4xbf16>, vector<4x128xbf16>, vector<128x128xf32> -> vector<128x128xf32>
    %c0_3 = arith.constant 0 : index
    %c0_4 = arith.constant 0 : index
    %3 = vector.load %arg4[%c0_3, %c0_4] : memref<1x128xf32, #tpu.memory_space<vmem>>, vector<1x128xf32>
    %4 = vector.broadcast %3 : vector<1x128xf32> to vector<128x128xf32>
    %5 = arith.mulf %2, %4 : vector<128x128xf32>
    %c0_5 = arith.constant 0 : index
    %c0_6 = arith.constant 0 : index
    %6 = vector.load %arg5[%c0_5, %c0_6] : memref<1x128xf32, #tpu.memory_space<vmem>>, vector<1x128xf32>
    %7 = vector.broadcast %6 : vector<1x128xf32> to vector<128x128xf32>
    %8 = arith.addf %5, %7 : vector<128x128xf32>
    %9 = arith.truncf %8 : vector<128x128xf32> to vector<128x128xbf16>
    %c0_7 = arith.constant 0 : index
    %c0_8 = arith.constant 0 : index
    %10 = vector.load %arg6[%c0_7, %c0_8] : memref<128x128xbf16, #tpu.memory_space<vmem>>, vector<128x128xbf16>
    tpu.vector_store %arg6[%c0_7, %c0_8], %9 {strides = array<i32>} : memref<128x128xbf16, #tpu.memory_space<vmem>>, vector<128x128xbf16>,
    return
  }
  func.func @transform_0(%arg0: i32, %arg1: i32) -> (i32, i32) {
    %c0_i32 = arith.constant 0 : i32
    %c0_i32_0 = arith.constant 0 : i32
    return %arg0, %c0_i32 : i32, i32
  }
  func.func @transform_1(%arg0: i32, %arg1: i32) -> (i32, i32) {
    %c0_i32 = arith.constant 0 : i32
    %c0_i32_0 = arith.constant 0 : i32
    return %c0_i32, %arg1 : i32, i32
  }
  func.func @transform_2(%arg0: i32, %arg1: i32) -> (i32, i32) {
    %c0_i32 = arith.constant 0 : i32
    %c0_i32_0 = arith.constant 0 : i32
    return %c0_i32, %arg1 : i32, i32
  }
  func.func @transform_3(%arg0: i32, %arg1: i32) -> (i32, i32) {
    %c0_i32 = arith.constant 0 : i32
    %c0_i32_0 = arith.constant 0 : i32
    return %c0_i32, %arg1 : i32, i32
  }
  func.func @transform_4(%arg0: i32, %arg1: i32) -> (i32, i32) {
    %c0_i32 = arith.constant 0 : i32
    return %arg0, %arg1 : i32, i32
  }
}

module attributes {stable_mosaic.version = 11 : i64} {
  func.func @kernel(%arg0: i32, %arg1: i32, %arg2: memref<128x36xbf16, #tpu.memory_space<vmem>>, %arg3: memref<36x128xbf16, #tpu.memory_space<vmem>>, %arg4: memref<1x128xf32, #tpu.memory_space<vmem>>, %arg5: memref<1x128xf32, #tpu.memory_space<vmem>>, %arg6: memref<128x128xbf16, #tpu.memory_space<vmem>>) attributes {dimension_semantics = [#tpu.dimension_semantics<parallel>, #tpu.dimension_semantics<parallel>], iteration_bounds = array<i64: 1, 1>, scalar_prefetch = 0 : i64, scratch_operands = 0 : i64, tpu.core_type = #tpu.core_type<tc>, window_params = [{transform_indices = @transform_0, window_bounds = array<i64: 128, 36>}, {transform_indices = @transform_1, window_bounds = array<i64: 36, 128>}, {transform_indices = @transform_2, window_bounds = array<i64: 1, 128>}, {transform_indices = @transform_3, window_bounds = array<i64: 1, 128>}, {transform_indices = @transform_4, window_bounds = array<i64: 128, 128>}]} {
    %c0 = arith.constant 0 : index
    %c0_0 = arith.constant 0 : index
    %0 = vector.load %arg2[%c0, %c0_0] : memref<128x36xbf16, #tpu.memory_space<vmem>>, vector<128x36xbf16>
    %c0_1 = arith.constant 0 : index
    %c0_2 = arith.constant 0 : index
    %1 = vector.load %arg3[%c0_1, %c0_2] : memref<36x128xbf16, #tpu.memory_space<vmem>>, vector<36x128xbf16>
    %cst = arith.constant dense<0.000000e+00> : vector<128x128xf32>
    %2 = tpu.matmul %0, %1, %cst {dimension_numbers = #tpu.dot_dimension_numbers<[1], [0], [0], [1], [0, 0, 1, 1], [], []>} : vector<128x36xbf16>, vector<36x128xbf16>, vector<128x128xf32> -> vector<128x128xf32>
    %c0_3 = arith.constant 0 : index
    %c0_4 = arith.constant 0 : index
    %3 = vector.load %arg4[%c0_3, %c0_4] : memref<1x128xf32, #tpu.memory_space<vmem>>, vector<1x128xf32>
    %4 = vector.broadcast %3 : vector<1x128xf32> to vector<128x128xf32>
    %5 = arith.mulf %2, %4 : vector<128x128xf32>
    %c0_5 = arith.constant 0 : index
    %c0_6 = arith.constant 0 : index
    %6 = vector.load %arg5[%c0_5, %c0_6] : memref<1x128xf32, #tpu.memory_space<vmem>>, vector<1x128xf32>
    %7 = vector.broadcast %6 : vector<1x128xf32> to vector<128x128xf32>
    %8 = arith.addf %5, %7 : vector<128x128xf32>
    %cst_7 = arith.constant 0.000000e+00 : f32
    %9 = vector.broadcast %cst_7 : f32 to vector<128x128xf32>
    %10 = arith.maximumf %8, %9 : vector<128x128xf32>
    %11 = arith.truncf %10 : vector<128x128xf32> to vector<128x128xbf16>
    %c0_8 = arith.constant 0 : index
    %c0_9 = arith.constant 0 : index
    %12 = vector.load %arg6[%c0_8, %c0_9] : memref<128x128xbf16, #tpu.memory_space<vmem>>, vector<128x128xbf16>
    tpu.vector_store %arg6[%c0_8, %c0_9], %11 {strides = array<i32>} : memref<128x128xbf16, #tpu.memory_space<vmem>>, vector<128x128xbf16>,
    return
  }
  func.func @transform_0(%arg0: i32, %arg1: i32) -> (i32, i32) {
    %c0_i32 = arith.constant 0 : i32
    %c0_i32_0 = arith.constant 0 : i32
    return %arg0, %c0_i32 : i32, i32
  }
  func.func @transform_1(%arg0: i32, %arg1: i32) -> (i32, i32) {
    %c0_i32 = arith.constant 0 : i32
    %c0_i32_0 = arith.constant 0 : i32
    return %c0_i32, %arg1 : i32, i32
  }
  func.func @transform_2(%arg0: i32, %arg1: i32) -> (i32, i32) {
    %c0_i32 = arith.constant 0 : i32
    %c0_i32_0 = arith.constant 0 : i32
    return %c0_i32, %arg1 : i32, i32
  }
  func.func @transform_3(%arg0: i32, %arg1: i32) -> (i32, i32) {
    %c0_i32 = arith.constant 0 : i32
    %c0_i32_0 = arith.constant 0 : i32
    return %c0_i32, %arg1 : i32, i32
  }
  func.func @transform_4(%arg0: i32, %arg1: i32) -> (i32, i32) {
    %c0_i32 = arith.constant 0 : i32
    return %arg0, %arg1 : i32, i32
  }
}

module attributes {stable_mosaic.version = 11 : i64} {
  func.func @kernel(%arg0: i32, %arg1: memref<1x64x8xbf16, #tpu.memory_space<vmem>>, %arg2: memref<9x8x8xbf16, #tpu.memory_space<vmem>>, %arg3: memref<1x8xf32, #tpu.memory_space<vmem>>, %arg4: memref<1x8xf32, #tpu.memory_space<vmem>>, %arg5: memref<1x64x8xbf16, #tpu.memory_space<vmem>>, %arg6: memref<1x64x8xf32, #tpu.memory_space<vmem>>, %arg7: memref<96x8xbf16, #tpu.memory_space<vmem>>) attributes {dimension_semantics = [#tpu.dimension_semantics<parallel>], iteration_bounds = array<i64: 2>, scalar_prefetch = 0 : i64, scratch_operands = 1 : i64, tpu.core_type = #tpu.core_type<tc>, window_params = [{transform_indices = @transform_0, window_bounds = array<i64: 1, 64, 8>}, {pipeline_mode = #tpu.pipeline_mode<synchronous>, transform_indices = @transform_1, window_bounds = array<i64: 9, 8, 8>}, {pipeline_mode = #tpu.pipeline_mode<synchronous>, transform_indices = @transform_2, window_bounds = array<i64: 1, 8>}, {pipeline_mode = #tpu.pipeline_mode<synchronous>, transform_indices = @transform_3, window_bounds = array<i64: 1, 8>}, {transform_indices = @transform_4, window_bounds = array<i64: 1, 64, 8>}, {transform_indices = @transform_5, window_bounds = array<i64: 1, 64, 8>}]} {
    %c0_i32 = arith.constant 0 : i32
    %0 = arith.cmpi eq, %arg0, %c0_i32 : i32
    %1 = arith.extui %0 : i1 to i32
    %c0_i32_0 = arith.constant 0 : i32
    %2 = arith.cmpi ne, %1, %c0_i32_0 : i32
    scf.if %2 {
      %cst_60 = arith.constant 0.000000e+00 : bf16
      %106 = vector.broadcast %cst_60 : bf16 to vector<16x8xbf16>
      %c0_61 = arith.constant 0 : index
      %c0_62 = arith.constant 0 : index
      %107 = vector.load %arg7[%c0_61, %c0_62] : memref<96x8xbf16, #tpu.memory_space<vmem>>, vector<16x8xbf16>
      tpu.vector_store %arg7[%c0_61, %c0_62], %106 {strides = array<i32>} : memref<96x8xbf16, #tpu.memory_space<vmem>>, vector<16x8xbf16>,
      %c80 = arith.constant 80 : index
      %c0_63 = arith.constant 0 : index
      %108 = vector.load %arg7[%c80, %c0_63] : memref<96x8xbf16, #tpu.memory_space<vmem>>, vector<16x8xbf16>
      tpu.vector_store %arg7[%c80, %c0_63], %106 {strides = array<i32>} : memref<96x8xbf16, #tpu.memory_space<vmem>>, vector<16x8xbf16>,
    } else {
    }
    %3 = tpu.iota {dimensions = array<i32: 0>} : vector<64x1xi32>
    %c8_i32 = arith.constant 8 : i32
    %c0_i32_1 = arith.constant 0 : i32
    %4 = arith.cmpi eq, %c8_i32, %c0_i32_1 : i32
    %c1_i32 = arith.constant 1 : i32
    %5 = arith.select %4, %c1_i32, %c8_i32 : i32
    %6 = vector.broadcast %5 : i32 to vector<64x1xi32>
    %7 = arith.remsi %3, %6 : vector<64x1xi32>
    %c0_i32_2 = arith.constant 0 : i32
    %8 = vector.broadcast %c0_i32_2 : i32 to vector<64x1xi32>
    %9 = arith.cmpi ne, %7, %8 : vector<64x1xi32>
    %c0_i32_3 = arith.constant 0 : i32
    %10 = vector.broadcast %c0_i32_3 : i32 to vector<64x1xi32>
    %11 = arith.cmpi slt, %7, %10 : vector<64x1xi32>
    %c0_i32_4 = arith.constant 0 : i32
    %12 = arith.cmpi slt, %5, %c0_i32_4 : i32
    %13 = vector.broadcast %12 : i1 to vector<64x1xi1>
    %14 = vector.broadcast %13 : vector<64x1xi1> to vector<64x1xi1>
    %15 = arith.xori %11, %14 : vector<64x1xi1>
    %16 = arith.andi %15, %9 : vector<64x1xi1>
    %17 = vector.broadcast %5 : i32 to vector<64x1xi32>
    %18 = arith.addi %7, %17 : vector<64x1xi32>
    %19 = arith.select %16, %18, %7 : vector<64x1xi1>, vector<64x1xi32>
    %c0_i32_5 = arith.constant 0 : i32
    %20 = vector.broadcast %c0_i32_5 : i32 to vector<64x1xi32>
    %21 = arith.cmpi ne, %19, %20 : vector<64x1xi32>
    %22 = arith.extui %21 : vector<64x1xi1> to vector<64x1xi32>
    %23 = arith.sitofp %22 : vector<64x1xi32> to vector<64x1xf32>
    %24 = arith.truncf %23 : vector<64x1xf32> to vector<64x1xbf16>
    %c7_i32 = arith.constant 7 : i32
    %25 = vector.broadcast %c7_i32 : i32 to vector<64x1xi32>
    %26 = arith.cmpi ne, %19, %25 : vector<64x1xi32>
    %27 = arith.extui %26 : vector<64x1xi1> to vector<64x1xi32>
    %28 = arith.sitofp %27 : vector<64x1xi32> to vector<64x1xf32>
    %29 = arith.truncf %28 : vector<64x1xf32> to vector<64x1xbf16>
    %c0 = arith.constant 0 : index
    %c0_6 = arith.constant 0 : index
    %c0_7 = arith.constant 0 : index
    %30 = vector.load %arg1[%c0, %c0_6, %c0_7] : memref<1x64x8xbf16, #tpu.memory_space<vmem>>, vector<1x64x8xbf16>
    %31 = vector.shape_cast %30 : vector<1x64x8xbf16> to vector<64x8xbf16>
    %c16 = arith.constant 16 : index
    %c0_8 = arith.constant 0 : index
    %32 = vector.load %arg7[%c16, %c0_8] : memref<96x8xbf16, #tpu.memory_space<vmem>>, vector<64x8xbf16>
    tpu.vector_store %arg7[%c16, %c0_8], %31 {strides = array<i32>} : memref<96x8xbf16, #tpu.memory_space<vmem>>, vector<64x8xbf16>,
    %cst = arith.constant 0.000000e+00 : f32
    %33 = vector.broadcast %cst : f32 to vector<64x8xf32>
    %c7 = arith.constant 7 : index
    %c0_9 = arith.constant 0 : index
    %34 = vector.load %arg7[%c7, %c0_9] : memref<96x8xbf16, #tpu.memory_space<vmem>>, vector<64x8xbf16>
    %35 = vector.broadcast %24 : vector<64x1xbf16> to vector<64x8xbf16>
    %36 = arith.mulf %34, %35 : vector<64x8xbf16>
    %c0_10 = arith.constant 0 : index
    %c0_11 = arith.constant 0 : index
    %c0_12 = arith.constant 0 : index
    %37 = vector.load %arg2[%c0_10, %c0_11, %c0_12] : memref<9x8x8xbf16, #tpu.memory_space<vmem>>, vector<1x8x8xbf16>
    %38 = vector.shape_cast %37 : vector<1x8x8xbf16> to vector<8x8xbf16>
    %cst_13 = arith.constant dense<0.000000e+00> : vector<64x8xf32>
    %39 = tpu.matmul %36, %38, %cst_13 {dimension_numbers = #tpu.dot_dimension_numbers<[1], [0], [0], [1], [0, 0, 1, 1], [], []>} : vector<64x8xbf16>, vector<8x8xbf16>, vector<64x8xf32> -> vector<64x8xf32>
    %40 = arith.addf %33, %39 : vector<64x8xf32>
    %c8 = arith.constant 8 : index
    %c0_14 = arith.constant 0 : index
    %41 = vector.load %arg7[%c8, %c0_14] : memref<96x8xbf16, #tpu.memory_space<vmem>>, vector<64x8xbf16>
    %c1 = arith.constant 1 : index
    %c0_15 = arith.constant 0 : index
    %c0_16 = arith.constant 0 : index
    %42 = vector.load %arg2[%c1, %c0_15, %c0_16] : memref<9x8x8xbf16, #tpu.memory_space<vmem>>, vector<1x8x8xbf16>
    %43 = vector.shape_cast %42 : vector<1x8x8xbf16> to vector<8x8xbf16>
    %cst_17 = arith.constant dense<0.000000e+00> : vector<64x8xf32>
    %44 = tpu.matmul %41, %43, %cst_17 {dimension_numbers = #tpu.dot_dimension_numbers<[1], [0], [0], [1], [0, 0, 1, 1], [], []>} : vector<64x8xbf16>, vector<8x8xbf16>, vector<64x8xf32> -> vector<64x8xf32>
    %45 = arith.addf %40, %44 : vector<64x8xf32>
    %c9 = arith.constant 9 : index
    %c0_18 = arith.constant 0 : index
    %46 = vector.load %arg7[%c9, %c0_18] : memref<96x8xbf16, #tpu.memory_space<vmem>>, vector<64x8xbf16>
    %47 = vector.broadcast %29 : vector<64x1xbf16> to vector<64x8xbf16>
    %48 = arith.mulf %46, %47 : vector<64x8xbf16>
    %c2 = arith.constant 2 : index
    %c0_19 = arith.constant 0 : index
    %c0_20 = arith.constant 0 : index
    %49 = vector.load %arg2[%c2, %c0_19, %c0_20] : memref<9x8x8xbf16, #tpu.memory_space<vmem>>, vector<1x8x8xbf16>
    %50 = vector.shape_cast %49 : vector<1x8x8xbf16> to vector<8x8xbf16>
    %cst_21 = arith.constant dense<0.000000e+00> : vector<64x8xf32>
    %51 = tpu.matmul %48, %50, %cst_21 {dimension_numbers = #tpu.dot_dimension_numbers<[1], [0], [0], [1], [0, 0, 1, 1], [], []>} : vector<64x8xbf16>, vector<8x8xbf16>, vector<64x8xf32> -> vector<64x8xf32>
    %52 = arith.addf %45, %51 : vector<64x8xf32>
    %c15 = arith.constant 15 : index
    %c0_22 = arith.constant 0 : index
    %53 = vector.load %arg7[%c15, %c0_22] : memref<96x8xbf16, #tpu.memory_space<vmem>>, vector<64x8xbf16>
    %54 = vector.broadcast %24 : vector<64x1xbf16> to vector<64x8xbf16>
    %55 = arith.mulf %53, %54 : vector<64x8xbf16>
    %c3 = arith.constant 3 : index
    %c0_23 = arith.constant 0 : index
    %c0_24 = arith.constant 0 : index
    %56 = vector.load %arg2[%c3, %c0_23, %c0_24] : memref<9x8x8xbf16, #tpu.memory_space<vmem>>, vector<1x8x8xbf16>
    %57 = vector.shape_cast %56 : vector<1x8x8xbf16> to vector<8x8xbf16>
    %cst_25 = arith.constant dense<0.000000e+00> : vector<64x8xf32>
    %58 = tpu.matmul %55, %57, %cst_25 {dimension_numbers = #tpu.dot_dimension_numbers<[1], [0], [0], [1], [0, 0, 1, 1], [], []>} : vector<64x8xbf16>, vector<8x8xbf16>, vector<64x8xf32> -> vector<64x8xf32>
    %59 = arith.addf %52, %58 : vector<64x8xf32>
    %c16_26 = arith.constant 16 : index
    %c0_27 = arith.constant 0 : index
    %60 = vector.load %arg7[%c16_26, %c0_27] : memref<96x8xbf16, #tpu.memory_space<vmem>>, vector<64x8xbf16>
    %c4 = arith.constant 4 : index
    %c0_28 = arith.constant 0 : index
    %c0_29 = arith.constant 0 : index
    %61 = vector.load %arg2[%c4, %c0_28, %c0_29] : memref<9x8x8xbf16, #tpu.memory_space<vmem>>, vector<1x8x8xbf16>
    %62 = vector.shape_cast %61 : vector<1x8x8xbf16> to vector<8x8xbf16>
    %cst_30 = arith.constant dense<0.000000e+00> : vector<64x8xf32>
    %63 = tpu.matmul %60, %62, %cst_30 {dimension_numbers = #tpu.dot_dimension_numbers<[1], [0], [0], [1], [0, 0, 1, 1], [], []>} : vector<64x8xbf16>, vector<8x8xbf16>, vector<64x8xf32> -> vector<64x8xf32>
    %64 = arith.addf %59, %63 : vector<64x8xf32>
    %c17 = arith.constant 17 : index
    %c0_31 = arith.constant 0 : index
    %65 = vector.load %arg7[%c17, %c0_31] : memref<96x8xbf16, #tpu.memory_space<vmem>>, vector<64x8xbf16>
    %66 = vector.broadcast %29 : vector<64x1xbf16> to vector<64x8xbf16>
    %67 = arith.mulf %65, %66 : vector<64x8xbf16>
    %c5 = arith.constant 5 : index
    %c0_32 = arith.constant 0 : index
    %c0_33 = arith.constant 0 : index
    %68 = vector.load %arg2[%c5, %c0_32, %c0_33] : memref<9x8x8xbf16, #tpu.memory_space<vmem>>, vector<1x8x8xbf16>
    %69 = vector.shape_cast %68 : vector<1x8x8xbf16> to vector<8x8xbf16>
    %cst_34 = arith.constant dense<0.000000e+00> : vector<64x8xf32>
    %70 = tpu.matmul %67, %69, %cst_34 {dimension_numbers = #tpu.dot_dimension_numbers<[1], [0], [0], [1], [0, 0, 1, 1], [], []>} : vector<64x8xbf16>, vector<8x8xbf16>, vector<64x8xf32> -> vector<64x8xf32>
    %71 = arith.addf %64, %70 : vector<64x8xf32>
    %c23 = arith.constant 23 : index
    %c0_35 = arith.constant 0 : index
    %72 = vector.load %arg7[%c23, %c0_35] : memref<96x8xbf16, #tpu.memory_space<vmem>>, vector<64x8xbf16>
    %73 = vector.broadcast %24 : vector<64x1xbf16> to vector<64x8xbf16>
    %74 = arith.mulf %72, %73 : vector<64x8xbf16>
    %c6 = arith.constant 6 : index
    %c0_36 = arith.constant 0 : index
    %c0_37 = arith.constant 0 : index
    %75 = vector.load %arg2[%c6, %c0_36, %c0_37] : memref<9x8x8xbf16, #tpu.memory_space<vmem>>, vector<1x8x8xbf16>
    %76 = vector.shape_cast %75 : vector<1x8x8xbf16> to vector<8x8xbf16>
    %cst_38 = arith.constant dense<0.000000e+00> : vector<64x8xf32>
    %77 = tpu.matmul %74, %76, %cst_38 {dimension_numbers = #tpu.dot_dimension_numbers<[1], [0], [0], [1], [0, 0, 1, 1], [], []>} : vector<64x8xbf16>, vector<8x8xbf16>, vector<64x8xf32> -> vector<64x8xf32>
    %78 = arith.addf %71, %77 : vector<64x8xf32>
    %c24 = arith.constant 24 : index
    %c0_39 = arith.constant 0 : index
    %79 = vector.load %arg7[%c24, %c0_39] : memref<96x8xbf16, #tpu.memory_space<vmem>>, vector<64x8xbf16>
    %c7_40 = arith.constant 7 : index
    %c0_41 = arith.constant 0 : index
    %c0_42 = arith.constant 0 : index
    %80 = vector.load %arg2[%c7_40, %c0_41, %c0_42] : memref<9x8x8xbf16, #tpu.memory_space<vmem>>, vector<1x8x8xbf16>
    %81 = vector.shape_cast %80 : vector<1x8x8xbf16> to vector<8x8xbf16>
    %cst_43 = arith.constant dense<0.000000e+00> : vector<64x8xf32>
    %82 = tpu.matmul %79, %81, %cst_43 {dimension_numbers = #tpu.dot_dimension_numbers<[1], [0], [0], [1], [0, 0, 1, 1], [], []>} : vector<64x8xbf16>, vector<8x8xbf16>, vector<64x8xf32> -> vector<64x8xf32>
    %83 = arith.addf %78, %82 : vector<64x8xf32>
    %c25 = arith.constant 25 : index
    %c0_44 = arith.constant 0 : index
    %84 = vector.load %arg7[%c25, %c0_44] : memref<96x8xbf16, #tpu.memory_space<vmem>>, vector<64x8xbf16>
    %85 = vector.broadcast %29 : vector<64x1xbf16> to vector<64x8xbf16>
    %86 = arith.mulf %84, %85 : vector<64x8xbf16>
    %c8_45 = arith.constant 8 : index
    %c0_46 = arith.constant 0 : index
    %c0_47 = arith.constant 0 : index
    %87 = vector.load %arg2[%c8_45, %c0_46, %c0_47] : memref<9x8x8xbf16, #tpu.memory_space<vmem>>, vector<1x8x8xbf16>
    %88 = vector.shape_cast %87 : vector<1x8x8xbf16> to vector<8x8xbf16>
    %cst_48 = arith.constant dense<0.000000e+00> : vector<64x8xf32>
    %89 = tpu.matmul %86, %88, %cst_48 {dimension_numbers = #tpu.dot_dimension_numbers<[1], [0], [0], [1], [0, 0, 1, 1], [], []>} : vector<64x8xbf16>, vector<8x8xbf16>, vector<64x8xf32> -> vector<64x8xf32>
    %90 = arith.addf %83, %89 : vector<64x8xf32>
    %c0_49 = arith.constant 0 : index
    %c0_50 = arith.constant 0 : index
    %91 = vector.load %arg3[%c0_49, %c0_50] : memref<1x8xf32, #tpu.memory_space<vmem>>, vector<1x8xf32>
    %92 = vector.broadcast %91 : vector<1x8xf32> to vector<64x8xf32>
    %93 = arith.mulf %90, %92 : vector<64x8xf32>
    %c0_51 = arith.constant 0 : index
    %c0_52 = arith.constant 0 : index
    %94 = vector.load %arg4[%c0_51, %c0_52] : memref<1x8xf32, #tpu.memory_space<vmem>>, vector<1x8xf32>
    %95 = vector.broadcast %94 : vector<1x8xf32> to vector<64x8xf32>
    %96 = arith.addf %93, %95 : vector<64x8xf32>
    %c0_53 = arith.constant 0 : index
    %c0_54 = arith.constant 0 : index
    %c0_55 = arith.constant 0 : index
    %97 = vector.load %arg5[%c0_53, %c0_54, %c0_55] : memref<1x64x8xbf16, #tpu.memory_space<vmem>>, vector<1x64x8xbf16>
    %98 = vector.shape_cast %97 : vector<1x64x8xbf16> to vector<64x8xbf16>
    %99 = arith.extf %98 : vector<64x8xbf16> to vector<64x8xf32>
    %100 = arith.addf %96, %99 : vector<64x8xf32>
    %cst_56 = arith.constant 0.000000e+00 : f32
    %101 = vector.broadcast %cst_56 : f32 to vector<64x8xf32>
    %102 = arith.maximumf %100, %101 : vector<64x8xf32>
    %c0_57 = arith.constant 0 : index
    %c0_58 = arith.constant 0 : index
    %c0_59 = arith.constant 0 : index
    %103 = vector.load %arg6[%c0_57, %c0_58, %c0_59] : memref<1x64x8xf32, #tpu.memory_space<vmem>>, vector<1x64x8xf32>
    %104 = vector.shape_cast %103 : vector<1x64x8xf32> to vector<64x8xf32>
    %105 = vector.shape_cast %102 : vector<64x8xf32> to vector<1x64x8xf32>
    tpu.vector_store %arg6[%c0_57, %c0_58, %c0_59], %105 {strides = array<i32>} : memref<1x64x8xf32, #tpu.memory_space<vmem>>, vector<1x64x8xf32>,
    return
  }
  func.func @transform_0(%arg0: i32) -> (i32, i32, i32) {
    %c0_i32 = arith.constant 0 : i32
    %c0_i32_0 = arith.constant 0 : i32
    %c0_i32_1 = arith.constant 0 : i32
    return %arg0, %c0_i32, %c0_i32_0 : i32, i32, i32
  }
  func.func @transform_1(%arg0: i32) -> (i32, i32, i32) {
    %c0_i32 = arith.constant 0 : i32
    %c0_i32_0 = arith.constant 0 : i32
    %c0_i32_1 = arith.constant 0 : i32
    %c0_i32_2 = arith.constant 0 : i32
    return %c0_i32, %c0_i32_0, %c0_i32_1 : i32, i32, i32
  }
  func.func @transform_2(%arg0: i32) -> (i32, i32) {
    %c0_i32 = arith.constant 0 : i32
    %c0_i32_0 = arith.constant 0 : i32
    %c0_i32_1 = arith.constant 0 : i32
    return %c0_i32, %c0_i32_0 : i32, i32
  }
  func.func @transform_3(%arg0: i32) -> (i32, i32) {
    %c0_i32 = arith.constant 0 : i32
    %c0_i32_0 = arith.constant 0 : i32
    %c0_i32_1 = arith.constant 0 : i32
    return %c0_i32, %c0_i32_0 : i32, i32
  }
  func.func @transform_4(%arg0: i32) -> (i32, i32, i32) {
    %c0_i32 = arith.constant 0 : i32
    %c0_i32_0 = arith.constant 0 : i32
    %c0_i32_1 = arith.constant 0 : i32
    return %arg0, %c0_i32, %c0_i32_0 : i32, i32, i32
  }
  func.func @transform_5(%arg0: i32) -> (i32, i32, i32) {
    %c0_i32 = arith.constant 0 : i32
    %c0_i32_0 = arith.constant 0 : i32
    %c0_i32_1 = arith.constant 0 : i32
    return %arg0, %c0_i32, %c0_i32_0 : i32, i32, i32
  }
}

</mosaic_0001>

<llo_original>
// kernel: _lambda_.6
$region0: #{_lambda_.6}
  #allocation0 [shape = 'u32[]', space=smem, size = 0x4, offset = 0x4, fixed_abs, tag = 'smem constant byte address 0x4 - core index']
  #allocation1 [shape = 'u32[144,128]{1,0:T(1,128)}', space=vmem, size = 0x12000, scoped, tag = 'internal scratch']
  %s0 = inlined_call_operand.vmem [shape: bf16[128,4], index: 0, kind: input, shape index: {}]
  %s1 = inlined_call_operand.vmem [shape: bf16[4,128], index: 1, kind: input, shape index: {}]
  %s2 = inlined_call_operand.vmem [shape: f32[1,128], index: 2, kind: input, shape index: {}]
  %s3 = inlined_call_operand.vmem [shape: f32[1,128], index: 3, kind: input, shape index: {}]
  %s4 = inlined_call_operand.vmem [shape: bf16[128,128], index: 4, kind: output, shape index: {}]
  %s5 = sld [smem:[#allocation0]]
  $region26: #{_lambda_.6} parent=0
    _
  %s7 = ssub.s32 1, %s5
  %s8 = scalar_select 0, %s7, %s5
  // Predicated region
  $region2: #{_lambda_.6} parent=0 // pred_check
    _
  $region3: #{_lambda_.6} parent=0 // pred_check_branch
    %10 = sbr.rel (0) target = $region5
  $region4: #{_lambda_.6} parent=0 // pred_region
    _
  $region5: #{_lambda_.6} parent=0 // pred_fallthru
    _
  // Predicated region
  $region6: #{_lambda_.6} parent=0 // pred_check
    _
  $region7: #{_lambda_.6} parent=0 // pred_check_branch
    %12 = sbr.rel (0) target = $region9
  $region8: #{_lambda_.6} parent=0 // pred_region
    _
  $region9: #{_lambda_.6} parent=0 // pred_fallthru
    _
  // Predicated region
  $region10: #{_lambda_.6} parent=0 // pred_check
    _
  $region11: #{_lambda_.6} parent=0 // pred_check_branch
    %14 = sbr.rel (0) target = $region13
  $region12: #{_lambda_.6} parent=0 // pred_region
    _
  $region13: #{_lambda_.6} parent=0 // pred_fallthru
    _
  // Predicated region
  $region14: #{_lambda_.6} parent=0 // pred_check
    _
  $region15: #{_lambda_.6} parent=0 // pred_check_branch
    %16 = sbr.rel (0) target = $region17
  $region16: #{_lambda_.6} parent=0 // pred_region
    _
  $region17: #{_lambda_.6} parent=0 // pred_fallthru
    _
  %v18 = vld [vmem:[%s0] sm:$0xf]
  %v19 = vld [vmem:[%s0 + $0x4] sm:$0xf]
  %v20 = vld [vmem:[%s0 + $0x8] sm:$0xf]
  %v21 = vld [vmem:[%s0 + $0xc] sm:$0xf]
  %v22 = vld [vmem:[%s0 + $0x10] sm:$0xf]
  %v23 = vld [vmem:[%s0 + $0x14] sm:$0xf]
  %v24 = vld [vmem:[%s0 + $0x18] sm:$0xf]
  %v25 = vld [vmem:[%s0 + $0x1c] sm:$0xf]
  %v26 = vld [vmem:[%s0 + $0x20] sm:$0xf]
  %v27 = vld [vmem:[%s0 + $0x24] sm:$0xf]
  %v28 = vld [vmem:[%s0 + $0x28] sm:$0xf]
  %v29 = vld [vmem:[%s0 + $0x2c] sm:$0xf]
  %v30 = vld [vmem:[%s0 + $0x30] sm:$0xf]
  %v31 = vld [vmem:[%s0 + $0x34] sm:$0xf]
  %v32 = vld [vmem:[%s0 + $0x38] sm:$0xf]
  %v33 = vld [vmem:[%s0 + $0x3c] sm:$0xf]
  %v34 = vld [vmem:[%s1] sm:$0x3]
  %v51 = vunpack.c.l.b16 %v18
  %v52 = vunpack.c.l.b16 %v19
  %v53 = vunpack.c.l.b16 %v20
  %v54 = vunpack.c.l.b16 %v21
  %v55 = vunpack.c.l.b16 %v22
  %v56 = vunpack.c.l.b16 %v23
  %v57 = vunpack.c.l.b16 %v24
  %v58 = vunpack.c.l.b16 %v25
  %v59 = vunpack.c.l.b16 %v26
  %v60 = vunpack.c.l.b16 %v27
  %v61 = vunpack.c.l.b16 %v28
  %v62 = vunpack.c.l.b16 %v29
  %v63 = vunpack.c.l.b16 %v30
  %v64 = vunpack.c.l.b16 %v31
  %v65 = vunpack.c.l.b16 %v32
  %v66 = vunpack.c.l.b16 %v33
  %v67 = vpack.c.b16 %v52, %v51
  %v68 = vpack.c.b16 %v54, %v53
  %v69 = vpack.c.b16 %v56, %v55
  %v70 = vpack.c.b16 %v58, %v57
  %v71 = vpack.c.b16 %v60, %v59
  %v72 = vpack.c.b16 %v62, %v61
  %v73 = vpack.c.b16 %v64, %v63
  %v74 = vpack.c.b16 %v66, %v65
  %vm75 = vcmask 31744
  %v77 = vsel %vm75, %v67, 0
  %v80 = vsel %vm75, %v68, 0
  %v83 = vsel %vm75, %v69, 0
  %v86 = vsel %vm75, %v70, 0
  %v89 = vsel %vm75, %v71, 0
  %v92 = vsel %vm75, %v72, 0
  %v95 = vsel %vm75, %v73, 0
  %v98 = vsel %vm75, %v74, 0
  %vm100 = vcmask 1041408
  %v102 = vsel %vm100, %v34, 0
  %104 = vmatprep.subr.bf16.mxu0 0
  %105 = vmatpush1.bf16.msra.mxu0 %v102
  %106 = vmatprep.subr.bf16.mxu0 0
  %107 = vmatpush1.bf16.msra.mxu0 0
  %108 = vmatprep.subr.bf16.mxu0 0
  %109 = vmatpush1.bf16.msra.mxu0 0
  %110 = vmatprep.subr.bf16.mxu0 0
  %111 = vmatpush1.bf16.msra.mxu0 0
  %112 = vmatprep.subr.bf16.mxu0 0
  %113 = vmatpush1.bf16.msra.mxu0 0
  %114 = vmatprep.subr.bf16.mxu0 0
  %115 = vmatpush1.bf16.msra.mxu0 0
  %116 = vmatprep.subr.bf16.mxu0 0
  %117 = vmatpush1.bf16.msra.mxu0 0
  %118 = vmatprep.subr.bf16.mxu0 0
  %119 = vmatpush1.bf16.msra.mxu0 0
  %120 = vmatprep.subr.bf16.mxu0 0
  %121 = vmatpush1.bf16.msra.mxu0 0
  %122 = vmatprep.subr.bf16.mxu0 0
  %123 = vmatpush1.bf16.msra.mxu0 0
  %124 = vmatprep.subr.bf16.mxu0 0
  %125 = vmatpush1.bf16.msra.mxu0 0
  %126 = vmatprep.subr.bf16.mxu0 0
  %127 = vmatpush1.bf16.msra.mxu0 0
  %128 = vmatprep.subr.bf16.mxu0 0
  %129 = vmatpush1.bf16.msra.mxu0 0
  %130 = vmatprep.subr.bf16.mxu0 0
  %131 = vmatpush1.bf16.msra.mxu0 0
  %132 = vmatprep.subr.bf16.mxu0 0
  %133 = vmatpush1.bf16.msra.mxu0 0
  %134 = vmatprep.subr.bf16.mxu0 0
  %135 = vmatpush1.bf16.msra.mxu0 0
  %136 = vmatprep.mubr.bf16.mxu0 0
  %137 = vmatmul.mubr.bf16.gmra.mrb[0].mxu0 %v77
  %v138 = vpop.f32.mrb[0].mxu0
  %v139 = vadd.f32 0.0, %v138
  %v140 = vpop.f32.mrb[0].mxu0
  %v141 = vpop.f32.mrb[0].mxu0
  %v142 = vadd.f32 0.0, %v141
  %v143 = vpop.f32.mrb[0].mxu0
  %144 = vmatprep.mubr.bf16.mxu0 0
  %145 = vmatmul.mubr.bf16.gmra.mrb[0].mxu0 %v80
  %v146 = vpop.f32.mrb[0].mxu0
  %v147 = vadd.f32 0.0, %v146
  %v148 = vpop.f32.mrb[0].mxu0
  %v149 = vpop.f32.mrb[0].mxu0
  %v150 = vadd.f32 0.0, %v149
  %v151 = vpop.f32.mrb[0].mxu0
  %152 = vmatprep.mubr.bf16.mxu0 0
  %153 = vmatmul.mubr.bf16.gmra.mrb[0].mxu0 %v83
  %v154 = vpop.f32.mrb[0].mxu0
  %v155 = vadd.f32 0.0, %v154
  %v156 = vpop.f32.mrb[0].mxu0
  %v157 = vpop.f32.mrb[0].mxu0
  %v158 = vadd.f32 0.0, %v157
  %v159 = vpop.f32.mrb[0].mxu0
  %160 = vmatprep.mubr.bf16.mxu0 0
  %161 = vmatmul.mubr.bf16.gmra.mrb[0].mxu0 %v86
  %v162 = vpop.f32.mrb[0].mxu0
  %v163 = vadd.f32 0.0, %v162
  %v164 = vpop.f32.mrb[0].mxu0
  %v165 = vpop.f32.mrb[0].mxu0
  %v166 = vadd.f32 0.0, %v165
  %v167 = vpop.f32.mrb[0].mxu0
  %168 = vmatprep.mubr.bf16.mxu0 0
  %169 = vmatmul.mubr.bf16.gmra.mrb[0].mxu0 %v89
  %v170 = vpop.f32.mrb[0].mxu0
  %v171 = vadd.f32 0.0, %v170
  %v172 = vpop.f32.mrb[0].mxu0
  %v173 = vpop.f32.mrb[0].mxu0
  %v174 = vadd.f32 0.0, %v173
  %v175 = vpop.f32.mrb[0].mxu0
  %176 = vmatprep.mubr.bf16.mxu0 0
  %177 = vmatmul.mubr.bf16.gmra.mrb[0].mxu0 %v92
  %v178 = vpop.f32.mrb[0].mxu0
  %v179 = vadd.f32 0.0, %v178
  %v180 = vpop.f32.mrb[0].mxu0
  %v181 = vpop.f32.mrb[0].mxu0
  %v182 = vadd.f32 0.0, %v181
  %v183 = vpop.f32.mrb[0].mxu0
  %184 = vmatprep.mubr.bf16.mxu0 0
  %185 = vmatmul.mubr.bf16.gmra.mrb[0].mxu0 %v95
  %v186 = vpop.f32.mrb[0].mxu0
  %v187 = vadd.f32 0.0, %v186
  %v188 = vpop.f32.mrb[0].mxu0
  %v189 = vpop.f32.mrb[0].mxu0
  %v190 = vadd.f32 0.0, %v189
  %v191 = vpop.f32.mrb[0].mxu0
  %192 = vmatprep.mubr.bf16.mxu0 0
  %193 = vmatmul.mubr.bf16.gmra.mrb[0].mxu0 %v98
  %v194 = vpop.f32.mrb[0].mxu0
  %v195 = vadd.f32 0.0, %v194
  %v196 = vpop.f32.mrb[0].mxu0
  %v197 = vpop.f32.mrb[0].mxu0
  %v198 = vadd.f32 0.0, %v197
  %v199 = vpop.f32.mrb[0].mxu0
  %200 = vdwg.mxu0
  %v201 = vld [vmem:[%s2] sm:$0x1]
  %v203 = vlaneseq
  %v204 = vshrl.u32 %v203, 7
  %v205 = vsub.s32 0, %v204
  %v206 = vrot.slane %v201, %v205
  %v208 = vmul.f32 %v139, %v206
  %v209 = vmul.f32 %v142, %v206
  %v210 = vmul.f32 %v147, %v206
  %v211 = vmul.f32 %v150, %v206
  %v212 = vmul.f32 %v155, %v206
  %v213 = vmul.f32 %v158, %v206
  %v214 = vmul.f32 %v163, %v206
  %v215 = vmul.f32 %v166, %v206
  %v216 = vmul.f32 %v171, %v206
  %v217 = vmul.f32 %v174, %v206
  %v218 = vmul.f32 %v179, %v206
  %v219 = vmul.f32 %v182, %v206
  %v220 = vmul.f32 %v187, %v206
  %v221 = vmul.f32 %v190, %v206
  %v222 = vmul.f32 %v195, %v206
  %v223 = vmul.f32 %v198, %v206
  %v224 = vld [vmem:[%s3] sm:$0x1]
  %v226 = vlaneseq
  %v227 = vshrl.u32 %v226, 7
  %v228 = vsub.s32 0, %v227
  %v229 = vrot.slane %v224, %v228
  %v231 = vadd.f32 %v208, %v229
  %v232 = vadd.f32 %v209, %v229
  %v233 = vadd.f32 %v210, %v229
  %v234 = vadd.f32 %v211, %v229
  %v235 = vadd.f32 %v212, %v229
  %v236 = vadd.f32 %v213, %v229
  %v237 = vadd.f32 %v214, %v229
  %v238 = vadd.f32 %v215, %v229
  %v239 = vadd.f32 %v216, %v229
  %v240 = vadd.f32 %v217, %v229
  %v241 = vadd.f32 %v218, %v229
  %v242 = vadd.f32 %v219, %v229
  %v243 = vadd.f32 %v220, %v229
  %v244 = vadd.f32 %v221, %v229
  %v245 = vadd.f32 %v222, %v229
  %v246 = vadd.f32 %v223, %v229
  %v247 = vpack.c.bf16 %v232, %v231
  %v248 = vpack.c.bf16 %v234, %v233
  %v249 = vpack.c.bf16 %v236, %v235
  %v250 = vpack.c.bf16 %v238, %v237
  %v251 = vpack.c.bf16 %v240, %v239
  %v252 = vpack.c.bf16 %v242, %v241
  %v253 = vpack.c.bf16 %v244, %v243
  %v254 = vpack.c.bf16 %v246, %v245
  %v263 = vunpack.c.l.b16 %v247
  %v264 = vunpack.c.h.b16 %v247
  %v265 = vunpack.c.l.b16 %v248
  %v266 = vunpack.c.h.b16 %v248
  %v267 = vunpack.c.l.b16 %v249
  %v268 = vunpack.c.h.b16 %v249
  %v269 = vunpack.c.l.b16 %v250
  %v270 = vunpack.c.h.b16 %v250
  %v271 = vunpack.c.l.b16 %v251
  %v272 = vunpack.c.h.b16 %v251
  %v273 = vunpack.c.l.b16 %v252
  %v274 = vunpack.c.h.b16 %v252
  %v275 = vunpack.c.l.b16 %v253
  %v276 = vunpack.c.h.b16 %v253
  %v277 = vunpack.c.l.b16 %v254
  %v278 = vunpack.c.h.b16 %v254
  %v279 = vpack.c.b16 %v263, %v263
  %v280 = vpack.c.b16 %v264, %v264
  %v281 = vpack.c.b16 %v265, %v265
  %v282 = vpack.c.b16 %v266, %v266
  %v283 = vpack.c.b16 %v267, %v267
  %v284 = vpack.c.b16 %v268, %v268
  %v285 = vpack.c.b16 %v269, %v269
  %v286 = vpack.c.b16 %v270, %v270
  %v287 = vpack.c.b16 %v271, %v271
  %v288 = vpack.c.b16 %v272, %v272
  %v289 = vpack.c.b16 %v273, %v273
  %v290 = vpack.c.b16 %v274, %v274
  %v291 = vpack.c.b16 %v275, %v275
  %v292 = vpack.c.b16 %v276, %v276
  %v293 = vpack.c.b16 %v277, %v277
  %v294 = vpack.c.b16 %v278, %v278
  %311 = vst [vmem:[%s4] sm:$0xf] %v279
  %312 = vst [vmem:[%s4 + $0x4] sm:$0xf] %v280
  %313 = vst [vmem:[%s4 + $0x8] sm:$0xf] %v281
  %314 = vst [vmem:[%s4 + $0xc] sm:$0xf] %v282
  %315 = vst [vmem:[%s4 + $0x10] sm:$0xf] %v283
  %316 = vst [vmem:[%s4 + $0x14] sm:$0xf] %v284
  %317 = vst [vmem:[%s4 + $0x18] sm:$0xf] %v285
  %318 = vst [vmem:[%s4 + $0x1c] sm:$0xf] %v286
  %319 = vst [vmem:[%s4 + $0x20] sm:$0xf] %v287
  %320 = vst [vmem:[%s4 + $0x24] sm:$0xf] %v288
  %321 = vst [vmem:[%s4 + $0x28] sm:$0xf] %v289
  %322 = vst [vmem:[%s4 + $0x2c] sm:$0xf] %v290
  %323 = vst [vmem:[%s4 + $0x30] sm:$0xf] %v291
  %324 = vst [vmem:[%s4 + $0x34] sm:$0xf] %v292
  %325 = vst [vmem:[%s4 + $0x38] sm:$0xf] %v293
  %326 = vst [vmem:[%s4 + $0x3c] sm:$0xf] %v294
  // Predicated region
  $region18: #{_lambda_.6} parent=0 // pred_check
    _
  $region19: #{_lambda_.6} parent=0 // pred_check_branch
    %328 = sbr.rel (0) target = $region21
  $region20: #{_lambda_.6} parent=0 // pred_region
    _
  $region21: #{_lambda_.6} parent=0 // pred_fallthru
    _
  // Predicated region
  $region22: #{_lambda_.6} parent=0 // pred_check
    _
  $region23: #{_lambda_.6} parent=0 // pred_check_branch
    %330 = sbr.rel (0) target = $region25
  $region24: #{_lambda_.6} parent=0 // pred_region
    _
  $region25: #{_lambda_.6} parent=0 // pred_fallthru
    _

// kernel: _lambda_.5
$region0: #{_lambda_.5}
  #allocation0 [shape = 'u32[]', space=smem, size = 0x4, offset = 0x4, fixed_abs, tag = 'smem constant byte address 0x4 - core index']
  #allocation1 [shape = 'u32[144,128]{1,0:T(1,128)}', space=vmem, size = 0x12000, scoped, tag = 'internal scratch']
  %s0 = inlined_call_operand.vmem [shape: bf16[128,36], index: 0, kind: input, shape index: {}]
  %s1 = inlined_call_operand.vmem [shape: bf16[36,128], index: 1, kind: input, shape index: {}]
  %s2 = inlined_call_operand.vmem [shape: f32[1,128], index: 2, kind: input, shape index: {}]
  %s3 = inlined_call_operand.vmem [shape: f32[1,128], index: 3, kind: input, shape index: {}]
  %s4 = inlined_call_operand.vmem [shape: bf16[128,128], index: 4, kind: output, shape index: {}]
  %s5 = sld [smem:[#allocation0]]
  $region26: #{_lambda_.5} parent=0
    _
  %s7 = ssub.s32 1, %s5
  %s8 = scalar_select 0, %s7, %s5
  // Predicated region
  $region2: #{_lambda_.5} parent=0 // pred_check
    _
  $region3: #{_lambda_.5} parent=0 // pred_check_branch
    %10 = sbr.rel (0) target = $region5
  $region4: #{_lambda_.5} parent=0 // pred_region
    _
  $region5: #{_lambda_.5} parent=0 // pred_fallthru
    _
  // Predicated region
  $region6: #{_lambda_.5} parent=0 // pred_check
    _
  $region7: #{_lambda_.5} parent=0 // pred_check_branch
    %12 = sbr.rel (0) target = $region9
  $region8: #{_lambda_.5} parent=0 // pred_region
    _
  $region9: #{_lambda_.5} parent=0 // pred_fallthru
    _
  // Predicated region
  $region10: #{_lambda_.5} parent=0 // pred_check
    _
  $region11: #{_lambda_.5} parent=0 // pred_check_branch
    %14 = sbr.rel (0) target = $region13
  $region12: #{_lambda_.5} parent=0 // pred_region
    _
  $region13: #{_lambda_.5} parent=0 // pred_fallthru
    _
  // Predicated region
  $region14: #{_lambda_.5} parent=0 // pred_check
    _
  $region15: #{_lambda_.5} parent=0 // pred_check_branch
    %16 = sbr.rel (0) target = $region17
  $region16: #{_lambda_.5} parent=0 // pred_region
    _
  $region17: #{_lambda_.5} parent=0 // pred_fallthru
    _
  %v18 = vld [vmem:[%s0] sm:$0xf]
  %v19 = vld [vmem:[%s0 + $0x4] sm:$0xf]
  %v20 = vld [vmem:[%s0 + $0x8] sm:$0xf]
  %v21 = vld [vmem:[%s0 + $0xc] sm:$0xf]
  %v22 = vld [vmem:[%s0 + $0x10] sm:$0xf]
  %v23 = vld [vmem:[%s0 + $0x14] sm:$0xf]
  %v24 = vld [vmem:[%s0 + $0x18] sm:$0xf]
  %v25 = vld [vmem:[%s0 + $0x1c] sm:$0xf]
  %v26 = vld [vmem:[%s0 + $0x20] sm:$0xf]
  %v27 = vld [vmem:[%s0 + $0x24] sm:$0xf]
  %v28 = vld [vmem:[%s0 + $0x28] sm:$0xf]
  %v29 = vld [vmem:[%s0 + $0x2c] sm:$0xf]
  %v30 = vld [vmem:[%s0 + $0x30] sm:$0xf]
  %v31 = vld [vmem:[%s0 + $0x34] sm:$0xf]
  %v32 = vld [vmem:[%s0 + $0x38] sm:$0xf]
  %v33 = vld [vmem:[%s0 + $0x3c] sm:$0xf]
  %v34 = vld [vmem:[%s1] sm:$0xf]
  %v35 = vld [vmem:[%s1 + $0x4] sm:$0xf]
  %v36 = vld [vmem:[%s1 + $0x8] sm:$0xf]
  %v37 = vld [vmem:[%s1 + $0xc] sm:$0xf]
  %v38 = vld [vmem:[%s1 + $0x10] sm:$0x3]
  %v55 = vunpack.c.l.b16 %v18
  %v56 = vunpack.c.l.b16 %v19
  %v57 = vunpack.c.l.b16 %v20
  %v58 = vunpack.c.l.b16 %v21
  %v59 = vunpack.c.l.b16 %v22
  %v60 = vunpack.c.l.b16 %v23
  %v61 = vunpack.c.l.b16 %v24
  %v62 = vunpack.c.l.b16 %v25
  %v63 = vunpack.c.l.b16 %v26
  %v64 = vunpack.c.l.b16 %v27
  %v65 = vunpack.c.l.b16 %v28
  %v66 = vunpack.c.l.b16 %v29
  %v67 = vunpack.c.l.b16 %v30
  %v68 = vunpack.c.l.b16 %v31
  %v69 = vunpack.c.l.b16 %v32
  %v70 = vunpack.c.l.b16 %v33
  %v71 = vpack.c.b16 %v56, %v55
  %v72 = vpack.c.b16 %v58, %v57
  %v73 = vpack.c.b16 %v60, %v59
  %v74 = vpack.c.b16 %v62, %v61
  %v75 = vpack.c.b16 %v64, %v63
  %v76 = vpack.c.b16 %v66, %v65
  %v77 = vpack.c.b16 %v68, %v67
  %v78 = vpack.c.b16 %v70, %v69
  %v84 = vunpack.c.l.b16 %v34
  %v85 = vunpack.c.l.b16 %v35
  %v86 = vunpack.c.l.b16 %v36
  %v87 = vunpack.c.l.b16 %v37
  %v88 = vunpack.c.l.b16 %v38
  %v89 = vpack.c.b16 %v85, %v84
  %v90 = vpack.c.b16 %v87, %v86
  %v91 = vpack.c.b16 %v88, %v88
  %vm94 = vcmask 293888
  %v96 = vsel %vm94, %v71, 0
  %v99 = vsel %vm94, %v72, 0
  %v102 = vsel %vm94, %v73, 0
  %v105 = vsel %vm94, %v74, 0
  %v108 = vsel %vm94, %v75, 0
  %v111 = vsel %vm94, %v76, 0
  %v114 = vsel %vm94, %v77, 0
  %v117 = vsel %vm94, %v78, 0
  %vm119 = vcmask 1041408
  %v121 = vsel %vm119, %v91, 0
  %123 = vmatprep.subr.bf16.mxu0 0
  %124 = vmatpush1.bf16.msra.mxu0 %v89
  %125 = vmatprep.subr.bf16.mxu0 0
  %126 = vmatpush1.bf16.msra.mxu0 %v90
  %127 = vmatprep.subr.bf16.mxu0 0
  %128 = vmatpush1.bf16.msra.mxu0 %v121
  %129 = vmatprep.subr.bf16.mxu0 0
  %130 = vmatpush1.bf16.msra.mxu0 0
  %131 = vmatprep.subr.bf16.mxu0 0
  %132 = vmatpush1.bf16.msra.mxu0 0
  %133 = vmatprep.subr.bf16.mxu0 0
  %134 = vmatpush1.bf16.msra.mxu0 0
  %135 = vmatprep.subr.bf16.mxu0 0
  %136 = vmatpush1.bf16.msra.mxu0 0
  %137 = vmatprep.subr.bf16.mxu0 0
  %138 = vmatpush1.bf16.msra.mxu0 0
  %139 = vmatprep.subr.bf16.mxu0 0
  %140 = vmatpush1.bf16.msra.mxu0 0
  %141 = vmatprep.subr.bf16.mxu0 0
  %142 = vmatpush1.bf16.msra.mxu0 0
  %143 = vmatprep.subr.bf16.mxu0 0
  %144 = vmatpush1.bf16.msra.mxu0 0
  %145 = vmatprep.subr.bf16.mxu0 0
  %146 = vmatpush1.bf16.msra.mxu0 0
  %147 = vmatprep.subr.bf16.mxu0 0
  %148 = vmatpush1.bf16.msra.mxu0 0
  %149 = vmatprep.subr.bf16.mxu0 0
  %150 = vmatpush1.bf16.msra.mxu0 0
  %151 = vmatprep.subr.bf16.mxu0 0
  %152 = vmatpush1.bf16.msra.mxu0 0
  %153 = vmatprep.subr.bf16.mxu0 0
  %154 = vmatpush1.bf16.msra.mxu0 0
  %155 = vmatprep.mubr.bf16.mxu0 0
  %156 = vmatmul.mubr.bf16.gmra.mrb[0].mxu0 %v96
  %v157 = vpop.f32.mrb[0].mxu0
  %v158 = vadd.f32 0.0, %v157
  %v159 = vpop.f32.mrb[0].mxu0
  %v160 = vpop.f32.mrb[0].mxu0
  %v161 = vadd.f32 0.0, %v160
  %v162 = vpop.f32.mrb[0].mxu0
  %163 = vmatprep.mubr.bf16.mxu0 0
  %164 = vmatmul.mubr.bf16.gmra.mrb[0].mxu0 %v99
  %v165 = vpop.f32.mrb[0].mxu0
  %v166 = vadd.f32 0.0, %v165
  %v167 = vpop.f32.mrb[0].mxu0
  %v168 = vpop.f32.mrb[0].mxu0
  %v169 = vadd.f32 0.0, %v168
  %v170 = vpop.f32.mrb[0].mxu0
  %171 = vmatprep.mubr.bf16.mxu0 0
  %172 = vmatmul.mubr.bf16.gmra.mrb[0].mxu0 %v102
  %v173 = vpop.f32.mrb[0].mxu0
  %v174 = vadd.f32 0.0, %v173
  %v175 = vpop.f32.mrb[0].mxu0
  %v176 = vpop.f32.mrb[0].mxu0
  %v177 = vadd.f32 0.0, %v176
  %v178 = vpop.f32.mrb[0].mxu0
  %179 = vmatprep.mubr.bf16.mxu0 0
  %180 = vmatmul.mubr.bf16.gmra.mrb[0].mxu0 %v105
  %v181 = vpop.f32.mrb[0].mxu0
  %v182 = vadd.f32 0.0, %v181
  %v183 = vpop.f32.mrb[0].mxu0
  %v184 = vpop.f32.mrb[0].mxu0
  %v185 = vadd.f32 0.0, %v184
  %v186 = vpop.f32.mrb[0].mxu0
  %187 = vmatprep.mubr.bf16.mxu0 0
  %188 = vmatmul.mubr.bf16.gmra.mrb[0].mxu0 %v108
  %v189 = vpop.f32.mrb[0].mxu0
  %v190 = vadd.f32 0.0, %v189
  %v191 = vpop.f32.mrb[0].mxu0
  %v192 = vpop.f32.mrb[0].mxu0
  %v193 = vadd.f32 0.0, %v192
  %v194 = vpop.f32.mrb[0].mxu0
  %195 = vmatprep.mubr.bf16.mxu0 0
  %196 = vmatmul.mubr.bf16.gmra.mrb[0].mxu0 %v111
  %v197 = vpop.f32.mrb[0].mxu0
  %v198 = vadd.f32 0.0, %v197
  %v199 = vpop.f32.mrb[0].mxu0
  %v200 = vpop.f32.mrb[0].mxu0
  %v201 = vadd.f32 0.0, %v200
  %v202 = vpop.f32.mrb[0].mxu0
  %203 = vmatprep.mubr.bf16.mxu0 0
  %204 = vmatmul.mubr.bf16.gmra.mrb[0].mxu0 %v114
  %v205 = vpop.f32.mrb[0].mxu0
  %v206 = vadd.f32 0.0, %v205
  %v207 = vpop.f32.mrb[0].mxu0
  %v208 = vpop.f32.mrb[0].mxu0
  %v209 = vadd.f32 0.0, %v208
  %v210 = vpop.f32.mrb[0].mxu0
  %211 = vmatprep.mubr.bf16.mxu0 0
  %212 = vmatmul.mubr.bf16.gmra.mrb[0].mxu0 %v117
  %v213 = vpop.f32.mrb[0].mxu0
  %v214 = vadd.f32 0.0, %v213
  %v215 = vpop.f32.mrb[0].mxu0
  %v216 = vpop.f32.mrb[0].mxu0
  %v217 = vadd.f32 0.0, %v216
  %v218 = vpop.f32.mrb[0].mxu0
  %219 = vdwg.mxu0
  %v220 = vld [vmem:[%s2] sm:$0x1]
  %v222 = vlaneseq
  %v223 = vshrl.u32 %v222, 7
  %v224 = vsub.s32 0, %v223
  %v225 = vrot.slane %v220, %v224
  %v227 = vmul.f32 %v158, %v225
  %v228 = vmul.f32 %v161, %v225
  %v229 = vmul.f32 %v166, %v225
  %v230 = vmul.f32 %v169, %v225
  %v231 = vmul.f32 %v174, %v225
  %v232 = vmul.f32 %v177, %v225
  %v233 = vmul.f32 %v182, %v225
  %v234 = vmul.f32 %v185, %v225
  %v235 = vmul.f32 %v190, %v225
  %v236 = vmul.f32 %v193, %v225
  %v237 = vmul.f32 %v198, %v225
  %v238 = vmul.f32 %v201, %v225
  %v239 = vmul.f32 %v206, %v225
  %v240 = vmul.f32 %v209, %v225
  %v241 = vmul.f32 %v214, %v225
  %v242 = vmul.f32 %v217, %v225
  %v243 = vld [vmem:[%s3] sm:$0x1]
  %v245 = vlaneseq
  %v246 = vshrl.u32 %v245, 7
  %v247 = vsub.s32 0, %v246
  %v248 = vrot.slane %v243, %v247
  %v250 = vadd.f32 %v227, %v248
  %v251 = vadd.f32 %v228, %v248
  %v252 = vadd.f32 %v229, %v248
  %v253 = vadd.f32 %v230, %v248
  %v254 = vadd.f32 %v231, %v248
  %v255 = vadd.f32 %v232, %v248
  %v256 = vadd.f32 %v233, %v248
  %v257 = vadd.f32 %v234, %v248
  %v258 = vadd.f32 %v235, %v248
  %v259 = vadd.f32 %v236, %v248
  %v260 = vadd.f32 %v237, %v248
  %v261 = vadd.f32 %v238, %v248
  %v262 = vadd.f32 %v239, %v248
  %v263 = vadd.f32 %v240, %v248
  %v264 = vadd.f32 %v241, %v248
  %v265 = vadd.f32 %v242, %v248
  %v266 = vmax.f32 %v250, 0.0
  %v267 = vmax.f32 %v251, 0.0
  %v268 = vmax.f32 %v252, 0.0
  %v269 = vmax.f32 %v253, 0.0
  %v270 = vmax.f32 %v254, 0.0
  %v271 = vmax.f32 %v255, 0.0
  %v272 = vmax.f32 %v256, 0.0
  %v273 = vmax.f32 %v257, 0.0
  %v274 = vmax.f32 %v258, 0.0
  %v275 = vmax.f32 %v259, 0.0
  %v276 = vmax.f32 %v260, 0.0
  %v277 = vmax.f32 %v261, 0.0
  %v278 = vmax.f32 %v262, 0.0
  %v279 = vmax.f32 %v263, 0.0
  %v280 = vmax.f32 %v264, 0.0
  %v281 = vmax.f32 %v265, 0.0
  %v282 = vpack.c.bf16 %v267, %v266
  %v283 = vpack.c.bf16 %v269, %v268
  %v284 = vpack.c.bf16 %v271, %v270
  %v285 = vpack.c.bf16 %v273, %v272
  %v286 = vpack.c.bf16 %v275, %v274
  %v287 = vpack.c.bf16 %v277, %v276
  %v288 = vpack.c.bf16 %v279, %v278
  %v289 = vpack.c.bf16 %v281, %v280
  %v298 = vunpack.c.l.b16 %v282
  %v299 = vunpack.c.h.b16 %v282
  %v300 = vunpack.c.l.b16 %v283
  %v301 = vunpack.c.h.b16 %v283
  %v302 = vunpack.c.l.b16 %v284
  %v303 = vunpack.c.h.b16 %v284
  %v304 = vunpack.c.l.b16 %v285
  %v305 = vunpack.c.h.b16 %v285
  %v306 = vunpack.c.l.b16 %v286
  %v307 = vunpack.c.h.b16 %v286
  %v308 = vunpack.c.l.b16 %v287
  %v309 = vunpack.c.h.b16 %v287
  %v310 = vunpack.c.l.b16 %v288
  %v311 = vunpack.c.h.b16 %v288
  %v312 = vunpack.c.l.b16 %v289
  %v313 = vunpack.c.h.b16 %v289
  %v314 = vpack.c.b16 %v298, %v298
  %v315 = vpack.c.b16 %v299, %v299
  %v316 = vpack.c.b16 %v300, %v300
  %v317 = vpack.c.b16 %v301, %v301
  %v318 = vpack.c.b16 %v302, %v302
  %v319 = vpack.c.b16 %v303, %v303
  %v320 = vpack.c.b16 %v304, %v304
  %v321 = vpack.c.b16 %v305, %v305
  %v322 = vpack.c.b16 %v306, %v306
  %v323 = vpack.c.b16 %v307, %v307
  %v324 = vpack.c.b16 %v308, %v308
  %v325 = vpack.c.b16 %v309, %v309
  %v326 = vpack.c.b16 %v310, %v310
  %v327 = vpack.c.b16 %v311, %v311
  %v328 = vpack.c.b16 %v312, %v312
  %v329 = vpack.c.b16 %v313, %v313
  %346 = vst [vmem:[%s4] sm:$0xf] %v314
  %347 = vst [vmem:[%s4 + $0x4] sm:$0xf] %v315
  %348 = vst [vmem:[%s4 + $0x8] sm:$0xf] %v316
  %349 = vst [vmem:[%s4 + $0xc] sm:$0xf] %v317
  %350 = vst [vmem:[%s4 + $0x10] sm:$0xf] %v318
  %351 = vst [vmem:[%s4 + $0x14] sm:$0xf] %v319
  %352 = vst [vmem:[%s4 + $0x18] sm:$0xf] %v320
  %353 = vst [vmem:[%s4 + $0x1c] sm:$0xf] %v321
  %354 = vst [vmem:[%s4 + $0x20] sm:$0xf] %v322
  %355 = vst [vmem:[%s4 + $0x24] sm:$0xf] %v323
  %356 = vst [vmem:[%s4 + $0x28] sm:$0xf] %v324
  %357 = vst [vmem:[%s4 + $0x2c] sm:$0xf] %v325
  %358 = vst [vmem:[%s4 + $0x30] sm:$0xf] %v326
  %359 = vst [vmem:[%s4 + $0x34] sm:$0xf] %v327
  %360 = vst [vmem:[%s4 + $0x38] sm:$0xf] %v328
  %361 = vst [vmem:[%s4 + $0x3c] sm:$0xf] %v329
  // Predicated region
  $region18: #{_lambda_.5} parent=0 // pred_check
    _
  $region19: #{_lambda_.5} parent=0 // pred_check_branch
    %363 = sbr.rel (0) target = $region21
  $region20: #{_lambda_.5} parent=0 // pred_region
    _
  $region21: #{_lambda_.5} parent=0 // pred_fallthru
    _
  // Predicated region
  $region22: #{_lambda_.5} parent=0 // pred_check
    _
  $region23: #{_lambda_.5} parent=0 // pred_check_branch
    %365 = sbr.rel (0) target = $region25
  $region24: #{_lambda_.5} parent=0 // pred_region
    _
  $region25: #{_lambda_.5} parent=0 // pred_fallthru
    _

// kernel: _lambda_.7
$region0: #{_lambda_.7}
  #allocation0 [shape = 'u32[]', space=smem, size = 0x4, offset = 0x4, fixed_abs, tag = 'smem constant byte address 0x4 - core index']
  #allocation1 [shape = 'u32[144,128]{1,0:T(1,128)}', space=vmem, size = 0x12000, scoped, tag = 'internal scratch']
  #allocation2 [shape = 'bf16[96,8]{1,0:T(16,128)(2,1)}', space=vmem, size = 0x6000, scoped, tag = 'scratch operand']
  %s0 = inlined_call_operand.vmem [shape: bf16[2,64,8], index: 0, kind: input, shape index: {}]
  %s1 = inlined_call_operand.vmem [shape: bf16[9,8,8], index: 1, kind: input, shape index: {}]
  %s2 = inlined_call_operand.vmem [shape: f32[1,8], index: 2, kind: input, shape index: {}]
  %s3 = inlined_call_operand.vmem [shape: f32[1,8], index: 3, kind: input, shape index: {}]
  %s4 = inlined_call_operand.vmem [shape: bf16[2,64,8], index: 4, kind: input, shape index: {}]
  %s5 = inlined_call_operand.vmem [shape: f32[2,64,8], index: 5, kind: output, shape index: {}]
  %s6 = sld [smem:[#allocation0]]
  $region57: #{_lambda_.7} parent=0
    _
  %s8 = ssub.s32 1, %s6
  %s9 = scalar_select 0, %s8, %s6
  loop: start=0, step=1, limit=4
  $region2: #{_lambda_.7} parent=0 // loop_pre_header
    _
  $region3: #{_lambda_.7} parent=0 // loop_header
    %s11 = sphi 0, %s15
    %p12 = scmp.ge.s32.totalorder %s11, 4
    %s21 = sphi 0, %s23
    %s24 = sphi 0, %s21
    %s25 = sphi 0, %s24
    %s41 = sphi 0, %s25
    %s45 = sphi 0, %s45
    %s47 = sphi 0, %s45
    %s48 = sphi 0, %s47
    %s62 = sphi 0, %s48
    %s66 = sphi 0, %s66
    %s68 = sphi 0, %s66
    %s69 = sphi 0, %s68
    %s83 = sphi 0, %s69
    %s87 = sphi 0, %s87
    %s89 = sphi 0, %s87
    %s90 = sphi 0, %s89
    %s104 = sphi 0, %s90
    %s110 = sphi 0, %s112
    %s113 = sphi 0, %s110
    %s114 = sphi 0, %s113
    %s130 = sphi 0, %s114
    %s136 = sphi 0, %s138
    %s139 = sphi 0, %s136
    %s140 = sphi 0, %s139
    %s156 = sphi 0, %s140
  $region4: #{_lambda_.7} parent=0 // loop_header_branch
    %14 = sbr.rel (%p12) target = $region8
  $region5: #{_lambda_.7} parent=0 // loop_body
    %s16 = ssub.s32 %s11, 1
    %s17 = ssub.s32 %s11, 2
    %s18 = sadd.s32 %s11, 1
    %s19 = ssub.s32 %s11, %s18
    %p20 = scmp.eq.s32.totalorder %s19, 0
    %s22 = sadd.s32 %s21, 1
    %s23 = scalar_select %p20, %s21, %s22
    %p26 = pneg %p20
    %p27 = scmp.eq.s32.totalorder %s11, 1
    %p28 = por %p26, %p27
    %p29 = scmp.ne.s32.totalorder %s21, %s24
    %p30 = scmp.eq.s32.totalorder %s11, 0
    %p31 = por %p29, %p30
    %p32 = scmp.ne.s32.totalorder %s21, %s24
    %p33 = scmp.eq.s32.totalorder %s16, 1
    %p34 = por %p32, %p33
    %p35 = scmp.ne.s32.totalorder %s24, %s25
    %p36 = scmp.eq.s32.totalorder %s16, 0
    %p37 = por %p35, %p36
    %p38 = scmp.ne.s32.totalorder %s24, %s25
    %p39 = scmp.eq.s32.totalorder %s17, 1
    %p40 = por %p38, %p39
    %p42 = scmp.ne.s32.totalorder %s25, %s41
    %p43 = scmp.eq.s32.totalorder %s17, 0
    %p44 = por %p42, %p43
    %s46 = sadd.s32 %s45, 1
    %p49 = scmp.eq.s32.totalorder %s11, 1
    %p50 = scmp.ne.s32.totalorder %s45, %s47
    %p51 = scmp.eq.s32.totalorder %s11, 0
    %p52 = por %p50, %p51
    %p53 = scmp.ne.s32.totalorder %s45, %s47
    %p54 = scmp.eq.s32.totalorder %s16, 1
    %p55 = por %p53, %p54
    %p56 = scmp.ne.s32.totalorder %s47, %s48
    %p57 = scmp.eq.s32.totalorder %s16, 0
    %p58 = por %p56, %p57
    %p59 = scmp.ne.s32.totalorder %s47, %s48
    %p60 = scmp.eq.s32.totalorder %s17, 1
    %p61 = por %p59, %p60
    %p63 = scmp.ne.s32.totalorder %s48, %s62
    %p64 = scmp.eq.s32.totalorder %s17, 0
    %p65 = por %p63, %p64
    %s67 = sadd.s32 %s66, 1
    %p70 = scmp.eq.s32.totalorder %s11, 1
    %p71 = scmp.ne.s32.totalorder %s66, %s68
    %p72 = scmp.eq.s32.totalorder %s11, 0
    %p73 = por %p71, %p72
    %p74 = scmp.ne.s32.totalorder %s66, %s68
    %p75 = scmp.eq.s32.totalorder %s16, 1
    %p76 = por %p74, %p75
    %p77 = scmp.ne.s32.totalorder %s68, %s69
    %p78 = scmp.eq.s32.totalorder %s16, 0
    %p79 = por %p77, %p78
    %p80 = scmp.ne.s32.totalorder %s68, %s69
    %p81 = scmp.eq.s32.totalorder %s17, 1
    %p82 = por %p80, %p81
    %p84 = scmp.ne.s32.totalorder %s69, %s83
    %p85 = scmp.eq.s32.totalorder %s17, 0
    %p86 = por %p84, %p85
    %s88 = sadd.s32 %s87, 1
    %p91 = scmp.eq.s32.totalorder %s11, 1
    %p92 = scmp.ne.s32.totalorder %s87, %s89
    %p93 = scmp.eq.s32.totalorder %s11, 0
    %p94 = por %p92, %p93
    %p95 = scmp.ne.s32.totalorder %s87, %s89
    %p96 = scmp.eq.s32.totalorder %s16, 1
    %p97 = por %p95, %p96
    %p98 = scmp.ne.s32.totalorder %s89, %s90
    %p99 = scmp.eq.s32.totalorder %s16, 0
    %p100 = por %p98, %p99
    %p101 = scmp.ne.s32.totalorder %s89, %s90
    %p102 = scmp.eq.s32.totalorder %s17, 1
    %p103 = por %p101, %p102
    %p105 = scmp.ne.s32.totalorder %s90, %s104
    %p106 = scmp.eq.s32.totalorder %s17, 0
    %p107 = por %p105, %p106
    %s108 = ssub.s32 %s11, %s18
    %p109 = scmp.eq.s32.totalorder %s108, 0
    %s111 = sadd.s32 %s110, 1
    %s112 = scalar_select %p109, %s110, %s111
    %p115 = pneg %p109
    %p116 = scmp.eq.s32.totalorder %s11, 1
    %p117 = por %p115, %p116
    %p118 = scmp.ne.s32.totalorder %s110, %s113
    %p119 = scmp.eq.s32.totalorder %s11, 0
    %p120 = por %p118, %p119
    %p121 = scmp.ne.s32.totalorder %s110, %s113
    %p122 = scmp.eq.s32.totalorder %s16, 1
    %p123 = por %p121, %p122
    %p124 = scmp.ne.s32.totalorder %s113, %s114
    %p125 = scmp.eq.s32.totalorder %s16, 0
    %p126 = por %p124, %p125
    %p127 = scmp.ne.s32.totalorder %s113, %s114
    %p128 = scmp.eq.s32.totalorder %s17, 1
    %p129 = por %p127, %p128
    %p131 = scmp.ne.s32.totalorder %s114, %s130
    %p132 = scmp.eq.s32.totalorder %s17, 0
    %p133 = por %p131, %p132
    %s134 = ssub.s32 %s11, %s18
    %p135 = scmp.eq.s32.totalorder %s134, 0
    %s137 = sadd.s32 %s136, 1
    %s138 = scalar_select %p135, %s136, %s137
    %p141 = pneg %p135
    %p142 = scmp.eq.s32.totalorder %s11, 1
    %p143 = por %p141, %p142
    %p144 = scmp.ne.s32.totalorder %s136, %s139
    %p145 = scmp.eq.s32.totalorder %s11, 0
    %p146 = por %p144, %p145
    %p147 = scmp.ne.s32.totalorder %s136, %s139
    %p148 = scmp.eq.s32.totalorder %s16, 1
    %p149 = por %p147, %p148
    %p150 = scmp.ne.s32.totalorder %s139, %s140
    %p151 = scmp.eq.s32.totalorder %s16, 0
    %p152 = por %p150, %p151
    %p153 = scmp.ne.s32.totalorder %s139, %s140
    %p154 = scmp.eq.s32.totalorder %s17, 1
    %p155 = por %p153, %p154
    %p157 = scmp.ne.s32.totalorder %s140, %s156
    %p158 = scmp.eq.s32.totalorder %s17, 0
    %p159 = por %p157, %p158
    %p160 = scmp.le.s32.totalorder 1, %s11
    %p161 = scmp.lt.s32.totalorder %s11, 3
    %p162 = pnand %p160, %p161
    %p163 = pneg %p162
    // Predicated region
    $region9: #{_lambda_.7} parent=5 // pred_check
      _
    $region10: #{_lambda_.7} parent=5 // pred_check_branch
      %165 = sbr.rel (%p162) target = $region12
    $region11: #{_lambda_.7} parent=5 // pred_region
      %s166 = ssub.s32 %s11, 1
      // Predicated region
      $region13: #{_lambda_.7} parent=11 // pred_check
        %p167 = pneg %p58
      $region14: #{_lambda_.7} parent=11 // pred_check_branch
        %169 = sbr.rel (%p167) target = $region16
      $region15: #{_lambda_.7} parent=11 // pred_region
        _
      $region16: #{_lambda_.7} parent=11 // pred_fallthru
        _
      // Predicated region
      $region17: #{_lambda_.7} parent=11 // pred_check
        %p170 = pneg %p79
      $region18: #{_lambda_.7} parent=11 // pred_check_branch
        %172 = sbr.rel (%p170) target = $region20
      $region19: #{_lambda_.7} parent=11 // pred_region
        _
      $region20: #{_lambda_.7} parent=11 // pred_fallthru
        _
      // Predicated region
      $region21: #{_lambda_.7} parent=11 // pred_check
        %p173 = pneg %p100
      $region22: #{_lambda_.7} parent=11 // pred_check_branch
        %175 = sbr.rel (%p173) target = $region24
      $region23: #{_lambda_.7} parent=11 // pred_region
        _
      $region24: #{_lambda_.7} parent=11 // pred_fallthru
        _
    $region12: #{_lambda_.7} parent=5 // pred_fallthru
      _
    %p176 = scmp.lt.s32.totalorder %s11, 2
    // Predicated region
    $region25: #{_lambda_.7} parent=5 // pred_check
      %p177 = pneg %p176
    $region26: #{_lambda_.7} parent=5 // pred_check_branch
      %179 = sbr.rel (%p177) target = $region28
    $region27: #{_lambda_.7} parent=5 // pred_region
      // Predicated region
      $region29: #{_lambda_.7} parent=27 // pred_check
        %p180 = pneg %p31
      $region30: #{_lambda_.7} parent=27 // pred_check_branch
        %182 = sbr.rel (%p180) target = $region32
      $region31: #{_lambda_.7} parent=27 // pred_region
        %p183 = scmp.lt.s32.totalorder %s11, 1
        %s184 = scalar_select %p183, %s11, 1
        %s185 = smul.addr %s184, 8
        %s186 = smul.addr %s185, 4
        %s187 = scalar_lea.vmem %s0, %s186
      $region32: #{_lambda_.7} parent=27 // pred_fallthru
        _
      // Predicated region
      $region33: #{_lambda_.7} parent=27 // pred_check
        %p188 = pneg %p120
      $region34: #{_lambda_.7} parent=27 // pred_check_branch
        %190 = sbr.rel (%p188) target = $region36
      $region35: #{_lambda_.7} parent=27 // pred_region
        %p191 = scmp.lt.s32.totalorder %s11, 1
        %s192 = scalar_select %p191, %s11, 1
        %s193 = smul.addr %s192, 8
        %s194 = smul.addr %s193, 4
        %s195 = scalar_lea.vmem %s4, %s194
      $region36: #{_lambda_.7} parent=27 // pred_fallthru
        _
    $region28: #{_lambda_.7} parent=5 // pred_fallthru
      _
    %p196 = scmp.le.s32.totalorder 1, %s11
    %p197 = scmp.lt.s32.totalorder %s11, 3
    %p198 = pnand %p196, %p197
    %p199 = pneg %p198
    // Predicated region
    $region37: #{_lambda_.7} parent=5 // pred_check
      _
    $region38: #{_lambda_.7} parent=5 // pred_check_branch
      %201 = sbr.rel (%p198) target = $region40
    $region39: #{_lambda_.7} parent=5 // pred_region
      %s202 = ssub.s32 %s11, 1
      %p203 = scmp.lt.s32.totalorder %s16, 1
      %s204 = scalar_select %p203, %s16, 1
      %s205 = smul.addr %s204, 8
      %s206 = smul.addr %s205, 4
      %s207 = scalar_lea.vmem %s0, %s206
      %p208 = pneg %p37
      %p209 = pneg %p34
      %p210 = pneg %p58
      %p211 = pneg %p55
      %p212 = pneg %p79
      %p213 = pneg %p76
      %p214 = pneg %p100
      %p215 = pneg %p97
      %p216 = scmp.lt.s32.totalorder %s16, 1
      %s217 = scalar_select %p216, %s16, 1
      %s218 = smul.addr %s217, 8
      %s219 = smul.addr %s218, 4
      %s220 = scalar_lea.vmem %s4, %s219
      %p221 = pneg %p126
      %p222 = pneg %p123
      %p223 = pneg %p152
      %p224 = pneg %p149
      %p225 = scmp.lt.s32.totalorder %s16, 1
      %s226 = scalar_select %p225, %s16, 1
      %s227 = smul.addr %s226, 8
      %s228 = smul.addr %s227, 8
      %s229 = scalar_lea.vmem %s5, %s228
      %p230 = scmp.lt.s32.totalorder %s16, 1
      %s231 = scalar_select %p230, %s16, 1
      %s232 = smul.addr %s231, 8
      %s233 = smul.addr %s232, 4
      %s234 = scalar_lea.vmem %s0, %s233
      %p235 = scmp.lt.s32.totalorder %s16, 1
      %s236 = scalar_select %p235, %s16, 1
      %s237 = smul.addr %s236, 8
      %s238 = smul.addr %s237, 4
      %s239 = scalar_lea.vmem %s4, %s238
      %p240 = scmp.lt.s32.totalorder %s16, 1
      %s241 = scalar_select %p240, %s16, 1
      %s242 = smul.addr %s241, 8
      %s243 = smul.addr %s242, 8
      %s244 = scalar_lea.vmem %s5, %s243
      %p246 = scmp.eq.s32.totalorder %s16, 0
      // Predicated region
      $region41: #{_lambda_.7} parent=39 // pred_check
        %p247 = pneg %p246
      $region42: #{_lambda_.7} parent=39 // pred_check_branch
        %249 = sbr.rel (%p247) target = $region44
      $region43: #{_lambda_.7} parent=39 // pred_region
        %vm250 = vcmask 64512
        %251 = vst.msk [vmem:[#allocation2] sm:$0xff] %vm250, 0
        %252 = vst.msk [vmem:[#allocation2 + $0x28] sm:$0xff] %vm250, 0
      $region44: #{_lambda_.7} parent=39 // pred_fallthru
        _
      %v253 = vlaneseq
      %v254 = vshrl.u32 %v253, 7
      %v255 = vadd.s32 %v254, 8
      %v256 = vadd.s32 %v254, 16
      %v257 = vadd.s32 %v254, 24
      %v258 = vadd.s32 %v254, 32
      %v259 = vadd.s32 %v254, 40
      %v260 = vadd.s32 %v254, 48
      %v261 = vadd.s32 %v254, 56
      %vm262 = vcmp.lt.s32.totalorder %v254, 0
      %v263 = vsub.s32 0, %v254
      %v264 = vsel %vm262, %v263, %v254
      %v265 = vshrl.u32 %v264, 3
      %v266 = vand.u32 %v264, 7
      %v267 = vsub.s32 0, %v266
      %v268 = vsel %vm262, %v267, %v266
      %vm269 = vcmp.lt.s32.totalorder %v255, 0
      %v270 = vsub.s32 0, %v255
      %v271 = vsel %vm269, %v270, %v255
      %v272 = vshrl.u32 %v271, 3
      %v273 = vand.u32 %v271, 7
      %v274 = vsub.s32 0, %v273
      %v275 = vsel %vm269, %v274, %v273
      %vm276 = vcmp.lt.s32.totalorder %v256, 0
      %v277 = vsub.s32 0, %v256
      %v278 = vsel %vm276, %v277, %v256
      %v279 = vshrl.u32 %v278, 3
      %v280 = vand.u32 %v278, 7
      %v281 = vsub.s32 0, %v280
      %v282 = vsel %vm276, %v281, %v280
      %vm283 = vcmp.lt.s32.totalorder %v257, 0
      %v284 = vsub.s32 0, %v257
      %v285 = vsel %vm283, %v284, %v257
      %v286 = vshrl.u32 %v285, 3
      %v287 = vand.u32 %v285, 7
      %v288 = vsub.s32 0, %v287
      %v289 = vsel %vm283, %v288, %v287
      %vm290 = vcmp.lt.s32.totalorder %v258, 0
      %v291 = vsub.s32 0, %v258
      %v292 = vsel %vm290, %v291, %v258
      %v293 = vshrl.u32 %v292, 3
      %v294 = vand.u32 %v292, 7
      %v295 = vsub.s32 0, %v294
      %v296 = vsel %vm290, %v295, %v294
      %vm297 = vcmp.lt.s32.totalorder %v259, 0
      %v298 = vsub.s32 0, %v259
      %v299 = vsel %vm297, %v298, %v259
      %v300 = vshrl.u32 %v299, 3
      %v301 = vand.u32 %v299, 7
      %v302 = vsub.s32 0, %v301
      %v303 = vsel %vm297, %v302, %v301
      %vm304 = vcmp.lt.s32.totalorder %v260, 0
      %v305 = vsub.s32 0, %v260
      %v306 = vsel %vm304, %v305, %v260
      %v307 = vshrl.u32 %v306, 3
      %v308 = vand.u32 %v306, 7
      %v309 = vsub.s32 0, %v308
      %v310 = vsel %vm304, %v309, %v308
      %vm311 = vcmp.lt.s32.totalorder %v261, 0
      %v312 = vsub.s32 0, %v261
      %v313 = vsel %vm311, %v312, %v261
      %v314 = vshrl.u32 %v313, 3
      %v315 = vand.u32 %v313, 7
      %v316 = vsub.s32 0, %v315
      %v317 = vsel %vm311, %v316, %v315
      %vm318 = vcmp.ne.s32.totalorder %v268, 0
      %vm319 = vcmp.ne.s32.totalorder %v275, 0
      %vm320 = vcmp.ne.s32.totalorder %v282, 0
      %vm321 = vcmp.ne.s32.totalorder %v289, 0
      %vm322 = vcmp.ne.s32.totalorder %v296, 0
      %vm323 = vcmp.ne.s32.totalorder %v303, 0
      %vm324 = vcmp.ne.s32.totalorder %v310, 0
      %vm325 = vcmp.ne.s32.totalorder %v317, 0
      %vm326 = vcmp.lt.s32.totalorder %v268, 0
      %vm327 = vcmp.lt.s32.totalorder %v275, 0
      %vm328 = vcmp.lt.s32.totalorder %v282, 0
      %vm329 = vcmp.lt.s32.totalorder %v289, 0
      %vm330 = vcmp.lt.s32.totalorder %v296, 0
      %vm331 = vcmp.lt.s32.totalorder %v303, 0
      %vm332 = vcmp.lt.s32.totalorder %v310, 0
      %vm333 = vcmp.lt.s32.totalorder %v317, 0
      %vm334 = vmand %vm326, %vm318
      %vm335 = vmand %vm327, %vm319
      %vm336 = vmand %vm328, %vm320
      %vm337 = vmand %vm329, %vm321
      %vm338 = vmand %vm330, %vm322
      %vm339 = vmand %vm331, %vm323
      %vm340 = vmand %vm332, %vm324
      %vm341 = vmand %vm333, %vm325
      %v342 = vadd.s32 %v268, 8
      %v343 = vadd.s32 %v275, 8
      %v344 = vadd.s32 %v282, 8
      %v345 = vadd.s32 %v289, 8
      %v346 = vadd.s32 %v296, 8
      %v347 = vadd.s32 %v303, 8
      %v348 = vadd.s32 %v310, 8
      %v349 = vadd.s32 %v317, 8
      %v350 = vsel %vm334, %v342, %v268
      %v351 = vsel %vm335, %v343, %v275
      %v352 = vsel %vm336, %v344, %v282
      %v353 = vsel %vm337, %v345, %v289
      %v354 = vsel %vm338, %v346, %v296
      %v355 = vsel %vm339, %v347, %v303
      %v356 = vsel %vm340, %v348, %v310
      %v357 = vsel %vm341, %v349, %v317
      %vm358 = vcmp.ne.s32.totalorder %v350, 0
      %vm359 = vcmp.ne.s32.totalorder %v351, 0
      %vm360 = vcmp.ne.s32.totalorder %v352, 0
      %vm361 = vcmp.ne.s32.totalorder %v353, 0
      %vm362 = vcmp.ne.s32.totalorder %v354, 0
      %vm363 = vcmp.ne.s32.totalorder %v355, 0
      %vm364 = vcmp.ne.s32.totalorder %v356, 0
      %vm365 = vcmp.ne.s32.totalorder %v357, 0
      %v366 = vsel %vm358, 1, 0
      %v367 = vsel %vm359, 1, 0
      %v368 = vsel %vm360, 1, 0
      %v369 = vsel %vm361, 1, 0
      %v370 = vsel %vm362, 1, 0
      %v371 = vsel %vm363, 1, 0
      %v372 = vsel %vm364, 1, 0
      %v373 = vsel %vm365, 1, 0
      %v374 = vcvt.s32.f32 %v366
      %v375 = vcvt.s32.f32 %v367
      %v376 = vcvt.s32.f32 %v368
      %v377 = vcvt.s32.f32 %v369
      %v378 = vcvt.s32.f32 %v370
      %v379 = vcvt.s32.f32 %v371
      %v380 = vcvt.s32.f32 %v372
      %v381 = vcvt.s32.f32 %v373
      %v382 = vpack.c.bf16 %v375, %v374
      %v383 = vpack.c.bf16 %v377, %v376
      %v384 = vpack.c.bf16 %v379, %v378
      %v385 = vpack.c.bf16 %v381, %v380
      %vm386 = vcmp.ne.s32.totalorder %v350, 7
      %vm387 = vcmp.ne.s32.totalorder %v351, 7
      %vm388 = vcmp.ne.s32.totalorder %v352, 7
      %vm389 = vcmp.ne.s32.totalorder %v353, 7
      %vm390 = vcmp.ne.s32.totalorder %v354, 7
      %vm391 = vcmp.ne.s32.totalorder %v355, 7
      %vm392 = vcmp.ne.s32.totalorder %v356, 7
      %vm393 = vcmp.ne.s32.totalorder %v357, 7
      %v394 = vsel %vm386, 1, 0
      %v395 = vsel %vm387, 1, 0
      %v396 = vsel %vm388, 1, 0
      %v397 = vsel %vm389, 1, 0
      %v398 = vsel %vm390, 1, 0
      %v399 = vsel %vm391, 1, 0
      %v400 = vsel %vm392, 1, 0
      %v401 = vsel %vm393, 1, 0
      %v402 = vcvt.s32.f32 %v394
      %v403 = vcvt.s32.f32 %v395
      %v404 = vcvt.s32.f32 %v396
      %v405 = vcvt.s32.f32 %v397
      %v406 = vcvt.s32.f32 %v398
      %v407 = vcvt.s32.f32 %v399
      %v408 = vcvt.s32.f32 %v400
      %v409 = vcvt.s32.f32 %v401
      %v410 = vpack.c.bf16 %v403, %v402
      %v411 = vpack.c.bf16 %v405, %v404
      %v412 = vpack.c.bf16 %v407, %v406
      %v413 = vpack.c.bf16 %v409, %v408
      %v414 = vld [vmem:[%s234] sm:$0xf]
      %v415 = vld [vmem:[%s234 + $0x4] sm:$0xf]
      %v416 = vld [vmem:[%s234 + $0x8] sm:$0xf]
      %v417 = vld [vmem:[%s234 + $0xc] sm:$0xf]
      %v418 = vld [vmem:[%s234 + $0x10] sm:$0xf]
      %v419 = vld [vmem:[%s234 + $0x14] sm:$0xf]
      %v420 = vld [vmem:[%s234 + $0x18] sm:$0xf]
      %v421 = vld [vmem:[%s234 + $0x1c] sm:$0xf]
      %v430 = vunpack.c.l.b16 %v414
      %v431 = vunpack.c.l.b16 %v415
      %v432 = vunpack.c.l.b16 %v416
      %v433 = vunpack.c.l.b16 %v417
      %v434 = vunpack.c.l.b16 %v418
      %v435 = vunpack.c.l.b16 %v419
      %v436 = vunpack.c.l.b16 %v420
      %v437 = vunpack.c.l.b16 %v421
      %v438 = vpack.c.b16 %v431, %v430
      %v439 = vpack.c.b16 %v433, %v432
      %v440 = vpack.c.b16 %v435, %v434
      %v441 = vpack.c.b16 %v437, %v436
      %vm446 = vcmask 64512
      %447 = vst.msk [vmem:[#allocation2 + $0x8] sm:$0xff] %vm446, %v438
      %448 = vst.msk [vmem:[#allocation2 + $0x10] sm:$0xff] %vm446, %v439
      %449 = vst.msk [vmem:[#allocation2 + $0x18] sm:$0xff] %vm446, %v440
      %450 = vst.msk [vmem:[#allocation2 + $0x20] sm:$0xff] %vm446, %v441
      %v451 = vld [vmem:[#allocation2] sm:$0xf8]
      %v452 = vld [vmem:[#allocation2 + $0x8] sm:$0xff]
      %v453 = vld [vmem:[#allocation2 + $0x10] sm:$0xff]
      %v454 = vld [vmem:[#allocation2 + $0x18] sm:$0xff]
      %v455 = vld [vmem:[#allocation2 + $0x20] sm:$0xf]
      %vm456 = vsmask.f32 3328
      %v458 = vshrl.u32 %v382, 16
      %v460 = vrot.slane %v458, 4
      %v461 = vshll.u32 %v382, 16
      %v463 = vrot.slane %v461, 5
      %v464 = vor.u32 %v460, %v463
      %v466 = vshrl.u32 %v383, 16
      %v468 = vrot.slane %v466, 4
      %v469 = vshll.u32 %v383, 16
      %v471 = vrot.slane %v469, 5
      %v472 = vor.u32 %v468, %v471
      %v473 = vsel %vm456, %v464, %v472
      %v475 = vshrl.u32 %v384, 16
      %v477 = vrot.slane %v475, 4
      %v478 = vshll.u32 %v384, 16
      %v480 = vrot.slane %v478, 5
      %v481 = vor.u32 %v477, %v480
      %v482 = vsel %vm456, %v472, %v481
      %v484 = vshrl.u32 %v385, 16
      %v486 = vrot.slane %v484, 4
      %v487 = vshll.u32 %v385, 16
      %v489 = vrot.slane %v487, 5
      %v490 = vor.u32 %v486, %v489
      %v491 = vsel %vm456, %v481, %v490
      %v497 = vmul.bf16 %v451, %v464
      %v498 = vmul.bf16 %v452, %v473
      %v499 = vmul.bf16 %v453, %v482
      %v500 = vmul.bf16 %v454, %v491
      %v501 = vmul.bf16 %v455, %v490
      %v502 = vld [vmem:[%s1] sm:$0xf]
      %v503 = vld [vmem:[#allocation2] sm:$0xf0]
      %s504 = scalar_lea.vmem %s1, 4
      %v505 = vld [vmem:[%s504] sm:$0xf]
      %vm511 = vcmask 1043456
      %v512 = vrot.slane %v503, 4
      %v513 = vrot.slane %v452, 4
      %v514 = vsel %vm511, %v512, %v513
      %v515 = vrot.slane %v453, 4
      %v516 = vsel %vm511, %v513, %v515
      %v517 = vrot.slane %v454, 4
      %v518 = vsel %vm511, %v515, %v517
      %v519 = vrot.slane %v455, 4
      %v520 = vsel %vm511, %v517, %v519
      %v522 = vsel %vm446, %v514, 0
      %v525 = vsel %vm446, %v516, 0
      %v528 = vsel %vm446, %v518, 0
      %v531 = vsel %vm446, %v520, 0
      %vm533 = vcmask 1043456
      %v535 = vsel %vm533, %v505, 0
      %537 = vmatprep.subr.bf16.mxu0 0
      %538 = vmatpush1.bf16.msra.mxu0 %v535
      %539 = vmatprep.subr.bf16.mxu0 0
      %540 = vmatpush1.bf16.msra.mxu0 0
      %541 = vmatprep.subr.bf16.mxu0 0
      %542 = vmatpush1.bf16.msra.mxu0 0
      %543 = vmatprep.subr.bf16.mxu0 0
      %544 = vmatpush1.bf16.msra.mxu0 0
      %545 = vmatprep.subr.bf16.mxu0 0
      %546 = vmatpush1.bf16.msra.mxu0 0
      %547 = vmatprep.subr.bf16.mxu0 0
      %548 = vmatpush1.bf16.msra.mxu0 0
      %549 = vmatprep.subr.bf16.mxu0 0
      %550 = vmatpush1.bf16.msra.mxu0 0
      %551 = vmatprep.subr.bf16.mxu0 0
      %552 = vmatpush1.bf16.msra.mxu0 0
      %553 = vmatprep.subr.bf16.mxu0 0
      %554 = vmatpush1.bf16.msra.mxu0 0
      %555 = vmatprep.subr.bf16.mxu0 0
      %556 = vmatpush1.bf16.msra.mxu0 0
      %557 = vmatprep.subr.bf16.mxu0 0
      %558 = vmatpush1.bf16.msra.mxu0 0
      %559 = vmatprep.subr.bf16.mxu0 0
      %560 = vmatpush1.bf16.msra.mxu0 0
      %561 = vmatprep.subr.bf16.mxu0 0
      %562 = vmatpush1.bf16.msra.mxu0 0
      %563 = vmatprep.subr.bf16.mxu0 0
      %564 = vmatpush1.bf16.msra.mxu0 0
      %565 = vmatprep.subr.bf16.mxu0 0
      %566 = vmatpush1.bf16.msra.mxu0 0
      %567 = vmatprep.subr.bf16.mxu0 0
      %568 = vmatpush1.bf16.msra.mxu0 0
      %569 = vmatprep.mubr.bf16.mxu0 0
      %570 = vmatmul.mubr.bf16.gmra.mrb[0].mxu0 %v522
      %v571 = vpop.f32.mrb[0].mxu0
      %v572 = vadd.f32 0.0, %v571
      %v573 = vpop.f32.mrb[0].mxu0
      %v574 = vpop.f32.mrb[0].mxu0
      %v575 = vadd.f32 0.0, %v574
      %v576 = vpop.f32.mrb[0].mxu0
      %577 = vmatprep.mubr.bf16.mxu0 0
      %578 = vmatmul.mubr.bf16.gmra.mrb[0].mxu0 %v525
      %v579 = vpop.f32.mrb[0].mxu0
      %v580 = vadd.f32 0.0, %v579
      %v581 = vpop.f32.mrb[0].mxu0
      %v582 = vpop.f32.mrb[0].mxu0
      %v583 = vadd.f32 0.0, %v582
      %v584 = vpop.f32.mrb[0].mxu0
      %585 = vmatprep.mubr.bf16.mxu0 0
      %586 = vmatmul.mubr.bf16.gmra.mrb[0].mxu0 %v528
      %v587 = vpop.f32.mrb[0].mxu0
      %v588 = vadd.f32 0.0, %v587
      %v589 = vpop.f32.mrb[0].mxu0
      %v590 = vpop.f32.mrb[0].mxu0
      %v591 = vadd.f32 0.0, %v590
      %v592 = vpop.f32.mrb[0].mxu0
      %593 = vmatprep.mubr.bf16.mxu0 0
      %594 = vmatmul.mubr.bf16.gmra.mrb[0].mxu0 %v531
      %v595 = vpop.f32.mrb[0].mxu0
      %v596 = vadd.f32 0.0, %v595
      %v597 = vpop.f32.mrb[0].mxu0
      %v598 = vpop.f32.mrb[0].mxu0
      %v599 = vadd.f32 0.0, %v598
      %v600 = vpop.f32.mrb[0].mxu0
      %601 = vdwg.mxu0
      %vm602 = vsmask.f32 4352
      %v604 = vshrl.u32 %v497, 16
      %v606 = vrot.slane %v604, 3
      %v607 = vshll.u32 %v497, 16
      %v609 = vrot.slane %v607, 4
      %v610 = vor.u32 %v606, %v609
      %v612 = vshrl.u32 %v498, 16
      %v614 = vrot.slane %v612, 3
      %v615 = vshll.u32 %v498, 16
      %v617 = vrot.slane %v615, 4
      %v618 = vor.u32 %v614, %v617
      %v619 = vsel %vm602, %v610, %v618
      %v621 = vshrl.u32 %v499, 16
      %v623 = vrot.slane %v621, 3
      %v624 = vshll.u32 %v499, 16
      %v626 = vrot.slane %v624, 4
      %v627 = vor.u32 %v623, %v626
      %v628 = vsel %vm602, %v618, %v627
      %v630 = vshrl.u32 %v500, 16
      %v632 = vrot.slane %v630, 3
      %v633 = vshll.u32 %v500, 16
      %v635 = vrot.slane %v633, 4
      %v636 = vor.u32 %v632, %v635
      %v637 = vsel %vm602, %v627, %v636
      %v639 = vshrl.u32 %v501, 16
      %v641 = vrot.slane %v639, 3
      %v642 = vshll.u32 %v501, 16
      %v644 = vrot.slane %v642, 4
      %v645 = vor.u32 %v641, %v644
      %v646 = vsel %vm602, %v636, %v645
      %v648 = vsel %vm446, %v619, 0
      %v651 = vsel %vm446, %v628, 0
      %v654 = vsel %vm446, %v637, 0
      %v657 = vsel %vm446, %v646, 0
      %v660 = vsel %vm533, %v502, 0
      %662 = vmatprep.subr.bf16.mxu0 0
      %663 = vmatpush1.bf16.msra.mxu0 %v660
      %664 = vmatprep.subr.bf16.mxu0 0
      %665 = vmatpush1.bf16.msra.mxu0 0
      %666 = vmatprep.subr.bf16.mxu0 0
      %667 = vmatpush1.bf16.msra.mxu0 0
      %668 = vmatprep.subr.bf16.mxu0 0
      %669 = vmatpush1.bf16.msra.mxu0 0
      %670 = vmatprep.subr.bf16.mxu0 0
      %671 = vmatpush1.bf16.msra.mxu0 0
      %672 = vmatprep.subr.bf16.mxu0 0
      %673 = vmatpush1.bf16.msra.mxu0 0
      %674 = vmatprep.subr.bf16.mxu0 0
      %675 = vmatpush1.bf16.msra.mxu0 0
      %676 = vmatprep.subr.bf16.mxu0 0
      %677 = vmatpush1.bf16.msra.mxu0 0
      %678 = vmatprep.subr.bf16.mxu0 0
      %679 = vmatpush1.bf16.msra.mxu0 0
      %680 = vmatprep.subr.bf16.mxu0 0
      %681 = vmatpush1.bf16.msra.mxu0 0
      %682 = vmatprep.subr.bf16.mxu0 0
      %683 = vmatpush1.bf16.msra.mxu0 0
      %684 = vmatprep.subr.bf16.mxu0 0
      %685 = vmatpush1.bf16.msra.mxu0 0
      %686 = vmatprep.subr.bf16.mxu0 0
      %687 = vmatpush1.bf16.msra.mxu0 0
      %688 = vmatprep.subr.bf16.mxu0 0
      %689 = vmatpush1.bf16.msra.mxu0 0
      %690 = vmatprep.subr.bf16.mxu0 0
      %691 = vmatpush1.bf16.msra.mxu0 0
      %692 = vmatprep.subr.bf16.mxu0 0
      %693 = vmatpush1.bf16.msra.mxu0 0
      %694 = vmatprep.mubr.bf16.mxu0 0
      %695 = vmatmul.mubr.bf16.gmra.mrb[0].mxu0 %v648
      %v696 = vpop.f32.mrb[0].mxu0
      %v697 = vadd.f32 %v572, %v696
      %v698 = vpop.f32.mrb[0].mxu0
      %v699 = vpop.f32.mrb[0].mxu0
      %v700 = vadd.f32 %v575, %v699
      %v701 = vpop.f32.mrb[0].mxu0
      %702 = vmatprep.mubr.bf16.mxu0 0
      %703 = vmatmul.mubr.bf16.gmra.mrb[0].mxu0 %v651
      %v704 = vpop.f32.mrb[0].mxu0
      %v705 = vadd.f32 %v580, %v704
      %v706 = vpop.f32.mrb[0].mxu0
      %v707 = vpop.f32.mrb[0].mxu0
      %v708 = vadd.f32 %v583, %v707
      %v709 = vpop.f32.mrb[0].mxu0
      %710 = vmatprep.mubr.bf16.mxu0 0
      %711 = vmatmul.mubr.bf16.gmra.mrb[0].mxu0 %v654
      %v712 = vpop.f32.mrb[0].mxu0
      %v713 = vadd.f32 %v588, %v712
      %v714 = vpop.f32.mrb[0].mxu0
      %v715 = vpop.f32.mrb[0].mxu0
      %v716 = vadd.f32 %v591, %v715
      %v717 = vpop.f32.mrb[0].mxu0
      %718 = vmatprep.mubr.bf16.mxu0 0
      %719 = vmatmul.mubr.bf16.gmra.mrb[0].mxu0 %v657
      %v720 = vpop.f32.mrb[0].mxu0
      %v721 = vadd.f32 %v596, %v720
      %v722 = vpop.f32.mrb[0].mxu0
      %v723 = vpop.f32.mrb[0].mxu0
      %v724 = vadd.f32 %v599, %v723
      %v725 = vpop.f32.mrb[0].mxu0
      %726 = vdwg.mxu0
      %v727 = vld [vmem:[#allocation2 + $0x20] sm:$0x1f]
      %v729 = vshrl.u32 %v410, 16
      %v731 = vrot.slane %v729, 3
      %v732 = vshll.u32 %v410, 16
      %v734 = vrot.slane %v732, 4
      %v735 = vor.u32 %v731, %v734
      %v737 = vshrl.u32 %v411, 16
      %v739 = vrot.slane %v737, 3
      %v740 = vshll.u32 %v411, 16
      %v742 = vrot.slane %v740, 4
      %v743 = vor.u32 %v739, %v742
      %v744 = vsel %vm602, %v735, %v743
      %v746 = vshrl.u32 %v412, 16
      %v748 = vrot.slane %v746, 3
      %v749 = vshll.u32 %v412, 16
      %v751 = vrot.slane %v749, 4
      %v752 = vor.u32 %v748, %v751
      %v753 = vsel %vm602, %v743, %v752
      %v755 = vshrl.u32 %v413, 16
      %v757 = vrot.slane %v755, 3
      %v758 = vshll.u32 %v413, 16
      %v760 = vrot.slane %v758, 4
      %v761 = vor.u32 %v757, %v760
      %v762 = vsel %vm602, %v752, %v761
      %v768 = vmul.bf16 %v503, %v735
      %v769 = vmul.bf16 %v452, %v744
      %v770 = vmul.bf16 %v453, %v753
      %v771 = vmul.bf16 %v454, %v762
      %v772 = vmul.bf16 %v727, %v761
      %s773 = scalar_lea.vmem %s1, 8
      %v774 = vld [vmem:[%s773] sm:$0xf]
      %v776 = vshrl.u32 %v768, 16
      %v778 = vrot.slane %v776, 4
      %v779 = vshll.u32 %v768, 16
      %v781 = vrot.slane %v779, 5
      %v782 = vor.u32 %v778, %v781
      %v784 = vshrl.u32 %v769, 16
      %v786 = vrot.slane %v784, 4
      %v787 = vshll.u32 %v769, 16
      %v789 = vrot.slane %v787, 5
      %v790 = vor.u32 %v786, %v789
      %v791 = vsel %vm456, %v782, %v790
      %v793 = vshrl.u32 %v770, 16
      %v795 = vrot.slane %v793, 4
      %v796 = vshll.u32 %v770, 16
      %v798 = vrot.slane %v796, 5
      %v799 = vor.u32 %v795, %v798
      %v800 = vsel %vm456, %v790, %v799
      %v802 = vshrl.u32 %v771, 16
      %v804 = vrot.slane %v802, 4
      %v805 = vshll.u32 %v771, 16
      %v807 = vrot.slane %v805, 5
      %v808 = vor.u32 %v804, %v807
      %v809 = vsel %vm456, %v799, %v808
      %v811 = vshrl.u32 %v772, 16
      %v813 = vrot.slane %v811, 4
      %v814 = vshll.u32 %v772, 16
      %v816 = vrot.slane %v814, 5
      %v817 = vor.u32 %v813, %v816
      %v818 = vsel %vm456, %v808, %v817
      %v820 = vsel %vm446, %v791, 0
      %v823 = vsel %vm446, %v800, 0
      %v826 = vsel %vm446, %v809, 0
      %v829 = vsel %vm446, %v818, 0
      %v832 = vsel %vm533, %v774, 0
      %834 = vmatprep.subr.bf16.mxu0 0
      %835 = vmatpush1.bf16.msra.mxu0 %v832
      %836 = vmatprep.subr.bf16.mxu0 0
      %837 = vmatpush1.bf16.msra.mxu0 0
      %838 = vmatprep.subr.bf16.mxu0 0
      %839 = vmatpush1.bf16.msra.mxu0 0
      %840 = vmatprep.subr.bf16.mxu0 0
      %841 = vmatpush1.bf16.msra.mxu0 0
      %842 = vmatprep.subr.bf16.mxu0 0
      %843 = vmatpush1.bf16.msra.mxu0 0
      %844 = vmatprep.subr.bf16.mxu0 0
      %845 = vmatpush1.bf16.msra.mxu0 0
      %846 = vmatprep.subr.bf16.mxu0 0
      %847 = vmatpush1.bf16.msra.mxu0 0
      %848 = vmatprep.subr.bf16.mxu0 0
      %849 = vmatpush1.bf16.msra.mxu0 0
      %850 = vmatprep.subr.bf16.mxu0 0
      %851 = vmatpush1.bf16.msra.mxu0 0
      %852 = vmatprep.subr.bf16.mxu0 0
      %853 = vmatpush1.bf16.msra.mxu0 0
      %854 = vmatprep.subr.bf16.mxu0 0
      %855 = vmatpush1.bf16.msra.mxu0 0
      %856 = vmatprep.subr.bf16.mxu0 0
      %857 = vmatpush1.bf16.msra.mxu0 0
      %858 = vmatprep.subr.bf16.mxu0 0
      %859 = vmatpush1.bf16.msra.mxu0 0
      %860 = vmatprep.subr.bf16.mxu0 0
      %861 = vmatpush1.bf16.msra.mxu0 0
      %862 = vmatprep.subr.bf16.mxu0 0
      %863 = vmatpush1.bf16.msra.mxu0 0
      %864 = vmatprep.subr.bf16.mxu0 0
      %865 = vmatpush1.bf16.msra.mxu0 0
      %866 = vmatprep.mubr.bf16.mxu0 0
      %867 = vmatmul.mubr.bf16.gmra.mrb[0].mxu0 %v820
      %v868 = vpop.f32.mrb[0].mxu0
      %v869 = vadd.f32 0.0, %v868
      %v870 = vpop.f32.mrb[0].mxu0
      %v871 = vpop.f32.mrb[0].mxu0
      %v872 = vadd.f32 0.0, %v871
      %v873 = vpop.f32.mrb[0].mxu0
      %874 = vmatprep.mubr.bf16.mxu0 0
      %875 = vmatmul.mubr.bf16.gmra.mrb[0].mxu0 %v823
      %v876 = vpop.f32.mrb[0].mxu0
      %v877 = vadd.f32 0.0, %v876
      %v878 = vpop.f32.mrb[0].mxu0
      %v879 = vpop.f32.mrb[0].mxu0
      %v880 = vadd.f32 0.0, %v879
      %v881 = vpop.f32.mrb[0].mxu0
      %882 = vmatprep.mubr.bf16.mxu0 0
      %883 = vmatmul.mubr.bf16.gmra.mrb[0].mxu0 %v826
      %v884 = vpop.f32.mrb[0].mxu0
      %v885 = vadd.f32 0.0, %v884
      %v886 = vpop.f32.mrb[0].mxu0
      %v887 = vpop.f32.mrb[0].mxu0
      %v888 = vadd.f32 0.0, %v887
      %v889 = vpop.f32.mrb[0].mxu0
      %890 = vmatprep.mubr.bf16.mxu0 0
      %891 = vmatmul.mubr.bf16.gmra.mrb[0].mxu0 %v829
      %v892 = vpop.f32.mrb[0].mxu0
      %v893 = vadd.f32 0.0, %v892
      %v894 = vpop.f32.mrb[0].mxu0
      %v895 = vpop.f32.mrb[0].mxu0
      %v896 = vadd.f32 0.0, %v895
      %v897 = vpop.f32.mrb[0].mxu0
      %898 = vdwg.mxu0
      %v899 = vadd.f32 %v697, %v869
      %v900 = vadd.f32 %v700, %v872
      %v901 = vadd.f32 %v705, %v877
      %v902 = vadd.f32 %v708, %v880
      %v903 = vadd.f32 %v713, %v885
      %v904 = vadd.f32 %v716, %v888
      %v905 = vadd.f32 %v721, %v893
      %v906 = vadd.f32 %v724, %v896
      %v907 = vld [vmem:[#allocation2] sm:$0x80]
      %v908 = vld [vmem:[#allocation2 + $0x20] sm:$0xff]
      %vm909 = vsmask.f32 7424
      %v910 = vrot.slane %v461, 1
      %v911 = vor.u32 %v458, %v910
      %v912 = vrot.slane %v469, 1
      %v913 = vsel %vm909, %v911, %v912
      %v914 = vor.u32 %v466, %v912
      %v915 = vrot.slane %v478, 1
      %v916 = vsel %vm909, %v914, %v915
      %v917 = vor.u32 %v475, %v915
      %v918 = vrot.slane %v487, 1
      %v919 = vsel %vm909, %v917, %v918
      %v920 = vor.u32 %v484, %v918
      %v926 = vmul.bf16 %v907, %v910
      %v927 = vmul.bf16 %v452, %v913
      %v928 = vmul.bf16 %v453, %v916
      %v929 = vmul.bf16 %v454, %v919
      %v930 = vmul.bf16 %v908, %v920
      %s931 = scalar_lea.vmem %s1, 12
      %v932 = vld [vmem:[%s931] sm:$0xf]
      %vm933 = vsmask.f32 256
      %v935 = vshrl.u32 %v926, 16
      %v937 = vrot.slane %v935, 7
      %v939 = vshrl.u32 %v927, 16
      %v941 = vrot.slane %v939, 7
      %v942 = vshll.u32 %v927, 16
      %v944 = vor.u32 %v941, %v942
      %v945 = vsel %vm933, %v937, %v944
      %v947 = vshrl.u32 %v928, 16
      %v949 = vrot.slane %v947, 7
      %v950 = vshll.u32 %v928, 16
      %v952 = vor.u32 %v949, %v950
      %v953 = vsel %vm933, %v941, %v952
      %v955 = vshrl.u32 %v929, 16
      %v957 = vrot.slane %v955, 7
      %v958 = vshll.u32 %v929, 16
      %v960 = vor.u32 %v957, %v958
      %v961 = vsel %vm933, %v949, %v960
      %v963 = vshrl.u32 %v930, 16
      %v965 = vrot.slane %v963, 7
      %v966 = vshll.u32 %v930, 16
      %v968 = vor.u32 %v965, %v966
      %v969 = vsel %vm933, %v957, %v968
      %v971 = vsel %vm446, %v945, 0
      %v974 = vsel %vm446, %v953, 0
      %v977 = vsel %vm446, %v961, 0
      %v980 = vsel %vm446, %v969, 0
      %v983 = vsel %vm533, %v932, 0
      %985 = vmatprep.subr.bf16.mxu0 0
      %986 = vmatpush1.bf16.msra.mxu0 %v983
      %987 = vmatprep.subr.bf16.mxu0 0
      %988 = vmatpush1.bf16.msra.mxu0 0
      %989 = vmatprep.subr.bf16.mxu0 0
      %990 = vmatpush1.bf16.msra.mxu0 0
      %991 = vmatprep.subr.bf16.mxu0 0
      %992 = vmatpush1.bf16.msra.mxu0 0
      %993 = vmatprep.subr.bf16.mxu0 0
      %994 = vmatpush1.bf16.msra.mxu0 0
      %995 = vmatprep.subr.bf16.mxu0 0
      %996 = vmatpush1.bf16.msra.mxu0 0
      %997 = vmatprep.subr.bf16.mxu0 0
      %998 = vmatpush1.bf16.msra.mxu0 0
      %999 = vmatprep.subr.bf16.mxu0 0
      %1000 = vmatpush1.bf16.msra.mxu0 0
      %1001 = vmatprep.subr.bf16.mxu0 0
      %1002 = vmatpush1.bf16.msra.mxu0 0
      %1003 = vmatprep.subr.bf16.mxu0 0
      %1004 = vmatpush1.bf16.msra.mxu0 0
      %1005 = vmatprep.subr.bf16.mxu0 0
      %1006 = vmatpush1.bf16.msra.mxu0 0
      %1007 = vmatprep.subr.bf16.mxu0 0
      %1008 = vmatpush1.bf16.msra.mxu0 0
      %1009 = vmatprep.subr.bf16.mxu0 0
      %1010 = vmatpush1.bf16.msra.mxu0 0
      %1011 = vmatprep.subr.bf16.mxu0 0
      %1012 = vmatpush1.bf16.msra.mxu0 0
      %1013 = vmatprep.subr.bf16.mxu0 0
      %1014 = vmatpush1.bf16.msra.mxu0 0
      %1015 = vmatprep.subr.bf16.mxu0 0
      %1016 = vmatpush1.bf16.msra.mxu0 0
      %1017 = vmatprep.mubr.bf16.mxu0 0
      %1018 = vmatmul.mubr.bf16.gmra.mrb[0].mxu0 %v971
      %v1019 = vpop.f32.mrb[0].mxu0
      %v1020 = vadd.f32 0.0, %v1019
      %v1021 = vpop.f32.mrb[0].mxu0
      %v1022 = vpop.f32.mrb[0].mxu0
      %v1023 = vadd.f32 0.0, %v1022
      %v1024 = vpop.f32.mrb[0].mxu0
      %1025 = vmatprep.mubr.bf16.mxu0 0
      %1026 = vmatmul.mubr.bf16.gmra.mrb[0].mxu0 %v974
      %v1027 = vpop.f32.mrb[0].mxu0
      %v1028 = vadd.f32 0.0, %v1027
      %v1029 = vpop.f32.mrb[0].mxu0
      %v1030 = vpop.f32.mrb[0].mxu0
      %v1031 = vadd.f32 0.0, %v1030
      %v1032 = vpop.f32.mrb[0].mxu0
      %1033 = vmatprep.mubr.bf16.mxu0 0
      %1034 = vmatmul.mubr.bf16.gmra.mrb[0].mxu0 %v977
      %v1035 = vpop.f32.mrb[0].mxu0
      %v1036 = vadd.f32 0.0, %v1035
      %v1037 = vpop.f32.mrb[0].mxu0
      %v1038 = vpop.f32.mrb[0].mxu0
      %v1039 = vadd.f32 0.0, %v1038
      %v1040 = vpop.f32.mrb[0].mxu0
      %1041 = vmatprep.mubr.bf16.mxu0 0
      %1042 = vmatmul.mubr.bf16.gmra.mrb[0].mxu0 %v980
      %v1043 = vpop.f32.mrb[0].mxu0
      %v1044 = vadd.f32 0.0, %v1043
      %v1045 = vpop.f32.mrb[0].mxu0
      %v1046 = vpop.f32.mrb[0].mxu0
      %v1047 = vadd.f32 0.0, %v1046
      %v1048 = vpop.f32.mrb[0].mxu0
      %1049 = vdwg.mxu0
      %v1050 = vadd.f32 %v899, %v1020
      %v1051 = vadd.f32 %v900, %v1023
      %v1052 = vadd.f32 %v901, %v1028
      %v1053 = vadd.f32 %v902, %v1031
      %v1054 = vadd.f32 %v903, %v1036
      %v1055 = vadd.f32 %v904, %v1039
      %v1056 = vadd.f32 %v905, %v1044
      %v1057 = vadd.f32 %v906, %v1047
      %s1058 = scalar_lea.vmem %s1, 16
      %v1059 = vld [vmem:[%s1058] sm:$0xf]
      %v1061 = vsel %vm446, %v452, 0
      %v1064 = vsel %vm446, %v453, 0
      %v1067 = vsel %vm446, %v454, 0
      %v1070 = vsel %vm446, %v908, 0
      %v1073 = vsel %vm533, %v1059, 0
      %1075 = vmatprep.subr.bf16.mxu0 0
      %1076 = vmatpush1.bf16.msra.mxu0 %v1073
      %1077 = vmatprep.subr.bf16.mxu0 0
      %1078 = vmatpush1.bf16.msra.mxu0 0
      %1079 = vmatprep.subr.bf16.mxu0 0
      %1080 = vmatpush1.bf16.msra.mxu0 0
      %1081 = vmatprep.subr.bf16.mxu0 0
      %1082 = vmatpush1.bf16.msra.mxu0 0
      %1083 = vmatprep.subr.bf16.mxu0 0
      %1084 = vmatpush1.bf16.msra.mxu0 0
      %1085 = vmatprep.subr.bf16.mxu0 0
      %1086 = vmatpush1.bf16.msra.mxu0 0
      %1087 = vmatprep.subr.bf16.mxu0 0
      %1088 = vmatpush1.bf16.msra.mxu0 0
      %1089 = vmatprep.subr.bf16.mxu0 0
      %1090 = vmatpush1.bf16.msra.mxu0 0
      %1091 = vmatprep.subr.bf16.mxu0 0
      %1092 = vmatpush1.bf16.msra.mxu0 0
      %1093 = vmatprep.subr.bf16.mxu0 0
      %1094 = vmatpush1.bf16.msra.mxu0 0
      %1095 = vmatprep.subr.bf16.mxu0 0
      %1096 = vmatpush1.bf16.msra.mxu0 0
      %1097 = vmatprep.subr.bf16.mxu0 0
      %1098 = vmatpush1.bf16.msra.mxu0 0
      %1099 = vmatprep.subr.bf16.mxu0 0
      %1100 = vmatpush1.bf16.msra.mxu0 0
      %1101 = vmatprep.subr.bf16.mxu0 0
      %1102 = vmatpush1.bf16.msra.mxu0 0
      %1103 = vmatprep.subr.bf16.mxu0 0
      %1104 = vmatpush1.bf16.msra.mxu0 0
      %1105 = vmatprep.subr.bf16.mxu0 0
      %1106 = vmatpush1.bf16.msra.mxu0 0
      %1107 = vmatprep.mubr.bf16.mxu0 0
      %1108 = vmatmul.mubr.bf16.gmra.mrb[0].mxu0 %v1061
      %v1109 = vpop.f32.mrb[0].mxu0
      %v1110 = vadd.f32 0.0, %v1109
      %v1111 = vpop.f32.mrb[0].mxu0
      %v1112 = vpop.f32.mrb[0].mxu0
      %v1113 = vadd.f32 0.0, %v1112
      %v1114 = vpop.f32.mrb[0].mxu0
      %1115 = vmatprep.mubr.bf16.mxu0 0
      %1116 = vmatmul.mubr.bf16.gmra.mrb[0].mxu0 %v1064
      %v1117 = vpop.f32.mrb[0].mxu0
      %v1118 = vadd.f32 0.0, %v1117
      %v1119 = vpop.f32.mrb[0].mxu0
      %v1120 = vpop.f32.mrb[0].mxu0
      %v1121 = vadd.f32 0.0, %v1120
      %v1122 = vpop.f32.mrb[0].mxu0
      %1123 = vmatprep.mubr.bf16.mxu0 0
      %1124 = vmatmul.mubr.bf16.gmra.mrb[0].mxu0 %v1067
      %v1125 = vpop.f32.mrb[0].mxu0
      %v1126 = vadd.f32 0.0, %v1125
      %v1127 = vpop.f32.mrb[0].mxu0
      %v1128 = vpop.f32.mrb[0].mxu0
      %v1129 = vadd.f32 0.0, %v1128
      %v1130 = vpop.f32.mrb[0].mxu0
      %1131 = vmatprep.mubr.bf16.mxu0 0
      %1132 = vmatmul.mubr.bf16.gmra.mrb[0].mxu0 %v1070
      %v1133 = vpop.f32.mrb[0].mxu0
      %v1134 = vadd.f32 0.0, %v1133
      %v1135 = vpop.f32.mrb[0].mxu0
      %v1136 = vpop.f32.mrb[0].mxu0
      %v1137 = vadd.f32 0.0, %v1136
      %v1138 = vpop.f32.mrb[0].mxu0
      %1139 = vdwg.mxu0
      %v1140 = vadd.f32 %v1050, %v1110
      %v1141 = vadd.f32 %v1051, %v1113
      %v1142 = vadd.f32 %v1052, %v1118
      %v1143 = vadd.f32 %v1053, %v1121
      %v1144 = vadd.f32 %v1054, %v1126
      %v1145 = vadd.f32 %v1055, %v1129
      %v1146 = vadd.f32 %v1056, %v1134
      %v1147 = vadd.f32 %v1057, %v1137
      %v1148 = vld [vmem:[#allocation2 + $0x8] sm:$0xff]
      %v1149 = vld [vmem:[#allocation2 + $0x10] sm:$0xff]
      %v1150 = vld [vmem:[#allocation2 + $0x18] sm:$0xff]
      %v1151 = vld [vmem:[#allocation2 + $0x20] sm:$0xff]
      %v1152 = vld [vmem:[#allocation2 + $0x28] sm:$0x1]
      %v1153 = vrot.slane %v729, 7
      %v1154 = vor.u32 %v1153, %v732
      %v1155 = vrot.slane %v737, 7
      %v1156 = vor.u32 %v1155, %v740
      %v1157 = vsel %vm933, %v1153, %v1156
      %v1158 = vrot.slane %v746, 7
      %v1159 = vor.u32 %v1158, %v749
      %v1160 = vsel %vm933, %v1155, %v1159
      %v1161 = vrot.slane %v755, 7
      %v1162 = vor.u32 %v1161, %v758
      %v1163 = vsel %vm933, %v1158, %v1162
      %v1169 = vmul.bf16 %v1148, %v1154
      %v1170 = vmul.bf16 %v1149, %v1157
      %v1171 = vmul.bf16 %v1150, %v1160
      %v1172 = vmul.bf16 %v1151, %v1163
      %v1173 = vmul.bf16 %v1152, %v1161
      %s1174 = scalar_lea.vmem %s1, 20
      %v1175 = vld [vmem:[%s1174] sm:$0xf]
      %v1177 = vshrl.u32 %v1169, 16
      %v1179 = vshll.u32 %v1169, 16
      %v1181 = vrot.slane %v1179, 1
      %v1182 = vor.u32 %v1177, %v1181
      %v1184 = vshll.u32 %v1170, 16
      %v1186 = vrot.slane %v1184, 1
      %v1187 = vsel %vm909, %v1182, %v1186
      %v1188 = vshrl.u32 %v1170, 16
      %v1190 = vor.u32 %v1188, %v1186
      %v1192 = vshll.u32 %v1171, 16
      %v1194 = vrot.slane %v1192, 1
      %v1195 = vsel %vm909, %v1190, %v1194
      %v1196 = vshrl.u32 %v1171, 16
      %v1198 = vor.u32 %v1196, %v1194
      %v1200 = vshll.u32 %v1172, 16
      %v1202 = vrot.slane %v1200, 1
      %v1203 = vsel %vm909, %v1198, %v1202
      %v1204 = vshrl.u32 %v1172, 16
      %v1206 = vor.u32 %v1204, %v1202
      %v1208 = vshll.u32 %v1173, 16
      %v1210 = vrot.slane %v1208, 1
      %v1211 = vsel %vm909, %v1206, %v1210
      %v1213 = vsel %vm446, %v1187, 0
      %v1216 = vsel %vm446, %v1195, 0
      %v1219 = vsel %vm446, %v1203, 0
      %v1222 = vsel %vm446, %v1211, 0
      %v1225 = vsel %vm533, %v1175, 0
      %1227 = vmatprep.subr.bf16.mxu0 0
      %1228 = vmatpush1.bf16.msra.mxu0 %v1225
      %1229 = vmatprep.subr.bf16.mxu0 0
      %1230 = vmatpush1.bf16.msra.mxu0 0
      %1231 = vmatprep.subr.bf16.mxu0 0
      %1232 = vmatpush1.bf16.msra.mxu0 0
      %1233 = vmatprep.subr.bf16.mxu0 0
      %1234 = vmatpush1.bf16.msra.mxu0 0
      %1235 = vmatprep.subr.bf16.mxu0 0
      %1236 = vmatpush1.bf16.msra.mxu0 0
      %1237 = vmatprep.subr.bf16.mxu0 0
      %1238 = vmatpush1.bf16.msra.mxu0 0
      %1239 = vmatprep.subr.bf16.mxu0 0
      %1240 = vmatpush1.bf16.msra.mxu0 0
      %1241 = vmatprep.subr.bf16.mxu0 0
      %1242 = vmatpush1.bf16.msra.mxu0 0
      %1243 = vmatprep.subr.bf16.mxu0 0
      %1244 = vmatpush1.bf16.msra.mxu0 0
      %1245 = vmatprep.subr.bf16.mxu0 0
      %1246 = vmatpush1.bf16.msra.mxu0 0
      %1247 = vmatprep.subr.bf16.mxu0 0
      %1248 = vmatpush1.bf16.msra.mxu0 0
      %1249 = vmatprep.subr.bf16.mxu0 0
      %1250 = vmatpush1.bf16.msra.mxu0 0
      %1251 = vmatprep.subr.bf16.mxu0 0
      %1252 = vmatpush1.bf16.msra.mxu0 0
      %1253 = vmatprep.subr.bf16.mxu0 0
      %1254 = vmatpush1.bf16.msra.mxu0 0
      %1255 = vmatprep.subr.bf16.mxu0 0
      %1256 = vmatpush1.bf16.msra.mxu0 0
      %1257 = vmatprep.subr.bf16.mxu0 0
      %1258 = vmatpush1.bf16.msra.mxu0 0
      %1259 = vmatprep.mubr.bf16.mxu0 0
      %1260 = vmatmul.mubr.bf16.gmra.mrb[0].mxu0 %v1213
      %v1261 = vpop.f32.mrb[0].mxu0
      %v1262 = vadd.f32 0.0, %v1261
      %v1263 = vpop.f32.mrb[0].mxu0
      %v1264 = vpop.f32.mrb[0].mxu0
      %v1265 = vadd.f32 0.0, %v1264
      %v1266 = vpop.f32.mrb[0].mxu0
      %1267 = vmatprep.mubr.bf16.mxu0 0
      %1268 = vmatmul.mubr.bf16.gmra.mrb[0].mxu0 %v1216
      %v1269 = vpop.f32.mrb[0].mxu0
      %v1270 = vadd.f32 0.0, %v1269
      %v1271 = vpop.f32.mrb[0].mxu0
      %v1272 = vpop.f32.mrb[0].mxu0
      %v1273 = vadd.f32 0.0, %v1272
      %v1274 = vpop.f32.mrb[0].mxu0
      %1275 = vmatprep.mubr.bf16.mxu0 0
      %1276 = vmatmul.mubr.bf16.gmra.mrb[0].mxu0 %v1219
      %v1277 = vpop.f32.mrb[0].mxu0
      %v1278 = vadd.f32 0.0, %v1277
      %v1279 = vpop.f32.mrb[0].mxu0
      %v1280 = vpop.f32.mrb[0].mxu0
      %v1281 = vadd.f32 0.0, %v1280
      %v1282 = vpop.f32.mrb[0].mxu0
      %1283 = vmatprep.mubr.bf16.mxu0 0
      %1284 = vmatmul.mubr.bf16.gmra.mrb[0].mxu0 %v1222
      %v1285 = vpop.f32.mrb[0].mxu0
      %v1286 = vadd.f32 0.0, %v1285
      %v1287 = vpop.f32.mrb[0].mxu0
      %v1288 = vpop.f32.mrb[0].mxu0
      %v1289 = vadd.f32 0.0, %v1288
      %v1290 = vpop.f32.mrb[0].mxu0
      %1291 = vdwg.mxu0
      %v1292 = vadd.f32 %v1140, %v1262
      %v1293 = vadd.f32 %v1141, %v1265
      %v1294 = vadd.f32 %v1142, %v1270
      %v1295 = vadd.f32 %v1143, %v1273
      %v1296 = vadd.f32 %v1144, %v1278
      %v1297 = vadd.f32 %v1145, %v1281
      %v1298 = vadd.f32 %v1146, %v1286
      %v1299 = vadd.f32 %v1147, %v1289
      %v1300 = vld [vmem:[#allocation2 + $0x8] sm:$0xf8]
      %v1301 = vld [vmem:[#allocation2 + $0x28] sm:$0xf]
      %v1302 = vmul.bf16 %v1300, %v464
      %v1303 = vmul.bf16 %v1149, %v473
      %v1304 = vmul.bf16 %v1150, %v482
      %v1305 = vmul.bf16 %v1151, %v491
      %v1306 = vmul.bf16 %v1301, %v490
      %s1307 = scalar_lea.vmem %s1, 24
      %v1308 = vld [vmem:[%s1307] sm:$0xf]
      %v1310 = vshrl.u32 %v1302, 16
      %v1312 = vrot.slane %v1310, 3
      %v1313 = vshll.u32 %v1302, 16
      %v1315 = vrot.slane %v1313, 4
      %v1316 = vor.u32 %v1312, %v1315
      %v1318 = vshrl.u32 %v1303, 16
      %v1320 = vrot.slane %v1318, 3
      %v1321 = vshll.u32 %v1303, 16
      %v1323 = vrot.slane %v1321, 4
      %v1324 = vor.u32 %v1320, %v1323
      %v1325 = vsel %vm602, %v1316, %v1324
      %v1327 = vshrl.u32 %v1304, 16
      %v1329 = vrot.slane %v1327, 3
      %v1330 = vshll.u32 %v1304, 16
      %v1332 = vrot.slane %v1330, 4
      %v1333 = vor.u32 %v1329, %v1332
      %v1334 = vsel %vm602, %v1324, %v1333
      %v1336 = vshrl.u32 %v1305, 16
      %v1338 = vrot.slane %v1336, 3
      %v1339 = vshll.u32 %v1305, 16
      %v1341 = vrot.slane %v1339, 4
      %v1342 = vor.u32 %v1338, %v1341
      %v1343 = vsel %vm602, %v1333, %v1342
      %v1345 = vshrl.u32 %v1306, 16
      %v1347 = vrot.slane %v1345, 3
      %v1348 = vshll.u32 %v1306, 16
      %v1350 = vrot.slane %v1348, 4
      %v1351 = vor.u32 %v1347, %v1350
      %v1352 = vsel %vm602, %v1342, %v1351
      %v1354 = vsel %vm446, %v1325, 0
      %v1357 = vsel %vm446, %v1334, 0
      %v1360 = vsel %vm446, %v1343, 0
      %v1363 = vsel %vm446, %v1352, 0
      %v1366 = vsel %vm533, %v1308, 0
      %1368 = vmatprep.subr.bf16.mxu0 0
      %1369 = vmatpush1.bf16.msra.mxu0 %v1366
      %1370 = vmatprep.subr.bf16.mxu0 0
      %1371 = vmatpush1.bf16.msra.mxu0 0
      %1372 = vmatprep.subr.bf16.mxu0 0
      %1373 = vmatpush1.bf16.msra.mxu0 0
      %1374 = vmatprep.subr.bf16.mxu0 0
      %1375 = vmatpush1.bf16.msra.mxu0 0
      %1376 = vmatprep.subr.bf16.mxu0 0
      %1377 = vmatpush1.bf16.msra.mxu0 0
      %1378 = vmatprep.subr.bf16.mxu0 0
      %1379 = vmatpush1.bf16.msra.mxu0 0
      %1380 = vmatprep.subr.bf16.mxu0 0
      %1381 = vmatpush1.bf16.msra.mxu0 0
      %1382 = vmatprep.subr.bf16.mxu0 0
      %1383 = vmatpush1.bf16.msra.mxu0 0
      %1384 = vmatprep.subr.bf16.mxu0 0
      %1385 = vmatpush1.bf16.msra.mxu0 0
      %1386 = vmatprep.subr.bf16.mxu0 0
      %1387 = vmatpush1.bf16.msra.mxu0 0
      %1388 = vmatprep.subr.bf16.mxu0 0
      %1389 = vmatpush1.bf16.msra.mxu0 0
      %1390 = vmatprep.subr.bf16.mxu0 0
      %1391 = vmatpush1.bf16.msra.mxu0 0
      %1392 = vmatprep.subr.bf16.mxu0 0
      %1393 = vmatpush1.bf16.msra.mxu0 0
      %1394 = vmatprep.subr.bf16.mxu0 0
      %1395 = vmatpush1.bf16.msra.mxu0 0
      %1396 = vmatprep.subr.bf16.mxu0 0
      %1397 = vmatpush1.bf16.msra.mxu0 0
      %1398 = vmatprep.subr.bf16.mxu0 0
      %1399 = vmatpush1.bf16.msra.mxu0 0
      %1400 = vmatprep.mubr.bf16.mxu0 0
      %1401 = vmatmul.mubr.bf16.gmra.mrb[0].mxu0 %v1354
      %v1402 = vpop.f32.mrb[0].mxu0
      %v1403 = vadd.f32 0.0, %v1402
      %v1404 = vpop.f32.mrb[0].mxu0
      %v1405 = vpop.f32.mrb[0].mxu0
      %v1406 = vadd.f32 0.0, %v1405
      %v1407 = vpop.f32.mrb[0].mxu0
      %1408 = vmatprep.mubr.bf16.mxu0 0
      %1409 = vmatmul.mubr.bf16.gmra.mrb[0].mxu0 %v1357
      %v1410 = vpop.f32.mrb[0].mxu0
      %v1411 = vadd.f32 0.0, %v1410
      %v1412 = vpop.f32.mrb[0].mxu0
      %v1413 = vpop.f32.mrb[0].mxu0
      %v1414 = vadd.f32 0.0, %v1413
      %v1415 = vpop.f32.mrb[0].mxu0
      %1416 = vmatprep.mubr.bf16.mxu0 0
      %1417 = vmatmul.mubr.bf16.gmra.mrb[0].mxu0 %v1360
      %v1418 = vpop.f32.mrb[0].mxu0
      %v1419 = vadd.f32 0.0, %v1418
      %v1420 = vpop.f32.mrb[0].mxu0
      %v1421 = vpop.f32.mrb[0].mxu0
      %v1422 = vadd.f32 0.0, %v1421
      %v1423 = vpop.f32.mrb[0].mxu0
      %1424 = vmatprep.mubr.bf16.mxu0 0
      %1425 = vmatmul.mubr.bf16.gmra.mrb[0].mxu0 %v1363
      %v1426 = vpop.f32.mrb[0].mxu0
      %v1427 = vadd.f32 0.0, %v1426
      %v1428 = vpop.f32.mrb[0].mxu0
      %v1429 = vpop.f32.mrb[0].mxu0
      %v1430 = vadd.f32 0.0, %v1429
      %v1431 = vpop.f32.mrb[0].mxu0
      %1432 = vdwg.mxu0
      %v1433 = vadd.f32 %v1292, %v1403
      %v1434 = vadd.f32 %v1293, %v1406
      %v1435 = vadd.f32 %v1294, %v1411
      %v1436 = vadd.f32 %v1295, %v1414
      %v1437 = vadd.f32 %v1296, %v1419
      %v1438 = vadd.f32 %v1297, %v1422
      %v1439 = vadd.f32 %v1298, %v1427
      %v1440 = vadd.f32 %v1299, %v1430
      %v1441 = vld [vmem:[#allocation2 + $0x8] sm:$0xf0]
      %s1442 = scalar_lea.vmem %s1, 28
      %v1443 = vld [vmem:[%s1442] sm:$0xf]
      %v1449 = vrot.slane %v1441, 4
      %v1450 = vrot.slane %v1149, 4
      %v1451 = vsel %vm511, %v1449, %v1450
      %v1452 = vrot.slane %v1150, 4
      %v1453 = vsel %vm511, %v1450, %v1452
      %v1454 = vrot.slane %v1151, 4
      %v1455 = vsel %vm511, %v1452, %v1454
      %v1456 = vrot.slane %v1301, 4
      %v1457 = vsel %vm511, %v1454, %v1456
      %v1459 = vsel %vm446, %v1451, 0
      %v1462 = vsel %vm446, %v1453, 0
      %v1465 = vsel %vm446, %v1455, 0
      %v1468 = vsel %vm446, %v1457, 0
      %v1471 = vsel %vm533, %v1443, 0
      %1473 = vmatprep.subr.bf16.mxu0 0
      %1474 = vmatpush1.bf16.msra.mxu0 %v1471
      %1475 = vmatprep.subr.bf16.mxu0 0
      %1476 = vmatpush1.bf16.msra.mxu0 0
      %1477 = vmatprep.subr.bf16.mxu0 0
      %1478 = vmatpush1.bf16.msra.mxu0 0
      %1479 = vmatprep.subr.bf16.mxu0 0
      %1480 = vmatpush1.bf16.msra.mxu0 0
      %1481 = vmatprep.subr.bf16.mxu0 0
      %1482 = vmatpush1.bf16.msra.mxu0 0
      %1483 = vmatprep.subr.bf16.mxu0 0
      %1484 = vmatpush1.bf16.msra.mxu0 0
      %1485 = vmatprep.subr.bf16.mxu0 0
      %1486 = vmatpush1.bf16.msra.mxu0 0
      %1487 = vmatprep.subr.bf16.mxu0 0
      %1488 = vmatpush1.bf16.msra.mxu0 0
      %1489 = vmatprep.subr.bf16.mxu0 0
      %1490 = vmatpush1.bf16.msra.mxu0 0
      %1491 = vmatprep.subr.bf16.mxu0 0
      %1492 = vmatpush1.bf16.msra.mxu0 0
      %1493 = vmatprep.subr.bf16.mxu0 0
      %1494 = vmatpush1.bf16.msra.mxu0 0
      %1495 = vmatprep.subr.bf16.mxu0 0
      %1496 = vmatpush1.bf16.msra.mxu0 0
      %1497 = vmatprep.subr.bf16.mxu0 0
      %1498 = vmatpush1.bf16.msra.mxu0 0
      %1499 = vmatprep.subr.bf16.mxu0 0
      %1500 = vmatpush1.bf16.msra.mxu0 0
      %1501 = vmatprep.subr.bf16.mxu0 0
      %1502 = vmatpush1.bf16.msra.mxu0 0
      %1503 = vmatprep.subr.bf16.mxu0 0
      %1504 = vmatpush1.bf16.msra.mxu0 0
      %1505 = vmatprep.mubr.bf16.mxu0 0
      %1506 = vmatmul.mubr.bf16.gmra.mrb[0].mxu0 %v1459
      %v1507 = vpop.f32.mrb[0].mxu0
      %v1508 = vadd.f32 0.0, %v1507
      %v1509 = vpop.f32.mrb[0].mxu0
      %v1510 = vpop.f32.mrb[0].mxu0
      %v1511 = vadd.f32 0.0, %v1510
      %v1512 = vpop.f32.mrb[0].mxu0
      %1513 = vmatprep.mubr.bf16.mxu0 0
      %1514 = vmatmul.mubr.bf16.gmra.mrb[0].mxu0 %v1462
      %v1515 = vpop.f32.mrb[0].mxu0
      %v1516 = vadd.f32 0.0, %v1515
      %v1517 = vpop.f32.mrb[0].mxu0
      %v1518 = vpop.f32.mrb[0].mxu0
      %v1519 = vadd.f32 0.0, %v1518
      %v1520 = vpop.f32.mrb[0].mxu0
      %1521 = vmatprep.mubr.bf16.mxu0 0
      %1522 = vmatmul.mubr.bf16.gmra.mrb[0].mxu0 %v1465
      %v1523 = vpop.f32.mrb[0].mxu0
      %v1524 = vadd.f32 0.0, %v1523
      %v1525 = vpop.f32.mrb[0].mxu0
      %v1526 = vpop.f32.mrb[0].mxu0
      %v1527 = vadd.f32 0.0, %v1526
      %v1528 = vpop.f32.mrb[0].mxu0
      %1529 = vmatprep.mubr.bf16.mxu0 0
      %1530 = vmatmul.mubr.bf16.gmra.mrb[0].mxu0 %v1468
      %v1531 = vpop.f32.mrb[0].mxu0
      %v1532 = vadd.f32 0.0, %v1531
      %v1533 = vpop.f32.mrb[0].mxu0
      %v1534 = vpop.f32.mrb[0].mxu0
      %v1535 = vadd.f32 0.0, %v1534
      %v1536 = vpop.f32.mrb[0].mxu0
      %1537 = vdwg.mxu0
      %v1538 = vadd.f32 %v1433, %v1508
      %v1539 = vadd.f32 %v1434, %v1511
      %v1540 = vadd.f32 %v1435, %v1516
      %v1541 = vadd.f32 %v1436, %v1519
      %v1542 = vadd.f32 %v1437, %v1524
      %v1543 = vadd.f32 %v1438, %v1527
      %v1544 = vadd.f32 %v1439, %v1532
      %v1545 = vadd.f32 %v1440, %v1535
      %v1546 = vld [vmem:[#allocation2 + $0x28] sm:$0x1f]
      %v1547 = vmul.bf16 %v1441, %v735
      %v1548 = vmul.bf16 %v1149, %v744
      %v1549 = vmul.bf16 %v1150, %v753
      %v1550 = vmul.bf16 %v1151, %v762
      %v1551 = vmul.bf16 %v1546, %v761
      %s1552 = scalar_lea.vmem %s1, 32
      %v1553 = vld [vmem:[%s1552] sm:$0xf]
      %v1555 = vshrl.u32 %v1547, 16
      %v1557 = vrot.slane %v1555, 4
      %v1558 = vshll.u32 %v1547, 16
      %v1560 = vrot.slane %v1558, 5
      %v1561 = vor.u32 %v1557, %v1560
      %v1563 = vshrl.u32 %v1548, 16
      %v1565 = vrot.slane %v1563, 4
      %v1566 = vshll.u32 %v1548, 16
      %v1568 = vrot.slane %v1566, 5
      %v1569 = vor.u32 %v1565, %v1568
      %v1570 = vsel %vm456, %v1561, %v1569
      %v1572 = vshrl.u32 %v1549, 16
      %v1574 = vrot.slane %v1572, 4
      %v1575 = vshll.u32 %v1549, 16
      %v1577 = vrot.slane %v1575, 5
      %v1578 = vor.u32 %v1574, %v1577
      %v1579 = vsel %vm456, %v1569, %v1578
      %v1581 = vshrl.u32 %v1550, 16
      %v1583 = vrot.slane %v1581, 4
      %v1584 = vshll.u32 %v1550, 16
      %v1586 = vrot.slane %v1584, 5
      %v1587 = vor.u32 %v1583, %v1586
      %v1588 = vsel %vm456, %v1578, %v1587
      %v1590 = vshrl.u32 %v1551, 16
      %v1592 = vrot.slane %v1590, 4
      %v1593 = vshll.u32 %v1551, 16
      %v1595 = vrot.slane %v1593, 5
      %v1596 = vor.u32 %v1592, %v1595
      %v1597 = vsel %vm456, %v1587, %v1596
      %v1599 = vsel %vm446, %v1570, 0
      %v1602 = vsel %vm446, %v1579, 0
      %v1605 = vsel %vm446, %v1588, 0
      %v1608 = vsel %vm446, %v1597, 0
      %v1611 = vsel %vm533, %v1553, 0
      %1613 = vmatprep.subr.bf16.mxu0 0
      %1614 = vmatpush1.bf16.msra.mxu0 %v1611
      %1615 = vmatprep.subr.bf16.mxu0 0
      %1616 = vmatpush1.bf16.msra.mxu0 0
      %1617 = vmatprep.subr.bf16.mxu0 0
      %1618 = vmatpush1.bf16.msra.mxu0 0
      %1619 = vmatprep.subr.bf16.mxu0 0
      %1620 = vmatpush1.bf16.msra.mxu0 0
      %1621 = vmatprep.subr.bf16.mxu0 0
      %1622 = vmatpush1.bf16.msra.mxu0 0
      %1623 = vmatprep.subr.bf16.mxu0 0
      %1624 = vmatpush1.bf16.msra.mxu0 0
      %1625 = vmatprep.subr.bf16.mxu0 0
      %1626 = vmatpush1.bf16.msra.mxu0 0
      %1627 = vmatprep.subr.bf16.mxu0 0
      %1628 = vmatpush1.bf16.msra.mxu0 0
      %1629 = vmatprep.subr.bf16.mxu0 0
      %1630 = vmatpush1.bf16.msra.mxu0 0
      %1631 = vmatprep.subr.bf16.mxu0 0
      %1632 = vmatpush1.bf16.msra.mxu0 0
      %1633 = vmatprep.subr.bf16.mxu0 0
      %1634 = vmatpush1.bf16.msra.mxu0 0
      %1635 = vmatprep.subr.bf16.mxu0 0
      %1636 = vmatpush1.bf16.msra.mxu0 0
      %1637 = vmatprep.subr.bf16.mxu0 0
      %1638 = vmatpush1.bf16.msra.mxu0 0
      %1639 = vmatprep.subr.bf16.mxu0 0
      %1640 = vmatpush1.bf16.msra.mxu0 0
      %1641 = vmatprep.subr.bf16.mxu0 0
      %1642 = vmatpush1.bf16.msra.mxu0 0
      %1643 = vmatprep.subr.bf16.mxu0 0
      %1644 = vmatpush1.bf16.msra.mxu0 0
      %1645 = vmatprep.mubr.bf16.mxu0 0
      %1646 = vmatmul.mubr.bf16.gmra.mrb[0].mxu0 %v1599
      %v1647 = vpop.f32.mrb[0].mxu0
      %v1648 = vadd.f32 0.0, %v1647
      %v1649 = vpop.f32.mrb[0].mxu0
      %v1650 = vpop.f32.mrb[0].mxu0
      %v1651 = vadd.f32 0.0, %v1650
      %v1652 = vpop.f32.mrb[0].mxu0
      %1653 = vmatprep.mubr.bf16.mxu0 0
      %1654 = vmatmul.mubr.bf16.gmra.mrb[0].mxu0 %v1602
      %v1655 = vpop.f32.mrb[0].mxu0
      %v1656 = vadd.f32 0.0, %v1655
      %v1657 = vpop.f32.mrb[0].mxu0
      %v1658 = vpop.f32.mrb[0].mxu0
      %v1659 = vadd.f32 0.0, %v1658
      %v1660 = vpop.f32.mrb[0].mxu0
      %1661 = vmatprep.mubr.bf16.mxu0 0
      %1662 = vmatmul.mubr.bf16.gmra.mrb[0].mxu0 %v1605
      %v1663 = vpop.f32.mrb[0].mxu0
      %v1664 = vadd.f32 0.0, %v1663
      %v1665 = vpop.f32.mrb[0].mxu0
      %v1666 = vpop.f32.mrb[0].mxu0
      %v1667 = vadd.f32 0.0, %v1666
      %v1668 = vpop.f32.mrb[0].mxu0
      %1669 = vmatprep.mubr.bf16.mxu0 0
      %1670 = vmatmul.mubr.bf16.gmra.mrb[0].mxu0 %v1608
      %v1671 = vpop.f32.mrb[0].mxu0
      %v1672 = vadd.f32 0.0, %v1671
      %v1673 = vpop.f32.mrb[0].mxu0
      %v1674 = vpop.f32.mrb[0].mxu0
      %v1675 = vadd.f32 0.0, %v1674
      %v1676 = vpop.f32.mrb[0].mxu0
      %1677 = vdwg.mxu0
      %v1678 = vadd.f32 %v1538, %v1648
      %v1679 = vadd.f32 %v1539, %v1651
      %v1680 = vadd.f32 %v1540, %v1656
      %v1681 = vadd.f32 %v1541, %v1659
      %v1682 = vadd.f32 %v1542, %v1664
      %v1683 = vadd.f32 %v1543, %v1667
      %v1684 = vadd.f32 %v1544, %v1672
      %v1685 = vadd.f32 %v1545, %v1675
      %v1686 = vld [vmem:[%s2] sm:$0x1]
      %v1688 = vlaneseq
      %v1689 = vshrl.u32 %v1688, 7
      %v1690 = vsub.s32 0, %v1689
      %v1691 = vrot.slane %v1686, %v1690
      %v1693 = vmul.f32 %v1678, %v1691
      %v1694 = vmul.f32 %v1679, %v1691
      %v1695 = vmul.f32 %v1680, %v1691
      %v1696 = vmul.f32 %v1681, %v1691
      %v1697 = vmul.f32 %v1682, %v1691
      %v1698 = vmul.f32 %v1683, %v1691
      %v1699 = vmul.f32 %v1684, %v1691
      %v1700 = vmul.f32 %v1685, %v1691
      %v1701 = vld [vmem:[%s3] sm:$0x1]
      %v1703 = vlaneseq
      %v1704 = vshrl.u32 %v1703, 7
      %v1705 = vsub.s32 0, %v1704
      %v1706 = vrot.slane %v1701, %v1705
      %v1708 = vadd.f32 %v1693, %v1706
      %v1709 = vadd.f32 %v1694, %v1706
      %v1710 = vadd.f32 %v1695, %v1706
      %v1711 = vadd.f32 %v1696, %v1706
      %v1712 = vadd.f32 %v1697, %v1706
      %v1713 = vadd.f32 %v1698, %v1706
      %v1714 = vadd.f32 %v1699, %v1706
      %v1715 = vadd.f32 %v1700, %v1706
      %v1716 = vld [vmem:[%s239] sm:$0xf]
      %v1717 = vld [vmem:[%s239 + $0x4] sm:$0xf]
      %v1718 = vld [vmem:[%s239 + $0x8] sm:$0xf]
      %v1719 = vld [vmem:[%s239 + $0xc] sm:$0xf]
      %v1720 = vld [vmem:[%s239 + $0x10] sm:$0xf]
      %v1721 = vld [vmem:[%s239 + $0x14] sm:$0xf]
      %v1722 = vld [vmem:[%s239 + $0x18] sm:$0xf]
      %v1723 = vld [vmem:[%s239 + $0x1c] sm:$0xf]
      %v1724 = vunpack.c.l.bf16 %v1716
      %v1725 = vunpack.c.l.bf16 %v1717
      %v1726 = vunpack.c.l.bf16 %v1718
      %v1727 = vunpack.c.l.bf16 %v1719
      %v1728 = vunpack.c.l.bf16 %v1720
      %v1729 = vunpack.c.l.bf16 %v1721
      %v1730 = vunpack.c.l.bf16 %v1722
      %v1731 = vunpack.c.l.bf16 %v1723
      %v1732 = vadd.f32 %v1708, %v1724
      %v1733 = vadd.f32 %v1709, %v1725
      %v1734 = vadd.f32 %v1710, %v1726
      %v1735 = vadd.f32 %v1711, %v1727
      %v1736 = vadd.f32 %v1712, %v1728
      %v1737 = vadd.f32 %v1713, %v1729
      %v1738 = vadd.f32 %v1714, %v1730
      %v1739 = vadd.f32 %v1715, %v1731
      %v1740 = vmax.f32 %v1732, 0.0
      %v1741 = vmax.f32 %v1733, 0.0
      %v1742 = vmax.f32 %v1734, 0.0
      %v1743 = vmax.f32 %v1735, 0.0
      %v1744 = vmax.f32 %v1736, 0.0
      %v1745 = vmax.f32 %v1737, 0.0
      %v1746 = vmax.f32 %v1738, 0.0
      %v1747 = vmax.f32 %v1739, 0.0
      %1748 = vst.msk [vmem:[%s244] sm:$0xff] %vm446, %v1740
      %1749 = vst.msk [vmem:[%s244 + $0x8] sm:$0xff] %vm446, %v1741
      %1750 = vst.msk [vmem:[%s244 + $0x10] sm:$0xff] %vm446, %v1742
      %1751 = vst.msk [vmem:[%s244 + $0x18] sm:$0xff] %vm446, %v1743
      %1752 = vst.msk [vmem:[%s244 + $0x20] sm:$0xff] %vm446, %v1744
      %1753 = vst.msk [vmem:[%s244 + $0x28] sm:$0xff] %vm446, %v1745
      %1754 = vst.msk [vmem:[%s244 + $0x30] sm:$0xff] %vm446, %v1746
      %1755 = vst.msk [vmem:[%s244 + $0x38] sm:$0xff] %vm446, %v1747
      %p1756 = scmp.lt.s32.totalorder %s16, 1
      %s1757 = scalar_select %p1756, %s16, 1
      %s1758 = smul.addr %s1757, 8
      %s1759 = smul.addr %s1758, 8
      %s1760 = scalar_lea.vmem %s5, %s1759
      // Predicated region
      $region45: #{_lambda_.7} parent=39 // pred_check
        %p1761 = pneg %p149
      $region46: #{_lambda_.7} parent=39 // pred_check_branch
        %1763 = sbr.rel (%p1761) target = $region48
      $region47: #{_lambda_.7} parent=39 // pred_region
        _
      $region48: #{_lambda_.7} parent=39 // pred_fallthru
        _
    $region40: #{_lambda_.7} parent=5 // pred_fallthru
      _
    %p1764 = scmp.le.s32.totalorder 2, %s11
    // Predicated region
    $region49: #{_lambda_.7} parent=5 // pred_check
      %p1765 = pneg %p1764
    $region50: #{_lambda_.7} parent=5 // pred_check_branch
      %1767 = sbr.rel (%p1765) target = $region52
    $region51: #{_lambda_.7} parent=5 // pred_region
      %s1768 = ssub.s32 %s11, 2
      // Predicated region
      $region53: #{_lambda_.7} parent=51 // pred_check
        %p1769 = pneg %p155
      $region54: #{_lambda_.7} parent=51 // pred_check_branch
        %1771 = sbr.rel (%p1769) target = $region56
      $region55: #{_lambda_.7} parent=51 // pred_region
        %p1772 = scmp.lt.s32.totalorder %s17, 1
        %s1773 = scalar_select %p1772, %s17, 1
        %s1774 = smul.addr %s1773, 8
        %s1775 = smul.addr %s1774, 8
        %s1776 = scalar_lea.vmem %s5, %s1775
      $region56: #{_lambda_.7} parent=51 // pred_fallthru
        _
    $region52: #{_lambda_.7} parent=5 // pred_fallthru
      _
  $region6: #{_lambda_.7} parent=0 // loop_footer
    %s15 = sadd.s32 1, %s11
  $region7: #{_lambda_.7} parent=0 // loop_footer_branch
    %10 = sbr.rel target = $region3
  $region8: #{_lambda_.7} parent=0 // loop_exit
    _

// kernel: _lambda_.4
$region0: #{_lambda_.4}
  #allocation0 [shape = 'u32[]', space=smem, size = 0x4, offset = 0x4, fixed_abs, tag = 'smem constant byte address 0x4 - core index']
  #allocation1 [shape = 'u32[144,128]{1,0:T(1,128)}', space=vmem, size = 0x12000, scoped, tag = 'internal scratch']
  #allocation2 [shape = 'bf16[320,4]{1,0:T(16,128)(2,1)}', space=vmem, size = 0x14000, scoped, tag = 'scratch operand']
  #allocation3 [shape = 'bf16[320,4]{1,0:T(16,128)(2,1)}', space=vmem, size = 0x14000, scoped, tag = 'scratch operand']
  %s0 = inlined_call_operand.vmem [shape: bf16[2,256,4], index: 0, kind: input, shape index: {}]
  %s1 = inlined_call_operand.vmem [shape: bf16[9,4,4], index: 1, kind: input, shape index: {}]
  %s2 = inlined_call_operand.vmem [shape: f32[1,4], index: 2, kind: input, shape index: {}]
  %s3 = inlined_call_operand.vmem [shape: f32[1,4], index: 3, kind: input, shape index: {}]
  %s4 = inlined_call_operand.vmem [shape: bf16[9,4,4], index: 4, kind: input, shape index: {}]
  %s5 = inlined_call_operand.vmem [shape: f32[1,4], index: 5, kind: input, shape index: {}]
  %s6 = inlined_call_operand.vmem [shape: f32[1,4], index: 6, kind: input, shape index: {}]
  %s7 = inlined_call_operand.vmem [shape: bf16[2,256,4], index: 7, kind: output, shape index: {}]
  %s8 = sld [smem:[#allocation0]]
  $region65: #{_lambda_.4} parent=0
    _
  %s10 = ssub.s32 1, %s8
  %s11 = scalar_select 0, %s10, %s8
  loop: start=0, step=1, limit=4
  $region2: #{_lambda_.4} parent=0 // loop_pre_header
    _
  $region3: #{_lambda_.4} parent=0 // loop_header
    %s13 = sphi 0, %s17
    %p14 = scmp.ge.s32.totalorder %s13, 4
    %s23 = sphi 0, %s25
    %s26 = sphi 0, %s23
    %s27 = sphi 0, %s26
    %s43 = sphi 0, %s27
    %s47 = sphi 0, %s47
    %s49 = sphi 0, %s47
    %s50 = sphi 0, %s49
    %s64 = sphi 0, %s50
    %s68 = sphi 0, %s68
    %s70 = sphi 0, %s68
    %s71 = sphi 0, %s70
    %s85 = sphi 0, %s71
    %s89 = sphi 0, %s89
    %s91 = sphi 0, %s89
    %s92 = sphi 0, %s91
    %s106 = sphi 0, %s92
    %s110 = sphi 0, %s110
    %s112 = sphi 0, %s110
    %s113 = sphi 0, %s112
    %s127 = sphi 0, %s113
    %s131 = sphi 0, %s131
    %s133 = sphi 0, %s131
    %s134 = sphi 0, %s133
    %s148 = sphi 0, %s134
    %s152 = sphi 0, %s152
    %s154 = sphi 0, %s152
    %s155 = sphi 0, %s154
    %s169 = sphi 0, %s155
    %s175 = sphi 0, %s177
    %s178 = sphi 0, %s175
    %s179 = sphi 0, %s178
    %s195 = sphi 0, %s179
  $region4: #{_lambda_.4} parent=0 // loop_header_branch
    %16 = sbr.rel (%p14) target = $region8
  $region5: #{_lambda_.4} parent=0 // loop_body
    %s18 = ssub.s32 %s13, 1
    %s19 = ssub.s32 %s13, 2
    %s20 = sadd.s32 %s13, 1
    %s21 = ssub.s32 %s13, %s20
    %p22 = scmp.eq.s32.totalorder %s21, 0
    %s24 = sadd.s32 %s23, 1
    %s25 = scalar_select %p22, %s23, %s24
    %p28 = pneg %p22
    %p29 = scmp.eq.s32.totalorder %s13, 1
    %p30 = por %p28, %p29
    %p31 = scmp.ne.s32.totalorder %s23, %s26
    %p32 = scmp.eq.s32.totalorder %s13, 0
    %p33 = por %p31, %p32
    %p34 = scmp.ne.s32.totalorder %s23, %s26
    %p35 = scmp.eq.s32.totalorder %s18, 1
    %p36 = por %p34, %p35
    %p37 = scmp.ne.s32.totalorder %s26, %s27
    %p38 = scmp.eq.s32.totalorder %s18, 0
    %p39 = por %p37, %p38
    %p40 = scmp.ne.s32.totalorder %s26, %s27
    %p41 = scmp.eq.s32.totalorder %s19, 1
    %p42 = por %p40, %p41
    %p44 = scmp.ne.s32.totalorder %s27, %s43
    %p45 = scmp.eq.s32.totalorder %s19, 0
    %p46 = por %p44, %p45
    %s48 = sadd.s32 %s47, 1
    %p51 = scmp.eq.s32.totalorder %s13, 1
    %p52 = scmp.ne.s32.totalorder %s47, %s49
    %p53 = scmp.eq.s32.totalorder %s13, 0
    %p54 = por %p52, %p53
    %p55 = scmp.ne.s32.totalorder %s47, %s49
    %p56 = scmp.eq.s32.totalorder %s18, 1
    %p57 = por %p55, %p56
    %p58 = scmp.ne.s32.totalorder %s49, %s50
    %p59 = scmp.eq.s32.totalorder %s18, 0
    %p60 = por %p58, %p59
    %p61 = scmp.ne.s32.totalorder %s49, %s50
    %p62 = scmp.eq.s32.totalorder %s19, 1
    %p63 = por %p61, %p62
    %p65 = scmp.ne.s32.totalorder %s50, %s64
    %p66 = scmp.eq.s32.totalorder %s19, 0
    %p67 = por %p65, %p66
    %s69 = sadd.s32 %s68, 1
    %p72 = scmp.eq.s32.totalorder %s13, 1
    %p73 = scmp.ne.s32.totalorder %s68, %s70
    %p74 = scmp.eq.s32.totalorder %s13, 0
    %p75 = por %p73, %p74
    %p76 = scmp.ne.s32.totalorder %s68, %s70
    %p77 = scmp.eq.s32.totalorder %s18, 1
    %p78 = por %p76, %p77
    %p79 = scmp.ne.s32.totalorder %s70, %s71
    %p80 = scmp.eq.s32.totalorder %s18, 0
    %p81 = por %p79, %p80
    %p82 = scmp.ne.s32.totalorder %s70, %s71
    %p83 = scmp.eq.s32.totalorder %s19, 1
    %p84 = por %p82, %p83
    %p86 = scmp.ne.s32.totalorder %s71, %s85
    %p87 = scmp.eq.s32.totalorder %s19, 0
    %p88 = por %p86, %p87
    %s90 = sadd.s32 %s89, 1
    %p93 = scmp.eq.s32.totalorder %s13, 1
    %p94 = scmp.ne.s32.totalorder %s89, %s91
    %p95 = scmp.eq.s32.totalorder %s13, 0
    %p96 = por %p94, %p95
    %p97 = scmp.ne.s32.totalorder %s89, %s91
    %p98 = scmp.eq.s32.totalorder %s18, 1
    %p99 = por %p97, %p98
    %p100 = scmp.ne.s32.totalorder %s91, %s92
    %p101 = scmp.eq.s32.totalorder %s18, 0
    %p102 = por %p100, %p101
    %p103 = scmp.ne.s32.totalorder %s91, %s92
    %p104 = scmp.eq.s32.totalorder %s19, 1
    %p105 = por %p103, %p104
    %p107 = scmp.ne.s32.totalorder %s92, %s106
    %p108 = scmp.eq.s32.totalorder %s19, 0
    %p109 = por %p107, %p108
    %s111 = sadd.s32 %s110, 1
    %p114 = scmp.eq.s32.totalorder %s13, 1
    %p115 = scmp.ne.s32.totalorder %s110, %s112
    %p116 = scmp.eq.s32.totalorder %s13, 0
    %p117 = por %p115, %p116
    %p118 = scmp.ne.s32.totalorder %s110, %s112
    %p119 = scmp.eq.s32.totalorder %s18, 1
    %p120 = por %p118, %p119
    %p121 = scmp.ne.s32.totalorder %s112, %s113
    %p122 = scmp.eq.s32.totalorder %s18, 0
    %p123 = por %p121, %p122
    %p124 = scmp.ne.s32.totalorder %s112, %s113
    %p125 = scmp.eq.s32.totalorder %s19, 1
    %p126 = por %p124, %p125
    %p128 = scmp.ne.s32.totalorder %s113, %s127
    %p129 = scmp.eq.s32.totalorder %s19, 0
    %p130 = por %p128, %p129
    %s132 = sadd.s32 %s131, 1
    %p135 = scmp.eq.s32.totalorder %s13, 1
    %p136 = scmp.ne.s32.totalorder %s131, %s133
    %p137 = scmp.eq.s32.totalorder %s13, 0
    %p138 = por %p136, %p137
    %p139 = scmp.ne.s32.totalorder %s131, %s133
    %p140 = scmp.eq.s32.totalorder %s18, 1
    %p141 = por %p139, %p140
    %p142 = scmp.ne.s32.totalorder %s133, %s134
    %p143 = scmp.eq.s32.totalorder %s18, 0
    %p144 = por %p142, %p143
    %p145 = scmp.ne.s32.totalorder %s133, %s134
    %p146 = scmp.eq.s32.totalorder %s19, 1
    %p147 = por %p145, %p146
    %p149 = scmp.ne.s32.totalorder %s134, %s148
    %p150 = scmp.eq.s32.totalorder %s19, 0
    %p151 = por %p149, %p150
    %s153 = sadd.s32 %s152, 1
    %p156 = scmp.eq.s32.totalorder %s13, 1
    %p157 = scmp.ne.s32.totalorder %s152, %s154
    %p158 = scmp.eq.s32.totalorder %s13, 0
    %p159 = por %p157, %p158
    %p160 = scmp.ne.s32.totalorder %s152, %s154
    %p161 = scmp.eq.s32.totalorder %s18, 1
    %p162 = por %p160, %p161
    %p163 = scmp.ne.s32.totalorder %s154, %s155
    %p164 = scmp.eq.s32.totalorder %s18, 0
    %p165 = por %p163, %p164
    %p166 = scmp.ne.s32.totalorder %s154, %s155
    %p167 = scmp.eq.s32.totalorder %s19, 1
    %p168 = por %p166, %p167
    %p170 = scmp.ne.s32.totalorder %s155, %s169
    %p171 = scmp.eq.s32.totalorder %s19, 0
    %p172 = por %p170, %p171
    %s173 = ssub.s32 %s13, %s20
    %p174 = scmp.eq.s32.totalorder %s173, 0
    %s176 = sadd.s32 %s175, 1
    %s177 = scalar_select %p174, %s175, %s176
    %p180 = pneg %p174
    %p181 = scmp.eq.s32.totalorder %s13, 1
    %p182 = por %p180, %p181
    %p183 = scmp.ne.s32.totalorder %s175, %s178
    %p184 = scmp.eq.s32.totalorder %s13, 0
    %p185 = por %p183, %p184
    %p186 = scmp.ne.s32.totalorder %s175, %s178
    %p187 = scmp.eq.s32.totalorder %s18, 1
    %p188 = por %p186, %p187
    %p189 = scmp.ne.s32.totalorder %s178, %s179
    %p190 = scmp.eq.s32.totalorder %s18, 0
    %p191 = por %p189, %p190
    %p192 = scmp.ne.s32.totalorder %s178, %s179
    %p193 = scmp.eq.s32.totalorder %s19, 1
    %p194 = por %p192, %p193
    %p196 = scmp.ne.s32.totalorder %s179, %s195
    %p197 = scmp.eq.s32.totalorder %s19, 0
    %p198 = por %p196, %p197
    %p199 = scmp.le.s32.totalorder 1, %s13
    %p200 = scmp.lt.s32.totalorder %s13, 3
    %p201 = pnand %p199, %p200
    %p202 = pneg %p201
    // Predicated region
    $region9: #{_lambda_.4} parent=5 // pred_check
      _
    $region10: #{_lambda_.4} parent=5 // pred_check_branch
      %204 = sbr.rel (%p201) target = $region12
    $region11: #{_lambda_.4} parent=5 // pred_region
      %s205 = ssub.s32 %s13, 1
      // Predicated region
      $region13: #{_lambda_.4} parent=11 // pred_check
        %p206 = pneg %p60
      $region14: #{_lambda_.4} parent=11 // pred_check_branch
        %208 = sbr.rel (%p206) target = $region16
      $region15: #{_lambda_.4} parent=11 // pred_region
        _
      $region16: #{_lambda_.4} parent=11 // pred_fallthru
        _
      // Predicated region
      $region17: #{_lambda_.4} parent=11 // pred_check
        %p209 = pneg %p81
      $region18: #{_lambda_.4} parent=11 // pred_check_branch
        %211 = sbr.rel (%p209) target = $region20
      $region19: #{_lambda_.4} parent=11 // pred_region
        _
      $region20: #{_lambda_.4} parent=11 // pred_fallthru
        _
      // Predicated region
      $region21: #{_lambda_.4} parent=11 // pred_check
        %p212 = pneg %p102
      $region22: #{_lambda_.4} parent=11 // pred_check_branch
        %214 = sbr.rel (%p212) target = $region24
      $region23: #{_lambda_.4} parent=11 // pred_region
        _
      $region24: #{_lambda_.4} parent=11 // pred_fallthru
        _
      // Predicated region
      $region25: #{_lambda_.4} parent=11 // pred_check
        %p215 = pneg %p123
      $region26: #{_lambda_.4} parent=11 // pred_check_branch
        %217 = sbr.rel (%p215) target = $region28
      $region27: #{_lambda_.4} parent=11 // pred_region
        _
      $region28: #{_lambda_.4} parent=11 // pred_fallthru
        _
      // Predicated region
      $region29: #{_lambda_.4} parent=11 // pred_check
        %p218 = pneg %p144
      $region30: #{_lambda_.4} parent=11 // pred_check_branch
        %220 = sbr.rel (%p218) target = $region32
      $region31: #{_lambda_.4} parent=11 // pred_region
        _
      $region32: #{_lambda_.4} parent=11 // pred_fallthru
        _
      // Predicated region
      $region33: #{_lambda_.4} parent=11 // pred_check
        %p221 = pneg %p165
      $region34: #{_lambda_.4} parent=11 // pred_check_branch
        %223 = sbr.rel (%p221) target = $region36
      $region35: #{_lambda_.4} parent=11 // pred_region
        _
      $region36: #{_lambda_.4} parent=11 // pred_fallthru
        _
    $region12: #{_lambda_.4} parent=5 // pred_fallthru
      _
    %p224 = scmp.lt.s32.totalorder %s13, 2
    // Predicated region
    $region37: #{_lambda_.4} parent=5 // pred_check
      %p225 = pneg %p224
    $region38: #{_lambda_.4} parent=5 // pred_check_branch
      %227 = sbr.rel (%p225) target = $region40
    $region39: #{_lambda_.4} parent=5 // pred_region
      // Predicated region
      $region41: #{_lambda_.4} parent=39 // pred_check
        %p228 = pneg %p33
      $region42: #{_lambda_.4} parent=39 // pred_check_branch
        %230 = sbr.rel (%p228) target = $region44
      $region43: #{_lambda_.4} parent=39 // pred_region
        %p231 = scmp.lt.s32.totalorder %s13, 1
        %s232 = scalar_select %p231, %s13, 1
        %s233 = smul.addr %s232, 32
        %s234 = smul.addr %s233, 4
        %s235 = scalar_lea.vmem %s0, %s234
      $region44: #{_lambda_.4} parent=39 // pred_fallthru
        _
    $region40: #{_lambda_.4} parent=5 // pred_fallthru
      _
    %p236 = scmp.le.s32.totalorder 1, %s13
    %p237 = scmp.lt.s32.totalorder %s13, 3
    %p238 = pnand %p236, %p237
    %p239 = pneg %p238
    // Predicated region
    $region45: #{_lambda_.4} parent=5 // pred_check
      _
    $region46: #{_lambda_.4} parent=5 // pred_check_branch
      %241 = sbr.rel (%p238) target = $region48
    $region47: #{_lambda_.4} parent=5 // pred_region
      %s242 = ssub.s32 %s13, 1
      %p243 = scmp.lt.s32.totalorder %s18, 1
      %s244 = scalar_select %p243, %s18, 1
      %s245 = smul.addr %s244, 32
      %s246 = smul.addr %s245, 4
      %s247 = scalar_lea.vmem %s0, %s246
      %p248 = pneg %p39
      %p249 = pneg %p36
      %p250 = pneg %p60
      %p251 = pneg %p57
      %p252 = pneg %p81
      %p253 = pneg %p78
      %p254 = pneg %p102
      %p255 = pneg %p99
      %p256 = pneg %p123
      %p257 = pneg %p120
      %p258 = pneg %p144
      %p259 = pneg %p141
      %p260 = pneg %p165
      %p261 = pneg %p162
      %p262 = pneg %p191
      %p263 = pneg %p188
      %p264 = scmp.lt.s32.totalorder %s18, 1
      %s265 = scalar_select %p264, %s18, 1
      %s266 = smul.addr %s265, 32
      %s267 = smul.addr %s266, 4
      %s268 = scalar_lea.vmem %s7, %s267
      %p269 = scmp.lt.s32.totalorder %s18, 1
      %s270 = scalar_select %p269, %s18, 1
      %s271 = smul.addr %s270, 32
      %s272 = smul.addr %s271, 4
      %s273 = scalar_lea.vmem %s0, %s272
      %p274 = scmp.lt.s32.totalorder %s18, 1
      %s275 = scalar_select %p274, %s18, 1
      %s276 = smul.addr %s275, 32
      %s277 = smul.addr %s276, 4
      %s278 = scalar_lea.vmem %s7, %s277
      %p280 = scmp.eq.s32.totalorder %s18, 0
      // Predicated region
      $region49: #{_lambda_.4} parent=47 // pred_check
        %p281 = pneg %p280
      $region50: #{_lambda_.4} parent=47 // pred_check_branch
        %283 = sbr.rel (%p281) target = $region52
      $region51: #{_lambda_.4} parent=47 // pred_region
        %vm284 = vcmask 31744
        %285 = vst.msk [vmem:[#allocation2] sm:$0xff] %vm284, 0
        %286 = vst.msk [vmem:[#allocation2 + $0x8] sm:$0xff] %vm284, 0
        %287 = vst.msk [vmem:[#allocation2 + $0x90] sm:$0xff] %vm284, 0
        %288 = vst.msk [vmem:[#allocation2 + $0x98] sm:$0xff] %vm284, 0
        %289 = vst.msk [vmem:[#allocation3] sm:$0xff] %vm284, 0
        %290 = vst.msk [vmem:[#allocation3 + $0x8] sm:$0xff] %vm284, 0
        %291 = vst.msk [vmem:[#allocation3 + $0x90] sm:$0xff] %vm284, 0
        %292 = vst.msk [vmem:[#allocation3 + $0x98] sm:$0xff] %vm284, 0
      $region52: #{_lambda_.4} parent=47 // pred_fallthru
        _
      %v293 = vlaneseq
      %v294 = vshrl.u32 %v293, 7
      %v295 = vadd.s32 %v294, 8
      %v296 = vadd.s32 %v294, 16
      %v297 = vadd.s32 %v294, 24
      %v298 = vadd.s32 %v294, 32
      %v299 = vadd.s32 %v294, 40
      %v300 = vadd.s32 %v294, 48
      %v301 = vadd.s32 %v294, 56
      %v302 = vadd.s32 %v294, 64
      %v303 = vadd.s32 %v294, 72
      %v304 = vadd.s32 %v294, 80
      %v305 = vadd.s32 %v294, 88
      %v306 = vadd.s32 %v294, 96
      %v307 = vadd.s32 %v294, 104
      %v308 = vadd.s32 %v294, 112
      %v309 = vadd.s32 %v294, 120
      %v310 = vadd.s32 %v294, 128
      %v311 = vadd.s32 %v294, 136
      %v312 = vadd.s32 %v294, 144
      %v313 = vadd.s32 %v294, 152
      %v314 = vadd.s32 %v294, 160
      %v315 = vadd.s32 %v294, 168
      %v316 = vadd.s32 %v294, 176
      %v317 = vadd.s32 %v294, 184
      %v318 = vadd.s32 %v294, 192
      %v319 = vadd.s32 %v294, 200
      %v320 = vadd.s32 %v294, 208
      %v321 = vadd.s32 %v294, 216
      %v322 = vadd.s32 %v294, 224
      %v323 = vadd.s32 %v294, 232
      %v324 = vadd.s32 %v294, 240
      %v325 = vadd.s32 %v294, 248
      %vm326 = vcmp.lt.s32.totalorder %v294, 0
      %v327 = vsub.s32 0, %v294
      %v328 = vsel %vm326, %v327, %v294
      %v329 = vshrl.u32 %v328, 4
      %v330 = vand.u32 %v328, 15
      %v331 = vsub.s32 0, %v330
      %v332 = vsel %vm326, %v331, %v330
      %vm333 = vcmp.lt.s32.totalorder %v295, 0
      %v334 = vsub.s32 0, %v295
      %v335 = vsel %vm333, %v334, %v295
      %v336 = vshrl.u32 %v335, 4
      %v337 = vand.u32 %v335, 15
      %v338 = vsub.s32 0, %v337
      %v339 = vsel %vm333, %v338, %v337
      %vm340 = vcmp.lt.s32.totalorder %v296, 0
      %v341 = vsub.s32 0, %v296
      %v342 = vsel %vm340, %v341, %v296
      %v343 = vshrl.u32 %v342, 4
      %v344 = vand.u32 %v342, 15
      %v345 = vsub.s32 0, %v344
      %v346 = vsel %vm340, %v345, %v344
      %vm347 = vcmp.lt.s32.totalorder %v297, 0
      %v348 = vsub.s32 0, %v297
      %v349 = vsel %vm347, %v348, %v297
      %v350 = vshrl.u32 %v349, 4
      %v351 = vand.u32 %v349, 15
      %v352 = vsub.s32 0, %v351
      %v353 = vsel %vm347, %v352, %v351
      %vm354 = vcmp.lt.s32.totalorder %v298, 0
      %v355 = vsub.s32 0, %v298
      %v356 = vsel %vm354, %v355, %v298
      %v357 = vshrl.u32 %v356, 4
      %v358 = vand.u32 %v356, 15
      %v359 = vsub.s32 0, %v358
      %v360 = vsel %vm354, %v359, %v358
      %vm361 = vcmp.lt.s32.totalorder %v299, 0
      %v362 = vsub.s32 0, %v299
      %v363 = vsel %vm361, %v362, %v299
      %v364 = vshrl.u32 %v363, 4
      %v365 = vand.u32 %v363, 15
      %v366 = vsub.s32 0, %v365
      %v367 = vsel %vm361, %v366, %v365
      %vm368 = vcmp.lt.s32.totalorder %v300, 0
      %v369 = vsub.s32 0, %v300
      %v370 = vsel %vm368, %v369, %v300
      %v371 = vshrl.u32 %v370, 4
      %v372 = vand.u32 %v370, 15
      %v373 = vsub.s32 0, %v372
      %v374 = vsel %vm368, %v373, %v372
      %vm375 = vcmp.lt.s32.totalorder %v301, 0
      %v376 = vsub.s32 0, %v301
      %v377 = vsel %vm375, %v376, %v301
      %v378 = vshrl.u32 %v377, 4
      %v379 = vand.u32 %v377, 15
      %v380 = vsub.s32 0, %v379
      %v381 = vsel %vm375, %v380, %v379
      %vm382 = vcmp.lt.s32.totalorder %v302, 0
      %v383 = vsub.s32 0, %v302
      %v384 = vsel %vm382, %v383, %v302
      %v385 = vshrl.u32 %v384, 4
      %v386 = vand.u32 %v384, 15
      %v387 = vsub.s32 0, %v386
      %v388 = vsel %vm382, %v387, %v386
      %vm389 = vcmp.lt.s32.totalorder %v303, 0
      %v390 = vsub.s32 0, %v303
      %v391 = vsel %vm389, %v390, %v303
      %v392 = vshrl.u32 %v391, 4
      %v393 = vand.u32 %v391, 15
      %v394 = vsub.s32 0, %v393
      %v395 = vsel %vm389, %v394, %v393
      %vm396 = vcmp.lt.s32.totalorder %v304, 0
      %v397 = vsub.s32 0, %v304
      %v398 = vsel %vm396, %v397, %v304
      %v399 = vshrl.u32 %v398, 4
      %v400 = vand.u32 %v398, 15
      %v401 = vsub.s32 0, %v400
      %v402 = vsel %vm396, %v401, %v400
      %vm403 = vcmp.lt.s32.totalorder %v305, 0
      %v404 = vsub.s32 0, %v305
      %v405 = vsel %vm403, %v404, %v305
      %v406 = vshrl.u32 %v405, 4
      %v407 = vand.u32 %v405, 15
      %v408 = vsub.s32 0, %v407
      %v409 = vsel %vm403, %v408, %v407
      %vm410 = vcmp.lt.s32.totalorder %v306, 0
      %v411 = vsub.s32 0, %v306
      %v412 = vsel %vm410, %v411, %v306
      %v413 = vshrl.u32 %v412, 4
      %v414 = vand.u32 %v412, 15
      %v415 = vsub.s32 0, %v414
      %v416 = vsel %vm410, %v415, %v414
      %vm417 = vcmp.lt.s32.totalorder %v307, 0
      %v418 = vsub.s32 0, %v307
      %v419 = vsel %vm417, %v418, %v307
      %v420 = vshrl.u32 %v419, 4
      %v421 = vand.u32 %v419, 15
      %v422 = vsub.s32 0, %v421
      %v423 = vsel %vm417, %v422, %v421
      %vm424 = vcmp.lt.s32.totalorder %v308, 0
      %v425 = vsub.s32 0, %v308
      %v426 = vsel %vm424, %v425, %v308
      %v427 = vshrl.u32 %v426, 4
      %v428 = vand.u32 %v426, 15
      %v429 = vsub.s32 0, %v428
      %v430 = vsel %vm424, %v429, %v428
      %vm431 = vcmp.lt.s32.totalorder %v309, 0
      %v432 = vsub.s32 0, %v309
      %v433 = vsel %vm431, %v432, %v309
      %v434 = vshrl.u32 %v433, 4
      %v435 = vand.u32 %v433, 15
      %v436 = vsub.s32 0, %v435
      %v437 = vsel %vm431, %v436, %v435
      %vm438 = vcmp.lt.s32.totalorder %v310, 0
      %v439 = vsub.s32 0, %v310
      %v440 = vsel %vm438, %v439, %v310
      %v441 = vshrl.u32 %v440, 4
      %v442 = vand.u32 %v440, 15
      %v443 = vsub.s32 0, %v442
      %v444 = vsel %vm438, %v443, %v442
      %vm445 = vcmp.lt.s32.totalorder %v311, 0
      %v446 = vsub.s32 0, %v311
      %v447 = vsel %vm445, %v446, %v311
      %v448 = vshrl.u32 %v447, 4
      %v449 = vand.u32 %v447, 15
      %v450 = vsub.s32 0, %v449
      %v451 = vsel %vm445, %v450, %v449
      %vm452 = vcmp.lt.s32.totalorder %v312, 0
      %v453 = vsub.s32 0, %v312
      %v454 = vsel %vm452, %v453, %v312
      %v455 = vshrl.u32 %v454, 4
      %v456 = vand.u32 %v454, 15
      %v457 = vsub.s32 0, %v456
      %v458 = vsel %vm452, %v457, %v456
      %vm459 = vcmp.lt.s32.totalorder %v313, 0
      %v460 = vsub.s32 0, %v313
      %v461 = vsel %vm459, %v460, %v313
      %v462 = vshrl.u32 %v461, 4
      %v463 = vand.u32 %v461, 15
      %v464 = vsub.s32 0, %v463
      %v465 = vsel %vm459, %v464, %v463
      %vm466 = vcmp.lt.s32.totalorder %v314, 0
      %v467 = vsub.s32 0, %v314
      %v468 = vsel %vm466, %v467, %v314
      %v469 = vshrl.u32 %v468, 4
      %v470 = vand.u32 %v468, 15
      %v471 = vsub.s32 0, %v470
      %v472 = vsel %vm466, %v471, %v470
      %vm473 = vcmp.lt.s32.totalorder %v315, 0
      %v474 = vsub.s32 0, %v315
      %v475 = vsel %vm473, %v474, %v315
      %v476 = vshrl.u32 %v475, 4
      %v477 = vand.u32 %v475, 15
      %v478 = vsub.s32 0, %v477
      %v479 = vsel %vm473, %v478, %v477
      %vm480 = vcmp.lt.s32.totalorder %v316, 0
      %v481 = vsub.s32 0, %v316
      %v482 = vsel %vm480, %v481, %v316
      %v483 = vshrl.u32 %v482, 4
      %v484 = vand.u32 %v482, 15
      %v485 = vsub.s32 0, %v484
      %v486 = vsel %vm480, %v485, %v484
      %vm487 = vcmp.lt.s32.totalorder %v317, 0
      %v488 = vsub.s32 0, %v317
      %v489 = vsel %vm487, %v488, %v317
      %v490 = vshrl.u32 %v489, 4
      %v491 = vand.u32 %v489, 15
      %v492 = vsub.s32 0, %v491
      %v493 = vsel %vm487, %v492, %v491
      %vm494 = vcmp.lt.s32.totalorder %v318, 0
      %v495 = vsub.s32 0, %v318
      %v496 = vsel %vm494, %v495, %v318
      %v497 = vshrl.u32 %v496, 4
      %v498 = vand.u32 %v496, 15
      %v499 = vsub.s32 0, %v498
      %v500 = vsel %vm494, %v499, %v498
      %vm501 = vcmp.lt.s32.totalorder %v319, 0
      %v502 = vsub.s32 0, %v319
      %v503 = vsel %vm501, %v502, %v319
      %v504 = vshrl.u32 %v503, 4
      %v505 = vand.u32 %v503, 15
      %v506 = vsub.s32 0, %v505
      %v507 = vsel %vm501, %v506, %v505
      %vm508 = vcmp.lt.s32.totalorder %v320, 0
      %v509 = vsub.s32 0, %v320
      %v510 = vsel %vm508, %v509, %v320
      %v511 = vshrl.u32 %v510, 4
      %v512 = vand.u32 %v510, 15
      %v513 = vsub.s32 0, %v512
      %v514 = vsel %vm508, %v513, %v512
      %vm515 = vcmp.lt.s32.totalorder %v321, 0
      %v516 = vsub.s32 0, %v321
      %v517 = vsel %vm515, %v516, %v321
      %v518 = vshrl.u32 %v517, 4
      %v519 = vand.u32 %v517, 15
      %v520 = vsub.s32 0, %v519
      %v521 = vsel %vm515, %v520, %v519
      %vm522 = vcmp.lt.s32.totalorder %v322, 0
      %v523 = vsub.s32 0, %v322
      %v524 = vsel %vm522, %v523, %v322
      %v525 = vshrl.u32 %v524, 4
      %v526 = vand.u32 %v524, 15
      %v527 = vsub.s32 0, %v526
      %v528 = vsel %vm522, %v527, %v526
      %vm529 = vcmp.lt.s32.totalorder %v323, 0
      %v530 = vsub.s32 0, %v323
      %v531 = vsel %vm529, %v530, %v323
      %v532 = vshrl.u32 %v531, 4
      %v533 = vand.u32 %v531, 15
      %v534 = vsub.s32 0, %v533
      %v535 = vsel %vm529, %v534, %v533
      %vm536 = vcmp.lt.s32.totalorder %v324, 0
      %v537 = vsub.s32 0, %v324
      %v538 = vsel %vm536, %v537, %v324
      %v539 = vshrl.u32 %v538, 4
      %v540 = vand.u32 %v538, 15
      %v541 = vsub.s32 0, %v540
      %v542 = vsel %vm536, %v541, %v540
      %vm543 = vcmp.lt.s32.totalorder %v325, 0
      %v544 = vsub.s32 0, %v325
      %v545 = vsel %vm543, %v544, %v325
      %v546 = vshrl.u32 %v545, 4
      %v547 = vand.u32 %v545, 15
      %v548 = vsub.s32 0, %v547
      %v549 = vsel %vm543, %v548, %v547
      %vm550 = vcmp.ne.s32.totalorder %v332, 0
      %vm551 = vcmp.ne.s32.totalorder %v339, 0
      %vm552 = vcmp.ne.s32.totalorder %v346, 0
      %vm553 = vcmp.ne.s32.totalorder %v353, 0
      %vm554 = vcmp.ne.s32.totalorder %v360, 0
      %vm555 = vcmp.ne.s32.totalorder %v367, 0
      %vm556 = vcmp.ne.s32.totalorder %v374, 0
      %vm557 = vcmp.ne.s32.totalorder %v381, 0
      %vm558 = vcmp.ne.s32.totalorder %v388, 0
      %vm559 = vcmp.ne.s32.totalorder %v395, 0
      %vm560 = vcmp.ne.s32.totalorder %v402, 0
      %vm561 = vcmp.ne.s32.totalorder %v409, 0
      %vm562 = vcmp.ne.s32.totalorder %v416, 0
      %vm563 = vcmp.ne.s32.totalorder %v423, 0
      %vm564 = vcmp.ne.s32.totalorder %v430, 0
      %vm565 = vcmp.ne.s32.totalorder %v437, 0
      %vm566 = vcmp.ne.s32.totalorder %v444, 0
      %vm567 = vcmp.ne.s32.totalorder %v451, 0
      %vm568 = vcmp.ne.s32.totalorder %v458, 0
      %vm569 = vcmp.ne.s32.totalorder %v465, 0
      %vm570 = vcmp.ne.s32.totalorder %v472, 0
      %vm571 = vcmp.ne.s32.totalorder %v479, 0
      %vm572 = vcmp.ne.s32.totalorder %v486, 0
      %vm573 = vcmp.ne.s32.totalorder %v493, 0
      %vm574 = vcmp.ne.s32.totalorder %v500, 0
      %vm575 = vcmp.ne.s32.totalorder %v507, 0
      %vm576 = vcmp.ne.s32.totalorder %v514, 0
      %vm577 = vcmp.ne.s32.totalorder %v521, 0
      %vm578 = vcmp.ne.s32.totalorder %v528, 0
      %vm579 = vcmp.ne.s32.totalorder %v535, 0
      %vm580 = vcmp.ne.s32.totalorder %v542, 0
      %vm581 = vcmp.ne.s32.totalorder %v549, 0
      %vm582 = vcmp.lt.s32.totalorder %v332, 0
      %vm583 = vcmp.lt.s32.totalorder %v339, 0
      %vm584 = vcmp.lt.s32.totalorder %v346, 0
      %vm585 = vcmp.lt.s32.totalorder %v353, 0
      %vm586 = vcmp.lt.s32.totalorder %v360, 0
      %vm587 = vcmp.lt.s32.totalorder %v367, 0
      %vm588 = vcmp.lt.s32.totalorder %v374, 0
      %vm589 = vcmp.lt.s32.totalorder %v381, 0
      %vm590 = vcmp.lt.s32.totalorder %v388, 0
      %vm591 = vcmp.lt.s32.totalorder %v395, 0
      %vm592 = vcmp.lt.s32.totalorder %v402, 0
      %vm593 = vcmp.lt.s32.totalorder %v409, 0
      %vm594 = vcmp.lt.s32.totalorder %v416, 0
      %vm595 = vcmp.lt.s32.totalorder %v423, 0
      %vm596 = vcmp.lt.s32.totalorder %v430, 0
      %vm597 = vcmp.lt.s32.totalorder %v437, 0
      %vm598 = vcmp.lt.s32.totalorder %v444, 0
      %vm599 = vcmp.lt.s32.totalorder %v451, 0
      %vm600 = vcmp.lt.s32.totalorder %v458, 0
      %vm601 = vcmp.lt.s32.totalorder %v465, 0
      %vm602 = vcmp.lt.s32.totalorder %v472, 0
      %vm603 = vcmp.lt.s32.totalorder %v479, 0
      %vm604 = vcmp.lt.s32.totalorder %v486, 0
      %vm605 = vcmp.lt.s32.totalorder %v493, 0
      %vm606 = vcmp.lt.s32.totalorder %v500, 0
      %vm607 = vcmp.lt.s32.totalorder %v507, 0
      %vm608 = vcmp.lt.s32.totalorder %v514, 0
      %vm609 = vcmp.lt.s32.totalorder %v521, 0
      %vm610 = vcmp.lt.s32.totalorder %v528, 0
      %vm611 = vcmp.lt.s32.totalorder %v535, 0
      %vm612 = vcmp.lt.s32.totalorder %v542, 0
      %vm613 = vcmp.lt.s32.totalorder %v549, 0
      %vm614 = vmand %vm582, %vm550
      %vm615 = vmand %vm583, %vm551
      %vm616 = vmand %vm584, %vm552
      %vm617 = vmand %vm585, %vm553
      %vm618 = vmand %vm586, %vm554
      %vm619 = vmand %vm587, %vm555
      %vm620 = vmand %vm588, %vm556
      %vm621 = vmand %vm589, %vm557
      %vm622 = vmand %vm590, %vm558
      %vm623 = vmand %vm591, %vm559
      %vm624 = vmand %vm592, %vm560
      %vm625 = vmand %vm593, %vm561
      %vm626 = vmand %vm594, %vm562
      %vm627 = vmand %vm595, %vm563
      %vm628 = vmand %vm596, %vm564
      %vm629 = vmand %vm597, %vm565
      %vm630 = vmand %vm598, %vm566
      %vm631 = vmand %vm599, %vm567
      %vm632 = vmand %vm600, %vm568
      %vm633 = vmand %vm601, %vm569
      %vm634 = vmand %vm602, %vm570
      %vm635 = vmand %vm603, %vm571
      %vm636 = vmand %vm604, %vm572
      %vm637 = vmand %vm605, %vm573
      %vm638 = vmand %vm606, %vm574
      %vm639 = vmand %vm607, %vm575
      %vm640 = vmand %vm608, %vm576
      %vm641 = vmand %vm609, %vm577
      %vm642 = vmand %vm610, %vm578
      %vm643 = vmand %vm611, %vm579
      %vm644 = vmand %vm612, %vm580
      %vm645 = vmand %vm613, %vm581
      %v646 = vadd.s32 %v332, 16
      %v647 = vadd.s32 %v339, 16
      %v648 = vadd.s32 %v346, 16
      %v649 = vadd.s32 %v353, 16
      %v650 = vadd.s32 %v360, 16
      %v651 = vadd.s32 %v367, 16
      %v652 = vadd.s32 %v374, 16
      %v653 = vadd.s32 %v381, 16
      %v654 = vadd.s32 %v388, 16
      %v655 = vadd.s32 %v395, 16
      %v656 = vadd.s32 %v402, 16
      %v657 = vadd.s32 %v409, 16
      %v658 = vadd.s32 %v416, 16
      %v659 = vadd.s32 %v423, 16
      %v660 = vadd.s32 %v430, 16
      %v661 = vadd.s32 %v437, 16
      %v662 = vadd.s32 %v444, 16
      %v663 = vadd.s32 %v451, 16
      %v664 = vadd.s32 %v458, 16
      %v665 = vadd.s32 %v465, 16
      %v666 = vadd.s32 %v472, 16
      %v667 = vadd.s32 %v479, 16
      %v668 = vadd.s32 %v486, 16
      %v669 = vadd.s32 %v493, 16
      %v670 = vadd.s32 %v500, 16
      %v671 = vadd.s32 %v507, 16
      %v672 = vadd.s32 %v514, 16
      %v673 = vadd.s32 %v521, 16
      %v674 = vadd.s32 %v528, 16
      %v675 = vadd.s32 %v535, 16
      %v676 = vadd.s32 %v542, 16
      %v677 = vadd.s32 %v549, 16
      %v678 = vsel %vm614, %v646, %v332
      %v679 = vsel %vm615, %v647, %v339
      %v680 = vsel %vm616, %v648, %v346
      %v681 = vsel %vm617, %v649, %v353
      %v682 = vsel %vm618, %v650, %v360
      %v683 = vsel %vm619, %v651, %v367
      %v684 = vsel %vm620, %v652, %v374
      %v685 = vsel %vm621, %v653, %v381
      %v686 = vsel %vm622, %v654, %v388
      %v687 = vsel %vm623, %v655, %v395
      %v688 = vsel %vm624, %v656, %v402
      %v689 = vsel %vm625, %v657, %v409
      %v690 = vsel %vm626, %v658, %v416
      %v691 = vsel %vm627, %v659, %v423
      %v692 = vsel %vm628, %v660, %v430
      %v693 = vsel %vm629, %v661, %v437
      %v694 = vsel %vm630, %v662, %v444
      %v695 = vsel %vm631, %v663, %v451
      %v696 = vsel %vm632, %v664, %v458
      %v697 = vsel %vm633, %v665, %v465
      %v698 = vsel %vm634, %v666, %v472
      %v699 = vsel %vm635, %v667, %v479
      %v700 = vsel %vm636, %v668, %v486
      %v701 = vsel %vm637, %v669, %v493
      %v702 = vsel %vm638, %v670, %v500
      %v703 = vsel %vm639, %v671, %v507
      %v704 = vsel %vm640, %v672, %v514
      %v705 = vsel %vm641, %v673, %v521
      %v706 = vsel %vm642, %v674, %v528
      %v707 = vsel %vm643, %v675, %v535
      %v708 = vsel %vm644, %v676, %v542
      %v709 = vsel %vm645, %v677, %v549
      %vm710 = vcmp.ne.s32.totalorder %v678, 0
      %vm711 = vcmp.ne.s32.totalorder %v679, 0
      %vm712 = vcmp.ne.s32.totalorder %v680, 0
      %vm713 = vcmp.ne.s32.totalorder %v681, 0
      %vm714 = vcmp.ne.s32.totalorder %v682, 0
      %vm715 = vcmp.ne.s32.totalorder %v683, 0
      %vm716 = vcmp.ne.s32.totalorder %v684, 0
      %vm717 = vcmp.ne.s32.totalorder %v685, 0
      %vm718 = vcmp.ne.s32.totalorder %v686, 0
      %vm719 = vcmp.ne.s32.totalorder %v687, 0
      %vm720 = vcmp.ne.s32.totalorder %v688, 0
      %vm721 = vcmp.ne.s32.totalorder %v689, 0
      %vm722 = vcmp.ne.s32.totalorder %v690, 0
      %vm723 = vcmp.ne.s32.totalorder %v691, 0
      %vm724 = vcmp.ne.s32.totalorder %v692, 0
      %vm725 = vcmp.ne.s32.totalorder %v693, 0
      %vm726 = vcmp.ne.s32.totalorder %v694, 0
      %vm727 = vcmp.ne.s32.totalorder %v695, 0
      %vm728 = vcmp.ne.s32.totalorder %v696, 0
      %vm729 = vcmp.ne.s32.totalorder %v697, 0
      %vm730 = vcmp.ne.s32.totalorder %v698, 0
      %vm731 = vcmp.ne.s32.totalorder %v699, 0
      %vm732 = vcmp.ne.s32.totalorder %v700, 0
      %vm733 = vcmp.ne.s32.totalorder %v701, 0
      %vm734 = vcmp.ne.s32.totalorder %v702, 0
      %vm735 = vcmp.ne.s32.totalorder %v703, 0
      %vm736 = vcmp.ne.s32.totalorder %v704, 0
      %vm737 = vcmp.ne.s32.totalorder %v705, 0
      %vm738 = vcmp.ne.s32.totalorder %v706, 0
      %vm739 = vcmp.ne.s32.totalorder %v707, 0
      %vm740 = vcmp.ne.s32.totalorder %v708, 0
      %vm741 = vcmp.ne.s32.totalorder %v709, 0
      %v742 = vsel %vm710, 1, 0
      %v743 = vsel %vm711, 1, 0
      %v744 = vsel %vm712, 1, 0
      %v745 = vsel %vm713, 1, 0
      %v746 = vsel %vm714, 1, 0
      %v747 = vsel %vm715, 1, 0
      %v748 = vsel %vm716, 1, 0
      %v749 = vsel %vm717, 1, 0
      %v750 = vsel %vm718, 1, 0
      %v751 = vsel %vm719, 1, 0
      %v752 = vsel %vm720, 1, 0
      %v753 = vsel %vm721, 1, 0
      %v754 = vsel %vm722, 1, 0
      %v755 = vsel %vm723, 1, 0
      %v756 = vsel %vm724, 1, 0
      %v757 = vsel %vm725, 1, 0
      %v758 = vsel %vm726, 1, 0
      %v759 = vsel %vm727, 1, 0
      %v760 = vsel %vm728, 1, 0
      %v761 = vsel %vm729, 1, 0
      %v762 = vsel %vm730, 1, 0
      %v763 = vsel %vm731, 1, 0
      %v764 = vsel %vm732, 1, 0
      %v765 = vsel %vm733, 1, 0
      %v766 = vsel %vm734, 1, 0
      %v767 = vsel %vm735, 1, 0
      %v768 = vsel %vm736, 1, 0
      %v769 = vsel %vm737, 1, 0
      %v770 = vsel %vm738, 1, 0
      %v771 = vsel %vm739, 1, 0
      %v772 = vsel %vm740, 1, 0
      %v773 = vsel %vm741, 1, 0
      %v774 = vcvt.s32.f32 %v742
      %v775 = vcvt.s32.f32 %v743
      %v776 = vcvt.s32.f32 %v744
      %v777 = vcvt.s32.f32 %v745
      %v778 = vcvt.s32.f32 %v746
      %v779 = vcvt.s32.f32 %v747
      %v780 = vcvt.s32.f32 %v748
      %v781 = vcvt.s32.f32 %v749
      %v782 = vcvt.s32.f32 %v750
      %v783 = vcvt.s32.f32 %v751
      %v784 = vcvt.s32.f32 %v752
      %v785 = vcvt.s32.f32 %v753
      %v786 = vcvt.s32.f32 %v754
      %v787 = vcvt.s32.f32 %v755
      %v788 = vcvt.s32.f32 %v756
      %v789 = vcvt.s32.f32 %v757
      %v790 = vcvt.s32.f32 %v758
      %v791 = vcvt.s32.f32 %v759
      %v792 = vcvt.s32.f32 %v760
      %v793 = vcvt.s32.f32 %v761
      %v794 = vcvt.s32.f32 %v762
      %v795 = vcvt.s32.f32 %v763
      %v796 = vcvt.s32.f32 %v764
      %v797 = vcvt.s32.f32 %v765
      %v798 = vcvt.s32.f32 %v766
      %v799 = vcvt.s32.f32 %v767
      %v800 = vcvt.s32.f32 %v768
      %v801 = vcvt.s32.f32 %v769
      %v802 = vcvt.s32.f32 %v770
      %v803 = vcvt.s32.f32 %v771
      %v804 = vcvt.s32.f32 %v772
      %v805 = vcvt.s32.f32 %v773
      %v806 = vpack.c.bf16 %v775, %v774
      %v807 = vpack.c.bf16 %v777, %v776
      %v808 = vpack.c.bf16 %v779, %v778
      %v809 = vpack.c.bf16 %v781, %v780
      %v810 = vpack.c.bf16 %v783, %v782
      %v811 = vpack.c.bf16 %v785, %v784
      %v812 = vpack.c.bf16 %v787, %v786
      %v813 = vpack.c.bf16 %v789, %v788
      %v814 = vpack.c.bf16 %v791, %v790
      %v815 = vpack.c.bf16 %v793, %v792
      %v816 = vpack.c.bf16 %v795, %v794
      %v817 = vpack.c.bf16 %v797, %v796
      %v818 = vpack.c.bf16 %v799, %v798
      %v819 = vpack.c.bf16 %v801, %v800
      %v820 = vpack.c.bf16 %v803, %v802
      %v821 = vpack.c.bf16 %v805, %v804
      %vm822 = vcmp.ne.s32.totalorder %v678, 15
      %vm823 = vcmp.ne.s32.totalorder %v679, 15
      %vm824 = vcmp.ne.s32.totalorder %v680, 15
      %vm825 = vcmp.ne.s32.totalorder %v681, 15
      %vm826 = vcmp.ne.s32.totalorder %v682, 15
      %vm827 = vcmp.ne.s32.totalorder %v683, 15
      %vm828 = vcmp.ne.s32.totalorder %v684, 15
      %vm829 = vcmp.ne.s32.totalorder %v685, 15
      %vm830 = vcmp.ne.s32.totalorder %v686, 15
      %vm831 = vcmp.ne.s32.totalorder %v687, 15
      %vm832 = vcmp.ne.s32.totalorder %v688, 15
      %vm833 = vcmp.ne.s32.totalorder %v689, 15
      %vm834 = vcmp.ne.s32.totalorder %v690, 15
      %vm835 = vcmp.ne.s32.totalorder %v691, 15
      %vm836 = vcmp.ne.s32.totalorder %v692, 15
      %vm837 = vcmp.ne.s32.totalorder %v693, 15
      %vm838 = vcmp.ne.s32.totalorder %v694, 15
      %vm839 = vcmp.ne.s32.totalorder %v695, 15
      %vm840 = vcmp.ne.s32.totalorder %v696, 15
      %vm841 = vcmp.ne.s32.totalorder %v697, 15
      %vm842 = vcmp.ne.s32.totalorder %v698, 15
      %vm843 = vcmp.ne.s32.totalorder %v699, 15
      %vm844 = vcmp.ne.s32.totalorder %v700, 15
      %vm845 = vcmp.ne.s32.totalorder %v701, 15
      %vm846 = vcmp.ne.s32.totalorder %v702, 15
      %vm847 = vcmp.ne.s32.totalorder %v703, 15
      %vm848 = vcmp.ne.s32.totalorder %v704, 15
      %vm849 = vcmp.ne.s32.totalorder %v705, 15
      %vm850 = vcmp.ne.s32.totalorder %v706, 15
      %vm851 = vcmp.ne.s32.totalorder %v707, 15
      %vm852 = vcmp.ne.s32.totalorder %v708, 15
      %vm853 = vcmp.ne.s32.totalorder %v709, 15
      %v854 = vsel %vm822, 1, 0
      %v855 = vsel %vm823, 1, 0
      %v856 = vsel %vm824, 1, 0
      %v857 = vsel %vm825, 1, 0
      %v858 = vsel %vm826, 1, 0
      %v859 = vsel %vm827, 1, 0
      %v860 = vsel %vm828, 1, 0
      %v861 = vsel %vm829, 1, 0
      %v862 = vsel %vm830, 1, 0
      %v863 = vsel %vm831, 1, 0
      %v864 = vsel %vm832, 1, 0
      %v865 = vsel %vm833, 1, 0
      %v866 = vsel %vm834, 1, 0
      %v867 = vsel %vm835, 1, 0
      %v868 = vsel %vm836, 1, 0
      %v869 = vsel %vm837, 1, 0
      %v870 = vsel %vm838, 1, 0
      %v871 = vsel %vm839, 1, 0
      %v872 = vsel %vm840, 1, 0
      %v873 = vsel %vm841, 1, 0
      %v874 = vsel %vm842, 1, 0
      %v875 = vsel %vm843, 1, 0
      %v876 = vsel %vm844, 1, 0
      %v877 = vsel %vm845, 1, 0
      %v878 = vsel %vm846, 1, 0
      %v879 = vsel %vm847, 1, 0
      %v880 = vsel %vm848, 1, 0
      %v881 = vsel %vm849, 1, 0
      %v882 = vsel %vm850, 1, 0
      %v883 = vsel %vm851, 1, 0
      %v884 = vsel %vm852, 1, 0
      %v885 = vsel %vm853, 1, 0
      %v886 = vcvt.s32.f32 %v854
      %v887 = vcvt.s32.f32 %v855
      %v888 = vcvt.s32.f32 %v856
      %v889 = vcvt.s32.f32 %v857
      %v890 = vcvt.s32.f32 %v858
      %v891 = vcvt.s32.f32 %v859
      %v892 = vcvt.s32.f32 %v860
      %v893 = vcvt.s32.f32 %v861
      %v894 = vcvt.s32.f32 %v862
      %v895 = vcvt.s32.f32 %v863
      %v896 = vcvt.s32.f32 %v864
      %v897 = vcvt.s32.f32 %v865
      %v898 = vcvt.s32.f32 %v866
      %v899 = vcvt.s32.f32 %v867
      %v900 = vcvt.s32.f32 %v868
      %v901 = vcvt.s32.f32 %v869
      %v902 = vcvt.s32.f32 %v870
      %v903 = vcvt.s32.f32 %v871
      %v904 = vcvt.s32.f32 %v872
      %v905 = vcvt.s32.f32 %v873
      %v906 = vcvt.s32.f32 %v874
      %v907 = vcvt.s32.f32 %v875
      %v908 = vcvt.s32.f32 %v876
      %v909 = vcvt.s32.f32 %v877
      %v910 = vcvt.s32.f32 %v878
      %v911 = vcvt.s32.f32 %v879
      %v912 = vcvt.s32.f32 %v880
      %v913 = vcvt.s32.f32 %v881
      %v914 = vcvt.s32.f32 %v882
      %v915 = vcvt.s32.f32 %v883
      %v916 = vcvt.s32.f32 %v884
      %v917 = vcvt.s32.f32 %v885
      %v918 = vpack.c.bf16 %v887, %v886
      %v919 = vpack.c.bf16 %v889, %v888
      %v920 = vpack.c.bf16 %v891, %v890
      %v921 = vpack.c.bf16 %v893, %v892
      %v922 = vpack.c.bf16 %v895, %v894
      %v923 = vpack.c.bf16 %v897, %v896
      %v924 = vpack.c.bf16 %v899, %v898
      %v925 = vpack.c.bf16 %v901, %v900
      %v926 = vpack.c.bf16 %v903, %v902
      %v927 = vpack.c.bf16 %v905, %v904
      %v928 = vpack.c.bf16 %v907, %v906
      %v929 = vpack.c.bf16 %v909, %v908
      %v930 = vpack.c.bf16 %v911, %v910
      %v931 = vpack.c.bf16 %v913, %v912
      %v932 = vpack.c.bf16 %v915, %v914
      %v933 = vpack.c.bf16 %v917, %v916
      %v934 = vld [vmem:[%s273] sm:$0xf]
      %v935 = vld [vmem:[%s273 + $0x4] sm:$0xf]
      %v936 = vld [vmem:[%s273 + $0x8] sm:$0xf]
      %v937 = vld [vmem:[%s273 + $0xc] sm:$0xf]
      %v938 = vld [vmem:[%s273 + $0x10] sm:$0xf]
      %v939 = vld [vmem:[%s273 + $0x14] sm:$0xf]
      %v940 = vld [vmem:[%s273 + $0x18] sm:$0xf]
      %v941 = vld [vmem:[%s273 + $0x1c] sm:$0xf]
      %v942 = vld [vmem:[%s273 + $0x20] sm:$0xf]
      %v943 = vld [vmem:[%s273 + $0x24] sm:$0xf]
      %v944 = vld [vmem:[%s273 + $0x28] sm:$0xf]
      %v945 = vld [vmem:[%s273 + $0x2c] sm:$0xf]
      %v946 = vld [vmem:[%s273 + $0x30] sm:$0xf]
      %v947 = vld [vmem:[%s273 + $0x34] sm:$0xf]
      %v948 = vld [vmem:[%s273 + $0x38] sm:$0xf]
      %v949 = vld [vmem:[%s273 + $0x3c] sm:$0xf]
      %v950 = vld [vmem:[%s273 + $0x40] sm:$0xf]
      %v951 = vld [vmem:[%s273 + $0x44] sm:$0xf]
      %v952 = vld [vmem:[%s273 + $0x48] sm:$0xf]
      %v953 = vld [vmem:[%s273 + $0x4c] sm:$0xf]
      %v954 = vld [vmem:[%s273 + $0x50] sm:$0xf]
      %v955 = vld [vmem:[%s273 + $0x54] sm:$0xf]
      %v956 = vld [vmem:[%s273 + $0x58] sm:$0xf]
      %v957 = vld [vmem:[%s273 + $0x5c] sm:$0xf]
      %v958 = vld [vmem:[%s273 + $0x60] sm:$0xf]
      %v959 = vld [vmem:[%s273 + $0x64] sm:$0xf]
      %v960 = vld [vmem:[%s273 + $0x68] sm:$0xf]
      %v961 = vld [vmem:[%s273 + $0x6c] sm:$0xf]
      %v962 = vld [vmem:[%s273 + $0x70] sm:$0xf]
      %v963 = vld [vmem:[%s273 + $0x74] sm:$0xf]
      %v964 = vld [vmem:[%s273 + $0x78] sm:$0xf]
      %v965 = vld [vmem:[%s273 + $0x7c] sm:$0xf]
      %v998 = vunpack.c.l.b16 %v934
      %v999 = vunpack.c.l.b16 %v935
      %v1000 = vunpack.c.l.b16 %v936
      %v1001 = vunpack.c.l.b16 %v937
      %v1002 = vunpack.c.l.b16 %v938
      %v1003 = vunpack.c.l.b16 %v939
      %v1004 = vunpack.c.l.b16 %v940
      %v1005 = vunpack.c.l.b16 %v941
      %v1006 = vunpack.c.l.b16 %v942
      %v1007 = vunpack.c.l.b16 %v943
      %v1008 = vunpack.c.l.b16 %v944
      %v1009 = vunpack.c.l.b16 %v945
      %v1010 = vunpack.c.l.b16 %v946
      %v1011 = vunpack.c.l.b16 %v947
      %v1012 = vunpack.c.l.b16 %v948
      %v1013 = vunpack.c.l.b16 %v949
      %v1014 = vunpack.c.l.b16 %v950
      %v1015 = vunpack.c.l.b16 %v951
      %v1016 = vunpack.c.l.b16 %v952
      %v1017 = vunpack.c.l.b16 %v953
      %v1018 = vunpack.c.l.b16 %v954
      %v1019 = vunpack.c.l.b16 %v955
      %v1020 = vunpack.c.l.b16 %v956
      %v1021 = vunpack.c.l.b16 %v957
      %v1022 = vunpack.c.l.b16 %v958
      %v1023 = vunpack.c.l.b16 %v959
      %v1024 = vunpack.c.l.b16 %v960
      %v1025 = vunpack.c.l.b16 %v961
      %v1026 = vunpack.c.l.b16 %v962
      %v1027 = vunpack.c.l.b16 %v963
      %v1028 = vunpack.c.l.b16 %v964
      %v1029 = vunpack.c.l.b16 %v965
      %v1030 = vpack.c.b16 %v999, %v998
      %v1031 = vpack.c.b16 %v1001, %v1000
      %v1032 = vpack.c.b16 %v1003, %v1002
      %v1033 = vpack.c.b16 %v1005, %v1004
      %v1034 = vpack.c.b16 %v1007, %v1006
      %v1035 = vpack.c.b16 %v1009, %v1008
      %v1036 = vpack.c.b16 %v1011, %v1010
      %v1037 = vpack.c.b16 %v1013, %v1012
      %v1038 = vpack.c.b16 %v1015, %v1014
      %v1039 = vpack.c.b16 %v1017, %v1016
      %v1040 = vpack.c.b16 %v1019, %v1018
      %v1041 = vpack.c.b16 %v1021, %v1020
      %v1042 = vpack.c.b16 %v1023, %v1022
      %v1043 = vpack.c.b16 %v1025, %v1024
      %v1044 = vpack.c.b16 %v1027, %v1026
      %v1045 = vpack.c.b16 %v1029, %v1028
      %vm1062 = vcmask 31744
      %1063 = vst.msk [vmem:[#allocation2 + $0x10] sm:$0xff] %vm1062, %v1030
      %1064 = vst.msk [vmem:[#allocation2 + $0x18] sm:$0xff] %vm1062, %v1031
      %1065 = vst.msk [vmem:[#allocation2 + $0x20] sm:$0xff] %vm1062, %v1032
      %1066 = vst.msk [vmem:[#allocation2 + $0x28] sm:$0xff] %vm1062, %v1033
      %1067 = vst.msk [vmem:[#allocation2 + $0x30] sm:$0xff] %vm1062, %v1034
      %1068 = vst.msk [vmem:[#allocation2 + $0x38] sm:$0xff] %vm1062, %v1035
      %1069 = vst.msk [vmem:[#allocation2 + $0x40] sm:$0xff] %vm1062, %v1036
      %1070 = vst.msk [vmem:[#allocation2 + $0x48] sm:$0xff] %vm1062, %v1037
      %1071 = vst.msk [vmem:[#allocation2 + $0x50] sm:$0xff] %vm1062, %v1038
      %1072 = vst.msk [vmem:[#allocation2 + $0x58] sm:$0xff] %vm1062, %v1039
      %1073 = vst.msk [vmem:[#allocation2 + $0x60] sm:$0xff] %vm1062, %v1040
      %1074 = vst.msk [vmem:[#allocation2 + $0x68] sm:$0xff] %vm1062, %v1041
      %1075 = vst.msk [vmem:[#allocation2 + $0x70] sm:$0xff] %vm1062, %v1042
      %1076 = vst.msk [vmem:[#allocation2 + $0x78] sm:$0xff] %vm1062, %v1043
      %1077 = vst.msk [vmem:[#allocation2 + $0x80] sm:$0xff] %vm1062, %v1044
      %1078 = vst.msk [vmem:[#allocation2 + $0x88] sm:$0xff] %vm1062, %v1045
      %v1079 = vld [vmem:[#allocation2] sm:$0x80]
      %v1080 = vld [vmem:[#allocation2 + $0x8] sm:$0xff]
      %v1081 = vld [vmem:[#allocation2 + $0x10] sm:$0xff]
      %v1082 = vld [vmem:[#allocation2 + $0x18] sm:$0xff]
      %v1083 = vld [vmem:[#allocation2 + $0x20] sm:$0xff]
      %v1084 = vld [vmem:[#allocation2 + $0x28] sm:$0xff]
      %v1085 = vld [vmem:[#allocation2 + $0x30] sm:$0xff]
      %v1086 = vld [vmem:[#allocation2 + $0x38] sm:$0xff]
      %v1087 = vld [vmem:[#allocation2 + $0x40] sm:$0xff]
      %v1088 = vld [vmem:[#allocation2 + $0x48] sm:$0xff]
      %v1089 = vld [vmem:[#allocation2 + $0x50] sm:$0xff]
      %v1090 = vld [vmem:[#allocation2 + $0x58] sm:$0xff]
      %v1091 = vld [vmem:[#allocation2 + $0x60] sm:$0xff]
      %v1092 = vld [vmem:[#allocation2 + $0x68] sm:$0xff]
      %v1093 = vld [vmem:[#allocation2 + $0x70] sm:$0xff]
      %v1094 = vld [vmem:[#allocation2 + $0x78] sm:$0xff]
      %v1095 = vld [vmem:[#allocation2 + $0x80] sm:$0xff]
      %vm1096 = vsmask.f32 7424
      %v1098 = vshll.u32 %v806, 16
      %v1100 = vrot.slane %v1098, 1
      %v1101 = vshrl.u32 %v806, 16
      %v1103 = vor.u32 %v1101, %v1100
      %v1105 = vshll.u32 %v807, 16
      %v1107 = vrot.slane %v1105, 1
      %v1108 = vsel %vm1096, %v1103, %v1107
      %v1109 = vshrl.u32 %v807, 16
      %v1111 = vor.u32 %v1109, %v1107
      %v1113 = vshll.u32 %v808, 16
      %v1115 = vrot.slane %v1113, 1
      %v1116 = vsel %vm1096, %v1111, %v1115
      %v1117 = vshrl.u32 %v808, 16
      %v1119 = vor.u32 %v1117, %v1115
      %v1121 = vshll.u32 %v809, 16
      %v1123 = vrot.slane %v1121, 1
      %v1124 = vsel %vm1096, %v1119, %v1123
      %v1125 = vshrl.u32 %v809, 16
      %v1127 = vor.u32 %v1125, %v1123
      %v1129 = vshll.u32 %v810, 16
      %v1131 = vrot.slane %v1129, 1
      %v1132 = vsel %vm1096, %v1127, %v1131
      %v1133 = vshrl.u32 %v810, 16
      %v1135 = vor.u32 %v1133, %v1131
      %v1137 = vshll.u32 %v811, 16
      %v1139 = vrot.slane %v1137, 1
      %v1140 = vsel %vm1096, %v1135, %v1139
      %v1141 = vshrl.u32 %v811, 16
      %v1143 = vor.u32 %v1141, %v1139
      %v1145 = vshll.u32 %v812, 16
      %v1147 = vrot.slane %v1145, 1
      %v1148 = vsel %vm1096, %v1143, %v1147
      %v1149 = vshrl.u32 %v812, 16
      %v1151 = vor.u32 %v1149, %v1147
      %v1153 = vshll.u32 %v813, 16
      %v1155 = vrot.slane %v1153, 1
      %v1156 = vsel %vm1096, %v1151, %v1155
      %v1157 = vshrl.u32 %v813, 16
      %v1159 = vor.u32 %v1157, %v1155
      %v1161 = vshll.u32 %v814, 16
      %v1163 = vrot.slane %v1161, 1
      %v1164 = vsel %vm1096, %v1159, %v1163
      %v1165 = vshrl.u32 %v814, 16
      %v1167 = vor.u32 %v1165, %v1163
      %v1169 = vshll.u32 %v815, 16
      %v1171 = vrot.slane %v1169, 1
      %v1172 = vsel %vm1096, %v1167, %v1171
      %v1173 = vshrl.u32 %v815, 16
      %v1175 = vor.u32 %v1173, %v1171
      %v1177 = vshll.u32 %v816, 16
      %v1179 = vrot.slane %v1177, 1
      %v1180 = vsel %vm1096, %v1175, %v1179
      %v1181 = vshrl.u32 %v816, 16
      %v1183 = vor.u32 %v1181, %v1179
      %v1185 = vshll.u32 %v817, 16
      %v1187 = vrot.slane %v1185, 1
      %v1188 = vsel %vm1096, %v1183, %v1187
      %v1189 = vshrl.u32 %v817, 16
      %v1191 = vor.u32 %v1189, %v1187
      %v1193 = vshll.u32 %v818, 16
      %v1195 = vrot.slane %v1193, 1
      %v1196 = vsel %vm1096, %v1191, %v1195
      %v1197 = vshrl.u32 %v818, 16
      %v1199 = vor.u32 %v1197, %v1195
      %v1201 = vshll.u32 %v819, 16
      %v1203 = vrot.slane %v1201, 1
      %v1204 = vsel %vm1096, %v1199, %v1203
      %v1205 = vshrl.u32 %v819, 16
      %v1207 = vor.u32 %v1205, %v1203
      %v1209 = vshll.u32 %v820, 16
      %v1211 = vrot.slane %v1209, 1
      %v1212 = vsel %vm1096, %v1207, %v1211
      %v1213 = vshrl.u32 %v820, 16
      %v1215 = vor.u32 %v1213, %v1211
      %v1217 = vshll.u32 %v821, 16
      %v1219 = vrot.slane %v1217, 1
      %v1220 = vsel %vm1096, %v1215, %v1219
      %v1221 = vshrl.u32 %v821, 16
      %v1223 = vor.u32 %v1221, %v1219
      %v1241 = vmul.bf16 %v1079, %v1100
      %v1242 = vmul.bf16 %v1080, %v1108
      %v1243 = vmul.bf16 %v1081, %v1116
      %v1244 = vmul.bf16 %v1082, %v1124
      %v1245 = vmul.bf16 %v1083, %v1132
      %v1246 = vmul.bf16 %v1084, %v1140
      %v1247 = vmul.bf16 %v1085, %v1148
      %v1248 = vmul.bf16 %v1086, %v1156
      %v1249 = vmul.bf16 %v1087, %v1164
      %v1250 = vmul.bf16 %v1088, %v1172
      %v1251 = vmul.bf16 %v1089, %v1180
      %v1252 = vmul.bf16 %v1090, %v1188
      %v1253 = vmul.bf16 %v1091, %v1196
      %v1254 = vmul.bf16 %v1092, %v1204
      %v1255 = vmul.bf16 %v1093, %v1212
      %v1256 = vmul.bf16 %v1094, %v1220
      %v1257 = vmul.bf16 %v1095, %v1223
      %v1258 = vld [vmem:[%s1] sm:$0x3]
      %s1259 = scalar_lea.vmem %s1, 2
      %v1260 = vld [vmem:[%s1259] sm:$0x3]
      %v1262 = vsel %vm1062, %v1080, 0
      %v1265 = vsel %vm1062, %v1081, 0
      %v1268 = vsel %vm1062, %v1082, 0
      %v1271 = vsel %vm1062, %v1083, 0
      %v1274 = vsel %vm1062, %v1084, 0
      %v1277 = vsel %vm1062, %v1085, 0
      %v1280 = vsel %vm1062, %v1086, 0
      %v1283 = vsel %vm1062, %v1087, 0
      %v1286 = vsel %vm1062, %v1088, 0
      %v1289 = vsel %vm1062, %v1089, 0
      %v1292 = vsel %vm1062, %v1090, 0
      %v1295 = vsel %vm1062, %v1091, 0
      %v1298 = vsel %vm1062, %v1092, 0
      %v1301 = vsel %vm1062, %v1093, 0
      %v1304 = vsel %vm1062, %v1094, 0
      %v1307 = vsel %vm1062, %v1095, 0
      %vm1309 = vcmask 1041408
      %v1311 = vsel %vm1309, %v1260, 0
      %1313 = vmatprep.subr.bf16.mxu0 0
      %1314 = vmatpush1.bf16.msra.mxu0 %v1311
      %1315 = vmatprep.subr.bf16.mxu0 0
      %1316 = vmatpush1.bf16.msra.mxu0 0
      %1317 = vmatprep.subr.bf16.mxu0 0
      %1318 = vmatpush1.bf16.msra.mxu0 0
      %1319 = vmatprep.subr.bf16.mxu0 0
      %1320 = vmatpush1.bf16.msra.mxu0 0
      %1321 = vmatprep.subr.bf16.mxu0 0
      %1322 = vmatpush1.bf16.msra.mxu0 0
      %1323 = vmatprep.subr.bf16.mxu0 0
      %1324 = vmatpush1.bf16.msra.mxu0 0
      %1325 = vmatprep.subr.bf16.mxu0 0
      %1326 = vmatpush1.bf16.msra.mxu0 0
      %1327 = vmatprep.subr.bf16.mxu0 0
      %1328 = vmatpush1.bf16.msra.mxu0 0
      %1329 = vmatprep.subr.bf16.mxu0 0
      %1330 = vmatpush1.bf16.msra.mxu0 0
      %1331 = vmatprep.subr.bf16.mxu0 0
      %1332 = vmatpush1.bf16.msra.mxu0 0
      %1333 = vmatprep.subr.bf16.mxu0 0
      %1334 = vmatpush1.bf16.msra.mxu0 0
      %1335 = vmatprep.subr.bf16.mxu0 0
      %1336 = vmatpush1.bf16.msra.mxu0 0
      %1337 = vmatprep.subr.bf16.mxu0 0
      %1338 = vmatpush1.bf16.msra.mxu0 0
      %1339 = vmatprep.subr.bf16.mxu0 0
      %1340 = vmatpush1.bf16.msra.mxu0 0
      %1341 = vmatprep.subr.bf16.mxu0 0
      %1342 = vmatpush1.bf16.msra.mxu0 0
      %1343 = vmatprep.subr.bf16.mxu0 0
      %1344 = vmatpush1.bf16.msra.mxu0 0
      %1345 = vmatprep.mubr.bf16.mxu0 0
      %1346 = vmatmul.mubr.bf16.gmra.mrb[0].mxu0 %v1262
      %v1347 = vpop.f32.mrb[0].mxu0
      %v1348 = vadd.f32 0.0, %v1347
      %v1349 = vpop.f32.mrb[0].mxu0
      %v1350 = vpop.f32.mrb[0].mxu0
      %v1351 = vadd.f32 0.0, %v1350
      %v1352 = vpop.f32.mrb[0].mxu0
      %1353 = vmatprep.mubr.bf16.mxu0 0
      %1354 = vmatmul.mubr.bf16.gmra.mrb[0].mxu0 %v1265
      %v1355 = vpop.f32.mrb[0].mxu0
      %v1356 = vadd.f32 0.0, %v1355
      %v1357 = vpop.f32.mrb[0].mxu0
      %v1358 = vpop.f32.mrb[0].mxu0
      %v1359 = vadd.f32 0.0, %v1358
      %v1360 = vpop.f32.mrb[0].mxu0
      %1361 = vmatprep.mubr.bf16.mxu0 0
      %1362 = vmatmul.mubr.bf16.gmra.mrb[0].mxu0 %v1268
      %v1363 = vpop.f32.mrb[0].mxu0
      %v1364 = vadd.f32 0.0, %v1363
      %v1365 = vpop.f32.mrb[0].mxu0
      %v1366 = vpop.f32.mrb[0].mxu0
      %v1367 = vadd.f32 0.0, %v1366
      %v1368 = vpop.f32.mrb[0].mxu0
      %1369 = vmatprep.mubr.bf16.mxu0 0
      %1370 = vmatmul.mubr.bf16.gmra.mrb[0].mxu0 %v1271
      %v1371 = vpop.f32.mrb[0].mxu0
      %v1372 = vadd.f32 0.0, %v1371
      %v1373 = vpop.f32.mrb[0].mxu0
      %v1374 = vpop.f32.mrb[0].mxu0
      %v1375 = vadd.f32 0.0, %v1374
      %v1376 = vpop.f32.mrb[0].mxu0
      %1377 = vmatprep.mubr.bf16.mxu0 0
      %1378 = vmatmul.mubr.bf16.gmra.mrb[0].mxu0 %v1274
      %v1379 = vpop.f32.mrb[0].mxu0
      %v1380 = vadd.f32 0.0, %v1379
      %v1381 = vpop.f32.mrb[0].mxu0
      %v1382 = vpop.f32.mrb[0].mxu0
      %v1383 = vadd.f32 0.0, %v1382
      %v1384 = vpop.f32.mrb[0].mxu0
      %1385 = vmatprep.mubr.bf16.mxu0 0
      %1386 = vmatmul.mubr.bf16.gmra.mrb[0].mxu0 %v1277
      %v1387 = vpop.f32.mrb[0].mxu0
      %v1388 = vadd.f32 0.0, %v1387
      %v1389 = vpop.f32.mrb[0].mxu0
      %v1390 = vpop.f32.mrb[0].mxu0
      %v1391 = vadd.f32 0.0, %v1390
      %v1392 = vpop.f32.mrb[0].mxu0
      %1393 = vmatprep.mubr.bf16.mxu0 0
      %1394 = vmatmul.mubr.bf16.gmra.mrb[0].mxu0 %v1280
      %v1395 = vpop.f32.mrb[0].mxu0
      %v1396 = vadd.f32 0.0, %v1395
      %v1397 = vpop.f32.mrb[0].mxu0
      %v1398 = vpop.f32.mrb[0].mxu0
      %v1399 = vadd.f32 0.0, %v1398
      %v1400 = vpop.f32.mrb[0].mxu0
      %1401 = vmatprep.mubr.bf16.mxu0 0
      %1402 = vmatmul.mubr.bf16.gmra.mrb[0].mxu0 %v1283
      %v1403 = vpop.f32.mrb[0].mxu0
      %v1404 = vadd.f32 0.0, %v1403
      %v1405 = vpop.f32.mrb[0].mxu0
      %v1406 = vpop.f32.mrb[0].mxu0
      %v1407 = vadd.f32 0.0, %v1406
      %v1408 = vpop.f32.mrb[0].mxu0
      %1409 = vmatprep.mubr.bf16.mxu0 0
      %1410 = vmatmul.mubr.bf16.gmra.mrb[0].mxu0 %v1286
      %v1411 = vpop.f32.mrb[0].mxu0
      %v1412 = vadd.f32 0.0, %v1411
      %v1413 = vpop.f32.mrb[0].mxu0
      %v1414 = vpop.f32.mrb[0].mxu0
      %v1415 = vadd.f32 0.0, %v1414
      %v1416 = vpop.f32.mrb[0].mxu0
      %1417 = vmatprep.mubr.bf16.mxu0 0
      %1418 = vmatmul.mubr.bf16.gmra.mrb[0].mxu0 %v1289
      %v1419 = vpop.f32.mrb[0].mxu0
      %v1420 = vadd.f32 0.0, %v1419
      %v1421 = vpop.f32.mrb[0].mxu0
      %v1422 = vpop.f32.mrb[0].mxu0
      %v1423 = vadd.f32 0.0, %v1422
      %v1424 = vpop.f32.mrb[0].mxu0
      %1425 = vmatprep.mubr.bf16.mxu0 0
      %1426 = vmatmul.mubr.bf16.gmra.mrb[0].mxu0 %v1292
      %v1427 = vpop.f32.mrb[0].mxu0
      %v1428 = vadd.f32 0.0, %v1427
      %v1429 = vpop.f32.mrb[0].mxu0
      %v1430 = vpop.f32.mrb[0].mxu0
      %v1431 = vadd.f32 0.0, %v1430
      %v1432 = vpop.f32.mrb[0].mxu0
      %1433 = vmatprep.mubr.bf16.mxu0 0
      %1434 = vmatmul.mubr.bf16.gmra.mrb[0].mxu0 %v1295
      %v1435 = vpop.f32.mrb[0].mxu0
      %v1436 = vadd.f32 0.0, %v1435
      %v1437 = vpop.f32.mrb[0].mxu0
      %v1438 = vpop.f32.mrb[0].mxu0
      %v1439 = vadd.f32 0.0, %v1438
      %v1440 = vpop.f32.mrb[0].mxu0
      %1441 = vmatprep.mubr.bf16.mxu0 0
      %1442 = vmatmul.mubr.bf16.gmra.mrb[0].mxu0 %v1298
      %v1443 = vpop.f32.mrb[0].mxu0
      %v1444 = vadd.f32 0.0, %v1443
      %v1445 = vpop.f32.mrb[0].mxu0
      %v1446 = vpop.f32.mrb[0].mxu0
      %v1447 = vadd.f32 0.0, %v1446
      %v1448 = vpop.f32.mrb[0].mxu0
      %1449 = vmatprep.mubr.bf16.mxu0 0
      %1450 = vmatmul.mubr.bf16.gmra.mrb[0].mxu0 %v1301
      %v1451 = vpop.f32.mrb[0].mxu0
      %v1452 = vadd.f32 0.0, %v1451
      %v1453 = vpop.f32.mrb[0].mxu0
      %v1454 = vpop.f32.mrb[0].mxu0
      %v1455 = vadd.f32 0.0, %v1454
      %v1456 = vpop.f32.mrb[0].mxu0
      %1457 = vmatprep.mubr.bf16.mxu0 0
      %1458 = vmatmul.mubr.bf16.gmra.mrb[0].mxu0 %v1304
      %v1459 = vpop.f32.mrb[0].mxu0
      %v1460 = vadd.f32 0.0, %v1459
      %v1461 = vpop.f32.mrb[0].mxu0
      %v1462 = vpop.f32.mrb[0].mxu0
      %v1463 = vadd.f32 0.0, %v1462
      %v1464 = vpop.f32.mrb[0].mxu0
      %1465 = vmatprep.mubr.bf16.mxu0 0
      %1466 = vmatmul.mubr.bf16.gmra.mrb[0].mxu0 %v1307
      %v1467 = vpop.f32.mrb[0].mxu0
      %v1468 = vadd.f32 0.0, %v1467
      %v1469 = vpop.f32.mrb[0].mxu0
      %v1470 = vpop.f32.mrb[0].mxu0
      %v1471 = vadd.f32 0.0, %v1470
      %v1472 = vpop.f32.mrb[0].mxu0
      %1473 = vdwg.mxu0
      %vm1474 = vsmask.f32 256
      %v1476 = vshrl.u32 %v1241, 16
      %v1478 = vrot.slane %v1476, 7
      %v1480 = vshrl.u32 %v1242, 16
      %v1482 = vrot.slane %v1480, 7
      %v1483 = vshll.u32 %v1242, 16
      %v1485 = vor.u32 %v1482, %v1483
      %v1486 = vsel %vm1474, %v1478, %v1485
      %v1488 = vshrl.u32 %v1243, 16
      %v1490 = vrot.slane %v1488, 7
      %v1491 = vshll.u32 %v1243, 16
      %v1493 = vor.u32 %v1490, %v1491
      %v1494 = vsel %vm1474, %v1482, %v1493
      %v1496 = vshrl.u32 %v1244, 16
      %v1498 = vrot.slane %v1496, 7
      %v1499 = vshll.u32 %v1244, 16
      %v1501 = vor.u32 %v1498, %v1499
      %v1502 = vsel %vm1474, %v1490, %v1501
      %v1504 = vshrl.u32 %v1245, 16
      %v1506 = vrot.slane %v1504, 7
      %v1507 = vshll.u32 %v1245, 16
      %v1509 = vor.u32 %v1506, %v1507
      %v1510 = vsel %vm1474, %v1498, %v1509
      %v1512 = vshrl.u32 %v1246, 16
      %v1514 = vrot.slane %v1512, 7
      %v1515 = vshll.u32 %v1246, 16
      %v1517 = vor.u32 %v1514, %v1515
      %v1518 = vsel %vm1474, %v1506, %v1517
      %v1520 = vshrl.u32 %v1247, 16
      %v1522 = vrot.slane %v1520, 7
      %v1523 = vshll.u32 %v1247, 16
      %v1525 = vor.u32 %v1522, %v1523
      %v1526 = vsel %vm1474, %v1514, %v1525
      %v1528 = vshrl.u32 %v1248, 16
      %v1530 = vrot.slane %v1528, 7
      %v1531 = vshll.u32 %v1248, 16
      %v1533 = vor.u32 %v1530, %v1531
      %v1534 = vsel %vm1474, %v1522, %v1533
      %v1536 = vshrl.u32 %v1249, 16
      %v1538 = vrot.slane %v1536, 7
      %v1539 = vshll.u32 %v1249, 16
      %v1541 = vor.u32 %v1538, %v1539
      %v1542 = vsel %vm1474, %v1530, %v1541
      %v1544 = vshrl.u32 %v1250, 16
      %v1546 = vrot.slane %v1544, 7
      %v1547 = vshll.u32 %v1250, 16
      %v1549 = vor.u32 %v1546, %v1547
      %v1550 = vsel %vm1474, %v1538, %v1549
      %v1552 = vshrl.u32 %v1251, 16
      %v1554 = vrot.slane %v1552, 7
      %v1555 = vshll.u32 %v1251, 16
      %v1557 = vor.u32 %v1554, %v1555
      %v1558 = vsel %vm1474, %v1546, %v1557
      %v1560 = vshrl.u32 %v1252, 16
      %v1562 = vrot.slane %v1560, 7
      %v1563 = vshll.u32 %v1252, 16
      %v1565 = vor.u32 %v1562, %v1563
      %v1566 = vsel %vm1474, %v1554, %v1565
      %v1568 = vshrl.u32 %v1253, 16
      %v1570 = vrot.slane %v1568, 7
      %v1571 = vshll.u32 %v1253, 16
      %v1573 = vor.u32 %v1570, %v1571
      %v1574 = vsel %vm1474, %v1562, %v1573
      %v1576 = vshrl.u32 %v1254, 16
      %v1578 = vrot.slane %v1576, 7
      %v1579 = vshll.u32 %v1254, 16
      %v1581 = vor.u32 %v1578, %v1579
      %v1582 = vsel %vm1474, %v1570, %v1581
      %v1584 = vshrl.u32 %v1255, 16
      %v1586 = vrot.slane %v1584, 7
      %v1587 = vshll.u32 %v1255, 16
      %v1589 = vor.u32 %v1586, %v1587
      %v1590 = vsel %vm1474, %v1578, %v1589
      %v1592 = vshrl.u32 %v1256, 16
      %v1594 = vrot.slane %v1592, 7
      %v1595 = vshll.u32 %v1256, 16
      %v1597 = vor.u32 %v1594, %v1595
      %v1598 = vsel %vm1474, %v1586, %v1597
      %v1600 = vshrl.u32 %v1257, 16
      %v1602 = vrot.slane %v1600, 7
      %v1603 = vshll.u32 %v1257, 16
      %v1605 = vor.u32 %v1602, %v1603
      %v1606 = vsel %vm1474, %v1594, %v1605
      %v1608 = vsel %vm1062, %v1486, 0
      %v1611 = vsel %vm1062, %v1494, 0
      %v1614 = vsel %vm1062, %v1502, 0
      %v1617 = vsel %vm1062, %v1510, 0
      %v1620 = vsel %vm1062, %v1518, 0
      %v1623 = vsel %vm1062, %v1526, 0
      %v1626 = vsel %vm1062, %v1534, 0
      %v1629 = vsel %vm1062, %v1542, 0
      %v1632 = vsel %vm1062, %v1550, 0
      %v1635 = vsel %vm1062, %v1558, 0
      %v1638 = vsel %vm1062, %v1566, 0
      %v1641 = vsel %vm1062, %v1574, 0
      %v1644 = vsel %vm1062, %v1582, 0
      %v1647 = vsel %vm1062, %v1590, 0
      %v1650 = vsel %vm1062, %v1598, 0
      %v1653 = vsel %vm1062, %v1606, 0
      %v1656 = vsel %vm1309, %v1258, 0
      %1658 = vmatprep.subr.bf16.mxu0 0
      %1659 = vmatpush1.bf16.msra.mxu0 %v1656
      %1660 = vmatprep.subr.bf16.mxu0 0
      %1661 = vmatpush1.bf16.msra.mxu0 0
      %1662 = vmatprep.subr.bf16.mxu0 0
      %1663 = vmatpush1.bf16.msra.mxu0 0
      %1664 = vmatprep.subr.bf16.mxu0 0
      %1665 = vmatpush1.bf16.msra.mxu0 0
      %1666 = vmatprep.subr.bf16.mxu0 0
      %1667 = vmatpush1.bf16.msra.mxu0 0
      %1668 = vmatprep.subr.bf16.mxu0 0
      %1669 = vmatpush1.bf16.msra.mxu0 0
      %1670 = vmatprep.subr.bf16.mxu0 0
      %1671 = vmatpush1.bf16.msra.mxu0 0
      %1672 = vmatprep.subr.bf16.mxu0 0
      %1673 = vmatpush1.bf16.msra.mxu0 0
      %1674 = vmatprep.subr.bf16.mxu0 0
      %1675 = vmatpush1.bf16.msra.mxu0 0
      %1676 = vmatprep.subr.bf16.mxu0 0
      %1677 = vmatpush1.bf16.msra.mxu0 0
      %1678 = vmatprep.subr.bf16.mxu0 0
      %1679 = vmatpush1.bf16.msra.mxu0 0
      %1680 = vmatprep.subr.bf16.mxu0 0
      %1681 = vmatpush1.bf16.msra.mxu0 0
      %1682 = vmatprep.subr.bf16.mxu0 0
      %1683 = vmatpush1.bf16.msra.mxu0 0
      %1684 = vmatprep.subr.bf16.mxu0 0
      %1685 = vmatpush1.bf16.msra.mxu0 0
      %1686 = vmatprep.subr.bf16.mxu0 0
      %1687 = vmatpush1.bf16.msra.mxu0 0
      %1688 = vmatprep.subr.bf16.mxu0 0
      %1689 = vmatpush1.bf16.msra.mxu0 0
      %1690 = vmatprep.mubr.bf16.mxu0 0
      %1691 = vmatmul.mubr.bf16.gmra.mrb[0].mxu0 %v1608
      %v1692 = vpop.f32.mrb[0].mxu0
      %v1693 = vadd.f32 %v1348, %v1692
      %v1694 = vpop.f32.mrb[0].mxu0
      %v1695 = vpop.f32.mrb[0].mxu0
      %v1696 = vadd.f32 %v1351, %v1695
      %v1697 = vpop.f32.mrb[0].mxu0
      %1698 = vmatprep.mubr.bf16.mxu0 0
      %1699 = vmatmul.mubr.bf16.gmra.mrb[0].mxu0 %v1611
      %v1700 = vpop.f32.mrb[0].mxu0
      %v1701 = vadd.f32 %v1356, %v1700
      %v1702 = vpop.f32.mrb[0].mxu0
      %v1703 = vpop.f32.mrb[0].mxu0
      %v1704 = vadd.f32 %v1359, %v1703
      %v1705 = vpop.f32.mrb[0].mxu0
      %1706 = vmatprep.mubr.bf16.mxu0 0
      %1707 = vmatmul.mubr.bf16.gmra.mrb[0].mxu0 %v1614
      %v1708 = vpop.f32.mrb[0].mxu0
      %v1709 = vadd.f32 %v1364, %v1708
      %v1710 = vpop.f32.mrb[0].mxu0
      %v1711 = vpop.f32.mrb[0].mxu0
      %v1712 = vadd.f32 %v1367, %v1711
      %v1713 = vpop.f32.mrb[0].mxu0
      %1714 = vmatprep.mubr.bf16.mxu0 0
      %1715 = vmatmul.mubr.bf16.gmra.mrb[0].mxu0 %v1617
      %v1716 = vpop.f32.mrb[0].mxu0
      %v1717 = vadd.f32 %v1372, %v1716
      %v1718 = vpop.f32.mrb[0].mxu0
      %v1719 = vpop.f32.mrb[0].mxu0
      %v1720 = vadd.f32 %v1375, %v1719
      %v1721 = vpop.f32.mrb[0].mxu0
      %1722 = vmatprep.mubr.bf16.mxu0 0
      %1723 = vmatmul.mubr.bf16.gmra.mrb[0].mxu0 %v1620
      %v1724 = vpop.f32.mrb[0].mxu0
      %v1725 = vadd.f32 %v1380, %v1724
      %v1726 = vpop.f32.mrb[0].mxu0
      %v1727 = vpop.f32.mrb[0].mxu0
      %v1728 = vadd.f32 %v1383, %v1727
      %v1729 = vpop.f32.mrb[0].mxu0
      %1730 = vmatprep.mubr.bf16.mxu0 0
      %1731 = vmatmul.mubr.bf16.gmra.mrb[0].mxu0 %v1623
      %v1732 = vpop.f32.mrb[0].mxu0
      %v1733 = vadd.f32 %v1388, %v1732
      %v1734 = vpop.f32.mrb[0].mxu0
      %v1735 = vpop.f32.mrb[0].mxu0
      %v1736 = vadd.f32 %v1391, %v1735
      %v1737 = vpop.f32.mrb[0].mxu0
      %1738 = vmatprep.mubr.bf16.mxu0 0
      %1739 = vmatmul.mubr.bf16.gmra.mrb[0].mxu0 %v1626
      %v1740 = vpop.f32.mrb[0].mxu0
      %v1741 = vadd.f32 %v1396, %v1740
      %v1742 = vpop.f32.mrb[0].mxu0
      %v1743 = vpop.f32.mrb[0].mxu0
      %v1744 = vadd.f32 %v1399, %v1743
      %v1745 = vpop.f32.mrb[0].mxu0
      %1746 = vmatprep.mubr.bf16.mxu0 0
      %1747 = vmatmul.mubr.bf16.gmra.mrb[0].mxu0 %v1629
      %v1748 = vpop.f32.mrb[0].mxu0
      %v1749 = vadd.f32 %v1404, %v1748
      %v1750 = vpop.f32.mrb[0].mxu0
      %v1751 = vpop.f32.mrb[0].mxu0
      %v1752 = vadd.f32 %v1407, %v1751
      %v1753 = vpop.f32.mrb[0].mxu0
      %1754 = vmatprep.mubr.bf16.mxu0 0
      %1755 = vmatmul.mubr.bf16.gmra.mrb[0].mxu0 %v1632
      %v1756 = vpop.f32.mrb[0].mxu0
      %v1757 = vadd.f32 %v1412, %v1756
      %v1758 = vpop.f32.mrb[0].mxu0
      %v1759 = vpop.f32.mrb[0].mxu0
      %v1760 = vadd.f32 %v1415, %v1759
      %v1761 = vpop.f32.mrb[0].mxu0
      %1762 = vmatprep.mubr.bf16.mxu0 0
      %1763 = vmatmul.mubr.bf16.gmra.mrb[0].mxu0 %v1635
      %v1764 = vpop.f32.mrb[0].mxu0
      %v1765 = vadd.f32 %v1420, %v1764
      %v1766 = vpop.f32.mrb[0].mxu0
      %v1767 = vpop.f32.mrb[0].mxu0
      %v1768 = vadd.f32 %v1423, %v1767
      %v1769 = vpop.f32.mrb[0].mxu0
      %1770 = vmatprep.mubr.bf16.mxu0 0
      %1771 = vmatmul.mubr.bf16.gmra.mrb[0].mxu0 %v1638
      %v1772 = vpop.f32.mrb[0].mxu0
      %v1773 = vadd.f32 %v1428, %v1772
      %v1774 = vpop.f32.mrb[0].mxu0
      %v1775 = vpop.f32.mrb[0].mxu0
      %v1776 = vadd.f32 %v1431, %v1775
      %v1777 = vpop.f32.mrb[0].mxu0
      %1778 = vmatprep.mubr.bf16.mxu0 0
      %1779 = vmatmul.mubr.bf16.gmra.mrb[0].mxu0 %v1641
      %v1780 = vpop.f32.mrb[0].mxu0
      %v1781 = vadd.f32 %v1436, %v1780
      %v1782 = vpop.f32.mrb[0].mxu0
      %v1783 = vpop.f32.mrb[0].mxu0
      %v1784 = vadd.f32 %v1439, %v1783
      %v1785 = vpop.f32.mrb[0].mxu0
      %1786 = vmatprep.mubr.bf16.mxu0 0
      %1787 = vmatmul.mubr.bf16.gmra.mrb[0].mxu0 %v1644
      %v1788 = vpop.f32.mrb[0].mxu0
      %v1789 = vadd.f32 %v1444, %v1788
      %v1790 = vpop.f32.mrb[0].mxu0
      %v1791 = vpop.f32.mrb[0].mxu0
      %v1792 = vadd.f32 %v1447, %v1791
      %v1793 = vpop.f32.mrb[0].mxu0
      %1794 = vmatprep.mubr.bf16.mxu0 0
      %1795 = vmatmul.mubr.bf16.gmra.mrb[0].mxu0 %v1647
      %v1796 = vpop.f32.mrb[0].mxu0
      %v1797 = vadd.f32 %v1452, %v1796
      %v1798 = vpop.f32.mrb[0].mxu0
      %v1799 = vpop.f32.mrb[0].mxu0
      %v1800 = vadd.f32 %v1455, %v1799
      %v1801 = vpop.f32.mrb[0].mxu0
      %1802 = vmatprep.mubr.bf16.mxu0 0
      %1803 = vmatmul.mubr.bf16.gmra.mrb[0].mxu0 %v1650
      %v1804 = vpop.f32.mrb[0].mxu0
      %v1805 = vadd.f32 %v1460, %v1804
      %v1806 = vpop.f32.mrb[0].mxu0
      %v1807 = vpop.f32.mrb[0].mxu0
      %v1808 = vadd.f32 %v1463, %v1807
      %v1809 = vpop.f32.mrb[0].mxu0
      %1810 = vmatprep.mubr.bf16.mxu0 0
      %1811 = vmatmul.mubr.bf16.gmra.mrb[0].mxu0 %v1653
      %v1812 = vpop.f32.mrb[0].mxu0
      %v1813 = vadd.f32 %v1468, %v1812
      %v1814 = vpop.f32.mrb[0].mxu0
      %v1815 = vpop.f32.mrb[0].mxu0
      %v1816 = vadd.f32 %v1471, %v1815
      %v1817 = vpop.f32.mrb[0].mxu0
      %1818 = vdwg.mxu0
      %v1819 = vld [vmem:[#allocation2 + $0x8] sm:$0xff]
      %v1820 = vld [vmem:[#allocation2 + $0x10] sm:$0xff]
      %v1821 = vld [vmem:[#allocation2 + $0x18] sm:$0xff]
      %v1822 = vld [vmem:[#allocation2 + $0x20] sm:$0xff]
      %v1823 = vld [vmem:[#allocation2 + $0x28] sm:$0xff]
      %v1824 = vld [vmem:[#allocation2 + $0x30] sm:$0xff]
      %v1825 = vld [vmem:[#allocation2 + $0x38] sm:$0xff]
      %v1826 = vld [vmem:[#allocation2 + $0x40] sm:$0xff]
      %v1827 = vld [vmem:[#allocation2 + $0x48] sm:$0xff]
      %v1828 = vld [vmem:[#allocation2 + $0x50] sm:$0xff]
      %v1829 = vld [vmem:[#allocation2 + $0x58] sm:$0xff]
      %v1830 = vld [vmem:[#allocation2 + $0x60] sm:$0xff]
      %v1831 = vld [vmem:[#allocation2 + $0x68] sm:$0xff]
      %v1832 = vld [vmem:[#allocation2 + $0x70] sm:$0xff]
      %v1833 = vld [vmem:[#allocation2 + $0x78] sm:$0xff]
      %v1834 = vld [vmem:[#allocation2 + $0x80] sm:$0xff]
      %v1835 = vld [vmem:[#allocation2 + $0x88] sm:$0x1]
      %v1837 = vshrl.u32 %v918, 16
      %v1839 = vrot.slane %v1837, 7
      %v1840 = vshll.u32 %v918, 16
      %v1842 = vor.u32 %v1839, %v1840
      %v1844 = vshrl.u32 %v919, 16
      %v1846 = vrot.slane %v1844, 7
      %v1847 = vshll.u32 %v919, 16
      %v1849 = vor.u32 %v1846, %v1847
      %v1850 = vsel %vm1474, %v1839, %v1849
      %v1852 = vshrl.u32 %v920, 16
      %v1854 = vrot.slane %v1852, 7
      %v1855 = vshll.u32 %v920, 16
      %v1857 = vor.u32 %v1854, %v1855
      %v1858 = vsel %vm1474, %v1846, %v1857
      %v1860 = vshrl.u32 %v921, 16
      %v1862 = vrot.slane %v1860, 7
      %v1863 = vshll.u32 %v921, 16
      %v1865 = vor.u32 %v1862, %v1863
      %v1866 = vsel %vm1474, %v1854, %v1865
      %v1868 = vshrl.u32 %v922, 16
      %v1870 = vrot.slane %v1868, 7
      %v1871 = vshll.u32 %v922, 16
      %v1873 = vor.u32 %v1870, %v1871
      %v1874 = vsel %vm1474, %v1862, %v1873
      %v1876 = vshrl.u32 %v923, 16
      %v1878 = vrot.slane %v1876, 7
      %v1879 = vshll.u32 %v923, 16
      %v1881 = vor.u32 %v1878, %v1879
      %v1882 = vsel %vm1474, %v1870, %v1881
      %v1884 = vshrl.u32 %v924, 16
      %v1886 = vrot.slane %v1884, 7
      %v1887 = vshll.u32 %v924, 16
      %v1889 = vor.u32 %v1886, %v1887
      %v1890 = vsel %vm1474, %v1878, %v1889
      %v1892 = vshrl.u32 %v925, 16
      %v1894 = vrot.slane %v1892, 7
      %v1895 = vshll.u32 %v925, 16
      %v1897 = vor.u32 %v1894, %v1895
      %v1898 = vsel %vm1474, %v1886, %v1897
      %v1900 = vshrl.u32 %v926, 16
      %v1902 = vrot.slane %v1900, 7
      %v1903 = vshll.u32 %v926, 16
      %v1905 = vor.u32 %v1902, %v1903
      %v1906 = vsel %vm1474, %v1894, %v1905
      %v1908 = vshrl.u32 %v927, 16
      %v1910 = vrot.slane %v1908, 7
      %v1911 = vshll.u32 %v927, 16
      %v1913 = vor.u32 %v1910, %v1911
      %v1914 = vsel %vm1474, %v1902, %v1913
      %v1916 = vshrl.u32 %v928, 16
      %v1918 = vrot.slane %v1916, 7
      %v1919 = vshll.u32 %v928, 16
      %v1921 = vor.u32 %v1918, %v1919
      %v1922 = vsel %vm1474, %v1910, %v1921
      %v1924 = vshrl.u32 %v929, 16
      %v1926 = vrot.slane %v1924, 7
      %v1927 = vshll.u32 %v929, 16
      %v1929 = vor.u32 %v1926, %v1927
      %v1930 = vsel %vm1474, %v1918, %v1929
      %v1932 = vshrl.u32 %v930, 16
      %v1934 = vrot.slane %v1932, 7
      %v1935 = vshll.u32 %v930, 16
      %v1937 = vor.u32 %v1934, %v1935
      %v1938 = vsel %vm1474, %v1926, %v1937
      %v1940 = vshrl.u32 %v931, 16
      %v1942 = vrot.slane %v1940, 7
      %v1943 = vshll.u32 %v931, 16
      %v1945 = vor.u32 %v1942, %v1943
      %v1946 = vsel %vm1474, %v1934, %v1945
      %v1948 = vshrl.u32 %v932, 16
      %v1950 = vrot.slane %v1948, 7
      %v1951 = vshll.u32 %v932, 16
      %v1953 = vor.u32 %v1950, %v1951
      %v1954 = vsel %vm1474, %v1942, %v1953
      %v1956 = vshrl.u32 %v933, 16
      %v1958 = vrot.slane %v1956, 7
      %v1959 = vshll.u32 %v933, 16
      %v1961 = vor.u32 %v1958, %v1959
      %v1962 = vsel %vm1474, %v1950, %v1961
      %v1980 = vmul.bf16 %v1819, %v1842
      %v1981 = vmul.bf16 %v1820, %v1850
      %v1982 = vmul.bf16 %v1821, %v1858
      %v1983 = vmul.bf16 %v1822, %v1866
      %v1984 = vmul.bf16 %v1823, %v1874
      %v1985 = vmul.bf16 %v1824, %v1882
      %v1986 = vmul.bf16 %v1825, %v1890
      %v1987 = vmul.bf16 %v1826, %v1898
      %v1988 = vmul.bf16 %v1827, %v1906
      %v1989 = vmul.bf16 %v1828, %v1914
      %v1990 = vmul.bf16 %v1829, %v1922
      %v1991 = vmul.bf16 %v1830, %v1930
      %v1992 = vmul.bf16 %v1831, %v1938
      %v1993 = vmul.bf16 %v1832, %v1946
      %v1994 = vmul.bf16 %v1833, %v1954
      %v1995 = vmul.bf16 %v1834, %v1962
      %v1996 = vmul.bf16 %v1835, %v1958
      %s1997 = scalar_lea.vmem %s1, 4
      %v1998 = vld [vmem:[%s1997] sm:$0x3]
      %v2000 = vshrl.u32 %v1980, 16
      %v2002 = vshll.u32 %v1980, 16
      %v2004 = vrot.slane %v2002, 1
      %v2005 = vor.u32 %v2000, %v2004
      %v2007 = vshll.u32 %v1981, 16
      %v2009 = vrot.slane %v2007, 1
      %v2010 = vsel %vm1096, %v2005, %v2009
      %v2011 = vshrl.u32 %v1981, 16
      %v2013 = vor.u32 %v2011, %v2009
      %v2015 = vshll.u32 %v1982, 16
      %v2017 = vrot.slane %v2015, 1
      %v2018 = vsel %vm1096, %v2013, %v2017
      %v2019 = vshrl.u32 %v1982, 16
      %v2021 = vor.u32 %v2019, %v2017
      %v2023 = vshll.u32 %v1983, 16
      %v2025 = vrot.slane %v2023, 1
      %v2026 = vsel %vm1096, %v2021, %v2025
      %v2027 = vshrl.u32 %v1983, 16
      %v2029 = vor.u32 %v2027, %v2025
      %v2031 = vshll.u32 %v1984, 16
      %v2033 = vrot.slane %v2031, 1
      %v2034 = vsel %vm1096, %v2029, %v2033
      %v2035 = vshrl.u32 %v1984, 16
      %v2037 = vor.u32 %v2035, %v2033
      %v2039 = vshll.u32 %v1985, 16
      %v2041 = vrot.slane %v2039, 1
      %v2042 = vsel %vm1096, %v2037, %v2041
      %v2043 = vshrl.u32 %v1985, 16
      %v2045 = vor.u32 %v2043, %v2041
      %v2047 = vshll.u32 %v1986, 16
      %v2049 = vrot.slane %v2047, 1
      %v2050 = vsel %vm1096, %v2045, %v2049
      %v2051 = vshrl.u32 %v1986, 16
      %v2053 = vor.u32 %v2051, %v2049
      %v2055 = vshll.u32 %v1987, 16
      %v2057 = vrot.slane %v2055, 1
      %v2058 = vsel %vm1096, %v2053, %v2057
      %v2059 = vshrl.u32 %v1987, 16
      %v2061 = vor.u32 %v2059, %v2057
      %v2063 = vshll.u32 %v1988, 16
      %v2065 = vrot.slane %v2063, 1
      %v2066 = vsel %vm1096, %v2061, %v2065
      %v2067 = vshrl.u32 %v1988, 16
      %v2069 = vor.u32 %v2067, %v2065
      %v2071 = vshll.u32 %v1989, 16
      %v2073 = vrot.slane %v2071, 1
      %v2074 = vsel %vm1096, %v2069, %v2073
      %v2075 = vshrl.u32 %v1989, 16
      %v2077 = vor.u32 %v2075, %v2073
      %v2079 = vshll.u32 %v1990, 16
      %v2081 = vrot.slane %v2079, 1
      %v2082 = vsel %vm1096, %v2077, %v2081
      %v2083 = vshrl.u32 %v1990, 16
      %v2085 = vor.u32 %v2083, %v2081
      %v2087 = vshll.u32 %v1991, 16
      %v2089 = vrot.slane %v2087, 1
      %v2090 = vsel %vm1096, %v2085, %v2089
      %v2091 = vshrl.u32 %v1991, 16
      %v2093 = vor.u32 %v2091, %v2089
      %v2095 = vshll.u32 %v1992, 16
      %v2097 = vrot.slane %v2095, 1
      %v2098 = vsel %vm1096, %v2093, %v2097
      %v2099 = vshrl.u32 %v1992, 16
      %v2101 = vor.u32 %v2099, %v2097
      %v2103 = vshll.u32 %v1993, 16
      %v2105 = vrot.slane %v2103, 1
      %v2106 = vsel %vm1096, %v2101, %v2105
      %v2107 = vshrl.u32 %v1993, 16
      %v2109 = vor.u32 %v2107, %v2105
      %v2111 = vshll.u32 %v1994, 16
      %v2113 = vrot.slane %v2111, 1
      %v2114 = vsel %vm1096, %v2109, %v2113
      %v2115 = vshrl.u32 %v1994, 16
      %v2117 = vor.u32 %v2115, %v2113
      %v2119 = vshll.u32 %v1995, 16
      %v2121 = vrot.slane %v2119, 1
      %v2122 = vsel %vm1096, %v2117, %v2121
      %v2123 = vshrl.u32 %v1995, 16
      %v2125 = vor.u32 %v2123, %v2121
      %v2127 = vshll.u32 %v1996, 16
      %v2129 = vrot.slane %v2127, 1
      %v2130 = vsel %vm1096, %v2125, %v2129
      %v2132 = vsel %vm1062, %v2010, 0
      %v2135 = vsel %vm1062, %v2018, 0
      %v2138 = vsel %vm1062, %v2026, 0
      %v2141 = vsel %vm1062, %v2034, 0
      %v2144 = vsel %vm1062, %v2042, 0
      %v2147 = vsel %vm1062, %v2050, 0
      %v2150 = vsel %vm1062, %v2058, 0
      %v2153 = vsel %vm1062, %v2066, 0
      %v2156 = vsel %vm1062, %v2074, 0
      %v2159 = vsel %vm1062, %v2082, 0
      %v2162 = vsel %vm1062, %v2090, 0
      %v2165 = vsel %vm1062, %v2098, 0
      %v2168 = vsel %vm1062, %v2106, 0
      %v2171 = vsel %vm1062, %v2114, 0
      %v2174 = vsel %vm1062, %v2122, 0
      %v2177 = vsel %vm1062, %v2130, 0
      %v2180 = vsel %vm1309, %v1998, 0
      %2182 = vmatprep.subr.bf16.mxu0 0
      %2183 = vmatpush1.bf16.msra.mxu0 %v2180
      %2184 = vmatprep.subr.bf16.mxu0 0
      %2185 = vmatpush1.bf16.msra.mxu0 0
      %2186 = vmatprep.subr.bf16.mxu0 0
      %2187 = vmatpush1.bf16.msra.mxu0 0
      %2188 = vmatprep.subr.bf16.mxu0 0
      %2189 = vmatpush1.bf16.msra.mxu0 0
      %2190 = vmatprep.subr.bf16.mxu0 0
      %2191 = vmatpush1.bf16.msra.mxu0 0
      %2192 = vmatprep.subr.bf16.mxu0 0
      %2193 = vmatpush1.bf16.msra.mxu0 0
      %2194 = vmatprep.subr.bf16.mxu0 0
      %2195 = vmatpush1.bf16.msra.mxu0 0
      %2196 = vmatprep.subr.bf16.mxu0 0
      %2197 = vmatpush1.bf16.msra.mxu0 0
      %2198 = vmatprep.subr.bf16.mxu0 0
      %2199 = vmatpush1.bf16.msra.mxu0 0
      %2200 = vmatprep.subr.bf16.mxu0 0
      %2201 = vmatpush1.bf16.msra.mxu0 0
      %2202 = vmatprep.subr.bf16.mxu0 0
      %2203 = vmatpush1.bf16.msra.mxu0 0
      %2204 = vmatprep.subr.bf16.mxu0 0
      %2205 = vmatpush1.bf16.msra.mxu0 0
      %2206 = vmatprep.subr.bf16.mxu0 0
      %2207 = vmatpush1.bf16.msra.mxu0 0
      %2208 = vmatprep.subr.bf16.mxu0 0
      %2209 = vmatpush1.bf16.msra.mxu0 0
      %2210 = vmatprep.subr.bf16.mxu0 0
      %2211 = vmatpush1.bf16.msra.mxu0 0
      %2212 = vmatprep.subr.bf16.mxu0 0
      %2213 = vmatpush1.bf16.msra.mxu0 0
      %2214 = vmatprep.mubr.bf16.mxu0 0
      %2215 = vmatmul.mubr.bf16.gmra.mrb[0].mxu0 %v2132
      %v2216 = vpop.f32.mrb[0].mxu0
      %v2217 = vadd.f32 0.0, %v2216
      %v2218 = vpop.f32.mrb[0].mxu0
      %v2219 = vpop.f32.mrb[0].mxu0
      %v2220 = vadd.f32 0.0, %v2219
      %v2221 = vpop.f32.mrb[0].mxu0
      %2222 = vmatprep.mubr.bf16.mxu0 0
      %2223 = vmatmul.mubr.bf16.gmra.mrb[0].mxu0 %v2135
      %v2224 = vpop.f32.mrb[0].mxu0
      %v2225 = vadd.f32 0.0, %v2224
      %v2226 = vpop.f32.mrb[0].mxu0
      %v2227 = vpop.f32.mrb[0].mxu0
      %v2228 = vadd.f32 0.0, %v2227
      %v2229 = vpop.f32.mrb[0].mxu0
      %2230 = vmatprep.mubr.bf16.mxu0 0
      %2231 = vmatmul.mubr.bf16.gmra.mrb[0].mxu0 %v2138
      %v2232 = vpop.f32.mrb[0].mxu0
      %v2233 = vadd.f32 0.0, %v2232
      %v2234 = vpop.f32.mrb[0].mxu0
      %v2235 = vpop.f32.mrb[0].mxu0
      %v2236 = vadd.f32 0.0, %v2235
      %v2237 = vpop.f32.mrb[0].mxu0
      %2238 = vmatprep.mubr.bf16.mxu0 0
      %2239 = vmatmul.mubr.bf16.gmra.mrb[0].mxu0 %v2141
      %v2240 = vpop.f32.mrb[0].mxu0
      %v2241 = vadd.f32 0.0, %v2240
      %v2242 = vpop.f32.mrb[0].mxu0
      %v2243 = vpop.f32.mrb[0].mxu0
      %v2244 = vadd.f32 0.0, %v2243
      %v2245 = vpop.f32.mrb[0].mxu0
      %2246 = vmatprep.mubr.bf16.mxu0 0
      %2247 = vmatmul.mubr.bf16.gmra.mrb[0].mxu0 %v2144
      %v2248 = vpop.f32.mrb[0].mxu0
      %v2249 = vadd.f32 0.0, %v2248
      %v2250 = vpop.f32.mrb[0].mxu0
      %v2251 = vpop.f32.mrb[0].mxu0
      %v2252 = vadd.f32 0.0, %v2251
      %v2253 = vpop.f32.mrb[0].mxu0
      %2254 = vmatprep.mubr.bf16.mxu0 0
      %2255 = vmatmul.mubr.bf16.gmra.mrb[0].mxu0 %v2147
      %v2256 = vpop.f32.mrb[0].mxu0
      %v2257 = vadd.f32 0.0, %v2256
      %v2258 = vpop.f32.mrb[0].mxu0
      %v2259 = vpop.f32.mrb[0].mxu0
      %v2260 = vadd.f32 0.0, %v2259
      %v2261 = vpop.f32.mrb[0].mxu0
      %2262 = vmatprep.mubr.bf16.mxu0 0
      %2263 = vmatmul.mubr.bf16.gmra.mrb[0].mxu0 %v2150
      %v2264 = vpop.f32.mrb[0].mxu0
      %v2265 = vadd.f32 0.0, %v2264
      %v2266 = vpop.f32.mrb[0].mxu0
      %v2267 = vpop.f32.mrb[0].mxu0
      %v2268 = vadd.f32 0.0, %v2267
      %v2269 = vpop.f32.mrb[0].mxu0
      %2270 = vmatprep.mubr.bf16.mxu0 0
      %2271 = vmatmul.mubr.bf16.gmra.mrb[0].mxu0 %v2153
      %v2272 = vpop.f32.mrb[0].mxu0
      %v2273 = vadd.f32 0.0, %v2272
      %v2274 = vpop.f32.mrb[0].mxu0
      %v2275 = vpop.f32.mrb[0].mxu0
      %v2276 = vadd.f32 0.0, %v2275
      %v2277 = vpop.f32.mrb[0].mxu0
      %2278 = vmatprep.mubr.bf16.mxu0 0
      %2279 = vmatmul.mubr.bf16.gmra.mrb[0].mxu0 %v2156
      %v2280 = vpop.f32.mrb[0].mxu0
      %v2281 = vadd.f32 0.0, %v2280
      %v2282 = vpop.f32.mrb[0].mxu0
      %v2283 = vpop.f32.mrb[0].mxu0
      %v2284 = vadd.f32 0.0, %v2283
      %v2285 = vpop.f32.mrb[0].mxu0
      %2286 = vmatprep.mubr.bf16.mxu0 0
      %2287 = vmatmul.mubr.bf16.gmra.mrb[0].mxu0 %v2159
      %v2288 = vpop.f32.mrb[0].mxu0
      %v2289 = vadd.f32 0.0, %v2288
      %v2290 = vpop.f32.mrb[0].mxu0
      %v2291 = vpop.f32.mrb[0].mxu0
      %v2292 = vadd.f32 0.0, %v2291
      %v2293 = vpop.f32.mrb[0].mxu0
      %2294 = vmatprep.mubr.bf16.mxu0 0
      %2295 = vmatmul.mubr.bf16.gmra.mrb[0].mxu0 %v2162
      %v2296 = vpop.f32.mrb[0].mxu0
      %v2297 = vadd.f32 0.0, %v2296
      %v2298 = vpop.f32.mrb[0].mxu0
      %v2299 = vpop.f32.mrb[0].mxu0
      %v2300 = vadd.f32 0.0, %v2299
      %v2301 = vpop.f32.mrb[0].mxu0
      %2302 = vmatprep.mubr.bf16.mxu0 0
      %2303 = vmatmul.mubr.bf16.gmra.mrb[0].mxu0 %v2165
      %v2304 = vpop.f32.mrb[0].mxu0
      %v2305 = vadd.f32 0.0, %v2304
      %v2306 = vpop.f32.mrb[0].mxu0
      %v2307 = vpop.f32.mrb[0].mxu0
      %v2308 = vadd.f32 0.0, %v2307
      %v2309 = vpop.f32.mrb[0].mxu0
      %2310 = vmatprep.mubr.bf16.mxu0 0
      %2311 = vmatmul.mubr.bf16.gmra.mrb[0].mxu0 %v2168
      %v2312 = vpop.f32.mrb[0].mxu0
      %v2313 = vadd.f32 0.0, %v2312
      %v2314 = vpop.f32.mrb[0].mxu0
      %v2315 = vpop.f32.mrb[0].mxu0
      %v2316 = vadd.f32 0.0, %v2315
      %v2317 = vpop.f32.mrb[0].mxu0
      %2318 = vmatprep.mubr.bf16.mxu0 0
      %2319 = vmatmul.mubr.bf16.gmra.mrb[0].mxu0 %v2171
      %v2320 = vpop.f32.mrb[0].mxu0
      %v2321 = vadd.f32 0.0, %v2320
      %v2322 = vpop.f32.mrb[0].mxu0
      %v2323 = vpop.f32.mrb[0].mxu0
      %v2324 = vadd.f32 0.0, %v2323
      %v2325 = vpop.f32.mrb[0].mxu0
      %2326 = vmatprep.mubr.bf16.mxu0 0
      %2327 = vmatmul.mubr.bf16.gmra.mrb[0].mxu0 %v2174
      %v2328 = vpop.f32.mrb[0].mxu0
      %v2329 = vadd.f32 0.0, %v2328
      %v2330 = vpop.f32.mrb[0].mxu0
      %v2331 = vpop.f32.mrb[0].mxu0
      %v2332 = vadd.f32 0.0, %v2331
      %v2333 = vpop.f32.mrb[0].mxu0
      %2334 = vmatprep.mubr.bf16.mxu0 0
      %2335 = vmatmul.mubr.bf16.gmra.mrb[0].mxu0 %v2177
      %v2336 = vpop.f32.mrb[0].mxu0
      %v2337 = vadd.f32 0.0, %v2336
      %v2338 = vpop.f32.mrb[0].mxu0
      %v2339 = vpop.f32.mrb[0].mxu0
      %v2340 = vadd.f32 0.0, %v2339
      %v2341 = vpop.f32.mrb[0].mxu0
      %2342 = vdwg.mxu0
      %v2343 = vadd.f32 %v1693, %v2217
      %v2344 = vadd.f32 %v1696, %v2220
      %v2345 = vadd.f32 %v1701, %v2225
      %v2346 = vadd.f32 %v1704, %v2228
      %v2347 = vadd.f32 %v1709, %v2233
      %v2348 = vadd.f32 %v1712, %v2236
      %v2349 = vadd.f32 %v1717, %v2241
      %v2350 = vadd.f32 %v1720, %v2244
      %v2351 = vadd.f32 %v1725, %v2249
      %v2352 = vadd.f32 %v1728, %v2252
      %v2353 = vadd.f32 %v1733, %v2257
      %v2354 = vadd.f32 %v1736, %v2260
      %v2355 = vadd.f32 %v1741, %v2265
      %v2356 = vadd.f32 %v1744, %v2268
      %v2357 = vadd.f32 %v1749, %v2273
      %v2358 = vadd.f32 %v1752, %v2276
      %v2359 = vadd.f32 %v1757, %v2281
      %v2360 = vadd.f32 %v1760, %v2284
      %v2361 = vadd.f32 %v1765, %v2289
      %v2362 = vadd.f32 %v1768, %v2292
      %v2363 = vadd.f32 %v1773, %v2297
      %v2364 = vadd.f32 %v1776, %v2300
      %v2365 = vadd.f32 %v1781, %v2305
      %v2366 = vadd.f32 %v1784, %v2308
      %v2367 = vadd.f32 %v1789, %v2313
      %v2368 = vadd.f32 %v1792, %v2316
      %v2369 = vadd.f32 %v1797, %v2321
      %v2370 = vadd.f32 %v1800, %v2324
      %v2371 = vadd.f32 %v1805, %v2329
      %v2372 = vadd.f32 %v1808, %v2332
      %v2373 = vadd.f32 %v1813, %v2337
      %v2374 = vadd.f32 %v1816, %v2340
      %v2375 = vld [vmem:[#allocation2 + $0x8] sm:$0x80]
      %v2376 = vld [vmem:[#allocation2 + $0x88] sm:$0xff]
      %v2377 = vmul.bf16 %v2375, %v1100
      %v2378 = vmul.bf16 %v1820, %v1108
      %v2379 = vmul.bf16 %v1821, %v1116
      %v2380 = vmul.bf16 %v1822, %v1124
      %v2381 = vmul.bf16 %v1823, %v1132
      %v2382 = vmul.bf16 %v1824, %v1140
      %v2383 = vmul.bf16 %v1825, %v1148
      %v2384 = vmul.bf16 %v1826, %v1156
      %v2385 = vmul.bf16 %v1827, %v1164
      %v2386 = vmul.bf16 %v1828, %v1172
      %v2387 = vmul.bf16 %v1829, %v1180
      %v2388 = vmul.bf16 %v1830, %v1188
      %v2389 = vmul.bf16 %v1831, %v1196
      %v2390 = vmul.bf16 %v1832, %v1204
      %v2391 = vmul.bf16 %v1833, %v1212
      %v2392 = vmul.bf16 %v1834, %v1220
      %v2393 = vmul.bf16 %v2376, %v1223
      %s2394 = scalar_lea.vmem %s1, 6
      %v2395 = vld [vmem:[%s2394] sm:$0x3]
      %v2397 = vshrl.u32 %v2377, 16
      %v2399 = vrot.slane %v2397, 7
      %v2401 = vshrl.u32 %v2378, 16
      %v2403 = vrot.slane %v2401, 7
      %v2404 = vshll.u32 %v2378, 16
      %v2406 = vor.u32 %v2403, %v2404
      %v2407 = vsel %vm1474, %v2399, %v2406
      %v2409 = vshrl.u32 %v2379, 16
      %v2411 = vrot.slane %v2409, 7
      %v2412 = vshll.u32 %v2379, 16
      %v2414 = vor.u32 %v2411, %v2412
      %v2415 = vsel %vm1474, %v2403, %v2414
      %v2417 = vshrl.u32 %v2380, 16
      %v2419 = vrot.slane %v2417, 7
      %v2420 = vshll.u32 %v2380, 16
      %v2422 = vor.u32 %v2419, %v2420
      %v2423 = vsel %vm1474, %v2411, %v2422
      %v2425 = vshrl.u32 %v2381, 16
      %v2427 = vrot.slane %v2425, 7
      %v2428 = vshll.u32 %v2381, 16
      %v2430 = vor.u32 %v2427, %v2428
      %v2431 = vsel %vm1474, %v2419, %v2430
      %v2433 = vshrl.u32 %v2382, 16
      %v2435 = vrot.slane %v2433, 7
      %v2436 = vshll.u32 %v2382, 16
      %v2438 = vor.u32 %v2435, %v2436
      %v2439 = vsel %vm1474, %v2427, %v2438
      %v2441 = vshrl.u32 %v2383, 16
      %v2443 = vrot.slane %v2441, 7
      %v2444 = vshll.u32 %v2383, 16
      %v2446 = vor.u32 %v2443, %v2444
      %v2447 = vsel %vm1474, %v2435, %v2446
      %v2449 = vshrl.u32 %v2384, 16
      %v2451 = vrot.slane %v2449, 7
      %v2452 = vshll.u32 %v2384, 16
      %v2454 = vor.u32 %v2451, %v2452
      %v2455 = vsel %vm1474, %v2443, %v2454
      %v2457 = vshrl.u32 %v2385, 16
      %v2459 = vrot.slane %v2457, 7
      %v2460 = vshll.u32 %v2385, 16
      %v2462 = vor.u32 %v2459, %v2460
      %v2463 = vsel %vm1474, %v2451, %v2462
      %v2465 = vshrl.u32 %v2386, 16
      %v2467 = vrot.slane %v2465, 7
      %v2468 = vshll.u32 %v2386, 16
      %v2470 = vor.u32 %v2467, %v2468
      %v2471 = vsel %vm1474, %v2459, %v2470
      %v2473 = vshrl.u32 %v2387, 16
      %v2475 = vrot.slane %v2473, 7
      %v2476 = vshll.u32 %v2387, 16
      %v2478 = vor.u32 %v2475, %v2476
      %v2479 = vsel %vm1474, %v2467, %v2478
      %v2481 = vshrl.u32 %v2388, 16
      %v2483 = vrot.slane %v2481, 7
      %v2484 = vshll.u32 %v2388, 16
      %v2486 = vor.u32 %v2483, %v2484
      %v2487 = vsel %vm1474, %v2475, %v2486
      %v2489 = vshrl.u32 %v2389, 16
      %v2491 = vrot.slane %v2489, 7
      %v2492 = vshll.u32 %v2389, 16
      %v2494 = vor.u32 %v2491, %v2492
      %v2495 = vsel %vm1474, %v2483, %v2494
      %v2497 = vshrl.u32 %v2390, 16
      %v2499 = vrot.slane %v2497, 7
      %v2500 = vshll.u32 %v2390, 16
      %v2502 = vor.u32 %v2499, %v2500
      %v2503 = vsel %vm1474, %v2491, %v2502
      %v2505 = vshrl.u32 %v2391, 16
      %v2507 = vrot.slane %v2505, 7
      %v2508 = vshll.u32 %v2391, 16
      %v2510 = vor.u32 %v2507, %v2508
      %v2511 = vsel %vm1474, %v2499, %v2510
      %v2513 = vshrl.u32 %v2392, 16
      %v2515 = vrot.slane %v2513, 7
      %v2516 = vshll.u32 %v2392, 16
      %v2518 = vor.u32 %v2515, %v2516
      %v2519 = vsel %vm1474, %v2507, %v2518
      %v2521 = vshrl.u32 %v2393, 16
      %v2523 = vrot.slane %v2521, 7
      %v2524 = vshll.u32 %v2393, 16
      %v2526 = vor.u32 %v2523, %v2524
      %v2527 = vsel %vm1474, %v2515, %v2526
      %v2529 = vsel %vm1062, %v2407, 0
      %v2532 = vsel %vm1062, %v2415, 0
      %v2535 = vsel %vm1062, %v2423, 0
      %v2538 = vsel %vm1062, %v2431, 0
      %v2541 = vsel %vm1062, %v2439, 0
      %v2544 = vsel %vm1062, %v2447, 0
      %v2547 = vsel %vm1062, %v2455, 0
      %v2550 = vsel %vm1062, %v2463, 0
      %v2553 = vsel %vm1062, %v2471, 0
      %v2556 = vsel %vm1062, %v2479, 0
      %v2559 = vsel %vm1062, %v2487, 0
      %v2562 = vsel %vm1062, %v2495, 0
      %v2565 = vsel %vm1062, %v2503, 0
      %v2568 = vsel %vm1062, %v2511, 0
      %v2571 = vsel %vm1062, %v2519, 0
      %v2574 = vsel %vm1062, %v2527, 0
      %v2577 = vsel %vm1309, %v2395, 0
      %2579 = vmatprep.subr.bf16.mxu0 0
      %2580 = vmatpush1.bf16.msra.mxu0 %v2577
      %2581 = vmatprep.subr.bf16.mxu0 0
      %2582 = vmatpush1.bf16.msra.mxu0 0
      %2583 = vmatprep.subr.bf16.mxu0 0
      %2584 = vmatpush1.bf16.msra.mxu0 0
      %2585 = vmatprep.subr.bf16.mxu0 0
      %2586 = vmatpush1.bf16.msra.mxu0 0
      %2587 = vmatprep.subr.bf16.mxu0 0
      %2588 = vmatpush1.bf16.msra.mxu0 0
      %2589 = vmatprep.subr.bf16.mxu0 0
      %2590 = vmatpush1.bf16.msra.mxu0 0
      %2591 = vmatprep.subr.bf16.mxu0 0
      %2592 = vmatpush1.bf16.msra.mxu0 0
      %2593 = vmatprep.subr.bf16.mxu0 0
      %2594 = vmatpush1.bf16.msra.mxu0 0
      %2595 = vmatprep.subr.bf16.mxu0 0
      %2596 = vmatpush1.bf16.msra.mxu0 0
      %2597 = vmatprep.subr.bf16.mxu0 0
      %2598 = vmatpush1.bf16.msra.mxu0 0
      %2599 = vmatprep.subr.bf16.mxu0 0
      %2600 = vmatpush1.bf16.msra.mxu0 0
      %2601 = vmatprep.subr.bf16.mxu0 0
      %2602 = vmatpush1.bf16.msra.mxu0 0
      %2603 = vmatprep.subr.bf16.mxu0 0
      %2604 = vmatpush1.bf16.msra.mxu0 0
      %2605 = vmatprep.subr.bf16.mxu0 0
      %2606 = vmatpush1.bf16.msra.mxu0 0
      %2607 = vmatprep.subr.bf16.mxu0 0
      %2608 = vmatpush1.bf16.msra.mxu0 0
      %2609 = vmatprep.subr.bf16.mxu0 0
      %2610 = vmatpush1.bf16.msra.mxu0 0
      %2611 = vmatprep.mubr.bf16.mxu0 0
      %2612 = vmatmul.mubr.bf16.gmra.mrb[0].mxu0 %v2529
      %v2613 = vpop.f32.mrb[0].mxu0
      %v2614 = vadd.f32 0.0, %v2613
      %v2615 = vpop.f32.mrb[0].mxu0
      %v2616 = vpop.f32.mrb[0].mxu0
      %v2617 = vadd.f32 0.0, %v2616
      %v2618 = vpop.f32.mrb[0].mxu0
      %2619 = vmatprep.mubr.bf16.mxu0 0
      %2620 = vmatmul.mubr.bf16.gmra.mrb[0].mxu0 %v2532
      %v2621 = vpop.f32.mrb[0].mxu0
      %v2622 = vadd.f32 0.0, %v2621
      %v2623 = vpop.f32.mrb[0].mxu0
      %v2624 = vpop.f32.mrb[0].mxu0
      %v2625 = vadd.f32 0.0, %v2624
      %v2626 = vpop.f32.mrb[0].mxu0
      %2627 = vmatprep.mubr.bf16.mxu0 0
      %2628 = vmatmul.mubr.bf16.gmra.mrb[0].mxu0 %v2535
      %v2629 = vpop.f32.mrb[0].mxu0
      %v2630 = vadd.f32 0.0, %v2629
      %v2631 = vpop.f32.mrb[0].mxu0
      %v2632 = vpop.f32.mrb[0].mxu0
      %v2633 = vadd.f32 0.0, %v2632
      %v2634 = vpop.f32.mrb[0].mxu0
      %2635 = vmatprep.mubr.bf16.mxu0 0
      %2636 = vmatmul.mubr.bf16.gmra.mrb[0].mxu0 %v2538
      %v2637 = vpop.f32.mrb[0].mxu0
      %v2638 = vadd.f32 0.0, %v2637
      %v2639 = vpop.f32.mrb[0].mxu0
      %v2640 = vpop.f32.mrb[0].mxu0
      %v2641 = vadd.f32 0.0, %v2640
      %v2642 = vpop.f32.mrb[0].mxu0
      %2643 = vmatprep.mubr.bf16.mxu0 0
      %2644 = vmatmul.mubr.bf16.gmra.mrb[0].mxu0 %v2541
      %v2645 = vpop.f32.mrb[0].mxu0
      %v2646 = vadd.f32 0.0, %v2645
      %v2647 = vpop.f32.mrb[0].mxu0
      %v2648 = vpop.f32.mrb[0].mxu0
      %v2649 = vadd.f32 0.0, %v2648
      %v2650 = vpop.f32.mrb[0].mxu0
      %2651 = vmatprep.mubr.bf16.mxu0 0
      %2652 = vmatmul.mubr.bf16.gmra.mrb[0].mxu0 %v2544
      %v2653 = vpop.f32.mrb[0].mxu0
      %v2654 = vadd.f32 0.0, %v2653
      %v2655 = vpop.f32.mrb[0].mxu0
      %v2656 = vpop.f32.mrb[0].mxu0
      %v2657 = vadd.f32 0.0, %v2656
      %v2658 = vpop.f32.mrb[0].mxu0
      %2659 = vmatprep.mubr.bf16.mxu0 0
      %2660 = vmatmul.mubr.bf16.gmra.mrb[0].mxu0 %v2547
      %v2661 = vpop.f32.mrb[0].mxu0
      %v2662 = vadd.f32 0.0, %v2661
      %v2663 = vpop.f32.mrb[0].mxu0
      %v2664 = vpop.f32.mrb[0].mxu0
      %v2665 = vadd.f32 0.0, %v2664
      %v2666 = vpop.f32.mrb[0].mxu0
      %2667 = vmatprep.mubr.bf16.mxu0 0
      %2668 = vmatmul.mubr.bf16.gmra.mrb[0].mxu0 %v2550
      %v2669 = vpop.f32.mrb[0].mxu0
      %v2670 = vadd.f32 0.0, %v2669
      %v2671 = vpop.f32.mrb[0].mxu0
      %v2672 = vpop.f32.mrb[0].mxu0
      %v2673 = vadd.f32 0.0, %v2672
      %v2674 = vpop.f32.mrb[0].mxu0
      %2675 = vmatprep.mubr.bf16.mxu0 0
      %2676 = vmatmul.mubr.bf16.gmra.mrb[0].mxu0 %v2553
      %v2677 = vpop.f32.mrb[0].mxu0
      %v2678 = vadd.f32 0.0, %v2677
      %v2679 = vpop.f32.mrb[0].mxu0
      %v2680 = vpop.f32.mrb[0].mxu0
      %v2681 = vadd.f32 0.0, %v2680
      %v2682 = vpop.f32.mrb[0].mxu0
      %2683 = vmatprep.mubr.bf16.mxu0 0
      %2684 = vmatmul.mubr.bf16.gmra.mrb[0].mxu0 %v2556
      %v2685 = vpop.f32.mrb[0].mxu0
      %v2686 = vadd.f32 0.0, %v2685
      %v2687 = vpop.f32.mrb[0].mxu0
      %v2688 = vpop.f32.mrb[0].mxu0
      %v2689 = vadd.f32 0.0, %v2688
      %v2690 = vpop.f32.mrb[0].mxu0
      %2691 = vmatprep.mubr.bf16.mxu0 0
      %2692 = vmatmul.mubr.bf16.gmra.mrb[0].mxu0 %v2559
      %v2693 = vpop.f32.mrb[0].mxu0
      %v2694 = vadd.f32 0.0, %v2693
      %v2695 = vpop.f32.mrb[0].mxu0
      %v2696 = vpop.f32.mrb[0].mxu0
      %v2697 = vadd.f32 0.0, %v2696
      %v2698 = vpop.f32.mrb[0].mxu0
      %2699 = vmatprep.mubr.bf16.mxu0 0
      %2700 = vmatmul.mubr.bf16.gmra.mrb[0].mxu0 %v2562
      %v2701 = vpop.f32.mrb[0].mxu0
      %v2702 = vadd.f32 0.0, %v2701
      %v2703 = vpop.f32.mrb[0].mxu0
      %v2704 = vpop.f32.mrb[0].mxu0
      %v2705 = vadd.f32 0.0, %v2704
      %v2706 = vpop.f32.mrb[0].mxu0
      %2707 = vmatprep.mubr.bf16.mxu0 0
      %2708 = vmatmul.mubr.bf16.gmra.mrb[0].mxu0 %v2565
      %v2709 = vpop.f32.mrb[0].mxu0
      %v2710 = vadd.f32 0.0, %v2709
      %v2711 = vpop.f32.mrb[0].mxu0
      %v2712 = vpop.f32.mrb[0].mxu0
      %v2713 = vadd.f32 0.0, %v2712
      %v2714 = vpop.f32.mrb[0].mxu0
      %2715 = vmatprep.mubr.bf16.mxu0 0
      %2716 = vmatmul.mubr.bf16.gmra.mrb[0].mxu0 %v2568
      %v2717 = vpop.f32.mrb[0].mxu0
      %v2718 = vadd.f32 0.0, %v2717
      %v2719 = vpop.f32.mrb[0].mxu0
      %v2720 = vpop.f32.mrb[0].mxu0
      %v2721 = vadd.f32 0.0, %v2720
      %v2722 = vpop.f32.mrb[0].mxu0
      %2723 = vmatprep.mubr.bf16.mxu0 0
      %2724 = vmatmul.mubr.bf16.gmra.mrb[0].mxu0 %v2571
      %v2725 = vpop.f32.mrb[0].mxu0
      %v2726 = vadd.f32 0.0, %v2725
      %v2727 = vpop.f32.mrb[0].mxu0
      %v2728 = vpop.f32.mrb[0].mxu0
      %v2729 = vadd.f32 0.0, %v2728
      %v2730 = vpop.f32.mrb[0].mxu0
      %2731 = vmatprep.mubr.bf16.mxu0 0
      %2732 = vmatmul.mubr.bf16.gmra.mrb[0].mxu0 %v2574
      %v2733 = vpop.f32.mrb[0].mxu0
      %v2734 = vadd.f32 0.0, %v2733
      %v2735 = vpop.f32.mrb[0].mxu0
      %v2736 = vpop.f32.mrb[0].mxu0
      %v2737 = vadd.f32 0.0, %v2736
      %v2738 = vpop.f32.mrb[0].mxu0
      %2739 = vdwg.mxu0
      %v2740 = vadd.f32 %v2343, %v2614
      %v2741 = vadd.f32 %v2344, %v2617
      %v2742 = vadd.f32 %v2345, %v2622
      %v2743 = vadd.f32 %v2346, %v2625
      %v2744 = vadd.f32 %v2347, %v2630
      %v2745 = vadd.f32 %v2348, %v2633
      %v2746 = vadd.f32 %v2349, %v2638
      %v2747 = vadd.f32 %v2350, %v2641
      %v2748 = vadd.f32 %v2351, %v2646
      %v2749 = vadd.f32 %v2352, %v2649
      %v2750 = vadd.f32 %v2353, %v2654
      %v2751 = vadd.f32 %v2354, %v2657
      %v2752 = vadd.f32 %v2355, %v2662
      %v2753 = vadd.f32 %v2356, %v2665
      %v2754 = vadd.f32 %v2357, %v2670
      %v2755 = vadd.f32 %v2358, %v2673
      %v2756 = vadd.f32 %v2359, %v2678
      %v2757 = vadd.f32 %v2360, %v2681
      %v2758 = vadd.f32 %v2361, %v2686
      %v2759 = vadd.f32 %v2362, %v2689
      %v2760 = vadd.f32 %v2363, %v2694
      %v2761 = vadd.f32 %v2364, %v2697
      %v2762 = vadd.f32 %v2365, %v2702
      %v2763 = vadd.f32 %v2366, %v2705
      %v2764 = vadd.f32 %v2367, %v2710
      %v2765 = vadd.f32 %v2368, %v2713
      %v2766 = vadd.f32 %v2369, %v2718
      %v2767 = vadd.f32 %v2370, %v2721
      %v2768 = vadd.f32 %v2371, %v2726
      %v2769 = vadd.f32 %v2372, %v2729
      %v2770 = vadd.f32 %v2373, %v2734
      %v2771 = vadd.f32 %v2374, %v2737
      %s2772 = scalar_lea.vmem %s1, 8
      %v2773 = vld [vmem:[%s2772] sm:$0x3]
      %v2775 = vsel %vm1062, %v1820, 0
      %v2778 = vsel %vm1062, %v1821, 0
      %v2781 = vsel %vm1062, %v1822, 0
      %v2784 = vsel %vm1062, %v1823, 0
      %v2787 = vsel %vm1062, %v1824, 0
      %v2790 = vsel %vm1062, %v1825, 0
      %v2793 = vsel %vm1062, %v1826, 0
      %v2796 = vsel %vm1062, %v1827, 0
      %v2799 = vsel %vm1062, %v1828, 0
      %v2802 = vsel %vm1062, %v1829, 0
      %v2805 = vsel %vm1062, %v1830, 0
      %v2808 = vsel %vm1062, %v1831, 0
      %v2811 = vsel %vm1062, %v1832, 0
      %v2814 = vsel %vm1062, %v1833, 0
      %v2817 = vsel %vm1062, %v1834, 0
      %v2820 = vsel %vm1062, %v2376, 0
      %v2823 = vsel %vm1309, %v2773, 0
      %2825 = vmatprep.subr.bf16.mxu0 0
      %2826 = vmatpush1.bf16.msra.mxu0 %v2823
      %2827 = vmatprep.subr.bf16.mxu0 0
      %2828 = vmatpush1.bf16.msra.mxu0 0
      %2829 = vmatprep.subr.bf16.mxu0 0
      %2830 = vmatpush1.bf16.msra.mxu0 0
      %2831 = vmatprep.subr.bf16.mxu0 0
      %2832 = vmatpush1.bf16.msra.mxu0 0
      %2833 = vmatprep.subr.bf16.mxu0 0
      %2834 = vmatpush1.bf16.msra.mxu0 0
      %2835 = vmatprep.subr.bf16.mxu0 0
      %2836 = vmatpush1.bf16.msra.mxu0 0
      %2837 = vmatprep.subr.bf16.mxu0 0
      %2838 = vmatpush1.bf16.msra.mxu0 0
      %2839 = vmatprep.subr.bf16.mxu0 0
      %2840 = vmatpush1.bf16.msra.mxu0 0
      %2841 = vmatprep.subr.bf16.mxu0 0
      %2842 = vmatpush1.bf16.msra.mxu0 0
      %2843 = vmatprep.subr.bf16.mxu0 0
      %2844 = vmatpush1.bf16.msra.mxu0 0
      %2845 = vmatprep.subr.bf16.mxu0 0
      %2846 = vmatpush1.bf16.msra.mxu0 0
      %2847 = vmatprep.subr.bf16.mxu0 0
      %2848 = vmatpush1.bf16.msra.mxu0 0
      %2849 = vmatprep.subr.bf16.mxu0 0
      %2850 = vmatpush1.bf16.msra.mxu0 0
      %2851 = vmatprep.subr.bf16.mxu0 0
      %2852 = vmatpush1.bf16.msra.mxu0 0
      %2853 = vmatprep.subr.bf16.mxu0 0
      %2854 = vmatpush1.bf16.msra.mxu0 0
      %2855 = vmatprep.subr.bf16.mxu0 0
      %2856 = vmatpush1.bf16.msra.mxu0 0
      %2857 = vmatprep.mubr.bf16.mxu0 0
      %2858 = vmatmul.mubr.bf16.gmra.mrb[0].mxu0 %v2775
      %v2859 = vpop.f32.mrb[0].mxu0
      %v2860 = vadd.f32 0.0, %v2859
      %v2861 = vpop.f32.mrb[0].mxu0
      %v2862 = vpop.f32.mrb[0].mxu0
      %v2863 = vadd.f32 0.0, %v2862
      %v2864 = vpop.f32.mrb[0].mxu0
      %2865 = vmatprep.mubr.bf16.mxu0 0
      %2866 = vmatmul.mubr.bf16.gmra.mrb[0].mxu0 %v2778
      %v2867 = vpop.f32.mrb[0].mxu0
      %v2868 = vadd.f32 0.0, %v2867
      %v2869 = vpop.f32.mrb[0].mxu0
      %v2870 = vpop.f32.mrb[0].mxu0
      %v2871 = vadd.f32 0.0, %v2870
      %v2872 = vpop.f32.mrb[0].mxu0
      %2873 = vmatprep.mubr.bf16.mxu0 0
      %2874 = vmatmul.mubr.bf16.gmra.mrb[0].mxu0 %v2781
      %v2875 = vpop.f32.mrb[0].mxu0
      %v2876 = vadd.f32 0.0, %v2875
      %v2877 = vpop.f32.mrb[0].mxu0
      %v2878 = vpop.f32.mrb[0].mxu0
      %v2879 = vadd.f32 0.0, %v2878
      %v2880 = vpop.f32.mrb[0].mxu0
      %2881 = vmatprep.mubr.bf16.mxu0 0
      %2882 = vmatmul.mubr.bf16.gmra.mrb[0].mxu0 %v2784
      %v2883 = vpop.f32.mrb[0].mxu0
      %v2884 = vadd.f32 0.0, %v2883
      %v2885 = vpop.f32.mrb[0].mxu0
      %v2886 = vpop.f32.mrb[0].mxu0
      %v2887 = vadd.f32 0.0, %v2886
      %v2888 = vpop.f32.mrb[0].mxu0
      %2889 = vmatprep.mubr.bf16.mxu0 0
      %2890 = vmatmul.mubr.bf16.gmra.mrb[0].mxu0 %v2787
      %v2891 = vpop.f32.mrb[0].mxu0
      %v2892 = vadd.f32 0.0, %v2891
      %v2893 = vpop.f32.mrb[0].mxu0
      %v2894 = vpop.f32.mrb[0].mxu0
      %v2895 = vadd.f32 0.0, %v2894
      %v2896 = vpop.f32.mrb[0].mxu0
      %2897 = vmatprep.mubr.bf16.mxu0 0
      %2898 = vmatmul.mubr.bf16.gmra.mrb[0].mxu0 %v2790
      %v2899 = vpop.f32.mrb[0].mxu0
      %v2900 = vadd.f32 0.0, %v2899
      %v2901 = vpop.f32.mrb[0].mxu0
      %v2902 = vpop.f32.mrb[0].mxu0
      %v2903 = vadd.f32 0.0, %v2902
      %v2904 = vpop.f32.mrb[0].mxu0
      %2905 = vmatprep.mubr.bf16.mxu0 0
      %2906 = vmatmul.mubr.bf16.gmra.mrb[0].mxu0 %v2793
      %v2907 = vpop.f32.mrb[0].mxu0
      %v2908 = vadd.f32 0.0, %v2907
      %v2909 = vpop.f32.mrb[0].mxu0
      %v2910 = vpop.f32.mrb[0].mxu0
      %v2911 = vadd.f32 0.0, %v2910
      %v2912 = vpop.f32.mrb[0].mxu0
      %2913 = vmatprep.mubr.bf16.mxu0 0
      %2914 = vmatmul.mubr.bf16.gmra.mrb[0].mxu0 %v2796
      %v2915 = vpop.f32.mrb[0].mxu0
      %v2916 = vadd.f32 0.0, %v2915
      %v2917 = vpop.f32.mrb[0].mxu0
      %v2918 = vpop.f32.mrb[0].mxu0
      %v2919 = vadd.f32 0.0, %v2918
      %v2920 = vpop.f32.mrb[0].mxu0
      %2921 = vmatprep.mubr.bf16.mxu0 0
      %2922 = vmatmul.mubr.bf16.gmra.mrb[0].mxu0 %v2799
      %v2923 = vpop.f32.mrb[0].mxu0
      %v2924 = vadd.f32 0.0, %v2923
      %v2925 = vpop.f32.mrb[0].mxu0
      %v2926 = vpop.f32.mrb[0].mxu0
      %v2927 = vadd.f32 0.0, %v2926
      %v2928 = vpop.f32.mrb[0].mxu0
      %2929 = vmatprep.mubr.bf16.mxu0 0
      %2930 = vmatmul.mubr.bf16.gmra.mrb[0].mxu0 %v2802
      %v2931 = vpop.f32.mrb[0].mxu0
      %v2932 = vadd.f32 0.0, %v2931
      %v2933 = vpop.f32.mrb[0].mxu0
      %v2934 = vpop.f32.mrb[0].mxu0
      %v2935 = vadd.f32 0.0, %v2934
      %v2936 = vpop.f32.mrb[0].mxu0
      %2937 = vmatprep.mubr.bf16.mxu0 0
      %2938 = vmatmul.mubr.bf16.gmra.mrb[0].mxu0 %v2805
      %v2939 = vpop.f32.mrb[0].mxu0
      %v2940 = vadd.f32 0.0, %v2939
      %v2941 = vpop.f32.mrb[0].mxu0
      %v2942 = vpop.f32.mrb[0].mxu0
      %v2943 = vadd.f32 0.0, %v2942
      %v2944 = vpop.f32.mrb[0].mxu0
      %2945 = vmatprep.mubr.bf16.mxu0 0
      %2946 = vmatmul.mubr.bf16.gmra.mrb[0].mxu0 %v2808
      %v2947 = vpop.f32.mrb[0].mxu0
      %v2948 = vadd.f32 0.0, %v2947
      %v2949 = vpop.f32.mrb[0].mxu0
      %v2950 = vpop.f32.mrb[0].mxu0
      %v2951 = vadd.f32 0.0, %v2950
      %v2952 = vpop.f32.mrb[0].mxu0
      %2953 = vmatprep.mubr.bf16.mxu0 0
      %2954 = vmatmul.mubr.bf16.gmra.mrb[0].mxu0 %v2811
      %v2955 = vpop.f32.mrb[0].mxu0
      %v2956 = vadd.f32 0.0, %v2955
      %v2957 = vpop.f32.mrb[0].mxu0
      %v2958 = vpop.f32.mrb[0].mxu0
      %v2959 = vadd.f32 0.0, %v2958
      %v2960 = vpop.f32.mrb[0].mxu0
      %2961 = vmatprep.mubr.bf16.mxu0 0
      %2962 = vmatmul.mubr.bf16.gmra.mrb[0].mxu0 %v2814
      %v2963 = vpop.f32.mrb[0].mxu0
      %v2964 = vadd.f32 0.0, %v2963
      %v2965 = vpop.f32.mrb[0].mxu0
      %v2966 = vpop.f32.mrb[0].mxu0
      %v2967 = vadd.f32 0.0, %v2966
      %v2968 = vpop.f32.mrb[0].mxu0
      %2969 = vmatprep.mubr.bf16.mxu0 0
      %2970 = vmatmul.mubr.bf16.gmra.mrb[0].mxu0 %v2817
      %v2971 = vpop.f32.mrb[0].mxu0
      %v2972 = vadd.f32 0.0, %v2971
      %v2973 = vpop.f32.mrb[0].mxu0
      %v2974 = vpop.f32.mrb[0].mxu0
      %v2975 = vadd.f32 0.0, %v2974
      %v2976 = vpop.f32.mrb[0].mxu0
      %2977 = vmatprep.mubr.bf16.mxu0 0
      %2978 = vmatmul.mubr.bf16.gmra.mrb[0].mxu0 %v2820
      %v2979 = vpop.f32.mrb[0].mxu0
      %v2980 = vadd.f32 0.0, %v2979
      %v2981 = vpop.f32.mrb[0].mxu0
      %v2982 = vpop.f32.mrb[0].mxu0
      %v2983 = vadd.f32 0.0, %v2982
      %v2984 = vpop.f32.mrb[0].mxu0
      %2985 = vdwg.mxu0
      %v2986 = vadd.f32 %v2740, %v2860
      %v2987 = vadd.f32 %v2741, %v2863
      %v2988 = vadd.f32 %v2742, %v2868
      %v2989 = vadd.f32 %v2743, %v2871
      %v2990 = vadd.f32 %v2744, %v2876
      %v2991 = vadd.f32 %v2745, %v2879
      %v2992 = vadd.f32 %v2746, %v2884
      %v2993 = vadd.f32 %v2747, %v2887
      %v2994 = vadd.f32 %v2748, %v2892
      %v2995 = vadd.f32 %v2749, %v2895
      %v2996 = vadd.f32 %v2750, %v2900
      %v2997 = vadd.f32 %v2751, %v2903
      %v2998 = vadd.f32 %v2752, %v2908
      %v2999 = vadd.f32 %v2753, %v2911
      %v3000 = vadd.f32 %v2754, %v2916
      %v3001 = vadd.f32 %v2755, %v2919
      %v3002 = vadd.f32 %v2756, %v2924
      %v3003 = vadd.f32 %v2757, %v2927
      %v3004 = vadd.f32 %v2758, %v2932
      %v3005 = vadd.f32 %v2759, %v2935
      %v3006 = vadd.f32 %v2760, %v2940
      %v3007 = vadd.f32 %v2761, %v2943
      %v3008 = vadd.f32 %v2762, %v2948
      %v3009 = vadd.f32 %v2763, %v2951
      %v3010 = vadd.f32 %v2764, %v2956
      %v3011 = vadd.f32 %v2765, %v2959
      %v3012 = vadd.f32 %v2766, %v2964
      %v3013 = vadd.f32 %v2767, %v2967
      %v3014 = vadd.f32 %v2768, %v2972
      %v3015 = vadd.f32 %v2769, %v2975
      %v3016 = vadd.f32 %v2770, %v2980
      %v3017 = vadd.f32 %v2771, %v2983
      %v3018 = vld [vmem:[#allocation2 + $0x10] sm:$0xff]
      %v3019 = vld [vmem:[#allocation2 + $0x18] sm:$0xff]
      %v3020 = vld [vmem:[#allocation2 + $0x20] sm:$0xff]
      %v3021 = vld [vmem:[#allocation2 + $0x28] sm:$0xff]
      %v3022 = vld [vmem:[#allocation2 + $0x30] sm:$0xff]
      %v3023 = vld [vmem:[#allocation2 + $0x38] sm:$0xff]
      %v3024 = vld [vmem:[#allocation2 + $0x40] sm:$0xff]
      %v3025 = vld [vmem:[#allocation2 + $0x48] sm:$0xff]
      %v3026 = vld [vmem:[#allocation2 + $0x50] sm:$0xff]
      %v3027 = vld [vmem:[#allocation2 + $0x58] sm:$0xff]
      %v3028 = vld [vmem:[#allocation2 + $0x60] sm:$0xff]
      %v3029 = vld [vmem:[#allocation2 + $0x68] sm:$0xff]
      %v3030 = vld [vmem:[#allocation2 + $0x70] sm:$0xff]
      %v3031 = vld [vmem:[#allocation2 + $0x78] sm:$0xff]
      %v3032 = vld [vmem:[#allocation2 + $0x80] sm:$0xff]
      %v3033 = vld [vmem:[#allocation2 + $0x88] sm:$0xff]
      %v3034 = vld [vmem:[#allocation2 + $0x90] sm:$0x1]
      %v3035 = vmul.bf16 %v3018, %v1842
      %v3036 = vmul.bf16 %v3019, %v1850
      %v3037 = vmul.bf16 %v3020, %v1858
      %v3038 = vmul.bf16 %v3021, %v1866
      %v3039 = vmul.bf16 %v3022, %v1874
      %v3040 = vmul.bf16 %v3023, %v1882
      %v3041 = vmul.bf16 %v3024, %v1890
      %v3042 = vmul.bf16 %v3025, %v1898
      %v3043 = vmul.bf16 %v3026, %v1906
      %v3044 = vmul.bf16 %v3027, %v1914
      %v3045 = vmul.bf16 %v3028, %v1922
      %v3046 = vmul.bf16 %v3029, %v1930
      %v3047 = vmul.bf16 %v3030, %v1938
      %v3048 = vmul.bf16 %v3031, %v1946
      %v3049 = vmul.bf16 %v3032, %v1954
      %v3050 = vmul.bf16 %v3033, %v1962
      %v3051 = vmul.bf16 %v3034, %v1958
      %s3052 = scalar_lea.vmem %s1, 10
      %v3053 = vld [vmem:[%s3052] sm:$0x3]
      %v3055 = vshrl.u32 %v3035, 16
      %v3057 = vshll.u32 %v3035, 16
      %v3059 = vrot.slane %v3057, 1
      %v3060 = vor.u32 %v3055, %v3059
      %v3062 = vshll.u32 %v3036, 16
      %v3064 = vrot.slane %v3062, 1
      %v3065 = vsel %vm1096, %v3060, %v3064
      %v3066 = vshrl.u32 %v3036, 16
      %v3068 = vor.u32 %v3066, %v3064
      %v3070 = vshll.u32 %v3037, 16
      %v3072 = vrot.slane %v3070, 1
      %v3073 = vsel %vm1096, %v3068, %v3072
      %v3074 = vshrl.u32 %v3037, 16
      %v3076 = vor.u32 %v3074, %v3072
      %v3078 = vshll.u32 %v3038, 16
      %v3080 = vrot.slane %v3078, 1
      %v3081 = vsel %vm1096, %v3076, %v3080
      %v3082 = vshrl.u32 %v3038, 16
      %v3084 = vor.u32 %v3082, %v3080
      %v3086 = vshll.u32 %v3039, 16
      %v3088 = vrot.slane %v3086, 1
      %v3089 = vsel %vm1096, %v3084, %v3088
      %v3090 = vshrl.u32 %v3039, 16
      %v3092 = vor.u32 %v3090, %v3088
      %v3094 = vshll.u32 %v3040, 16
      %v3096 = vrot.slane %v3094, 1
      %v3097 = vsel %vm1096, %v3092, %v3096
      %v3098 = vshrl.u32 %v3040, 16
      %v3100 = vor.u32 %v3098, %v3096
      %v3102 = vshll.u32 %v3041, 16
      %v3104 = vrot.slane %v3102, 1
      %v3105 = vsel %vm1096, %v3100, %v3104
      %v3106 = vshrl.u32 %v3041, 16
      %v3108 = vor.u32 %v3106, %v3104
      %v3110 = vshll.u32 %v3042, 16
      %v3112 = vrot.slane %v3110, 1
      %v3113 = vsel %vm1096, %v3108, %v3112
      %v3114 = vshrl.u32 %v3042, 16
      %v3116 = vor.u32 %v3114, %v3112
      %v3118 = vshll.u32 %v3043, 16
      %v3120 = vrot.slane %v3118, 1
      %v3121 = vsel %vm1096, %v3116, %v3120
      %v3122 = vshrl.u32 %v3043, 16
      %v3124 = vor.u32 %v3122, %v3120
      %v3126 = vshll.u32 %v3044, 16
      %v3128 = vrot.slane %v3126, 1
      %v3129 = vsel %vm1096, %v3124, %v3128
      %v3130 = vshrl.u32 %v3044, 16
      %v3132 = vor.u32 %v3130, %v3128
      %v3134 = vshll.u32 %v3045, 16
      %v3136 = vrot.slane %v3134, 1
      %v3137 = vsel %vm1096, %v3132, %v3136
      %v3138 = vshrl.u32 %v3045, 16
      %v3140 = vor.u32 %v3138, %v3136
      %v3142 = vshll.u32 %v3046, 16
      %v3144 = vrot.slane %v3142, 1
      %v3145 = vsel %vm1096, %v3140, %v3144
      %v3146 = vshrl.u32 %v3046, 16
      %v3148 = vor.u32 %v3146, %v3144
      %v3150 = vshll.u32 %v3047, 16
      %v3152 = vrot.slane %v3150, 1
      %v3153 = vsel %vm1096, %v3148, %v3152
      %v3154 = vshrl.u32 %v3047, 16
      %v3156 = vor.u32 %v3154, %v3152
      %v3158 = vshll.u32 %v3048, 16
      %v3160 = vrot.slane %v3158, 1
      %v3161 = vsel %vm1096, %v3156, %v3160
      %v3162 = vshrl.u32 %v3048, 16
      %v3164 = vor.u32 %v3162, %v3160
      %v3166 = vshll.u32 %v3049, 16
      %v3168 = vrot.slane %v3166, 1
      %v3169 = vsel %vm1096, %v3164, %v3168
      %v3170 = vshrl.u32 %v3049, 16
      %v3172 = vor.u32 %v3170, %v3168
      %v3174 = vshll.u32 %v3050, 16
      %v3176 = vrot.slane %v3174, 1
      %v3177 = vsel %vm1096, %v3172, %v3176
      %v3178 = vshrl.u32 %v3050, 16
      %v3180 = vor.u32 %v3178, %v3176
      %v3182 = vshll.u32 %v3051, 16
      %v3184 = vrot.slane %v3182, 1
      %v3185 = vsel %vm1096, %v3180, %v3184
      %v3187 = vsel %vm1062, %v3065, 0
      %v3190 = vsel %vm1062, %v3073, 0
      %v3193 = vsel %vm1062, %v3081, 0
      %v3196 = vsel %vm1062, %v3089, 0
      %v3199 = vsel %vm1062, %v3097, 0
      %v3202 = vsel %vm1062, %v3105, 0
      %v3205 = vsel %vm1062, %v3113, 0
      %v3208 = vsel %vm1062, %v3121, 0
      %v3211 = vsel %vm1062, %v3129, 0
      %v3214 = vsel %vm1062, %v3137, 0
      %v3217 = vsel %vm1062, %v3145, 0
      %v3220 = vsel %vm1062, %v3153, 0
      %v3223 = vsel %vm1062, %v3161, 0
      %v3226 = vsel %vm1062, %v3169, 0
      %v3229 = vsel %vm1062, %v3177, 0
      %v3232 = vsel %vm1062, %v3185, 0
      %v3235 = vsel %vm1309, %v3053, 0
      %3237 = vmatprep.subr.bf16.mxu0 0
      %3238 = vmatpush1.bf16.msra.mxu0 %v3235
      %3239 = vmatprep.subr.bf16.mxu0 0
      %3240 = vmatpush1.bf16.msra.mxu0 0
      %3241 = vmatprep.subr.bf16.mxu0 0
      %3242 = vmatpush1.bf16.msra.mxu0 0
      %3243 = vmatprep.subr.bf16.mxu0 0
      %3244 = vmatpush1.bf16.msra.mxu0 0
      %3245 = vmatprep.subr.bf16.mxu0 0
      %3246 = vmatpush1.bf16.msra.mxu0 0
      %3247 = vmatprep.subr.bf16.mxu0 0
      %3248 = vmatpush1.bf16.msra.mxu0 0
      %3249 = vmatprep.subr.bf16.mxu0 0
      %3250 = vmatpush1.bf16.msra.mxu0 0
      %3251 = vmatprep.subr.bf16.mxu0 0
      %3252 = vmatpush1.bf16.msra.mxu0 0
      %3253 = vmatprep.subr.bf16.mxu0 0
      %3254 = vmatpush1.bf16.msra.mxu0 0
      %3255 = vmatprep.subr.bf16.mxu0 0
      %3256 = vmatpush1.bf16.msra.mxu0 0
      %3257 = vmatprep.subr.bf16.mxu0 0
      %3258 = vmatpush1.bf16.msra.mxu0 0
      %3259 = vmatprep.subr.bf16.mxu0 0
      %3260 = vmatpush1.bf16.msra.mxu0 0
      %3261 = vmatprep.subr.bf16.mxu0 0
      %3262 = vmatpush1.bf16.msra.mxu0 0
      %3263 = vmatprep.subr.bf16.mxu0 0
      %3264 = vmatpush1.bf16.msra.mxu0 0
      %3265 = vmatprep.subr.bf16.mxu0 0
      %3266 = vmatpush1.bf16.msra.mxu0 0
      %3267 = vmatprep.subr.bf16.mxu0 0
      %3268 = vmatpush1.bf16.msra.mxu0 0
      %3269 = vmatprep.mubr.bf16.mxu0 0
      %3270 = vmatmul.mubr.bf16.gmra.mrb[0].mxu0 %v3187
      %v3271 = vpop.f32.mrb[0].mxu0
      %v3272 = vadd.f32 0.0, %v3271
      %v3273 = vpop.f32.mrb[0].mxu0
      %v3274 = vpop.f32.mrb[0].mxu0
      %v3275 = vadd.f32 0.0, %v3274
      %v3276 = vpop.f32.mrb[0].mxu0
      %3277 = vmatprep.mubr.bf16.mxu0 0
      %3278 = vmatmul.mubr.bf16.gmra.mrb[0].mxu0 %v3190
      %v3279 = vpop.f32.mrb[0].mxu0
      %v3280 = vadd.f32 0.0, %v3279
      %v3281 = vpop.f32.mrb[0].mxu0
      %v3282 = vpop.f32.mrb[0].mxu0
      %v3283 = vadd.f32 0.0, %v3282
      %v3284 = vpop.f32.mrb[0].mxu0
      %3285 = vmatprep.mubr.bf16.mxu0 0
      %3286 = vmatmul.mubr.bf16.gmra.mrb[0].mxu0 %v3193
      %v3287 = vpop.f32.mrb[0].mxu0
      %v3288 = vadd.f32 0.0, %v3287
      %v3289 = vpop.f32.mrb[0].mxu0
      %v3290 = vpop.f32.mrb[0].mxu0
      %v3291 = vadd.f32 0.0, %v3290
      %v3292 = vpop.f32.mrb[0].mxu0
      %3293 = vmatprep.mubr.bf16.mxu0 0
      %3294 = vmatmul.mubr.bf16.gmra.mrb[0].mxu0 %v3196
      %v3295 = vpop.f32.mrb[0].mxu0
      %v3296 = vadd.f32 0.0, %v3295
      %v3297 = vpop.f32.mrb[0].mxu0
      %v3298 = vpop.f32.mrb[0].mxu0
      %v3299 = vadd.f32 0.0, %v3298
      %v3300 = vpop.f32.mrb[0].mxu0
      %3301 = vmatprep.mubr.bf16.mxu0 0
      %3302 = vmatmul.mubr.bf16.gmra.mrb[0].mxu0 %v3199
      %v3303 = vpop.f32.mrb[0].mxu0
      %v3304 = vadd.f32 0.0, %v3303
      %v3305 = vpop.f32.mrb[0].mxu0
      %v3306 = vpop.f32.mrb[0].mxu0
      %v3307 = vadd.f32 0.0, %v3306
      %v3308 = vpop.f32.mrb[0].mxu0
      %3309 = vmatprep.mubr.bf16.mxu0 0
      %3310 = vmatmul.mubr.bf16.gmra.mrb[0].mxu0 %v3202
      %v3311 = vpop.f32.mrb[0].mxu0
      %v3312 = vadd.f32 0.0, %v3311
      %v3313 = vpop.f32.mrb[0].mxu0
      %v3314 = vpop.f32.mrb[0].mxu0
      %v3315 = vadd.f32 0.0, %v3314
      %v3316 = vpop.f32.mrb[0].mxu0
      %3317 = vmatprep.mubr.bf16.mxu0 0
      %3318 = vmatmul.mubr.bf16.gmra.mrb[0].mxu0 %v3205
      %v3319 = vpop.f32.mrb[0].mxu0
      %v3320 = vadd.f32 0.0, %v3319
      %v3321 = vpop.f32.mrb[0].mxu0
      %v3322 = vpop.f32.mrb[0].mxu0
      %v3323 = vadd.f32 0.0, %v3322
      %v3324 = vpop.f32.mrb[0].mxu0
      %3325 = vmatprep.mubr.bf16.mxu0 0
      %3326 = vmatmul.mubr.bf16.gmra.mrb[0].mxu0 %v3208
      %v3327 = vpop.f32.mrb[0].mxu0
      %v3328 = vadd.f32 0.0, %v3327
      %v3329 = vpop.f32.mrb[0].mxu0
      %v3330 = vpop.f32.mrb[0].mxu0
      %v3331 = vadd.f32 0.0, %v3330
      %v3332 = vpop.f32.mrb[0].mxu0
      %3333 = vmatprep.mubr.bf16.mxu0 0
      %3334 = vmatmul.mubr.bf16.gmra.mrb[0].mxu0 %v3211
      %v3335 = vpop.f32.mrb[0].mxu0
      %v3336 = vadd.f32 0.0, %v3335
      %v3337 = vpop.f32.mrb[0].mxu0
      %v3338 = vpop.f32.mrb[0].mxu0
      %v3339 = vadd.f32 0.0, %v3338
      %v3340 = vpop.f32.mrb[0].mxu0
      %3341 = vmatprep.mubr.bf16.mxu0 0
      %3342 = vmatmul.mubr.bf16.gmra.mrb[0].mxu0 %v3214
      %v3343 = vpop.f32.mrb[0].mxu0
      %v3344 = vadd.f32 0.0, %v3343
      %v3345 = vpop.f32.mrb[0].mxu0
      %v3346 = vpop.f32.mrb[0].mxu0
      %v3347 = vadd.f32 0.0, %v3346
      %v3348 = vpop.f32.mrb[0].mxu0
      %3349 = vmatprep.mubr.bf16.mxu0 0
      %3350 = vmatmul.mubr.bf16.gmra.mrb[0].mxu0 %v3217
      %v3351 = vpop.f32.mrb[0].mxu0
      %v3352 = vadd.f32 0.0, %v3351
      %v3353 = vpop.f32.mrb[0].mxu0
      %v3354 = vpop.f32.mrb[0].mxu0
      %v3355 = vadd.f32 0.0, %v3354
      %v3356 = vpop.f32.mrb[0].mxu0
      %3357 = vmatprep.mubr.bf16.mxu0 0
      %3358 = vmatmul.mubr.bf16.gmra.mrb[0].mxu0 %v3220
      %v3359 = vpop.f32.mrb[0].mxu0
      %v3360 = vadd.f32 0.0, %v3359
      %v3361 = vpop.f32.mrb[0].mxu0
      %v3362 = vpop.f32.mrb[0].mxu0
      %v3363 = vadd.f32 0.0, %v3362
      %v3364 = vpop.f32.mrb[0].mxu0
      %3365 = vmatprep.mubr.bf16.mxu0 0
      %3366 = vmatmul.mubr.bf16.gmra.mrb[0].mxu0 %v3223
      %v3367 = vpop.f32.mrb[0].mxu0
      %v3368 = vadd.f32 0.0, %v3367
      %v3369 = vpop.f32.mrb[0].mxu0
      %v3370 = vpop.f32.mrb[0].mxu0
      %v3371 = vadd.f32 0.0, %v3370
      %v3372 = vpop.f32.mrb[0].mxu0
      %3373 = vmatprep.mubr.bf16.mxu0 0
      %3374 = vmatmul.mubr.bf16.gmra.mrb[0].mxu0 %v3226
      %v3375 = vpop.f32.mrb[0].mxu0
      %v3376 = vadd.f32 0.0, %v3375
      %v3377 = vpop.f32.mrb[0].mxu0
      %v3378 = vpop.f32.mrb[0].mxu0
      %v3379 = vadd.f32 0.0, %v3378
      %v3380 = vpop.f32.mrb[0].mxu0
      %3381 = vmatprep.mubr.bf16.mxu0 0
      %3382 = vmatmul.mubr.bf16.gmra.mrb[0].mxu0 %v3229
      %v3383 = vpop.f32.mrb[0].mxu0
      %v3384 = vadd.f32 0.0, %v3383
      %v3385 = vpop.f32.mrb[0].mxu0
      %v3386 = vpop.f32.mrb[0].mxu0
      %v3387 = vadd.f32 0.0, %v3386
      %v3388 = vpop.f32.mrb[0].mxu0
      %3389 = vmatprep.mubr.bf16.mxu0 0
      %3390 = vmatmul.mubr.bf16.gmra.mrb[0].mxu0 %v3232
      %v3391 = vpop.f32.mrb[0].mxu0
      %v3392 = vadd.f32 0.0, %v3391
      %v3393 = vpop.f32.mrb[0].mxu0
      %v3394 = vpop.f32.mrb[0].mxu0
      %v3395 = vadd.f32 0.0, %v3394
      %v3396 = vpop.f32.mrb[0].mxu0
      %3397 = vdwg.mxu0
      %v3398 = vadd.f32 %v2986, %v3272
      %v3399 = vadd.f32 %v2987, %v3275
      %v3400 = vadd.f32 %v2988, %v3280
      %v3401 = vadd.f32 %v2989, %v3283
      %v3402 = vadd.f32 %v2990, %v3288
      %v3403 = vadd.f32 %v2991, %v3291
      %v3404 = vadd.f32 %v2992, %v3296
      %v3405 = vadd.f32 %v2993, %v3299
      %v3406 = vadd.f32 %v2994, %v3304
      %v3407 = vadd.f32 %v2995, %v3307
      %v3408 = vadd.f32 %v2996, %v3312
      %v3409 = vadd.f32 %v2997, %v3315
      %v3410 = vadd.f32 %v2998, %v3320
      %v3411 = vadd.f32 %v2999, %v3323
      %v3412 = vadd.f32 %v3000, %v3328
      %v3413 = vadd.f32 %v3001, %v3331
      %v3414 = vadd.f32 %v3002, %v3336
      %v3415 = vadd.f32 %v3003, %v3339
      %v3416 = vadd.f32 %v3004, %v3344
      %v3417 = vadd.f32 %v3005, %v3347
      %v3418 = vadd.f32 %v3006, %v3352
      %v3419 = vadd.f32 %v3007, %v3355
      %v3420 = vadd.f32 %v3008, %v3360
      %v3421 = vadd.f32 %v3009, %v3363
      %v3422 = vadd.f32 %v3010, %v3368
      %v3423 = vadd.f32 %v3011, %v3371
      %v3424 = vadd.f32 %v3012, %v3376
      %v3425 = vadd.f32 %v3013, %v3379
      %v3426 = vadd.f32 %v3014, %v3384
      %v3427 = vadd.f32 %v3015, %v3387
      %v3428 = vadd.f32 %v3016, %v3392
      %v3429 = vadd.f32 %v3017, %v3395
      %v3430 = vld [vmem:[#allocation2 + $0x10] sm:$0x80]
      %v3431 = vld [vmem:[#allocation2 + $0x90] sm:$0xff]
      %v3432 = vmul.bf16 %v3430, %v1100
      %v3433 = vmul.bf16 %v3019, %v1108
      %v3434 = vmul.bf16 %v3020, %v1116
      %v3435 = vmul.bf16 %v3021, %v1124
      %v3436 = vmul.bf16 %v3022, %v1132
      %v3437 = vmul.bf16 %v3023, %v1140
      %v3438 = vmul.bf16 %v3024, %v1148
      %v3439 = vmul.bf16 %v3025, %v1156
      %v3440 = vmul.bf16 %v3026, %v1164
      %v3441 = vmul.bf16 %v3027, %v1172
      %v3442 = vmul.bf16 %v3028, %v1180
      %v3443 = vmul.bf16 %v3029, %v1188
      %v3444 = vmul.bf16 %v3030, %v1196
      %v3445 = vmul.bf16 %v3031, %v1204
      %v3446 = vmul.bf16 %v3032, %v1212
      %v3447 = vmul.bf16 %v3033, %v1220
      %v3448 = vmul.bf16 %v3431, %v1223
      %s3449 = scalar_lea.vmem %s1, 12
      %v3450 = vld [vmem:[%s3449] sm:$0x3]
      %v3452 = vshrl.u32 %v3432, 16
      %v3454 = vrot.slane %v3452, 7
      %v3456 = vshrl.u32 %v3433, 16
      %v3458 = vrot.slane %v3456, 7
      %v3459 = vshll.u32 %v3433, 16
      %v3461 = vor.u32 %v3458, %v3459
      %v3462 = vsel %vm1474, %v3454, %v3461
      %v3464 = vshrl.u32 %v3434, 16
      %v3466 = vrot.slane %v3464, 7
      %v3467 = vshll.u32 %v3434, 16
      %v3469 = vor.u32 %v3466, %v3467
      %v3470 = vsel %vm1474, %v3458, %v3469
      %v3472 = vshrl.u32 %v3435, 16
      %v3474 = vrot.slane %v3472, 7
      %v3475 = vshll.u32 %v3435, 16
      %v3477 = vor.u32 %v3474, %v3475
      %v3478 = vsel %vm1474, %v3466, %v3477
      %v3480 = vshrl.u32 %v3436, 16
      %v3482 = vrot.slane %v3480, 7
      %v3483 = vshll.u32 %v3436, 16
      %v3485 = vor.u32 %v3482, %v3483
      %v3486 = vsel %vm1474, %v3474, %v3485
      %v3488 = vshrl.u32 %v3437, 16
      %v3490 = vrot.slane %v3488, 7
      %v3491 = vshll.u32 %v3437, 16
      %v3493 = vor.u32 %v3490, %v3491
      %v3494 = vsel %vm1474, %v3482, %v3493
      %v3496 = vshrl.u32 %v3438, 16
      %v3498 = vrot.slane %v3496, 7
      %v3499 = vshll.u32 %v3438, 16
      %v3501 = vor.u32 %v3498, %v3499
      %v3502 = vsel %vm1474, %v3490, %v3501
      %v3504 = vshrl.u32 %v3439, 16
      %v3506 = vrot.slane %v3504, 7
      %v3507 = vshll.u32 %v3439, 16
      %v3509 = vor.u32 %v3506, %v3507
      %v3510 = vsel %vm1474, %v3498, %v3509
      %v3512 = vshrl.u32 %v3440, 16
      %v3514 = vrot.slane %v3512, 7
      %v3515 = vshll.u32 %v3440, 16
      %v3517 = vor.u32 %v3514, %v3515
      %v3518 = vsel %vm1474, %v3506, %v3517
      %v3520 = vshrl.u32 %v3441, 16
      %v3522 = vrot.slane %v3520, 7
      %v3523 = vshll.u32 %v3441, 16
      %v3525 = vor.u32 %v3522, %v3523
      %v3526 = vsel %vm1474, %v3514, %v3525
      %v3528 = vshrl.u32 %v3442, 16
      %v3530 = vrot.slane %v3528, 7
      %v3531 = vshll.u32 %v3442, 16
      %v3533 = vor.u32 %v3530, %v3531
      %v3534 = vsel %vm1474, %v3522, %v3533
      %v3536 = vshrl.u32 %v3443, 16
      %v3538 = vrot.slane %v3536, 7
      %v3539 = vshll.u32 %v3443, 16
      %v3541 = vor.u32 %v3538, %v3539
      %v3542 = vsel %vm1474, %v3530, %v3541
      %v3544 = vshrl.u32 %v3444, 16
      %v3546 = vrot.slane %v3544, 7
      %v3547 = vshll.u32 %v3444, 16
      %v3549 = vor.u32 %v3546, %v3547
      %v3550 = vsel %vm1474, %v3538, %v3549
      %v3552 = vshrl.u32 %v3445, 16
      %v3554 = vrot.slane %v3552, 7
      %v3555 = vshll.u32 %v3445, 16
      %v3557 = vor.u32 %v3554, %v3555
      %v3558 = vsel %vm1474, %v3546, %v3557
      %v3560 = vshrl.u32 %v3446, 16
      %v3562 = vrot.slane %v3560, 7
      %v3563 = vshll.u32 %v3446, 16
      %v3565 = vor.u32 %v3562, %v3563
      %v3566 = vsel %vm1474, %v3554, %v3565
      %v3568 = vshrl.u32 %v3447, 16
      %v3570 = vrot.slane %v3568, 7
      %v3571 = vshll.u32 %v3447, 16
      %v3573 = vor.u32 %v3570, %v3571
      %v3574 = vsel %vm1474, %v3562, %v3573
      %v3576 = vshrl.u32 %v3448, 16
      %v3578 = vrot.slane %v3576, 7
      %v3579 = vshll.u32 %v3448, 16
      %v3581 = vor.u32 %v3578, %v3579
      %v3582 = vsel %vm1474, %v3570, %v3581
      %v3584 = vsel %vm1062, %v3462, 0
      %v3587 = vsel %vm1062, %v3470, 0
      %v3590 = vsel %vm1062, %v3478, 0
      %v3593 = vsel %vm1062, %v3486, 0
      %v3596 = vsel %vm1062, %v3494, 0
      %v3599 = vsel %vm1062, %v3502, 0
      %v3602 = vsel %vm1062, %v3510, 0
      %v3605 = vsel %vm1062, %v3518, 0
      %v3608 = vsel %vm1062, %v3526, 0
      %v3611 = vsel %vm1062, %v3534, 0
      %v3614 = vsel %vm1062, %v3542, 0
      %v3617 = vsel %vm1062, %v3550, 0
      %v3620 = vsel %vm1062, %v3558, 0
      %v3623 = vsel %vm1062, %v3566, 0
      %v3626 = vsel %vm1062, %v3574, 0
      %v3629 = vsel %vm1062, %v3582, 0
      %v3632 = vsel %vm1309, %v3450, 0
      %3634 = vmatprep.subr.bf16.mxu0 0
      %3635 = vmatpush1.bf16.msra.mxu0 %v3632
      %3636 = vmatprep.subr.bf16.mxu0 0
      %3637 = vmatpush1.bf16.msra.mxu0 0
      %3638 = vmatprep.subr.bf16.mxu0 0
      %3639 = vmatpush1.bf16.msra.mxu0 0
      %3640 = vmatprep.subr.bf16.mxu0 0
      %3641 = vmatpush1.bf16.msra.mxu0 0
      %3642 = vmatprep.subr.bf16.mxu0 0
      %3643 = vmatpush1.bf16.msra.mxu0 0
      %3644 = vmatprep.subr.bf16.mxu0 0
      %3645 = vmatpush1.bf16.msra.mxu0 0
      %3646 = vmatprep.subr.bf16.mxu0 0
      %3647 = vmatpush1.bf16.msra.mxu0 0
      %3648 = vmatprep.subr.bf16.mxu0 0
      %3649 = vmatpush1.bf16.msra.mxu0 0
      %3650 = vmatprep.subr.bf16.mxu0 0
      %3651 = vmatpush1.bf16.msra.mxu0 0
      %3652 = vmatprep.subr.bf16.mxu0 0
      %3653 = vmatpush1.bf16.msra.mxu0 0
      %3654 = vmatprep.subr.bf16.mxu0 0
      %3655 = vmatpush1.bf16.msra.mxu0 0
      %3656 = vmatprep.subr.bf16.mxu0 0
      %3657 = vmatpush1.bf16.msra.mxu0 0
      %3658 = vmatprep.subr.bf16.mxu0 0
      %3659 = vmatpush1.bf16.msra.mxu0 0
      %3660 = vmatprep.subr.bf16.mxu0 0
      %3661 = vmatpush1.bf16.msra.mxu0 0
      %3662 = vmatprep.subr.bf16.mxu0 0
      %3663 = vmatpush1.bf16.msra.mxu0 0
      %3664 = vmatprep.subr.bf16.mxu0 0
      %3665 = vmatpush1.bf16.msra.mxu0 0
      %3666 = vmatprep.mubr.bf16.mxu0 0
      %3667 = vmatmul.mubr.bf16.gmra.mrb[0].mxu0 %v3584
      %v3668 = vpop.f32.mrb[0].mxu0
      %v3669 = vadd.f32 0.0, %v3668
      %v3670 = vpop.f32.mrb[0].mxu0
      %v3671 = vpop.f32.mrb[0].mxu0
      %v3672 = vadd.f32 0.0, %v3671
      %v3673 = vpop.f32.mrb[0].mxu0
      %3674 = vmatprep.mubr.bf16.mxu0 0
      %3675 = vmatmul.mubr.bf16.gmra.mrb[0].mxu0 %v3587
      %v3676 = vpop.f32.mrb[0].mxu0
      %v3677 = vadd.f32 0.0, %v3676
      %v3678 = vpop.f32.mrb[0].mxu0
      %v3679 = vpop.f32.mrb[0].mxu0
      %v3680 = vadd.f32 0.0, %v3679
      %v3681 = vpop.f32.mrb[0].mxu0
      %3682 = vmatprep.mubr.bf16.mxu0 0
      %3683 = vmatmul.mubr.bf16.gmra.mrb[0].mxu0 %v3590
      %v3684 = vpop.f32.mrb[0].mxu0
      %v3685 = vadd.f32 0.0, %v3684
      %v3686 = vpop.f32.mrb[0].mxu0
      %v3687 = vpop.f32.mrb[0].mxu0
      %v3688 = vadd.f32 0.0, %v3687
      %v3689 = vpop.f32.mrb[0].mxu0
      %3690 = vmatprep.mubr.bf16.mxu0 0
      %3691 = vmatmul.mubr.bf16.gmra.mrb[0].mxu0 %v3593
      %v3692 = vpop.f32.mrb[0].mxu0
      %v3693 = vadd.f32 0.0, %v3692
      %v3694 = vpop.f32.mrb[0].mxu0
      %v3695 = vpop.f32.mrb[0].mxu0
      %v3696 = vadd.f32 0.0, %v3695
      %v3697 = vpop.f32.mrb[0].mxu0
      %3698 = vmatprep.mubr.bf16.mxu0 0
      %3699 = vmatmul.mubr.bf16.gmra.mrb[0].mxu0 %v3596
      %v3700 = vpop.f32.mrb[0].mxu0
      %v3701 = vadd.f32 0.0, %v3700
      %v3702 = vpop.f32.mrb[0].mxu0
      %v3703 = vpop.f32.mrb[0].mxu0
      %v3704 = vadd.f32 0.0, %v3703
      %v3705 = vpop.f32.mrb[0].mxu0
      %3706 = vmatprep.mubr.bf16.mxu0 0
      %3707 = vmatmul.mubr.bf16.gmra.mrb[0].mxu0 %v3599
      %v3708 = vpop.f32.mrb[0].mxu0
      %v3709 = vadd.f32 0.0, %v3708
      %v3710 = vpop.f32.mrb[0].mxu0
      %v3711 = vpop.f32.mrb[0].mxu0
      %v3712 = vadd.f32 0.0, %v3711
      %v3713 = vpop.f32.mrb[0].mxu0
      %3714 = vmatprep.mubr.bf16.mxu0 0
      %3715 = vmatmul.mubr.bf16.gmra.mrb[0].mxu0 %v3602
      %v3716 = vpop.f32.mrb[0].mxu0
      %v3717 = vadd.f32 0.0, %v3716
      %v3718 = vpop.f32.mrb[0].mxu0
      %v3719 = vpop.f32.mrb[0].mxu0
      %v3720 = vadd.f32 0.0, %v3719
      %v3721 = vpop.f32.mrb[0].mxu0
      %3722 = vmatprep.mubr.bf16.mxu0 0
      %3723 = vmatmul.mubr.bf16.gmra.mrb[0].mxu0 %v3605
      %v3724 = vpop.f32.mrb[0].mxu0
      %v3725 = vadd.f32 0.0, %v3724
      %v3726 = vpop.f32.mrb[0].mxu0
      %v3727 = vpop.f32.mrb[0].mxu0
      %v3728 = vadd.f32 0.0, %v3727
      %v3729 = vpop.f32.mrb[0].mxu0
      %3730 = vmatprep.mubr.bf16.mxu0 0
      %3731 = vmatmul.mubr.bf16.gmra.mrb[0].mxu0 %v3608
      %v3732 = vpop.f32.mrb[0].mxu0
      %v3733 = vadd.f32 0.0, %v3732
      %v3734 = vpop.f32.mrb[0].mxu0
      %v3735 = vpop.f32.mrb[0].mxu0
      %v3736 = vadd.f32 0.0, %v3735
      %v3737 = vpop.f32.mrb[0].mxu0
      %3738 = vmatprep.mubr.bf16.mxu0 0
      %3739 = vmatmul.mubr.bf16.gmra.mrb[0].mxu0 %v3611
      %v3740 = vpop.f32.mrb[0].mxu0
      %v3741 = vadd.f32 0.0, %v3740
      %v3742 = vpop.f32.mrb[0].mxu0
      %v3743 = vpop.f32.mrb[0].mxu0
      %v3744 = vadd.f32 0.0, %v3743
      %v3745 = vpop.f32.mrb[0].mxu0
      %3746 = vmatprep.mubr.bf16.mxu0 0
      %3747 = vmatmul.mubr.bf16.gmra.mrb[0].mxu0 %v3614
      %v3748 = vpop.f32.mrb[0].mxu0
      %v3749 = vadd.f32 0.0, %v3748
      %v3750 = vpop.f32.mrb[0].mxu0
      %v3751 = vpop.f32.mrb[0].mxu0
      %v3752 = vadd.f32 0.0, %v3751
      %v3753 = vpop.f32.mrb[0].mxu0
      %3754 = vmatprep.mubr.bf16.mxu0 0
      %3755 = vmatmul.mubr.bf16.gmra.mrb[0].mxu0 %v3617
      %v3756 = vpop.f32.mrb[0].mxu0
      %v3757 = vadd.f32 0.0, %v3756
      %v3758 = vpop.f32.mrb[0].mxu0
      %v3759 = vpop.f32.mrb[0].mxu0
      %v3760 = vadd.f32 0.0, %v3759
      %v3761 = vpop.f32.mrb[0].mxu0
      %3762 = vmatprep.mubr.bf16.mxu0 0
      %3763 = vmatmul.mubr.bf16.gmra.mrb[0].mxu0 %v3620
      %v3764 = vpop.f32.mrb[0].mxu0
      %v3765 = vadd.f32 0.0, %v3764
      %v3766 = vpop.f32.mrb[0].mxu0
      %v3767 = vpop.f32.mrb[0].mxu0
      %v3768 = vadd.f32 0.0, %v3767
      %v3769 = vpop.f32.mrb[0].mxu0
      %3770 = vmatprep.mubr.bf16.mxu0 0
      %3771 = vmatmul.mubr.bf16.gmra.mrb[0].mxu0 %v3623
      %v3772 = vpop.f32.mrb[0].mxu0
      %v3773 = vadd.f32 0.0, %v3772
      %v3774 = vpop.f32.mrb[0].mxu0
      %v3775 = vpop.f32.mrb[0].mxu0
      %v3776 = vadd.f32 0.0, %v3775
      %v3777 = vpop.f32.mrb[0].mxu0
      %3778 = vmatprep.mubr.bf16.mxu0 0
      %3779 = vmatmul.mubr.bf16.gmra.mrb[0].mxu0 %v3626
      %v3780 = vpop.f32.mrb[0].mxu0
      %v3781 = vadd.f32 0.0, %v3780
      %v3782 = vpop.f32.mrb[0].mxu0
      %v3783 = vpop.f32.mrb[0].mxu0
      %v3784 = vadd.f32 0.0, %v3783
      %v3785 = vpop.f32.mrb[0].mxu0
      %3786 = vmatprep.mubr.bf16.mxu0 0
      %3787 = vmatmul.mubr.bf16.gmra.mrb[0].mxu0 %v3629
      %v3788 = vpop.f32.mrb[0].mxu0
      %v3789 = vadd.f32 0.0, %v3788
      %v3790 = vpop.f32.mrb[0].mxu0
      %v3791 = vpop.f32.mrb[0].mxu0
      %v3792 = vadd.f32 0.0, %v3791
      %v3793 = vpop.f32.mrb[0].mxu0
      %3794 = vdwg.mxu0
      %v3795 = vadd.f32 %v3398, %v3669
      %v3796 = vadd.f32 %v3399, %v3672
      %v3797 = vadd.f32 %v3400, %v3677
      %v3798 = vadd.f32 %v3401, %v3680
      %v3799 = vadd.f32 %v3402, %v3685
      %v3800 = vadd.f32 %v3403, %v3688
      %v3801 = vadd.f32 %v3404, %v3693
      %v3802 = vadd.f32 %v3405, %v3696
      %v3803 = vadd.f32 %v3406, %v3701
      %v3804 = vadd.f32 %v3407, %v3704
      %v3805 = vadd.f32 %v3408, %v3709
      %v3806 = vadd.f32 %v3409, %v3712
      %v3807 = vadd.f32 %v3410, %v3717
      %v3808 = vadd.f32 %v3411, %v3720
      %v3809 = vadd.f32 %v3412, %v3725
      %v3810 = vadd.f32 %v3413, %v3728
      %v3811 = vadd.f32 %v3414, %v3733
      %v3812 = vadd.f32 %v3415, %v3736
      %v3813 = vadd.f32 %v3416, %v3741
      %v3814 = vadd.f32 %v3417, %v3744
      %v3815 = vadd.f32 %v3418, %v3749
      %v3816 = vadd.f32 %v3419, %v3752
      %v3817 = vadd.f32 %v3420, %v3757
      %v3818 = vadd.f32 %v3421, %v3760
      %v3819 = vadd.f32 %v3422, %v3765
      %v3820 = vadd.f32 %v3423, %v3768
      %v3821 = vadd.f32 %v3424, %v3773
      %v3822 = vadd.f32 %v3425, %v3776
      %v3823 = vadd.f32 %v3426, %v3781
      %v3824 = vadd.f32 %v3427, %v3784
      %v3825 = vadd.f32 %v3428, %v3789
      %v3826 = vadd.f32 %v3429, %v3792
      %s3827 = scalar_lea.vmem %s1, 14
      %v3828 = vld [vmem:[%s3827] sm:$0x3]
      %v3830 = vsel %vm1062, %v3019, 0
      %v3833 = vsel %vm1062, %v3020, 0
      %v3836 = vsel %vm1062, %v3021, 0
      %v3839 = vsel %vm1062, %v3022, 0
      %v3842 = vsel %vm1062, %v3023, 0
      %v3845 = vsel %vm1062, %v3024, 0
      %v3848 = vsel %vm1062, %v3025, 0
      %v3851 = vsel %vm1062, %v3026, 0
      %v3854 = vsel %vm1062, %v3027, 0
      %v3857 = vsel %vm1062, %v3028, 0
      %v3860 = vsel %vm1062, %v3029, 0
      %v3863 = vsel %vm1062, %v3030, 0
      %v3866 = vsel %vm1062, %v3031, 0
      %v3869 = vsel %vm1062, %v3032, 0
      %v3872 = vsel %vm1062, %v3033, 0
      %v3875 = vsel %vm1062, %v3431, 0
      %v3878 = vsel %vm1309, %v3828, 0
      %3880 = vmatprep.subr.bf16.mxu0 0
      %3881 = vmatpush1.bf16.msra.mxu0 %v3878
      %3882 = vmatprep.subr.bf16.mxu0 0
      %3883 = vmatpush1.bf16.msra.mxu0 0
      %3884 = vmatprep.subr.bf16.mxu0 0
      %3885 = vmatpush1.bf16.msra.mxu0 0
      %3886 = vmatprep.subr.bf16.mxu0 0
      %3887 = vmatpush1.bf16.msra.mxu0 0
      %3888 = vmatprep.subr.bf16.mxu0 0
      %3889 = vmatpush1.bf16.msra.mxu0 0
      %3890 = vmatprep.subr.bf16.mxu0 0
      %3891 = vmatpush1.bf16.msra.mxu0 0
      %3892 = vmatprep.subr.bf16.mxu0 0
      %3893 = vmatpush1.bf16.msra.mxu0 0
      %3894 = vmatprep.subr.bf16.mxu0 0
      %3895 = vmatpush1.bf16.msra.mxu0 0
      %3896 = vmatprep.subr.bf16.mxu0 0
      %3897 = vmatpush1.bf16.msra.mxu0 0
      %3898 = vmatprep.subr.bf16.mxu0 0
      %3899 = vmatpush1.bf16.msra.mxu0 0
      %3900 = vmatprep.subr.bf16.mxu0 0
      %3901 = vmatpush1.bf16.msra.mxu0 0
      %3902 = vmatprep.subr.bf16.mxu0 0
      %3903 = vmatpush1.bf16.msra.mxu0 0
      %3904 = vmatprep.subr.bf16.mxu0 0
      %3905 = vmatpush1.bf16.msra.mxu0 0
      %3906 = vmatprep.subr.bf16.mxu0 0
      %3907 = vmatpush1.bf16.msra.mxu0 0
      %3908 = vmatprep.subr.bf16.mxu0 0
      %3909 = vmatpush1.bf16.msra.mxu0 0
      %3910 = vmatprep.subr.bf16.mxu0 0
      %3911 = vmatpush1.bf16.msra.mxu0 0
      %3912 = vmatprep.mubr.bf16.mxu0 0
      %3913 = vmatmul.mubr.bf16.gmra.mrb[0].mxu0 %v3830
      %v3914 = vpop.f32.mrb[0].mxu0
      %v3915 = vadd.f32 0.0, %v3914
      %v3916 = vpop.f32.mrb[0].mxu0
      %v3917 = vpop.f32.mrb[0].mxu0
      %v3918 = vadd.f32 0.0, %v3917
      %v3919 = vpop.f32.mrb[0].mxu0
      %3920 = vmatprep.mubr.bf16.mxu0 0
      %3921 = vmatmul.mubr.bf16.gmra.mrb[0].mxu0 %v3833
      %v3922 = vpop.f32.mrb[0].mxu0
      %v3923 = vadd.f32 0.0, %v3922
      %v3924 = vpop.f32.mrb[0].mxu0
      %v3925 = vpop.f32.mrb[0].mxu0
      %v3926 = vadd.f32 0.0, %v3925
      %v3927 = vpop.f32.mrb[0].mxu0
      %3928 = vmatprep.mubr.bf16.mxu0 0
      %3929 = vmatmul.mubr.bf16.gmra.mrb[0].mxu0 %v3836
      %v3930 = vpop.f32.mrb[0].mxu0
      %v3931 = vadd.f32 0.0, %v3930
      %v3932 = vpop.f32.mrb[0].mxu0
      %v3933 = vpop.f32.mrb[0].mxu0
      %v3934 = vadd.f32 0.0, %v3933
      %v3935 = vpop.f32.mrb[0].mxu0
      %3936 = vmatprep.mubr.bf16.mxu0 0
      %3937 = vmatmul.mubr.bf16.gmra.mrb[0].mxu0 %v3839
      %v3938 = vpop.f32.mrb[0].mxu0
      %v3939 = vadd.f32 0.0, %v3938
      %v3940 = vpop.f32.mrb[0].mxu0
      %v3941 = vpop.f32.mrb[0].mxu0
      %v3942 = vadd.f32 0.0, %v3941
      %v3943 = vpop.f32.mrb[0].mxu0
      %3944 = vmatprep.mubr.bf16.mxu0 0
      %3945 = vmatmul.mubr.bf16.gmra.mrb[0].mxu0 %v3842
      %v3946 = vpop.f32.mrb[0].mxu0
      %v3947 = vadd.f32 0.0, %v3946
      %v3948 = vpop.f32.mrb[0].mxu0
      %v3949 = vpop.f32.mrb[0].mxu0
      %v3950 = vadd.f32 0.0, %v3949
      %v3951 = vpop.f32.mrb[0].mxu0
      %3952 = vmatprep.mubr.bf16.mxu0 0
      %3953 = vmatmul.mubr.bf16.gmra.mrb[0].mxu0 %v3845
      %v3954 = vpop.f32.mrb[0].mxu0
      %v3955 = vadd.f32 0.0, %v3954
      %v3956 = vpop.f32.mrb[0].mxu0
      %v3957 = vpop.f32.mrb[0].mxu0
      %v3958 = vadd.f32 0.0, %v3957
      %v3959 = vpop.f32.mrb[0].mxu0
      %3960 = vmatprep.mubr.bf16.mxu0 0
      %3961 = vmatmul.mubr.bf16.gmra.mrb[0].mxu0 %v3848
      %v3962 = vpop.f32.mrb[0].mxu0
      %v3963 = vadd.f32 0.0, %v3962
      %v3964 = vpop.f32.mrb[0].mxu0
      %v3965 = vpop.f32.mrb[0].mxu0
      %v3966 = vadd.f32 0.0, %v3965
      %v3967 = vpop.f32.mrb[0].mxu0
      %3968 = vmatprep.mubr.bf16.mxu0 0
      %3969 = vmatmul.mubr.bf16.gmra.mrb[0].mxu0 %v3851
      %v3970 = vpop.f32.mrb[0].mxu0
      %v3971 = vadd.f32 0.0, %v3970
      %v3972 = vpop.f32.mrb[0].mxu0
      %v3973 = vpop.f32.mrb[0].mxu0
      %v3974 = vadd.f32 0.0, %v3973
      %v3975 = vpop.f32.mrb[0].mxu0
      %3976 = vmatprep.mubr.bf16.mxu0 0
      %3977 = vmatmul.mubr.bf16.gmra.mrb[0].mxu0 %v3854
      %v3978 = vpop.f32.mrb[0].mxu0
      %v3979 = vadd.f32 0.0, %v3978
      %v3980 = vpop.f32.mrb[0].mxu0
      %v3981 = vpop.f32.mrb[0].mxu0
      %v3982 = vadd.f32 0.0, %v3981
      %v3983 = vpop.f32.mrb[0].mxu0
      %3984 = vmatprep.mubr.bf16.mxu0 0
      %3985 = vmatmul.mubr.bf16.gmra.mrb[0].mxu0 %v3857
      %v3986 = vpop.f32.mrb[0].mxu0
      %v3987 = vadd.f32 0.0, %v3986
      %v3988 = vpop.f32.mrb[0].mxu0
      %v3989 = vpop.f32.mrb[0].mxu0
      %v3990 = vadd.f32 0.0, %v3989
      %v3991 = vpop.f32.mrb[0].mxu0
      %3992 = vmatprep.mubr.bf16.mxu0 0
      %3993 = vmatmul.mubr.bf16.gmra.mrb[0].mxu0 %v3860
      %v3994 = vpop.f32.mrb[0].mxu0
      %v3995 = vadd.f32 0.0, %v3994
      %v3996 = vpop.f32.mrb[0].mxu0
      %v3997 = vpop.f32.mrb[0].mxu0
      %v3998 = vadd.f32 0.0, %v3997
      %v3999 = vpop.f32.mrb[0].mxu0
      %4000 = vmatprep.mubr.bf16.mxu0 0
      %4001 = vmatmul.mubr.bf16.gmra.mrb[0].mxu0 %v3863
      %v4002 = vpop.f32.mrb[0].mxu0
      %v4003 = vadd.f32 0.0, %v4002
      %v4004 = vpop.f32.mrb[0].mxu0
      %v4005 = vpop.f32.mrb[0].mxu0
      %v4006 = vadd.f32 0.0, %v4005
      %v4007 = vpop.f32.mrb[0].mxu0
      %4008 = vmatprep.mubr.bf16.mxu0 0
      %4009 = vmatmul.mubr.bf16.gmra.mrb[0].mxu0 %v3866
      %v4010 = vpop.f32.mrb[0].mxu0
      %v4011 = vadd.f32 0.0, %v4010
      %v4012 = vpop.f32.mrb[0].mxu0
      %v4013 = vpop.f32.mrb[0].mxu0
      %v4014 = vadd.f32 0.0, %v4013
      %v4015 = vpop.f32.mrb[0].mxu0
      %4016 = vmatprep.mubr.bf16.mxu0 0
      %4017 = vmatmul.mubr.bf16.gmra.mrb[0].mxu0 %v3869
      %v4018 = vpop.f32.mrb[0].mxu0
      %v4019 = vadd.f32 0.0, %v4018
      %v4020 = vpop.f32.mrb[0].mxu0
      %v4021 = vpop.f32.mrb[0].mxu0
      %v4022 = vadd.f32 0.0, %v4021
      %v4023 = vpop.f32.mrb[0].mxu0
      %4024 = vmatprep.mubr.bf16.mxu0 0
      %4025 = vmatmul.mubr.bf16.gmra.mrb[0].mxu0 %v3872
      %v4026 = vpop.f32.mrb[0].mxu0
      %v4027 = vadd.f32 0.0, %v4026
      %v4028 = vpop.f32.mrb[0].mxu0
      %v4029 = vpop.f32.mrb[0].mxu0
      %v4030 = vadd.f32 0.0, %v4029
      %v4031 = vpop.f32.mrb[0].mxu0
      %4032 = vmatprep.mubr.bf16.mxu0 0
      %4033 = vmatmul.mubr.bf16.gmra.mrb[0].mxu0 %v3875
      %v4034 = vpop.f32.mrb[0].mxu0
      %v4035 = vadd.f32 0.0, %v4034
      %v4036 = vpop.f32.mrb[0].mxu0
      %v4037 = vpop.f32.mrb[0].mxu0
      %v4038 = vadd.f32 0.0, %v4037
      %v4039 = vpop.f32.mrb[0].mxu0
      %4040 = vdwg.mxu0
      %v4041 = vadd.f32 %v3795, %v3915
      %v4042 = vadd.f32 %v3796, %v3918
      %v4043 = vadd.f32 %v3797, %v3923
      %v4044 = vadd.f32 %v3798, %v3926
      %v4045 = vadd.f32 %v3799, %v3931
      %v4046 = vadd.f32 %v3800, %v3934
      %v4047 = vadd.f32 %v3801, %v3939
      %v4048 = vadd.f32 %v3802, %v3942
      %v4049 = vadd.f32 %v3803, %v3947
      %v4050 = vadd.f32 %v3804, %v3950
      %v4051 = vadd.f32 %v3805, %v3955
      %v4052 = vadd.f32 %v3806, %v3958
      %v4053 = vadd.f32 %v3807, %v3963
      %v4054 = vadd.f32 %v3808, %v3966
      %v4055 = vadd.f32 %v3809, %v3971
      %v4056 = vadd.f32 %v3810, %v3974
      %v4057 = vadd.f32 %v3811, %v3979
      %v4058 = vadd.f32 %v3812, %v3982
      %v4059 = vadd.f32 %v3813, %v3987
      %v4060 = vadd.f32 %v3814, %v3990
      %v4061 = vadd.f32 %v3815, %v3995
      %v4062 = vadd.f32 %v3816, %v3998
      %v4063 = vadd.f32 %v3817, %v4003
      %v4064 = vadd.f32 %v3818, %v4006
      %v4065 = vadd.f32 %v3819, %v4011
      %v4066 = vadd.f32 %v3820, %v4014
      %v4067 = vadd.f32 %v3821, %v4019
      %v4068 = vadd.f32 %v3822, %v4022
      %v4069 = vadd.f32 %v3823, %v4027
      %v4070 = vadd.f32 %v3824, %v4030
      %v4071 = vadd.f32 %v3825, %v4035
      %v4072 = vadd.f32 %v3826, %v4038
      %v4073 = vld [vmem:[#allocation2 + $0x18] sm:$0xff]
      %v4074 = vld [vmem:[#allocation2 + $0x20] sm:$0xff]
      %v4075 = vld [vmem:[#allocation2 + $0x28] sm:$0xff]
      %v4076 = vld [vmem:[#allocation2 + $0x30] sm:$0xff]
      %v4077 = vld [vmem:[#allocation2 + $0x38] sm:$0xff]
      %v4078 = vld [vmem:[#allocation2 + $0x40] sm:$0xff]
      %v4079 = vld [vmem:[#allocation2 + $0x48] sm:$0xff]
      %v4080 = vld [vmem:[#allocation2 + $0x50] sm:$0xff]
      %v4081 = vld [vmem:[#allocation2 + $0x58] sm:$0xff]
      %v4082 = vld [vmem:[#allocation2 + $0x60] sm:$0xff]
      %v4083 = vld [vmem:[#allocation2 + $0x68] sm:$0xff]
      %v4084 = vld [vmem:[#allocation2 + $0x70] sm:$0xff]
      %v4085 = vld [vmem:[#allocation2 + $0x78] sm:$0xff]
      %v4086 = vld [vmem:[#allocation2 + $0x80] sm:$0xff]
      %v4087 = vld [vmem:[#allocation2 + $0x88] sm:$0xff]
      %v4088 = vld [vmem:[#allocation2 + $0x90] sm:$0xff]
      %v4089 = vld [vmem:[#allocation2 + $0x98] sm:$0x1]
      %v4090 = vmul.bf16 %v4073, %v1842
      %v4091 = vmul.bf16 %v4074, %v1850
      %v4092 = vmul.bf16 %v4075, %v1858
      %v4093 = vmul.bf16 %v4076, %v1866
      %v4094 = vmul.bf16 %v4077, %v1874
      %v4095 = vmul.bf16 %v4078, %v1882
      %v4096 = vmul.bf16 %v4079, %v1890
      %v4097 = vmul.bf16 %v4080, %v1898
      %v4098 = vmul.bf16 %v4081, %v1906
      %v4099 = vmul.bf16 %v4082, %v1914
      %v4100 = vmul.bf16 %v4083, %v1922
      %v4101 = vmul.bf16 %v4084, %v1930
      %v4102 = vmul.bf16 %v4085, %v1938
      %v4103 = vmul.bf16 %v4086, %v1946
      %v4104 = vmul.bf16 %v4087, %v1954
      %v4105 = vmul.bf16 %v4088, %v1962
      %v4106 = vmul.bf16 %v4089, %v1958
      %s4107 = scalar_lea.vmem %s1, 16
      %v4108 = vld [vmem:[%s4107] sm:$0x3]
      %v4110 = vshrl.u32 %v4090, 16
      %v4112 = vshll.u32 %v4090, 16
      %v4114 = vrot.slane %v4112, 1
      %v4115 = vor.u32 %v4110, %v4114
      %v4117 = vshll.u32 %v4091, 16
      %v4119 = vrot.slane %v4117, 1
      %v4120 = vsel %vm1096, %v4115, %v4119
      %v4121 = vshrl.u32 %v4091, 16
      %v4123 = vor.u32 %v4121, %v4119
      %v4125 = vshll.u32 %v4092, 16
      %v4127 = vrot.slane %v4125, 1
      %v4128 = vsel %vm1096, %v4123, %v4127
      %v4129 = vshrl.u32 %v4092, 16
      %v4131 = vor.u32 %v4129, %v4127
      %v4133 = vshll.u32 %v4093, 16
      %v4135 = vrot.slane %v4133, 1
      %v4136 = vsel %vm1096, %v4131, %v4135
      %v4137 = vshrl.u32 %v4093, 16
      %v4139 = vor.u32 %v4137, %v4135
      %v4141 = vshll.u32 %v4094, 16
      %v4143 = vrot.slane %v4141, 1
      %v4144 = vsel %vm1096, %v4139, %v4143
      %v4145 = vshrl.u32 %v4094, 16
      %v4147 = vor.u32 %v4145, %v4143
      %v4149 = vshll.u32 %v4095, 16
      %v4151 = vrot.slane %v4149, 1
      %v4152 = vsel %vm1096, %v4147, %v4151
      %v4153 = vshrl.u32 %v4095, 16
      %v4155 = vor.u32 %v4153, %v4151
      %v4157 = vshll.u32 %v4096, 16
      %v4159 = vrot.slane %v4157, 1
      %v4160 = vsel %vm1096, %v4155, %v4159
      %v4161 = vshrl.u32 %v4096, 16
      %v4163 = vor.u32 %v4161, %v4159
      %v4165 = vshll.u32 %v4097, 16
      %v4167 = vrot.slane %v4165, 1
      %v4168 = vsel %vm1096, %v4163, %v4167
      %v4169 = vshrl.u32 %v4097, 16
      %v4171 = vor.u32 %v4169, %v4167
      %v4173 = vshll.u32 %v4098, 16
      %v4175 = vrot.slane %v4173, 1
      %v4176 = vsel %vm1096, %v4171, %v4175
      %v4177 = vshrl.u32 %v4098, 16
      %v4179 = vor.u32 %v4177, %v4175
      %v4181 = vshll.u32 %v4099, 16
      %v4183 = vrot.slane %v4181, 1
      %v4184 = vsel %vm1096, %v4179, %v4183
      %v4185 = vshrl.u32 %v4099, 16
      %v4187 = vor.u32 %v4185, %v4183
      %v4189 = vshll.u32 %v4100, 16
      %v4191 = vrot.slane %v4189, 1
      %v4192 = vsel %vm1096, %v4187, %v4191
      %v4193 = vshrl.u32 %v4100, 16
      %v4195 = vor.u32 %v4193, %v4191
      %v4197 = vshll.u32 %v4101, 16
      %v4199 = vrot.slane %v4197, 1
      %v4200 = vsel %vm1096, %v4195, %v4199
      %v4201 = vshrl.u32 %v4101, 16
      %v4203 = vor.u32 %v4201, %v4199
      %v4205 = vshll.u32 %v4102, 16
      %v4207 = vrot.slane %v4205, 1
      %v4208 = vsel %vm1096, %v4203, %v4207
      %v4209 = vshrl.u32 %v4102, 16
      %v4211 = vor.u32 %v4209, %v4207
      %v4213 = vshll.u32 %v4103, 16
      %v4215 = vrot.slane %v4213, 1
      %v4216 = vsel %vm1096, %v4211, %v4215
      %v4217 = vshrl.u32 %v4103, 16
      %v4219 = vor.u32 %v4217, %v4215
      %v4221 = vshll.u32 %v4104, 16
      %v4223 = vrot.slane %v4221, 1
      %v4224 = vsel %vm1096, %v4219, %v4223
      %v4225 = vshrl.u32 %v4104, 16
      %v4227 = vor.u32 %v4225, %v4223
      %v4229 = vshll.u32 %v4105, 16
      %v4231 = vrot.slane %v4229, 1
      %v4232 = vsel %vm1096, %v4227, %v4231
      %v4233 = vshrl.u32 %v4105, 16
      %v4235 = vor.u32 %v4233, %v4231
      %v4237 = vshll.u32 %v4106, 16
      %v4239 = vrot.slane %v4237, 1
      %v4240 = vsel %vm1096, %v4235, %v4239
      %v4242 = vsel %vm1062, %v4120, 0
      %v4245 = vsel %vm1062, %v4128, 0
      %v4248 = vsel %vm1062, %v4136, 0
      %v4251 = vsel %vm1062, %v4144, 0
      %v4254 = vsel %vm1062, %v4152, 0
      %v4257 = vsel %vm1062, %v4160, 0
      %v4260 = vsel %vm1062, %v4168, 0
      %v4263 = vsel %vm1062, %v4176, 0
      %v4266 = vsel %vm1062, %v4184, 0
      %v4269 = vsel %vm1062, %v4192, 0
      %v4272 = vsel %vm1062, %v4200, 0
      %v4275 = vsel %vm1062, %v4208, 0
      %v4278 = vsel %vm1062, %v4216, 0
      %v4281 = vsel %vm1062, %v4224, 0
      %v4284 = vsel %vm1062, %v4232, 0
      %v4287 = vsel %vm1062, %v4240, 0
      %v4290 = vsel %vm1309, %v4108, 0
      %4292 = vmatprep.subr.bf16.mxu0 0
      %4293 = vmatpush1.bf16.msra.mxu0 %v4290
      %4294 = vmatprep.subr.bf16.mxu0 0
      %4295 = vmatpush1.bf16.msra.mxu0 0
      %4296 = vmatprep.subr.bf16.mxu0 0
      %4297 = vmatpush1.bf16.msra.mxu0 0
      %4298 = vmatprep.subr.bf16.mxu0 0
      %4299 = vmatpush1.bf16.msra.mxu0 0
      %4300 = vmatprep.subr.bf16.mxu0 0
      %4301 = vmatpush1.bf16.msra.mxu0 0
      %4302 = vmatprep.subr.bf16.mxu0 0
      %4303 = vmatpush1.bf16.msra.mxu0 0
      %4304 = vmatprep.subr.bf16.mxu0 0
      %4305 = vmatpush1.bf16.msra.mxu0 0
      %4306 = vmatprep.subr.bf16.mxu0 0
      %4307 = vmatpush1.bf16.msra.mxu0 0
      %4308 = vmatprep.subr.bf16.mxu0 0
      %4309 = vmatpush1.bf16.msra.mxu0 0
      %4310 = vmatprep.subr.bf16.mxu0 0
      %4311 = vmatpush1.bf16.msra.mxu0 0
      %4312 = vmatprep.subr.bf16.mxu0 0
      %4313 = vmatpush1.bf16.msra.mxu0 0
      %4314 = vmatprep.subr.bf16.mxu0 0
      %4315 = vmatpush1.bf16.msra.mxu0 0
      %4316 = vmatprep.subr.bf16.mxu0 0
      %4317 = vmatpush1.bf16.msra.mxu0 0
      %4318 = vmatprep.subr.bf16.mxu0 0
      %4319 = vmatpush1.bf16.msra.mxu0 0
      %4320 = vmatprep.subr.bf16.mxu0 0
      %4321 = vmatpush1.bf16.msra.mxu0 0
      %4322 = vmatprep.subr.bf16.mxu0 0
      %4323 = vmatpush1.bf16.msra.mxu0 0
      %4324 = vmatprep.mubr.bf16.mxu0 0
      %4325 = vmatmul.mubr.bf16.gmra.mrb[0].mxu0 %v4242
      %v4326 = vpop.f32.mrb[0].mxu0
      %v4327 = vadd.f32 0.0, %v4326
      %v4328 = vpop.f32.mrb[0].mxu0
      %v4329 = vpop.f32.mrb[0].mxu0
      %v4330 = vadd.f32 0.0, %v4329
      %v4331 = vpop.f32.mrb[0].mxu0
      %4332 = vmatprep.mubr.bf16.mxu0 0
      %4333 = vmatmul.mubr.bf16.gmra.mrb[0].mxu0 %v4245
      %v4334 = vpop.f32.mrb[0].mxu0
      %v4335 = vadd.f32 0.0, %v4334
      %v4336 = vpop.f32.mrb[0].mxu0
      %v4337 = vpop.f32.mrb[0].mxu0
      %v4338 = vadd.f32 0.0, %v4337
      %v4339 = vpop.f32.mrb[0].mxu0
      %4340 = vmatprep.mubr.bf16.mxu0 0
      %4341 = vmatmul.mubr.bf16.gmra.mrb[0].mxu0 %v4248
      %v4342 = vpop.f32.mrb[0].mxu0
      %v4343 = vadd.f32 0.0, %v4342
      %v4344 = vpop.f32.mrb[0].mxu0
      %v4345 = vpop.f32.mrb[0].mxu0
      %v4346 = vadd.f32 0.0, %v4345
      %v4347 = vpop.f32.mrb[0].mxu0
      %4348 = vmatprep.mubr.bf16.mxu0 0
      %4349 = vmatmul.mubr.bf16.gmra.mrb[0].mxu0 %v4251
      %v4350 = vpop.f32.mrb[0].mxu0
      %v4351 = vadd.f32 0.0, %v4350
      %v4352 = vpop.f32.mrb[0].mxu0
      %v4353 = vpop.f32.mrb[0].mxu0
      %v4354 = vadd.f32 0.0, %v4353
      %v4355 = vpop.f32.mrb[0].mxu0
      %4356 = vmatprep.mubr.bf16.mxu0 0
      %4357 = vmatmul.mubr.bf16.gmra.mrb[0].mxu0 %v4254
      %v4358 = vpop.f32.mrb[0].mxu0
      %v4359 = vadd.f32 0.0, %v4358
      %v4360 = vpop.f32.mrb[0].mxu0
      %v4361 = vpop.f32.mrb[0].mxu0
      %v4362 = vadd.f32 0.0, %v4361
      %v4363 = vpop.f32.mrb[0].mxu0
      %4364 = vmatprep.mubr.bf16.mxu0 0
      %4365 = vmatmul.mubr.bf16.gmra.mrb[0].mxu0 %v4257
      %v4366 = vpop.f32.mrb[0].mxu0
      %v4367 = vadd.f32 0.0, %v4366
      %v4368 = vpop.f32.mrb[0].mxu0
      %v4369 = vpop.f32.mrb[0].mxu0
      %v4370 = vadd.f32 0.0, %v4369
      %v4371 = vpop.f32.mrb[0].mxu0
      %4372 = vmatprep.mubr.bf16.mxu0 0
      %4373 = vmatmul.mubr.bf16.gmra.mrb[0].mxu0 %v4260
      %v4374 = vpop.f32.mrb[0].mxu0
      %v4375 = vadd.f32 0.0, %v4374
      %v4376 = vpop.f32.mrb[0].mxu0
      %v4377 = vpop.f32.mrb[0].mxu0
      %v4378 = vadd.f32 0.0, %v4377
      %v4379 = vpop.f32.mrb[0].mxu0
      %4380 = vmatprep.mubr.bf16.mxu0 0
      %4381 = vmatmul.mubr.bf16.gmra.mrb[0].mxu0 %v4263
      %v4382 = vpop.f32.mrb[0].mxu0
      %v4383 = vadd.f32 0.0, %v4382
      %v4384 = vpop.f32.mrb[0].mxu0
      %v4385 = vpop.f32.mrb[0].mxu0
      %v4386 = vadd.f32 0.0, %v4385
      %v4387 = vpop.f32.mrb[0].mxu0
      %4388 = vmatprep.mubr.bf16.mxu0 0
      %4389 = vmatmul.mubr.bf16.gmra.mrb[0].mxu0 %v4266
      %v4390 = vpop.f32.mrb[0].mxu0
      %v4391 = vadd.f32 0.0, %v4390
      %v4392 = vpop.f32.mrb[0].mxu0
      %v4393 = vpop.f32.mrb[0].mxu0
      %v4394 = vadd.f32 0.0, %v4393
      %v4395 = vpop.f32.mrb[0].mxu0
      %4396 = vmatprep.mubr.bf16.mxu0 0
      %4397 = vmatmul.mubr.bf16.gmra.mrb[0].mxu0 %v4269
      %v4398 = vpop.f32.mrb[0].mxu0
      %v4399 = vadd.f32 0.0, %v4398
      %v4400 = vpop.f32.mrb[0].mxu0
      %v4401 = vpop.f32.mrb[0].mxu0
      %v4402 = vadd.f32 0.0, %v4401
      %v4403 = vpop.f32.mrb[0].mxu0
      %4404 = vmatprep.mubr.bf16.mxu0 0
      %4405 = vmatmul.mubr.bf16.gmra.mrb[0].mxu0 %v4272
      %v4406 = vpop.f32.mrb[0].mxu0
      %v4407 = vadd.f32 0.0, %v4406
      %v4408 = vpop.f32.mrb[0].mxu0
      %v4409 = vpop.f32.mrb[0].mxu0
      %v4410 = vadd.f32 0.0, %v4409
      %v4411 = vpop.f32.mrb[0].mxu0
      %4412 = vmatprep.mubr.bf16.mxu0 0
      %4413 = vmatmul.mubr.bf16.gmra.mrb[0].mxu0 %v4275
      %v4414 = vpop.f32.mrb[0].mxu0
      %v4415 = vadd.f32 0.0, %v4414
      %v4416 = vpop.f32.mrb[0].mxu0
      %v4417 = vpop.f32.mrb[0].mxu0
      %v4418 = vadd.f32 0.0, %v4417
      %v4419 = vpop.f32.mrb[0].mxu0
      %4420 = vmatprep.mubr.bf16.mxu0 0
      %4421 = vmatmul.mubr.bf16.gmra.mrb[0].mxu0 %v4278
      %v4422 = vpop.f32.mrb[0].mxu0
      %v4423 = vadd.f32 0.0, %v4422
      %v4424 = vpop.f32.mrb[0].mxu0
      %v4425 = vpop.f32.mrb[0].mxu0
      %v4426 = vadd.f32 0.0, %v4425
      %v4427 = vpop.f32.mrb[0].mxu0
      %4428 = vmatprep.mubr.bf16.mxu0 0
      %4429 = vmatmul.mubr.bf16.gmra.mrb[0].mxu0 %v4281
      %v4430 = vpop.f32.mrb[0].mxu0
      %v4431 = vadd.f32 0.0, %v4430
      %v4432 = vpop.f32.mrb[0].mxu0
      %v4433 = vpop.f32.mrb[0].mxu0
      %v4434 = vadd.f32 0.0, %v4433
      %v4435 = vpop.f32.mrb[0].mxu0
      %4436 = vmatprep.mubr.bf16.mxu0 0
      %4437 = vmatmul.mubr.bf16.gmra.mrb[0].mxu0 %v4284
      %v4438 = vpop.f32.mrb[0].mxu0
      %v4439 = vadd.f32 0.0, %v4438
      %v4440 = vpop.f32.mrb[0].mxu0
      %v4441 = vpop.f32.mrb[0].mxu0
      %v4442 = vadd.f32 0.0, %v4441
      %v4443 = vpop.f32.mrb[0].mxu0
      %4444 = vmatprep.mubr.bf16.mxu0 0
      %4445 = vmatmul.mubr.bf16.gmra.mrb[0].mxu0 %v4287
      %v4446 = vpop.f32.mrb[0].mxu0
      %v4447 = vadd.f32 0.0, %v4446
      %v4448 = vpop.f32.mrb[0].mxu0
      %v4449 = vpop.f32.mrb[0].mxu0
      %v4450 = vadd.f32 0.0, %v4449
      %v4451 = vpop.f32.mrb[0].mxu0
      %4452 = vdwg.mxu0
      %v4453 = vadd.f32 %v4041, %v4327
      %v4454 = vadd.f32 %v4042, %v4330
      %v4455 = vadd.f32 %v4043, %v4335
      %v4456 = vadd.f32 %v4044, %v4338
      %v4457 = vadd.f32 %v4045, %v4343
      %v4458 = vadd.f32 %v4046, %v4346
      %v4459 = vadd.f32 %v4047, %v4351
      %v4460 = vadd.f32 %v4048, %v4354
      %v4461 = vadd.f32 %v4049, %v4359
      %v4462 = vadd.f32 %v4050, %v4362
      %v4463 = vadd.f32 %v4051, %v4367
      %v4464 = vadd.f32 %v4052, %v4370
      %v4465 = vadd.f32 %v4053, %v4375
      %v4466 = vadd.f32 %v4054, %v4378
      %v4467 = vadd.f32 %v4055, %v4383
      %v4468 = vadd.f32 %v4056, %v4386
      %v4469 = vadd.f32 %v4057, %v4391
      %v4470 = vadd.f32 %v4058, %v4394
      %v4471 = vadd.f32 %v4059, %v4399
      %v4472 = vadd.f32 %v4060, %v4402
      %v4473 = vadd.f32 %v4061, %v4407
      %v4474 = vadd.f32 %v4062, %v4410
      %v4475 = vadd.f32 %v4063, %v4415
      %v4476 = vadd.f32 %v4064, %v4418
      %v4477 = vadd.f32 %v4065, %v4423
      %v4478 = vadd.f32 %v4066, %v4426
      %v4479 = vadd.f32 %v4067, %v4431
      %v4480 = vadd.f32 %v4068, %v4434
      %v4481 = vadd.f32 %v4069, %v4439
      %v4482 = vadd.f32 %v4070, %v4442
      %v4483 = vadd.f32 %v4071, %v4447
      %v4484 = vadd.f32 %v4072, %v4450
      %v4485 = vld [vmem:[%s2] sm:$0x1]
      %v4487 = vlaneseq
      %v4488 = vshrl.u32 %v4487, 7
      %v4489 = vsub.s32 0, %v4488
      %v4490 = vrot.slane %v4485, %v4489
      %v4492 = vmul.f32 %v4453, %v4490
      %v4493 = vmul.f32 %v4454, %v4490
      %v4494 = vmul.f32 %v4455, %v4490
      %v4495 = vmul.f32 %v4456, %v4490
      %v4496 = vmul.f32 %v4457, %v4490
      %v4497 = vmul.f32 %v4458, %v4490
      %v4498 = vmul.f32 %v4459, %v4490
      %v4499 = vmul.f32 %v4460, %v4490
      %v4500 = vmul.f32 %v4461, %v4490
      %v4501 = vmul.f32 %v4462, %v4490
      %v4502 = vmul.f32 %v4463, %v4490
      %v4503 = vmul.f32 %v4464, %v4490
      %v4504 = vmul.f32 %v4465, %v4490
      %v4505 = vmul.f32 %v4466, %v4490
      %v4506 = vmul.f32 %v4467, %v4490
      %v4507 = vmul.f32 %v4468, %v4490
      %v4508 = vmul.f32 %v4469, %v4490
      %v4509 = vmul.f32 %v4470, %v4490
      %v4510 = vmul.f32 %v4471, %v4490
      %v4511 = vmul.f32 %v4472, %v4490
      %v4512 = vmul.f32 %v4473, %v4490
      %v4513 = vmul.f32 %v4474, %v4490
      %v4514 = vmul.f32 %v4475, %v4490
      %v4515 = vmul.f32 %v4476, %v4490
      %v4516 = vmul.f32 %v4477, %v4490
      %v4517 = vmul.f32 %v4478, %v4490
      %v4518 = vmul.f32 %v4479, %v4490
      %v4519 = vmul.f32 %v4480, %v4490
      %v4520 = vmul.f32 %v4481, %v4490
      %v4521 = vmul.f32 %v4482, %v4490
      %v4522 = vmul.f32 %v4483, %v4490
      %v4523 = vmul.f32 %v4484, %v4490
      %v4524 = vld [vmem:[%s3] sm:$0x1]
      %v4526 = vlaneseq
      %v4527 = vshrl.u32 %v4526, 7
      %v4528 = vsub.s32 0, %v4527
      %v4529 = vrot.slane %v4524, %v4528
      %v4531 = vadd.f32 %v4492, %v4529
      %v4532 = vadd.f32 %v4493, %v4529
      %v4533 = vadd.f32 %v4494, %v4529
      %v4534 = vadd.f32 %v4495, %v4529
      %v4535 = vadd.f32 %v4496, %v4529
      %v4536 = vadd.f32 %v4497, %v4529
      %v4537 = vadd.f32 %v4498, %v4529
      %v4538 = vadd.f32 %v4499, %v4529
      %v4539 = vadd.f32 %v4500, %v4529
      %v4540 = vadd.f32 %v4501, %v4529
      %v4541 = vadd.f32 %v4502, %v4529
      %v4542 = vadd.f32 %v4503, %v4529
      %v4543 = vadd.f32 %v4504, %v4529
      %v4544 = vadd.f32 %v4505, %v4529
      %v4545 = vadd.f32 %v4506, %v4529
      %v4546 = vadd.f32 %v4507, %v4529
      %v4547 = vadd.f32 %v4508, %v4529
      %v4548 = vadd.f32 %v4509, %v4529
      %v4549 = vadd.f32 %v4510, %v4529
      %v4550 = vadd.f32 %v4511, %v4529
      %v4551 = vadd.f32 %v4512, %v4529
      %v4552 = vadd.f32 %v4513, %v4529
      %v4553 = vadd.f32 %v4514, %v4529
      %v4554 = vadd.f32 %v4515, %v4529
      %v4555 = vadd.f32 %v4516, %v4529
      %v4556 = vadd.f32 %v4517, %v4529
      %v4557 = vadd.f32 %v4518, %v4529
      %v4558 = vadd.f32 %v4519, %v4529
      %v4559 = vadd.f32 %v4520, %v4529
      %v4560 = vadd.f32 %v4521, %v4529
      %v4561 = vadd.f32 %v4522, %v4529
      %v4562 = vadd.f32 %v4523, %v4529
      %v4563 = vmax.f32 %v4531, 0.0
      %v4564 = vmax.f32 %v4532, 0.0
      %v4565 = vmax.f32 %v4533, 0.0
      %v4566 = vmax.f32 %v4534, 0.0
      %v4567 = vmax.f32 %v4535, 0.0
      %v4568 = vmax.f32 %v4536, 0.0
      %v4569 = vmax.f32 %v4537, 0.0
      %v4570 = vmax.f32 %v4538, 0.0
      %v4571 = vmax.f32 %v4539, 0.0
      %v4572 = vmax.f32 %v4540, 0.0
      %v4573 = vmax.f32 %v4541, 0.0
      %v4574 = vmax.f32 %v4542, 0.0
      %v4575 = vmax.f32 %v4543, 0.0
      %v4576 = vmax.f32 %v4544, 0.0
      %v4577 = vmax.f32 %v4545, 0.0
      %v4578 = vmax.f32 %v4546, 0.0
      %v4579 = vmax.f32 %v4547, 0.0
      %v4580 = vmax.f32 %v4548, 0.0
      %v4581 = vmax.f32 %v4549, 0.0
      %v4582 = vmax.f32 %v4550, 0.0
      %v4583 = vmax.f32 %v4551, 0.0
      %v4584 = vmax.f32 %v4552, 0.0
      %v4585 = vmax.f32 %v4553, 0.0
      %v4586 = vmax.f32 %v4554, 0.0
      %v4587 = vmax.f32 %v4555, 0.0
      %v4588 = vmax.f32 %v4556, 0.0
      %v4589 = vmax.f32 %v4557, 0.0
      %v4590 = vmax.f32 %v4558, 0.0
      %v4591 = vmax.f32 %v4559, 0.0
      %v4592 = vmax.f32 %v4560, 0.0
      %v4593 = vmax.f32 %v4561, 0.0
      %v4594 = vmax.f32 %v4562, 0.0
      %v4595 = vpack.c.bf16 %v4564, %v4563
      %v4596 = vpack.c.bf16 %v4566, %v4565
      %v4597 = vpack.c.bf16 %v4568, %v4567
      %v4598 = vpack.c.bf16 %v4570, %v4569
      %v4599 = vpack.c.bf16 %v4572, %v4571
      %v4600 = vpack.c.bf16 %v4574, %v4573
      %v4601 = vpack.c.bf16 %v4576, %v4575
      %v4602 = vpack.c.bf16 %v4578, %v4577
      %v4603 = vpack.c.bf16 %v4580, %v4579
      %v4604 = vpack.c.bf16 %v4582, %v4581
      %v4605 = vpack.c.bf16 %v4584, %v4583
      %v4606 = vpack.c.bf16 %v4586, %v4585
      %v4607 = vpack.c.bf16 %v4588, %v4587
      %v4608 = vpack.c.bf16 %v4590, %v4589
      %v4609 = vpack.c.bf16 %v4592, %v4591
      %v4610 = vpack.c.bf16 %v4594, %v4593
      %4611 = vst.msk [vmem:[#allocation3 + $0x10] sm:$0xff] %vm1062, %v4595
      %4612 = vst.msk [vmem:[#allocation3 + $0x18] sm:$0xff] %vm1062, %v4596
      %4613 = vst.msk [vmem:[#allocation3 + $0x20] sm:$0xff] %vm1062, %v4597
      %4614 = vst.msk [vmem:[#allocation3 + $0x28] sm:$0xff] %vm1062, %v4598
      %4615 = vst.msk [vmem:[#allocation3 + $0x30] sm:$0xff] %vm1062, %v4599
      %4616 = vst.msk [vmem:[#allocation3 + $0x38] sm:$0xff] %vm1062, %v4600
      %4617 = vst.msk [vmem:[#allocation3 + $0x40] sm:$0xff] %vm1062, %v4601
      %4618 = vst.msk [vmem:[#allocation3 + $0x48] sm:$0xff] %vm1062, %v4602
      %4619 = vst.msk [vmem:[#allocation3 + $0x50] sm:$0xff] %vm1062, %v4603
      %4620 = vst.msk [vmem:[#allocation3 + $0x58] sm:$0xff] %vm1062, %v4604
      %4621 = vst.msk [vmem:[#allocation3 + $0x60] sm:$0xff] %vm1062, %v4605
      %4622 = vst.msk [vmem:[#allocation3 + $0x68] sm:$0xff] %vm1062, %v4606
      %4623 = vst.msk [vmem:[#allocation3 + $0x70] sm:$0xff] %vm1062, %v4607
      %4624 = vst.msk [vmem:[#allocation3 + $0x78] sm:$0xff] %vm1062, %v4608
      %4625 = vst.msk [vmem:[#allocation3 + $0x80] sm:$0xff] %vm1062, %v4609
      %4626 = vst.msk [vmem:[#allocation3 + $0x88] sm:$0xff] %vm1062, %v4610
      %v4627 = vld [vmem:[#allocation3] sm:$0x80]
      %v4628 = vld [vmem:[#allocation3 + $0x8] sm:$0xff]
      %v4629 = vld [vmem:[#allocation3 + $0x10] sm:$0xff]
      %v4630 = vld [vmem:[#allocation3 + $0x18] sm:$0xff]
      %v4631 = vld [vmem:[#allocation3 + $0x20] sm:$0xff]
      %v4632 = vld [vmem:[#allocation3 + $0x28] sm:$0xff]
      %v4633 = vld [vmem:[#allocation3 + $0x30] sm:$0xff]
      %v4634 = vld [vmem:[#allocation3 + $0x38] sm:$0xff]
      %v4635 = vld [vmem:[#allocation3 + $0x40] sm:$0xff]
      %v4636 = vld [vmem:[#allocation3 + $0x48] sm:$0xff]
      %v4637 = vld [vmem:[#allocation3 + $0x50] sm:$0xff]
      %v4638 = vld [vmem:[#allocation3 + $0x58] sm:$0xff]
      %v4639 = vld [vmem:[#allocation3 + $0x60] sm:$0xff]
      %v4640 = vld [vmem:[#allocation3 + $0x68] sm:$0xff]
      %v4641 = vld [vmem:[#allocation3 + $0x70] sm:$0xff]
      %v4642 = vld [vmem:[#allocation3 + $0x78] sm:$0xff]
      %v4643 = vld [vmem:[#allocation3 + $0x80] sm:$0xff]
      %v4644 = vmul.bf16 %v4627, %v1100
      %v4645 = vmul.bf16 %v4628, %v1108
      %v4646 = vmul.bf16 %v4629, %v1116
      %v4647 = vmul.bf16 %v4630, %v1124
      %v4648 = vmul.bf16 %v4631, %v1132
      %v4649 = vmul.bf16 %v4632, %v1140
      %v4650 = vmul.bf16 %v4633, %v1148
      %v4651 = vmul.bf16 %v4634, %v1156
      %v4652 = vmul.bf16 %v4635, %v1164
      %v4653 = vmul.bf16 %v4636, %v1172
      %v4654 = vmul.bf16 %v4637, %v1180
      %v4655 = vmul.bf16 %v4638, %v1188
      %v4656 = vmul.bf16 %v4639, %v1196
      %v4657 = vmul.bf16 %v4640, %v1204
      %v4658 = vmul.bf16 %v4641, %v1212
      %v4659 = vmul.bf16 %v4642, %v1220
      %v4660 = vmul.bf16 %v4643, %v1223
      %v4661 = vld [vmem:[%s4] sm:$0x3]
      %s4662 = scalar_lea.vmem %s4, 2
      %v4663 = vld [vmem:[%s4662] sm:$0x3]
      %v4665 = vsel %vm1062, %v4628, 0
      %v4668 = vsel %vm1062, %v4629, 0
      %v4671 = vsel %vm1062, %v4630, 0
      %v4674 = vsel %vm1062, %v4631, 0
      %v4677 = vsel %vm1062, %v4632, 0
      %v4680 = vsel %vm1062, %v4633, 0
      %v4683 = vsel %vm1062, %v4634, 0
      %v4686 = vsel %vm1062, %v4635, 0
      %v4689 = vsel %vm1062, %v4636, 0
      %v4692 = vsel %vm1062, %v4637, 0
      %v4695 = vsel %vm1062, %v4638, 0
      %v4698 = vsel %vm1062, %v4639, 0
      %v4701 = vsel %vm1062, %v4640, 0
      %v4704 = vsel %vm1062, %v4641, 0
      %v4707 = vsel %vm1062, %v4642, 0
      %v4710 = vsel %vm1062, %v4643, 0
      %v4713 = vsel %vm1309, %v4663, 0
      %4715 = vmatprep.subr.bf16.mxu0 0
      %4716 = vmatpush1.bf16.msra.mxu0 %v4713
      %4717 = vmatprep.subr.bf16.mxu0 0
      %4718 = vmatpush1.bf16.msra.mxu0 0
      %4719 = vmatprep.subr.bf16.mxu0 0
      %4720 = vmatpush1.bf16.msra.mxu0 0
      %4721 = vmatprep.subr.bf16.mxu0 0
      %4722 = vmatpush1.bf16.msra.mxu0 0
      %4723 = vmatprep.subr.bf16.mxu0 0
      %4724 = vmatpush1.bf16.msra.mxu0 0
      %4725 = vmatprep.subr.bf16.mxu0 0
      %4726 = vmatpush1.bf16.msra.mxu0 0
      %4727 = vmatprep.subr.bf16.mxu0 0
      %4728 = vmatpush1.bf16.msra.mxu0 0
      %4729 = vmatprep.subr.bf16.mxu0 0
      %4730 = vmatpush1.bf16.msra.mxu0 0
      %4731 = vmatprep.subr.bf16.mxu0 0
      %4732 = vmatpush1.bf16.msra.mxu0 0
      %4733 = vmatprep.subr.bf16.mxu0 0
      %4734 = vmatpush1.bf16.msra.mxu0 0
      %4735 = vmatprep.subr.bf16.mxu0 0
      %4736 = vmatpush1.bf16.msra.mxu0 0
      %4737 = vmatprep.subr.bf16.mxu0 0
      %4738 = vmatpush1.bf16.msra.mxu0 0
      %4739 = vmatprep.subr.bf16.mxu0 0
      %4740 = vmatpush1.bf16.msra.mxu0 0
      %4741 = vmatprep.subr.bf16.mxu0 0
      %4742 = vmatpush1.bf16.msra.mxu0 0
      %4743 = vmatprep.subr.bf16.mxu0 0
      %4744 = vmatpush1.bf16.msra.mxu0 0
      %4745 = vmatprep.subr.bf16.mxu0 0
      %4746 = vmatpush1.bf16.msra.mxu0 0
      %4747 = vmatprep.mubr.bf16.mxu0 0
      %4748 = vmatmul.mubr.bf16.gmra.mrb[0].mxu0 %v4665
      %v4749 = vpop.f32.mrb[0].mxu0
      %v4750 = vadd.f32 0.0, %v4749
      %v4751 = vpop.f32.mrb[0].mxu0
      %v4752 = vpop.f32.mrb[0].mxu0
      %v4753 = vadd.f32 0.0, %v4752
      %v4754 = vpop.f32.mrb[0].mxu0
      %4755 = vmatprep.mubr.bf16.mxu0 0
      %4756 = vmatmul.mubr.bf16.gmra.mrb[0].mxu0 %v4668
      %v4757 = vpop.f32.mrb[0].mxu0
      %v4758 = vadd.f32 0.0, %v4757
      %v4759 = vpop.f32.mrb[0].mxu0
      %v4760 = vpop.f32.mrb[0].mxu0
      %v4761 = vadd.f32 0.0, %v4760
      %v4762 = vpop.f32.mrb[0].mxu0
      %4763 = vmatprep.mubr.bf16.mxu0 0
      %4764 = vmatmul.mubr.bf16.gmra.mrb[0].mxu0 %v4671
      %v4765 = vpop.f32.mrb[0].mxu0
      %v4766 = vadd.f32 0.0, %v4765
      %v4767 = vpop.f32.mrb[0].mxu0
      %v4768 = vpop.f32.mrb[0].mxu0
      %v4769 = vadd.f32 0.0, %v4768
      %v4770 = vpop.f32.mrb[0].mxu0
      %4771 = vmatprep.mubr.bf16.mxu0 0
      %4772 = vmatmul.mubr.bf16.gmra.mrb[0].mxu0 %v4674
      %v4773 = vpop.f32.mrb[0].mxu0
      %v4774 = vadd.f32 0.0, %v4773
      %v4775 = vpop.f32.mrb[0].mxu0
      %v4776 = vpop.f32.mrb[0].mxu0
      %v4777 = vadd.f32 0.0, %v4776
      %v4778 = vpop.f32.mrb[0].mxu0
      %4779 = vmatprep.mubr.bf16.mxu0 0
      %4780 = vmatmul.mubr.bf16.gmra.mrb[0].mxu0 %v4677
      %v4781 = vpop.f32.mrb[0].mxu0
      %v4782 = vadd.f32 0.0, %v4781
      %v4783 = vpop.f32.mrb[0].mxu0
      %v4784 = vpop.f32.mrb[0].mxu0
      %v4785 = vadd.f32 0.0, %v4784
      %v4786 = vpop.f32.mrb[0].mxu0
      %4787 = vmatprep.mubr.bf16.mxu0 0
      %4788 = vmatmul.mubr.bf16.gmra.mrb[0].mxu0 %v4680
      %v4789 = vpop.f32.mrb[0].mxu0
      %v4790 = vadd.f32 0.0, %v4789
      %v4791 = vpop.f32.mrb[0].mxu0
      %v4792 = vpop.f32.mrb[0].mxu0
      %v4793 = vadd.f32 0.0, %v4792
      %v4794 = vpop.f32.mrb[0].mxu0
      %4795 = vmatprep.mubr.bf16.mxu0 0
      %4796 = vmatmul.mubr.bf16.gmra.mrb[0].mxu0 %v4683
      %v4797 = vpop.f32.mrb[0].mxu0
      %v4798 = vadd.f32 0.0, %v4797
      %v4799 = vpop.f32.mrb[0].mxu0
      %v4800 = vpop.f32.mrb[0].mxu0
      %v4801 = vadd.f32 0.0, %v4800
      %v4802 = vpop.f32.mrb[0].mxu0
      %4803 = vmatprep.mubr.bf16.mxu0 0
      %4804 = vmatmul.mubr.bf16.gmra.mrb[0].mxu0 %v4686
      %v4805 = vpop.f32.mrb[0].mxu0
      %v4806 = vadd.f32 0.0, %v4805
      %v4807 = vpop.f32.mrb[0].mxu0
      %v4808 = vpop.f32.mrb[0].mxu0
      %v4809 = vadd.f32 0.0, %v4808
      %v4810 = vpop.f32.mrb[0].mxu0
      %4811 = vmatprep.mubr.bf16.mxu0 0
      %4812 = vmatmul.mubr.bf16.gmra.mrb[0].mxu0 %v4689
      %v4813 = vpop.f32.mrb[0].mxu0
      %v4814 = vadd.f32 0.0, %v4813
      %v4815 = vpop.f32.mrb[0].mxu0
      %v4816 = vpop.f32.mrb[0].mxu0
      %v4817 = vadd.f32 0.0, %v4816
      %v4818 = vpop.f32.mrb[0].mxu0
      %4819 = vmatprep.mubr.bf16.mxu0 0
      %4820 = vmatmul.mubr.bf16.gmra.mrb[0].mxu0 %v4692
      %v4821 = vpop.f32.mrb[0].mxu0
      %v4822 = vadd.f32 0.0, %v4821
      %v4823 = vpop.f32.mrb[0].mxu0
      %v4824 = vpop.f32.mrb[0].mxu0
      %v4825 = vadd.f32 0.0, %v4824
      %v4826 = vpop.f32.mrb[0].mxu0
      %4827 = vmatprep.mubr.bf16.mxu0 0
      %4828 = vmatmul.mubr.bf16.gmra.mrb[0].mxu0 %v4695
      %v4829 = vpop.f32.mrb[0].mxu0
      %v4830 = vadd.f32 0.0, %v4829
      %v4831 = vpop.f32.mrb[0].mxu0
      %v4832 = vpop.f32.mrb[0].mxu0
      %v4833 = vadd.f32 0.0, %v4832
      %v4834 = vpop.f32.mrb[0].mxu0
      %4835 = vmatprep.mubr.bf16.mxu0 0
      %4836 = vmatmul.mubr.bf16.gmra.mrb[0].mxu0 %v4698
      %v4837 = vpop.f32.mrb[0].mxu0
      %v4838 = vadd.f32 0.0, %v4837
      %v4839 = vpop.f32.mrb[0].mxu0
      %v4840 = vpop.f32.mrb[0].mxu0
      %v4841 = vadd.f32 0.0, %v4840
      %v4842 = vpop.f32.mrb[0].mxu0
      %4843 = vmatprep.mubr.bf16.mxu0 0
      %4844 = vmatmul.mubr.bf16.gmra.mrb[0].mxu0 %v4701
      %v4845 = vpop.f32.mrb[0].mxu0
      %v4846 = vadd.f32 0.0, %v4845
      %v4847 = vpop.f32.mrb[0].mxu0
      %v4848 = vpop.f32.mrb[0].mxu0
      %v4849 = vadd.f32 0.0, %v4848
      %v4850 = vpop.f32.mrb[0].mxu0
      %4851 = vmatprep.mubr.bf16.mxu0 0
      %4852 = vmatmul.mubr.bf16.gmra.mrb[0].mxu0 %v4704
      %v4853 = vpop.f32.mrb[0].mxu0
      %v4854 = vadd.f32 0.0, %v4853
      %v4855 = vpop.f32.mrb[0].mxu0
      %v4856 = vpop.f32.mrb[0].mxu0
      %v4857 = vadd.f32 0.0, %v4856
      %v4858 = vpop.f32.mrb[0].mxu0
      %4859 = vmatprep.mubr.bf16.mxu0 0
      %4860 = vmatmul.mubr.bf16.gmra.mrb[0].mxu0 %v4707
      %v4861 = vpop.f32.mrb[0].mxu0
      %v4862 = vadd.f32 0.0, %v4861
      %v4863 = vpop.f32.mrb[0].mxu0
      %v4864 = vpop.f32.mrb[0].mxu0
      %v4865 = vadd.f32 0.0, %v4864
      %v4866 = vpop.f32.mrb[0].mxu0
      %4867 = vmatprep.mubr.bf16.mxu0 0
      %4868 = vmatmul.mubr.bf16.gmra.mrb[0].mxu0 %v4710
      %v4869 = vpop.f32.mrb[0].mxu0
      %v4870 = vadd.f32 0.0, %v4869
      %v4871 = vpop.f32.mrb[0].mxu0
      %v4872 = vpop.f32.mrb[0].mxu0
      %v4873 = vadd.f32 0.0, %v4872
      %v4874 = vpop.f32.mrb[0].mxu0
      %4875 = vdwg.mxu0
      %v4877 = vshrl.u32 %v4644, 16
      %v4879 = vrot.slane %v4877, 7
      %v4881 = vshrl.u32 %v4645, 16
      %v4883 = vrot.slane %v4881, 7
      %v4884 = vshll.u32 %v4645, 16
      %v4886 = vor.u32 %v4883, %v4884
      %v4887 = vsel %vm1474, %v4879, %v4886
      %v4889 = vshrl.u32 %v4646, 16
      %v4891 = vrot.slane %v4889, 7
      %v4892 = vshll.u32 %v4646, 16
      %v4894 = vor.u32 %v4891, %v4892
      %v4895 = vsel %vm1474, %v4883, %v4894
      %v4897 = vshrl.u32 %v4647, 16
      %v4899 = vrot.slane %v4897, 7
      %v4900 = vshll.u32 %v4647, 16
      %v4902 = vor.u32 %v4899, %v4900
      %v4903 = vsel %vm1474, %v4891, %v4902
      %v4905 = vshrl.u32 %v4648, 16
      %v4907 = vrot.slane %v4905, 7
      %v4908 = vshll.u32 %v4648, 16
      %v4910 = vor.u32 %v4907, %v4908
      %v4911 = vsel %vm1474, %v4899, %v4910
      %v4913 = vshrl.u32 %v4649, 16
      %v4915 = vrot.slane %v4913, 7
      %v4916 = vshll.u32 %v4649, 16
      %v4918 = vor.u32 %v4915, %v4916
      %v4919 = vsel %vm1474, %v4907, %v4918
      %v4921 = vshrl.u32 %v4650, 16
      %v4923 = vrot.slane %v4921, 7
      %v4924 = vshll.u32 %v4650, 16
      %v4926 = vor.u32 %v4923, %v4924
      %v4927 = vsel %vm1474, %v4915, %v4926
      %v4929 = vshrl.u32 %v4651, 16
      %v4931 = vrot.slane %v4929, 7
      %v4932 = vshll.u32 %v4651, 16
      %v4934 = vor.u32 %v4931, %v4932
      %v4935 = vsel %vm1474, %v4923, %v4934
      %v4937 = vshrl.u32 %v4652, 16
      %v4939 = vrot.slane %v4937, 7
      %v4940 = vshll.u32 %v4652, 16
      %v4942 = vor.u32 %v4939, %v4940
      %v4943 = vsel %vm1474, %v4931, %v4942
      %v4945 = vshrl.u32 %v4653, 16
      %v4947 = vrot.slane %v4945, 7
      %v4948 = vshll.u32 %v4653, 16
      %v4950 = vor.u32 %v4947, %v4948
      %v4951 = vsel %vm1474, %v4939, %v4950
      %v4953 = vshrl.u32 %v4654, 16
      %v4955 = vrot.slane %v4953, 7
      %v4956 = vshll.u32 %v4654, 16
      %v4958 = vor.u32 %v4955, %v4956
      %v4959 = vsel %vm1474, %v4947, %v4958
      %v4961 = vshrl.u32 %v4655, 16
      %v4963 = vrot.slane %v4961, 7
      %v4964 = vshll.u32 %v4655, 16
      %v4966 = vor.u32 %v4963, %v4964
      %v4967 = vsel %vm1474, %v4955, %v4966
      %v4969 = vshrl.u32 %v4656, 16
      %v4971 = vrot.slane %v4969, 7
      %v4972 = vshll.u32 %v4656, 16
      %v4974 = vor.u32 %v4971, %v4972
      %v4975 = vsel %vm1474, %v4963, %v4974
      %v4977 = vshrl.u32 %v4657, 16
      %v4979 = vrot.slane %v4977, 7
      %v4980 = vshll.u32 %v4657, 16
      %v4982 = vor.u32 %v4979, %v4980
      %v4983 = vsel %vm1474, %v4971, %v4982
      %v4985 = vshrl.u32 %v4658, 16
      %v4987 = vrot.slane %v4985, 7
      %v4988 = vshll.u32 %v4658, 16
      %v4990 = vor.u32 %v4987, %v4988
      %v4991 = vsel %vm1474, %v4979, %v4990
      %v4993 = vshrl.u32 %v4659, 16
      %v4995 = vrot.slane %v4993, 7
      %v4996 = vshll.u32 %v4659, 16
      %v4998 = vor.u32 %v4995, %v4996
      %v4999 = vsel %vm1474, %v4987, %v4998
      %v5001 = vshrl.u32 %v4660, 16
      %v5003 = vrot.slane %v5001, 7
      %v5004 = vshll.u32 %v4660, 16
      %v5006 = vor.u32 %v5003, %v5004
      %v5007 = vsel %vm1474, %v4995, %v5006
      %v5009 = vsel %vm1062, %v4887, 0
      %v5012 = vsel %vm1062, %v4895, 0
      %v5015 = vsel %vm1062, %v4903, 0
      %v5018 = vsel %vm1062, %v4911, 0
      %v5021 = vsel %vm1062, %v4919, 0
      %v5024 = vsel %vm1062, %v4927, 0
      %v5027 = vsel %vm1062, %v4935, 0
      %v5030 = vsel %vm1062, %v4943, 0
      %v5033 = vsel %vm1062, %v4951, 0
      %v5036 = vsel %vm1062, %v4959, 0
      %v5039 = vsel %vm1062, %v4967, 0
      %v5042 = vsel %vm1062, %v4975, 0
      %v5045 = vsel %vm1062, %v4983, 0
      %v5048 = vsel %vm1062, %v4991, 0
      %v5051 = vsel %vm1062, %v4999, 0
      %v5054 = vsel %vm1062, %v5007, 0
      %v5057 = vsel %vm1309, %v4661, 0
      %5059 = vmatprep.subr.bf16.mxu0 0
      %5060 = vmatpush1.bf16.msra.mxu0 %v5057
      %5061 = vmatprep.subr.bf16.mxu0 0
      %5062 = vmatpush1.bf16.msra.mxu0 0
      %5063 = vmatprep.subr.bf16.mxu0 0
      %5064 = vmatpush1.bf16.msra.mxu0 0
      %5065 = vmatprep.subr.bf16.mxu0 0
      %5066 = vmatpush1.bf16.msra.mxu0 0
      %5067 = vmatprep.subr.bf16.mxu0 0
      %5068 = vmatpush1.bf16.msra.mxu0 0
      %5069 = vmatprep.subr.bf16.mxu0 0
      %5070 = vmatpush1.bf16.msra.mxu0 0
      %5071 = vmatprep.subr.bf16.mxu0 0
      %5072 = vmatpush1.bf16.msra.mxu0 0
      %5073 = vmatprep.subr.bf16.mxu0 0
      %5074 = vmatpush1.bf16.msra.mxu0 0
      %5075 = vmatprep.subr.bf16.mxu0 0
      %5076 = vmatpush1.bf16.msra.mxu0 0
      %5077 = vmatprep.subr.bf16.mxu0 0
      %5078 = vmatpush1.bf16.msra.mxu0 0
      %5079 = vmatprep.subr.bf16.mxu0 0
      %5080 = vmatpush1.bf16.msra.mxu0 0
      %5081 = vmatprep.subr.bf16.mxu0 0
      %5082 = vmatpush1.bf16.msra.mxu0 0
      %5083 = vmatprep.subr.bf16.mxu0 0
      %5084 = vmatpush1.bf16.msra.mxu0 0
      %5085 = vmatprep.subr.bf16.mxu0 0
      %5086 = vmatpush1.bf16.msra.mxu0 0
      %5087 = vmatprep.subr.bf16.mxu0 0
      %5088 = vmatpush1.bf16.msra.mxu0 0
      %5089 = vmatprep.subr.bf16.mxu0 0
      %5090 = vmatpush1.bf16.msra.mxu0 0
      %5091 = vmatprep.mubr.bf16.mxu0 0
      %5092 = vmatmul.mubr.bf16.gmra.mrb[0].mxu0 %v5009
      %v5093 = vpop.f32.mrb[0].mxu0
      %v5094 = vadd.f32 %v4750, %v5093
      %v5095 = vpop.f32.mrb[0].mxu0
      %v5096 = vpop.f32.mrb[0].mxu0
      %v5097 = vadd.f32 %v4753, %v5096
      %v5098 = vpop.f32.mrb[0].mxu0
      %5099 = vmatprep.mubr.bf16.mxu0 0
      %5100 = vmatmul.mubr.bf16.gmra.mrb[0].mxu0 %v5012
      %v5101 = vpop.f32.mrb[0].mxu0
      %v5102 = vadd.f32 %v4758, %v5101
      %v5103 = vpop.f32.mrb[0].mxu0
      %v5104 = vpop.f32.mrb[0].mxu0
      %v5105 = vadd.f32 %v4761, %v5104
      %v5106 = vpop.f32.mrb[0].mxu0
      %5107 = vmatprep.mubr.bf16.mxu0 0
      %5108 = vmatmul.mubr.bf16.gmra.mrb[0].mxu0 %v5015
      %v5109 = vpop.f32.mrb[0].mxu0
      %v5110 = vadd.f32 %v4766, %v5109
      %v5111 = vpop.f32.mrb[0].mxu0
      %v5112 = vpop.f32.mrb[0].mxu0
      %v5113 = vadd.f32 %v4769, %v5112
      %v5114 = vpop.f32.mrb[0].mxu0
      %5115 = vmatprep.mubr.bf16.mxu0 0
      %5116 = vmatmul.mubr.bf16.gmra.mrb[0].mxu0 %v5018
      %v5117 = vpop.f32.mrb[0].mxu0
      %v5118 = vadd.f32 %v4774, %v5117
      %v5119 = vpop.f32.mrb[0].mxu0
      %v5120 = vpop.f32.mrb[0].mxu0
      %v5121 = vadd.f32 %v4777, %v5120
      %v5122 = vpop.f32.mrb[0].mxu0
      %5123 = vmatprep.mubr.bf16.mxu0 0
      %5124 = vmatmul.mubr.bf16.gmra.mrb[0].mxu0 %v5021
      %v5125 = vpop.f32.mrb[0].mxu0
      %v5126 = vadd.f32 %v4782, %v5125
      %v5127 = vpop.f32.mrb[0].mxu0
      %v5128 = vpop.f32.mrb[0].mxu0
      %v5129 = vadd.f32 %v4785, %v5128
      %v5130 = vpop.f32.mrb[0].mxu0
      %5131 = vmatprep.mubr.bf16.mxu0 0
      %5132 = vmatmul.mubr.bf16.gmra.mrb[0].mxu0 %v5024
      %v5133 = vpop.f32.mrb[0].mxu0
      %v5134 = vadd.f32 %v4790, %v5133
      %v5135 = vpop.f32.mrb[0].mxu0
      %v5136 = vpop.f32.mrb[0].mxu0
      %v5137 = vadd.f32 %v4793, %v5136
      %v5138 = vpop.f32.mrb[0].mxu0
      %5139 = vmatprep.mubr.bf16.mxu0 0
      %5140 = vmatmul.mubr.bf16.gmra.mrb[0].mxu0 %v5027
      %v5141 = vpop.f32.mrb[0].mxu0
      %v5142 = vadd.f32 %v4798, %v5141
      %v5143 = vpop.f32.mrb[0].mxu0
      %v5144 = vpop.f32.mrb[0].mxu0
      %v5145 = vadd.f32 %v4801, %v5144
      %v5146 = vpop.f32.mrb[0].mxu0
      %5147 = vmatprep.mubr.bf16.mxu0 0
      %5148 = vmatmul.mubr.bf16.gmra.mrb[0].mxu0 %v5030
      %v5149 = vpop.f32.mrb[0].mxu0
      %v5150 = vadd.f32 %v4806, %v5149
      %v5151 = vpop.f32.mrb[0].mxu0
      %v5152 = vpop.f32.mrb[0].mxu0
      %v5153 = vadd.f32 %v4809, %v5152
      %v5154 = vpop.f32.mrb[0].mxu0
      %5155 = vmatprep.mubr.bf16.mxu0 0
      %5156 = vmatmul.mubr.bf16.gmra.mrb[0].mxu0 %v5033
      %v5157 = vpop.f32.mrb[0].mxu0
      %v5158 = vadd.f32 %v4814, %v5157
      %v5159 = vpop.f32.mrb[0].mxu0
      %v5160 = vpop.f32.mrb[0].mxu0
      %v5161 = vadd.f32 %v4817, %v5160
      %v5162 = vpop.f32.mrb[0].mxu0
      %5163 = vmatprep.mubr.bf16.mxu0 0
      %5164 = vmatmul.mubr.bf16.gmra.mrb[0].mxu0 %v5036
      %v5165 = vpop.f32.mrb[0].mxu0
      %v5166 = vadd.f32 %v4822, %v5165
      %v5167 = vpop.f32.mrb[0].mxu0
      %v5168 = vpop.f32.mrb[0].mxu0
      %v5169 = vadd.f32 %v4825, %v5168
      %v5170 = vpop.f32.mrb[0].mxu0
      %5171 = vmatprep.mubr.bf16.mxu0 0
      %5172 = vmatmul.mubr.bf16.gmra.mrb[0].mxu0 %v5039
      %v5173 = vpop.f32.mrb[0].mxu0
      %v5174 = vadd.f32 %v4830, %v5173
      %v5175 = vpop.f32.mrb[0].mxu0
      %v5176 = vpop.f32.mrb[0].mxu0
      %v5177 = vadd.f32 %v4833, %v5176
      %v5178 = vpop.f32.mrb[0].mxu0
      %5179 = vmatprep.mubr.bf16.mxu0 0
      %5180 = vmatmul.mubr.bf16.gmra.mrb[0].mxu0 %v5042
      %v5181 = vpop.f32.mrb[0].mxu0
      %v5182 = vadd.f32 %v4838, %v5181
      %v5183 = vpop.f32.mrb[0].mxu0
      %v5184 = vpop.f32.mrb[0].mxu0
      %v5185 = vadd.f32 %v4841, %v5184
      %v5186 = vpop.f32.mrb[0].mxu0
      %5187 = vmatprep.mubr.bf16.mxu0 0
      %5188 = vmatmul.mubr.bf16.gmra.mrb[0].mxu0 %v5045
      %v5189 = vpop.f32.mrb[0].mxu0
      %v5190 = vadd.f32 %v4846, %v5189
      %v5191 = vpop.f32.mrb[0].mxu0
      %v5192 = vpop.f32.mrb[0].mxu0
      %v5193 = vadd.f32 %v4849, %v5192
      %v5194 = vpop.f32.mrb[0].mxu0
      %5195 = vmatprep.mubr.bf16.mxu0 0
      %5196 = vmatmul.mubr.bf16.gmra.mrb[0].mxu0 %v5048
      %v5197 = vpop.f32.mrb[0].mxu0
      %v5198 = vadd.f32 %v4854, %v5197
      %v5199 = vpop.f32.mrb[0].mxu0
      %v5200 = vpop.f32.mrb[0].mxu0
      %v5201 = vadd.f32 %v4857, %v5200
      %v5202 = vpop.f32.mrb[0].mxu0
      %5203 = vmatprep.mubr.bf16.mxu0 0
      %5204 = vmatmul.mubr.bf16.gmra.mrb[0].mxu0 %v5051
      %v5205 = vpop.f32.mrb[0].mxu0
      %v5206 = vadd.f32 %v4862, %v5205
      %v5207 = vpop.f32.mrb[0].mxu0
      %v5208 = vpop.f32.mrb[0].mxu0
      %v5209 = vadd.f32 %v4865, %v5208
      %v5210 = vpop.f32.mrb[0].mxu0
      %5211 = vmatprep.mubr.bf16.mxu0 0
      %5212 = vmatmul.mubr.bf16.gmra.mrb[0].mxu0 %v5054
      %v5213 = vpop.f32.mrb[0].mxu0
      %v5214 = vadd.f32 %v4870, %v5213
      %v5215 = vpop.f32.mrb[0].mxu0
      %v5216 = vpop.f32.mrb[0].mxu0
      %v5217 = vadd.f32 %v4873, %v5216
      %v5218 = vpop.f32.mrb[0].mxu0
      %5219 = vdwg.mxu0
      %v5220 = vld [vmem:[#allocation3 + $0x8] sm:$0xff]
      %v5221 = vld [vmem:[#allocation3 + $0x10] sm:$0xff]
      %v5222 = vld [vmem:[#allocation3 + $0x18] sm:$0xff]
      %v5223 = vld [vmem:[#allocation3 + $0x20] sm:$0xff]
      %v5224 = vld [vmem:[#allocation3 + $0x28] sm:$0xff]
      %v5225 = vld [vmem:[#allocation3 + $0x30] sm:$0xff]
      %v5226 = vld [vmem:[#allocation3 + $0x38] sm:$0xff]
      %v5227 = vld [vmem:[#allocation3 + $0x40] sm:$0xff]
      %v5228 = vld [vmem:[#allocation3 + $0x48] sm:$0xff]
      %v5229 = vld [vmem:[#allocation3 + $0x50] sm:$0xff]
      %v5230 = vld [vmem:[#allocation3 + $0x58] sm:$0xff]
      %v5231 = vld [vmem:[#allocation3 + $0x60] sm:$0xff]
      %v5232 = vld [vmem:[#allocation3 + $0x68] sm:$0xff]
      %v5233 = vld [vmem:[#allocation3 + $0x70] sm:$0xff]
      %v5234 = vld [vmem:[#allocation3 + $0x78] sm:$0xff]
      %v5235 = vld [vmem:[#allocation3 + $0x80] sm:$0xff]
      %v5236 = vld [vmem:[#allocation3 + $0x88] sm:$0x1]
      %v5237 = vmul.bf16 %v5220, %v1842
      %v5238 = vmul.bf16 %v5221, %v1850
      %v5239 = vmul.bf16 %v5222, %v1858
      %v5240 = vmul.bf16 %v5223, %v1866
      %v5241 = vmul.bf16 %v5224, %v1874
      %v5242 = vmul.bf16 %v5225, %v1882
      %v5243 = vmul.bf16 %v5226, %v1890
      %v5244 = vmul.bf16 %v5227, %v1898
      %v5245 = vmul.bf16 %v5228, %v1906
      %v5246 = vmul.bf16 %v5229, %v1914
      %v5247 = vmul.bf16 %v5230, %v1922
      %v5248 = vmul.bf16 %v5231, %v1930
      %v5249 = vmul.bf16 %v5232, %v1938
      %v5250 = vmul.bf16 %v5233, %v1946
      %v5251 = vmul.bf16 %v5234, %v1954
      %v5252 = vmul.bf16 %v5235, %v1962
      %v5253 = vmul.bf16 %v5236, %v1958
      %s5254 = scalar_lea.vmem %s4, 4
      %v5255 = vld [vmem:[%s5254] sm:$0x3]
      %v5257 = vshrl.u32 %v5237, 16
      %v5259 = vshll.u32 %v5237, 16
      %v5261 = vrot.slane %v5259, 1
      %v5262 = vor.u32 %v5257, %v5261
      %v5264 = vshll.u32 %v5238, 16
      %v5266 = vrot.slane %v5264, 1
      %v5267 = vsel %vm1096, %v5262, %v5266
      %v5268 = vshrl.u32 %v5238, 16
      %v5270 = vor.u32 %v5268, %v5266
      %v5272 = vshll.u32 %v5239, 16
      %v5274 = vrot.slane %v5272, 1
      %v5275 = vsel %vm1096, %v5270, %v5274
      %v5276 = vshrl.u32 %v5239, 16
      %v5278 = vor.u32 %v5276, %v5274
      %v5280 = vshll.u32 %v5240, 16
      %v5282 = vrot.slane %v5280, 1
      %v5283 = vsel %vm1096, %v5278, %v5282
      %v5284 = vshrl.u32 %v5240, 16
      %v5286 = vor.u32 %v5284, %v5282
      %v5288 = vshll.u32 %v5241, 16
      %v5290 = vrot.slane %v5288, 1
      %v5291 = vsel %vm1096, %v5286, %v5290
      %v5292 = vshrl.u32 %v5241, 16
      %v5294 = vor.u32 %v5292, %v5290
      %v5296 = vshll.u32 %v5242, 16
      %v5298 = vrot.slane %v5296, 1
      %v5299 = vsel %vm1096, %v5294, %v5298
      %v5300 = vshrl.u32 %v5242, 16
      %v5302 = vor.u32 %v5300, %v5298
      %v5304 = vshll.u32 %v5243, 16
      %v5306 = vrot.slane %v5304, 1
      %v5307 = vsel %vm1096, %v5302, %v5306
      %v5308 = vshrl.u32 %v5243, 16
      %v5310 = vor.u32 %v5308, %v5306
      %v5312 = vshll.u32 %v5244, 16
      %v5314 = vrot.slane %v5312, 1
      %v5315 = vsel %vm1096, %v5310, %v5314
      %v5316 = vshrl.u32 %v5244, 16
      %v5318 = vor.u32 %v5316, %v5314
      %v5320 = vshll.u32 %v5245, 16
      %v5322 = vrot.slane %v5320, 1
      %v5323 = vsel %vm1096, %v5318, %v5322
      %v5324 = vshrl.u32 %v5245, 16
      %v5326 = vor.u32 %v5324, %v5322
      %v5328 = vshll.u32 %v5246, 16
      %v5330 = vrot.slane %v5328, 1
      %v5331 = vsel %vm1096, %v5326, %v5330
      %v5332 = vshrl.u32 %v5246, 16
      %v5334 = vor.u32 %v5332, %v5330
      %v5336 = vshll.u32 %v5247, 16
      %v5338 = vrot.slane %v5336, 1
      %v5339 = vsel %vm1096, %v5334, %v5338
      %v5340 = vshrl.u32 %v5247, 16
      %v5342 = vor.u32 %v5340, %v5338
      %v5344 = vshll.u32 %v5248, 16
      %v5346 = vrot.slane %v5344, 1
      %v5347 = vsel %vm1096, %v5342, %v5346
      %v5348 = vshrl.u32 %v5248, 16
      %v5350 = vor.u32 %v5348, %v5346
      %v5352 = vshll.u32 %v5249, 16
      %v5354 = vrot.slane %v5352, 1
      %v5355 = vsel %vm1096, %v5350, %v5354
      %v5356 = vshrl.u32 %v5249, 16
      %v5358 = vor.u32 %v5356, %v5354
      %v5360 = vshll.u32 %v5250, 16
      %v5362 = vrot.slane %v5360, 1
      %v5363 = vsel %vm1096, %v5358, %v5362
      %v5364 = vshrl.u32 %v5250, 16
      %v5366 = vor.u32 %v5364, %v5362
      %v5368 = vshll.u32 %v5251, 16
      %v5370 = vrot.slane %v5368, 1
      %v5371 = vsel %vm1096, %v5366, %v5370
      %v5372 = vshrl.u32 %v5251, 16
      %v5374 = vor.u32 %v5372, %v5370
      %v5376 = vshll.u32 %v5252, 16
      %v5378 = vrot.slane %v5376, 1
      %v5379 = vsel %vm1096, %v5374, %v5378
      %v5380 = vshrl.u32 %v5252, 16
      %v5382 = vor.u32 %v5380, %v5378
      %v5384 = vshll.u32 %v5253, 16
      %v5386 = vrot.slane %v5384, 1
      %v5387 = vsel %vm1096, %v5382, %v5386
      %v5389 = vsel %vm1062, %v5267, 0
      %v5392 = vsel %vm1062, %v5275, 0
      %v5395 = vsel %vm1062, %v5283, 0
      %v5398 = vsel %vm1062, %v5291, 0
      %v5401 = vsel %vm1062, %v5299, 0
      %v5404 = vsel %vm1062, %v5307, 0
      %v5407 = vsel %vm1062, %v5315, 0
      %v5410 = vsel %vm1062, %v5323, 0
      %v5413 = vsel %vm1062, %v5331, 0
      %v5416 = vsel %vm1062, %v5339, 0
      %v5419 = vsel %vm1062, %v5347, 0
      %v5422 = vsel %vm1062, %v5355, 0
      %v5425 = vsel %vm1062, %v5363, 0
      %v5428 = vsel %vm1062, %v5371, 0
      %v5431 = vsel %vm1062, %v5379, 0
      %v5434 = vsel %vm1062, %v5387, 0
      %v5437 = vsel %vm1309, %v5255, 0
      %5439 = vmatprep.subr.bf16.mxu0 0
      %5440 = vmatpush1.bf16.msra.mxu0 %v5437
      %5441 = vmatprep.subr.bf16.mxu0 0
      %5442 = vmatpush1.bf16.msra.mxu0 0
      %5443 = vmatprep.subr.bf16.mxu0 0
      %5444 = vmatpush1.bf16.msra.mxu0 0
      %5445 = vmatprep.subr.bf16.mxu0 0
      %5446 = vmatpush1.bf16.msra.mxu0 0
      %5447 = vmatprep.subr.bf16.mxu0 0
      %5448 = vmatpush1.bf16.msra.mxu0 0
      %5449 = vmatprep.subr.bf16.mxu0 0
      %5450 = vmatpush1.bf16.msra.mxu0 0
      %5451 = vmatprep.subr.bf16.mxu0 0
      %5452 = vmatpush1.bf16.msra.mxu0 0
      %5453 = vmatprep.subr.bf16.mxu0 0
      %5454 = vmatpush1.bf16.msra.mxu0 0
      %5455 = vmatprep.subr.bf16.mxu0 0
      %5456 = vmatpush1.bf16.msra.mxu0 0
      %5457 = vmatprep.subr.bf16.mxu0 0
      %5458 = vmatpush1.bf16.msra.mxu0 0
      %5459 = vmatprep.subr.bf16.mxu0 0
      %5460 = vmatpush1.bf16.msra.mxu0 0
      %5461 = vmatprep.subr.bf16.mxu0 0
      %5462 = vmatpush1.bf16.msra.mxu0 0
      %5463 = vmatprep.subr.bf16.mxu0 0
      %5464 = vmatpush1.bf16.msra.mxu0 0
      %5465 = vmatprep.subr.bf16.mxu0 0
      %5466 = vmatpush1.bf16.msra.mxu0 0
      %5467 = vmatprep.subr.bf16.mxu0 0
      %5468 = vmatpush1.bf16.msra.mxu0 0
      %5469 = vmatprep.subr.bf16.mxu0 0
      %5470 = vmatpush1.bf16.msra.mxu0 0
      %5471 = vmatprep.mubr.bf16.mxu0 0
      %5472 = vmatmul.mubr.bf16.gmra.mrb[0].mxu0 %v5389
      %v5473 = vpop.f32.mrb[0].mxu0
      %v5474 = vadd.f32 0.0, %v5473
      %v5475 = vpop.f32.mrb[0].mxu0
      %v5476 = vpop.f32.mrb[0].mxu0
      %v5477 = vadd.f32 0.0, %v5476
      %v5478 = vpop.f32.mrb[0].mxu0
      %5479 = vmatprep.mubr.bf16.mxu0 0
      %5480 = vmatmul.mubr.bf16.gmra.mrb[0].mxu0 %v5392
      %v5481 = vpop.f32.mrb[0].mxu0
      %v5482 = vadd.f32 0.0, %v5481
      %v5483 = vpop.f32.mrb[0].mxu0
      %v5484 = vpop.f32.mrb[0].mxu0
      %v5485 = vadd.f32 0.0, %v5484
      %v5486 = vpop.f32.mrb[0].mxu0
      %5487 = vmatprep.mubr.bf16.mxu0 0
      %5488 = vmatmul.mubr.bf16.gmra.mrb[0].mxu0 %v5395
      %v5489 = vpop.f32.mrb[0].mxu0
      %v5490 = vadd.f32 0.0, %v5489
      %v5491 = vpop.f32.mrb[0].mxu0
      %v5492 = vpop.f32.mrb[0].mxu0
      %v5493 = vadd.f32 0.0, %v5492
      %v5494 = vpop.f32.mrb[0].mxu0
      %5495 = vmatprep.mubr.bf16.mxu0 0
      %5496 = vmatmul.mubr.bf16.gmra.mrb[0].mxu0 %v5398
      %v5497 = vpop.f32.mrb[0].mxu0
      %v5498 = vadd.f32 0.0, %v5497
      %v5499 = vpop.f32.mrb[0].mxu0
      %v5500 = vpop.f32.mrb[0].mxu0
      %v5501 = vadd.f32 0.0, %v5500
      %v5502 = vpop.f32.mrb[0].mxu0
      %5503 = vmatprep.mubr.bf16.mxu0 0
      %5504 = vmatmul.mubr.bf16.gmra.mrb[0].mxu0 %v5401
      %v5505 = vpop.f32.mrb[0].mxu0
      %v5506 = vadd.f32 0.0, %v5505
      %v5507 = vpop.f32.mrb[0].mxu0
      %v5508 = vpop.f32.mrb[0].mxu0
      %v5509 = vadd.f32 0.0, %v5508
      %v5510 = vpop.f32.mrb[0].mxu0
      %5511 = vmatprep.mubr.bf16.mxu0 0
      %5512 = vmatmul.mubr.bf16.gmra.mrb[0].mxu0 %v5404
      %v5513 = vpop.f32.mrb[0].mxu0
      %v5514 = vadd.f32 0.0, %v5513
      %v5515 = vpop.f32.mrb[0].mxu0
      %v5516 = vpop.f32.mrb[0].mxu0
      %v5517 = vadd.f32 0.0, %v5516
      %v5518 = vpop.f32.mrb[0].mxu0
      %5519 = vmatprep.mubr.bf16.mxu0 0
      %5520 = vmatmul.mubr.bf16.gmra.mrb[0].mxu0 %v5407
      %v5521 = vpop.f32.mrb[0].mxu0
      %v5522 = vadd.f32 0.0, %v5521
      %v5523 = vpop.f32.mrb[0].mxu0
      %v5524 = vpop.f32.mrb[0].mxu0
      %v5525 = vadd.f32 0.0, %v5524
      %v5526 = vpop.f32.mrb[0].mxu0
      %5527 = vmatprep.mubr.bf16.mxu0 0
      %5528 = vmatmul.mubr.bf16.gmra.mrb[0].mxu0 %v5410
      %v5529 = vpop.f32.mrb[0].mxu0
      %v5530 = vadd.f32 0.0, %v5529
      %v5531 = vpop.f32.mrb[0].mxu0
      %v5532 = vpop.f32.mrb[0].mxu0
      %v5533 = vadd.f32 0.0, %v5532
      %v5534 = vpop.f32.mrb[0].mxu0
      %5535 = vmatprep.mubr.bf16.mxu0 0
      %5536 = vmatmul.mubr.bf16.gmra.mrb[0].mxu0 %v5413
      %v5537 = vpop.f32.mrb[0].mxu0
      %v5538 = vadd.f32 0.0, %v5537
      %v5539 = vpop.f32.mrb[0].mxu0
      %v5540 = vpop.f32.mrb[0].mxu0
      %v5541 = vadd.f32 0.0, %v5540
      %v5542 = vpop.f32.mrb[0].mxu0
      %5543 = vmatprep.mubr.bf16.mxu0 0
      %5544 = vmatmul.mubr.bf16.gmra.mrb[0].mxu0 %v5416
      %v5545 = vpop.f32.mrb[0].mxu0
      %v5546 = vadd.f32 0.0, %v5545
      %v5547 = vpop.f32.mrb[0].mxu0
      %v5548 = vpop.f32.mrb[0].mxu0
      %v5549 = vadd.f32 0.0, %v5548
      %v5550 = vpop.f32.mrb[0].mxu0
      %5551 = vmatprep.mubr.bf16.mxu0 0
      %5552 = vmatmul.mubr.bf16.gmra.mrb[0].mxu0 %v5419
      %v5553 = vpop.f32.mrb[0].mxu0
      %v5554 = vadd.f32 0.0, %v5553
      %v5555 = vpop.f32.mrb[0].mxu0
      %v5556 = vpop.f32.mrb[0].mxu0
      %v5557 = vadd.f32 0.0, %v5556
      %v5558 = vpop.f32.mrb[0].mxu0
      %5559 = vmatprep.mubr.bf16.mxu0 0
      %5560 = vmatmul.mubr.bf16.gmra.mrb[0].mxu0 %v5422
      %v5561 = vpop.f32.mrb[0].mxu0
      %v5562 = vadd.f32 0.0, %v5561
      %v5563 = vpop.f32.mrb[0].mxu0
      %v5564 = vpop.f32.mrb[0].mxu0
      %v5565 = vadd.f32 0.0, %v5564
      %v5566 = vpop.f32.mrb[0].mxu0
      %5567 = vmatprep.mubr.bf16.mxu0 0
      %5568 = vmatmul.mubr.bf16.gmra.mrb[0].mxu0 %v5425
      %v5569 = vpop.f32.mrb[0].mxu0
      %v5570 = vadd.f32 0.0, %v5569
      %v5571 = vpop.f32.mrb[0].mxu0
      %v5572 = vpop.f32.mrb[0].mxu0
      %v5573 = vadd.f32 0.0, %v5572
      %v5574 = vpop.f32.mrb[0].mxu0
      %5575 = vmatprep.mubr.bf16.mxu0 0
      %5576 = vmatmul.mubr.bf16.gmra.mrb[0].mxu0 %v5428
      %v5577 = vpop.f32.mrb[0].mxu0
      %v5578 = vadd.f32 0.0, %v5577
      %v5579 = vpop.f32.mrb[0].mxu0
      %v5580 = vpop.f32.mrb[0].mxu0
      %v5581 = vadd.f32 0.0, %v5580
      %v5582 = vpop.f32.mrb[0].mxu0
      %5583 = vmatprep.mubr.bf16.mxu0 0
      %5584 = vmatmul.mubr.bf16.gmra.mrb[0].mxu0 %v5431
      %v5585 = vpop.f32.mrb[0].mxu0
      %v5586 = vadd.f32 0.0, %v5585
      %v5587 = vpop.f32.mrb[0].mxu0
      %v5588 = vpop.f32.mrb[0].mxu0
      %v5589 = vadd.f32 0.0, %v5588
      %v5590 = vpop.f32.mrb[0].mxu0
      %5591 = vmatprep.mubr.bf16.mxu0 0
      %5592 = vmatmul.mubr.bf16.gmra.mrb[0].mxu0 %v5434
      %v5593 = vpop.f32.mrb[0].mxu0
      %v5594 = vadd.f32 0.0, %v5593
      %v5595 = vpop.f32.mrb[0].mxu0
      %v5596 = vpop.f32.mrb[0].mxu0
      %v5597 = vadd.f32 0.0, %v5596
      %v5598 = vpop.f32.mrb[0].mxu0
      %5599 = vdwg.mxu0
      %v5600 = vadd.f32 %v5094, %v5474
      %v5601 = vadd.f32 %v5097, %v5477
      %v5602 = vadd.f32 %v5102, %v5482
      %v5603 = vadd.f32 %v5105, %v5485
      %v5604 = vadd.f32 %v5110, %v5490
      %v5605 = vadd.f32 %v5113, %v5493
      %v5606 = vadd.f32 %v5118, %v5498
      %v5607 = vadd.f32 %v5121, %v5501
      %v5608 = vadd.f32 %v5126, %v5506
      %v5609 = vadd.f32 %v5129, %v5509
      %v5610 = vadd.f32 %v5134, %v5514
      %v5611 = vadd.f32 %v5137, %v5517
      %v5612 = vadd.f32 %v5142, %v5522
      %v5613 = vadd.f32 %v5145, %v5525
      %v5614 = vadd.f32 %v5150, %v5530
      %v5615 = vadd.f32 %v5153, %v5533
      %v5616 = vadd.f32 %v5158, %v5538
      %v5617 = vadd.f32 %v5161, %v5541
      %v5618 = vadd.f32 %v5166, %v5546
      %v5619 = vadd.f32 %v5169, %v5549
      %v5620 = vadd.f32 %v5174, %v5554
      %v5621 = vadd.f32 %v5177, %v5557
      %v5622 = vadd.f32 %v5182, %v5562
      %v5623 = vadd.f32 %v5185, %v5565
      %v5624 = vadd.f32 %v5190, %v5570
      %v5625 = vadd.f32 %v5193, %v5573
      %v5626 = vadd.f32 %v5198, %v5578
      %v5627 = vadd.f32 %v5201, %v5581
      %v5628 = vadd.f32 %v5206, %v5586
      %v5629 = vadd.f32 %v5209, %v5589
      %v5630 = vadd.f32 %v5214, %v5594
      %v5631 = vadd.f32 %v5217, %v5597
      %v5632 = vld [vmem:[#allocation3 + $0x8] sm:$0x80]
      %v5633 = vld [vmem:[#allocation3 + $0x88] sm:$0xff]
      %v5634 = vmul.bf16 %v5632, %v1100
      %v5635 = vmul.bf16 %v5221, %v1108
      %v5636 = vmul.bf16 %v5222, %v1116
      %v5637 = vmul.bf16 %v5223, %v1124
      %v5638 = vmul.bf16 %v5224, %v1132
      %v5639 = vmul.bf16 %v5225, %v1140
      %v5640 = vmul.bf16 %v5226, %v1148
      %v5641 = vmul.bf16 %v5227, %v1156
      %v5642 = vmul.bf16 %v5228, %v1164
      %v5643 = vmul.bf16 %v5229, %v1172
      %v5644 = vmul.bf16 %v5230, %v1180
      %v5645 = vmul.bf16 %v5231, %v1188
      %v5646 = vmul.bf16 %v5232, %v1196
      %v5647 = vmul.bf16 %v5233, %v1204
      %v5648 = vmul.bf16 %v5234, %v1212
      %v5649 = vmul.bf16 %v5235, %v1220
      %v5650 = vmul.bf16 %v5633, %v1223
      %s5651 = scalar_lea.vmem %s4, 6
      %v5652 = vld [vmem:[%s5651] sm:$0x3]
      %v5654 = vshrl.u32 %v5634, 16
      %v5656 = vrot.slane %v5654, 7
      %v5658 = vshrl.u32 %v5635, 16
      %v5660 = vrot.slane %v5658, 7
      %v5661 = vshll.u32 %v5635, 16
      %v5663 = vor.u32 %v5660, %v5661
      %v5664 = vsel %vm1474, %v5656, %v5663
      %v5666 = vshrl.u32 %v5636, 16
      %v5668 = vrot.slane %v5666, 7
      %v5669 = vshll.u32 %v5636, 16
      %v5671 = vor.u32 %v5668, %v5669
      %v5672 = vsel %vm1474, %v5660, %v5671
      %v5674 = vshrl.u32 %v5637, 16
      %v5676 = vrot.slane %v5674, 7
      %v5677 = vshll.u32 %v5637, 16
      %v5679 = vor.u32 %v5676, %v5677
      %v5680 = vsel %vm1474, %v5668, %v5679
      %v5682 = vshrl.u32 %v5638, 16
      %v5684 = vrot.slane %v5682, 7
      %v5685 = vshll.u32 %v5638, 16
      %v5687 = vor.u32 %v5684, %v5685
      %v5688 = vsel %vm1474, %v5676, %v5687
      %v5690 = vshrl.u32 %v5639, 16
      %v5692 = vrot.slane %v5690, 7
      %v5693 = vshll.u32 %v5639, 16
      %v5695 = vor.u32 %v5692, %v5693
      %v5696 = vsel %vm1474, %v5684, %v5695
      %v5698 = vshrl.u32 %v5640, 16
      %v5700 = vrot.slane %v5698, 7
      %v5701 = vshll.u32 %v5640, 16
      %v5703 = vor.u32 %v5700, %v5701
      %v5704 = vsel %vm1474, %v5692, %v5703
      %v5706 = vshrl.u32 %v5641, 16
      %v5708 = vrot.slane %v5706, 7
      %v5709 = vshll.u32 %v5641, 16
      %v5711 = vor.u32 %v5708, %v5709
      %v5712 = vsel %vm1474, %v5700, %v5711
      %v5714 = vshrl.u32 %v5642, 16
      %v5716 = vrot.slane %v5714, 7
      %v5717 = vshll.u32 %v5642, 16
      %v5719 = vor.u32 %v5716, %v5717
      %v5720 = vsel %vm1474, %v5708, %v5719
      %v5722 = vshrl.u32 %v5643, 16
      %v5724 = vrot.slane %v5722, 7
      %v5725 = vshll.u32 %v5643, 16
      %v5727 = vor.u32 %v5724, %v5725
      %v5728 = vsel %vm1474, %v5716, %v5727
      %v5730 = vshrl.u32 %v5644, 16
      %v5732 = vrot.slane %v5730, 7
      %v5733 = vshll.u32 %v5644, 16
      %v5735 = vor.u32 %v5732, %v5733
      %v5736 = vsel %vm1474, %v5724, %v5735
      %v5738 = vshrl.u32 %v5645, 16
      %v5740 = vrot.slane %v5738, 7
      %v5741 = vshll.u32 %v5645, 16
      %v5743 = vor.u32 %v5740, %v5741
      %v5744 = vsel %vm1474, %v5732, %v5743
      %v5746 = vshrl.u32 %v5646, 16
      %v5748 = vrot.slane %v5746, 7
      %v5749 = vshll.u32 %v5646, 16
      %v5751 = vor.u32 %v5748, %v5749
      %v5752 = vsel %vm1474, %v5740, %v5751
      %v5754 = vshrl.u32 %v5647, 16
      %v5756 = vrot.slane %v5754, 7
      %v5757 = vshll.u32 %v5647, 16
      %v5759 = vor.u32 %v5756, %v5757
      %v5760 = vsel %vm1474, %v5748, %v5759
      %v5762 = vshrl.u32 %v5648, 16
      %v5764 = vrot.slane %v5762, 7
      %v5765 = vshll.u32 %v5648, 16
      %v5767 = vor.u32 %v5764, %v5765
      %v5768 = vsel %vm1474, %v5756, %v5767
      %v5770 = vshrl.u32 %v5649, 16
      %v5772 = vrot.slane %v5770, 7
      %v5773 = vshll.u32 %v5649, 16
      %v5775 = vor.u32 %v5772, %v5773
      %v5776 = vsel %vm1474, %v5764, %v5775
      %v5778 = vshrl.u32 %v5650, 16
      %v5780 = vrot.slane %v5778, 7
      %v5781 = vshll.u32 %v5650, 16
      %v5783 = vor.u32 %v5780, %v5781
      %v5784 = vsel %vm1474, %v5772, %v5783
      %v5786 = vsel %vm1062, %v5664, 0
      %v5789 = vsel %vm1062, %v5672, 0
      %v5792 = vsel %vm1062, %v5680, 0
      %v5795 = vsel %vm1062, %v5688, 0
      %v5798 = vsel %vm1062, %v5696, 0
      %v5801 = vsel %vm1062, %v5704, 0
      %v5804 = vsel %vm1062, %v5712, 0
      %v5807 = vsel %vm1062, %v5720, 0
      %v5810 = vsel %vm1062, %v5728, 0
      %v5813 = vsel %vm1062, %v5736, 0
      %v5816 = vsel %vm1062, %v5744, 0
      %v5819 = vsel %vm1062, %v5752, 0
      %v5822 = vsel %vm1062, %v5760, 0
      %v5825 = vsel %vm1062, %v5768, 0
      %v5828 = vsel %vm1062, %v5776, 0
      %v5831 = vsel %vm1062, %v5784, 0
      %v5834 = vsel %vm1309, %v5652, 0
      %5836 = vmatprep.subr.bf16.mxu0 0
      %5837 = vmatpush1.bf16.msra.mxu0 %v5834
      %5838 = vmatprep.subr.bf16.mxu0 0
      %5839 = vmatpush1.bf16.msra.mxu0 0
      %5840 = vmatprep.subr.bf16.mxu0 0
      %5841 = vmatpush1.bf16.msra.mxu0 0
      %5842 = vmatprep.subr.bf16.mxu0 0
      %5843 = vmatpush1.bf16.msra.mxu0 0
      %5844 = vmatprep.subr.bf16.mxu0 0
      %5845 = vmatpush1.bf16.msra.mxu0 0
      %5846 = vmatprep.subr.bf16.mxu0 0
      %5847 = vmatpush1.bf16.msra.mxu0 0
      %5848 = vmatprep.subr.bf16.mxu0 0
      %5849 = vmatpush1.bf16.msra.mxu0 0
      %5850 = vmatprep.subr.bf16.mxu0 0
      %5851 = vmatpush1.bf16.msra.mxu0 0
      %5852 = vmatprep.subr.bf16.mxu0 0
      %5853 = vmatpush1.bf16.msra.mxu0 0
      %5854 = vmatprep.subr.bf16.mxu0 0
      %5855 = vmatpush1.bf16.msra.mxu0 0
      %5856 = vmatprep.subr.bf16.mxu0 0
      %5857 = vmatpush1.bf16.msra.mxu0 0
      %5858 = vmatprep.subr.bf16.mxu0 0
      %5859 = vmatpush1.bf16.msra.mxu0 0
      %5860 = vmatprep.subr.bf16.mxu0 0
      %5861 = vmatpush1.bf16.msra.mxu0 0
      %5862 = vmatprep.subr.bf16.mxu0 0
      %5863 = vmatpush1.bf16.msra.mxu0 0
      %5864 = vmatprep.subr.bf16.mxu0 0
      %5865 = vmatpush1.bf16.msra.mxu0 0
      %5866 = vmatprep.subr.bf16.mxu0 0
      %5867 = vmatpush1.bf16.msra.mxu0 0
      %5868 = vmatprep.mubr.bf16.mxu0 0
      %5869 = vmatmul.mubr.bf16.gmra.mrb[0].mxu0 %v5786
      %v5870 = vpop.f32.mrb[0].mxu0
      %v5871 = vadd.f32 0.0, %v5870
      %v5872 = vpop.f32.mrb[0].mxu0
      %v5873 = vpop.f32.mrb[0].mxu0
      %v5874 = vadd.f32 0.0, %v5873
      %v5875 = vpop.f32.mrb[0].mxu0
      %5876 = vmatprep.mubr.bf16.mxu0 0
      %5877 = vmatmul.mubr.bf16.gmra.mrb[0].mxu0 %v5789
      %v5878 = vpop.f32.mrb[0].mxu0
      %v5879 = vadd.f32 0.0, %v5878
      %v5880 = vpop.f32.mrb[0].mxu0
      %v5881 = vpop.f32.mrb[0].mxu0
      %v5882 = vadd.f32 0.0, %v5881
      %v5883 = vpop.f32.mrb[0].mxu0
      %5884 = vmatprep.mubr.bf16.mxu0 0
      %5885 = vmatmul.mubr.bf16.gmra.mrb[0].mxu0 %v5792
      %v5886 = vpop.f32.mrb[0].mxu0
      %v5887 = vadd.f32 0.0, %v5886
      %v5888 = vpop.f32.mrb[0].mxu0
      %v5889 = vpop.f32.mrb[0].mxu0
      %v5890 = vadd.f32 0.0, %v5889
      %v5891 = vpop.f32.mrb[0].mxu0
      %5892 = vmatprep.mubr.bf16.mxu0 0
      %5893 = vmatmul.mubr.bf16.gmra.mrb[0].mxu0 %v5795
      %v5894 = vpop.f32.mrb[0].mxu0
      %v5895 = vadd.f32 0.0, %v5894
      %v5896 = vpop.f32.mrb[0].mxu0
      %v5897 = vpop.f32.mrb[0].mxu0
      %v5898 = vadd.f32 0.0, %v5897
      %v5899 = vpop.f32.mrb[0].mxu0
      %5900 = vmatprep.mubr.bf16.mxu0 0
      %5901 = vmatmul.mubr.bf16.gmra.mrb[0].mxu0 %v5798
      %v5902 = vpop.f32.mrb[0].mxu0
      %v5903 = vadd.f32 0.0, %v5902
      %v5904 = vpop.f32.mrb[0].mxu0
      %v5905 = vpop.f32.mrb[0].mxu0
      %v5906 = vadd.f32 0.0, %v5905
      %v5907 = vpop.f32.mrb[0].mxu0
      %5908 = vmatprep.mubr.bf16.mxu0 0
      %5909 = vmatmul.mubr.bf16.gmra.mrb[0].mxu0 %v5801
      %v5910 = vpop.f32.mrb[0].mxu0
      %v5911 = vadd.f32 0.0, %v5910
      %v5912 = vpop.f32.mrb[0].mxu0
      %v5913 = vpop.f32.mrb[0].mxu0
      %v5914 = vadd.f32 0.0, %v5913
      %v5915 = vpop.f32.mrb[0].mxu0
      %5916 = vmatprep.mubr.bf16.mxu0 0
      %5917 = vmatmul.mubr.bf16.gmra.mrb[0].mxu0 %v5804
      %v5918 = vpop.f32.mrb[0].mxu0
      %v5919 = vadd.f32 0.0, %v5918
      %v5920 = vpop.f32.mrb[0].mxu0
      %v5921 = vpop.f32.mrb[0].mxu0
      %v5922 = vadd.f32 0.0, %v5921
      %v5923 = vpop.f32.mrb[0].mxu0
      %5924 = vmatprep.mubr.bf16.mxu0 0
      %5925 = vmatmul.mubr.bf16.gmra.mrb[0].mxu0 %v5807
      %v5926 = vpop.f32.mrb[0].mxu0
      %v5927 = vadd.f32 0.0, %v5926
      %v5928 = vpop.f32.mrb[0].mxu0
      %v5929 = vpop.f32.mrb[0].mxu0
      %v5930 = vadd.f32 0.0, %v5929
      %v5931 = vpop.f32.mrb[0].mxu0
      %5932 = vmatprep.mubr.bf16.mxu0 0
      %5933 = vmatmul.mubr.bf16.gmra.mrb[0].mxu0 %v5810
      %v5934 = vpop.f32.mrb[0].mxu0
      %v5935 = vadd.f32 0.0, %v5934
      %v5936 = vpop.f32.mrb[0].mxu0
      %v5937 = vpop.f32.mrb[0].mxu0
      %v5938 = vadd.f32 0.0, %v5937
      %v5939 = vpop.f32.mrb[0].mxu0
      %5940 = vmatprep.mubr.bf16.mxu0 0
      %5941 = vmatmul.mubr.bf16.gmra.mrb[0].mxu0 %v5813
      %v5942 = vpop.f32.mrb[0].mxu0
      %v5943 = vadd.f32 0.0, %v5942
      %v5944 = vpop.f32.mrb[0].mxu0
      %v5945 = vpop.f32.mrb[0].mxu0
      %v5946 = vadd.f32 0.0, %v5945
      %v5947 = vpop.f32.mrb[0].mxu0
      %5948 = vmatprep.mubr.bf16.mxu0 0
      %5949 = vmatmul.mubr.bf16.gmra.mrb[0].mxu0 %v5816
      %v5950 = vpop.f32.mrb[0].mxu0
      %v5951 = vadd.f32 0.0, %v5950
      %v5952 = vpop.f32.mrb[0].mxu0
      %v5953 = vpop.f32.mrb[0].mxu0
      %v5954 = vadd.f32 0.0, %v5953
      %v5955 = vpop.f32.mrb[0].mxu0
      %5956 = vmatprep.mubr.bf16.mxu0 0
      %5957 = vmatmul.mubr.bf16.gmra.mrb[0].mxu0 %v5819
      %v5958 = vpop.f32.mrb[0].mxu0
      %v5959 = vadd.f32 0.0, %v5958
      %v5960 = vpop.f32.mrb[0].mxu0
      %v5961 = vpop.f32.mrb[0].mxu0
      %v5962 = vadd.f32 0.0, %v5961
      %v5963 = vpop.f32.mrb[0].mxu0
      %5964 = vmatprep.mubr.bf16.mxu0 0
      %5965 = vmatmul.mubr.bf16.gmra.mrb[0].mxu0 %v5822
      %v5966 = vpop.f32.mrb[0].mxu0
      %v5967 = vadd.f32 0.0, %v5966
      %v5968 = vpop.f32.mrb[0].mxu0
      %v5969 = vpop.f32.mrb[0].mxu0
      %v5970 = vadd.f32 0.0, %v5969
      %v5971 = vpop.f32.mrb[0].mxu0
      %5972 = vmatprep.mubr.bf16.mxu0 0
      %5973 = vmatmul.mubr.bf16.gmra.mrb[0].mxu0 %v5825
      %v5974 = vpop.f32.mrb[0].mxu0
      %v5975 = vadd.f32 0.0, %v5974
      %v5976 = vpop.f32.mrb[0].mxu0
      %v5977 = vpop.f32.mrb[0].mxu0
      %v5978 = vadd.f32 0.0, %v5977
      %v5979 = vpop.f32.mrb[0].mxu0
      %5980 = vmatprep.mubr.bf16.mxu0 0
      %5981 = vmatmul.mubr.bf16.gmra.mrb[0].mxu0 %v5828
      %v5982 = vpop.f32.mrb[0].mxu0
      %v5983 = vadd.f32 0.0, %v5982
      %v5984 = vpop.f32.mrb[0].mxu0
      %v5985 = vpop.f32.mrb[0].mxu0
      %v5986 = vadd.f32 0.0, %v5985
      %v5987 = vpop.f32.mrb[0].mxu0
      %5988 = vmatprep.mubr.bf16.mxu0 0
      %5989 = vmatmul.mubr.bf16.gmra.mrb[0].mxu0 %v5831
      %v5990 = vpop.f32.mrb[0].mxu0
      %v5991 = vadd.f32 0.0, %v5990
      %v5992 = vpop.f32.mrb[0].mxu0
      %v5993 = vpop.f32.mrb[0].mxu0
      %v5994 = vadd.f32 0.0, %v5993
      %v5995 = vpop.f32.mrb[0].mxu0
      %5996 = vdwg.mxu0
      %v5997 = vadd.f32 %v5600, %v5871
      %v5998 = vadd.f32 %v5601, %v5874
      %v5999 = vadd.f32 %v5602, %v5879
      %v6000 = vadd.f32 %v5603, %v5882
      %v6001 = vadd.f32 %v5604, %v5887
      %v6002 = vadd.f32 %v5605, %v5890
      %v6003 = vadd.f32 %v5606, %v5895
      %v6004 = vadd.f32 %v5607, %v5898
      %v6005 = vadd.f32 %v5608, %v5903
      %v6006 = vadd.f32 %v5609, %v5906
      %v6007 = vadd.f32 %v5610, %v5911
      %v6008 = vadd.f32 %v5611, %v5914
      %v6009 = vadd.f32 %v5612, %v5919
      %v6010 = vadd.f32 %v5613, %v5922
      %v6011 = vadd.f32 %v5614, %v5927
      %v6012 = vadd.f32 %v5615, %v5930
      %v6013 = vadd.f32 %v5616, %v5935
      %v6014 = vadd.f32 %v5617, %v5938
      %v6015 = vadd.f32 %v5618, %v5943
      %v6016 = vadd.f32 %v5619, %v5946
      %v6017 = vadd.f32 %v5620, %v5951
      %v6018 = vadd.f32 %v5621, %v5954
      %v6019 = vadd.f32 %v5622, %v5959
      %v6020 = vadd.f32 %v5623, %v5962
      %v6021 = vadd.f32 %v5624, %v5967
      %v6022 = vadd.f32 %v5625, %v5970
      %v6023 = vadd.f32 %v5626, %v5975
      %v6024 = vadd.f32 %v5627, %v5978
      %v6025 = vadd.f32 %v5628, %v5983
      %v6026 = vadd.f32 %v5629, %v5986
      %v6027 = vadd.f32 %v5630, %v5991
      %v6028 = vadd.f32 %v5631, %v5994
      %s6029 = scalar_lea.vmem %s4, 8
      %v6030 = vld [vmem:[%s6029] sm:$0x3]
      %v6032 = vsel %vm1062, %v5221, 0
      %v6035 = vsel %vm1062, %v5222, 0
      %v6038 = vsel %vm1062, %v5223, 0
      %v6041 = vsel %vm1062, %v5224, 0
      %v6044 = vsel %vm1062, %v5225, 0
      %v6047 = vsel %vm1062, %v5226, 0
      %v6050 = vsel %vm1062, %v5227, 0
      %v6053 = vsel %vm1062, %v5228, 0
      %v6056 = vsel %vm1062, %v5229, 0
      %v6059 = vsel %vm1062, %v5230, 0
      %v6062 = vsel %vm1062, %v5231, 0
      %v6065 = vsel %vm1062, %v5232, 0
      %v6068 = vsel %vm1062, %v5233, 0
      %v6071 = vsel %vm1062, %v5234, 0
      %v6074 = vsel %vm1062, %v5235, 0
      %v6077 = vsel %vm1062, %v5633, 0
      %v6080 = vsel %vm1309, %v6030, 0
      %6082 = vmatprep.subr.bf16.mxu0 0
      %6083 = vmatpush1.bf16.msra.mxu0 %v6080
      %6084 = vmatprep.subr.bf16.mxu0 0
      %6085 = vmatpush1.bf16.msra.mxu0 0
      %6086 = vmatprep.subr.bf16.mxu0 0
      %6087 = vmatpush1.bf16.msra.mxu0 0
      %6088 = vmatprep.subr.bf16.mxu0 0
      %6089 = vmatpush1.bf16.msra.mxu0 0
      %6090 = vmatprep.subr.bf16.mxu0 0
      %6091 = vmatpush1.bf16.msra.mxu0 0
      %6092 = vmatprep.subr.bf16.mxu0 0
      %6093 = vmatpush1.bf16.msra.mxu0 0
      %6094 = vmatprep.subr.bf16.mxu0 0
      %6095 = vmatpush1.bf16.msra.mxu0 0
      %6096 = vmatprep.subr.bf16.mxu0 0
      %6097 = vmatpush1.bf16.msra.mxu0 0
      %6098 = vmatprep.subr.bf16.mxu0 0
      %6099 = vmatpush1.bf16.msra.mxu0 0
      %6100 = vmatprep.subr.bf16.mxu0 0
      %6101 = vmatpush1.bf16.msra.mxu0 0
      %6102 = vmatprep.subr.bf16.mxu0 0
      %6103 = vmatpush1.bf16.msra.mxu0 0
      %6104 = vmatprep.subr.bf16.mxu0 0
      %6105 = vmatpush1.bf16.msra.mxu0 0
      %6106 = vmatprep.subr.bf16.mxu0 0
      %6107 = vmatpush1.bf16.msra.mxu0 0
      %6108 = vmatprep.subr.bf16.mxu0 0
      %6109 = vmatpush1.bf16.msra.mxu0 0
      %6110 = vmatprep.subr.bf16.mxu0 0
      %6111 = vmatpush1.bf16.msra.mxu0 0
      %6112 = vmatprep.subr.bf16.mxu0 0
      %6113 = vmatpush1.bf16.msra.mxu0 0
      %6114 = vmatprep.mubr.bf16.mxu0 0
      %6115 = vmatmul.mubr.bf16.gmra.mrb[0].mxu0 %v6032
      %v6116 = vpop.f32.mrb[0].mxu0
      %v6117 = vadd.f32 0.0, %v6116
      %v6118 = vpop.f32.mrb[0].mxu0
      %v6119 = vpop.f32.mrb[0].mxu0
      %v6120 = vadd.f32 0.0, %v6119
      %v6121 = vpop.f32.mrb[0].mxu0
      %6122 = vmatprep.mubr.bf16.mxu0 0
      %6123 = vmatmul.mubr.bf16.gmra.mrb[0].mxu0 %v6035
      %v6124 = vpop.f32.mrb[0].mxu0
      %v6125 = vadd.f32 0.0, %v6124
      %v6126 = vpop.f32.mrb[0].mxu0
      %v6127 = vpop.f32.mrb[0].mxu0
      %v6128 = vadd.f32 0.0, %v6127
      %v6129 = vpop.f32.mrb[0].mxu0
      %6130 = vmatprep.mubr.bf16.mxu0 0
      %6131 = vmatmul.mubr.bf16.gmra.mrb[0].mxu0 %v6038
      %v6132 = vpop.f32.mrb[0].mxu0
      %v6133 = vadd.f32 0.0, %v6132
      %v6134 = vpop.f32.mrb[0].mxu0
      %v6135 = vpop.f32.mrb[0].mxu0
      %v6136 = vadd.f32 0.0, %v6135
      %v6137 = vpop.f32.mrb[0].mxu0
      %6138 = vmatprep.mubr.bf16.mxu0 0
      %6139 = vmatmul.mubr.bf16.gmra.mrb[0].mxu0 %v6041
      %v6140 = vpop.f32.mrb[0].mxu0
      %v6141 = vadd.f32 0.0, %v6140
      %v6142 = vpop.f32.mrb[0].mxu0
      %v6143 = vpop.f32.mrb[0].mxu0
      %v6144 = vadd.f32 0.0, %v6143
      %v6145 = vpop.f32.mrb[0].mxu0
      %6146 = vmatprep.mubr.bf16.mxu0 0
      %6147 = vmatmul.mubr.bf16.gmra.mrb[0].mxu0 %v6044
      %v6148 = vpop.f32.mrb[0].mxu0
      %v6149 = vadd.f32 0.0, %v6148
      %v6150 = vpop.f32.mrb[0].mxu0
      %v6151 = vpop.f32.mrb[0].mxu0
      %v6152 = vadd.f32 0.0, %v6151
      %v6153 = vpop.f32.mrb[0].mxu0
      %6154 = vmatprep.mubr.bf16.mxu0 0
      %6155 = vmatmul.mubr.bf16.gmra.mrb[0].mxu0 %v6047
      %v6156 = vpop.f32.mrb[0].mxu0
      %v6157 = vadd.f32 0.0, %v6156
      %v6158 = vpop.f32.mrb[0].mxu0
      %v6159 = vpop.f32.mrb[0].mxu0
      %v6160 = vadd.f32 0.0, %v6159
      %v6161 = vpop.f32.mrb[0].mxu0
      %6162 = vmatprep.mubr.bf16.mxu0 0
      %6163 = vmatmul.mubr.bf16.gmra.mrb[0].mxu0 %v6050
      %v6164 = vpop.f32.mrb[0].mxu0
      %v6165 = vadd.f32 0.0, %v6164
      %v6166 = vpop.f32.mrb[0].mxu0
      %v6167 = vpop.f32.mrb[0].mxu0
      %v6168 = vadd.f32 0.0, %v6167
      %v6169 = vpop.f32.mrb[0].mxu0
      %6170 = vmatprep.mubr.bf16.mxu0 0
      %6171 = vmatmul.mubr.bf16.gmra.mrb[0].mxu0 %v6053
      %v6172 = vpop.f32.mrb[0].mxu0
      %v6173 = vadd.f32 0.0, %v6172
      %v6174 = vpop.f32.mrb[0].mxu0
      %v6175 = vpop.f32.mrb[0].mxu0
      %v6176 = vadd.f32 0.0, %v6175
      %v6177 = vpop.f32.mrb[0].mxu0
      %6178 = vmatprep.mubr.bf16.mxu0 0
      %6179 = vmatmul.mubr.bf16.gmra.mrb[0].mxu0 %v6056
      %v6180 = vpop.f32.mrb[0].mxu0
      %v6181 = vadd.f32 0.0, %v6180
      %v6182 = vpop.f32.mrb[0].mxu0
      %v6183 = vpop.f32.mrb[0].mxu0
      %v6184 = vadd.f32 0.0, %v6183
      %v6185 = vpop.f32.mrb[0].mxu0
      %6186 = vmatprep.mubr.bf16.mxu0 0
      %6187 = vmatmul.mubr.bf16.gmra.mrb[0].mxu0 %v6059
      %v6188 = vpop.f32.mrb[0].mxu0
      %v6189 = vadd.f32 0.0, %v6188
      %v6190 = vpop.f32.mrb[0].mxu0
      %v6191 = vpop.f32.mrb[0].mxu0
      %v6192 = vadd.f32 0.0, %v6191
      %v6193 = vpop.f32.mrb[0].mxu0
      %6194 = vmatprep.mubr.bf16.mxu0 0
      %6195 = vmatmul.mubr.bf16.gmra.mrb[0].mxu0 %v6062
      %v6196 = vpop.f32.mrb[0].mxu0
      %v6197 = vadd.f32 0.0, %v6196
      %v6198 = vpop.f32.mrb[0].mxu0
      %v6199 = vpop.f32.mrb[0].mxu0
      %v6200 = vadd.f32 0.0, %v6199
      %v6201 = vpop.f32.mrb[0].mxu0
      %6202 = vmatprep.mubr.bf16.mxu0 0
      %6203 = vmatmul.mubr.bf16.gmra.mrb[0].mxu0 %v6065
      %v6204 = vpop.f32.mrb[0].mxu0
      %v6205 = vadd.f32 0.0, %v6204
      %v6206 = vpop.f32.mrb[0].mxu0
      %v6207 = vpop.f32.mrb[0].mxu0
      %v6208 = vadd.f32 0.0, %v6207
      %v6209 = vpop.f32.mrb[0].mxu0
      %6210 = vmatprep.mubr.bf16.mxu0 0
      %6211 = vmatmul.mubr.bf16.gmra.mrb[0].mxu0 %v6068
      %v6212 = vpop.f32.mrb[0].mxu0
      %v6213 = vadd.f32 0.0, %v6212
      %v6214 = vpop.f32.mrb[0].mxu0
      %v6215 = vpop.f32.mrb[0].mxu0
      %v6216 = vadd.f32 0.0, %v6215
      %v6217 = vpop.f32.mrb[0].mxu0
      %6218 = vmatprep.mubr.bf16.mxu0 0
      %6219 = vmatmul.mubr.bf16.gmra.mrb[0].mxu0 %v6071
      %v6220 = vpop.f32.mrb[0].mxu0
      %v6221 = vadd.f32 0.0, %v6220
      %v6222 = vpop.f32.mrb[0].mxu0
      %v6223 = vpop.f32.mrb[0].mxu0
      %v6224 = vadd.f32 0.0, %v6223
      %v6225 = vpop.f32.mrb[0].mxu0
      %6226 = vmatprep.mubr.bf16.mxu0 0
      %6227 = vmatmul.mubr.bf16.gmra.mrb[0].mxu0 %v6074
      %v6228 = vpop.f32.mrb[0].mxu0
      %v6229 = vadd.f32 0.0, %v6228
      %v6230 = vpop.f32.mrb[0].mxu0
      %v6231 = vpop.f32.mrb[0].mxu0
      %v6232 = vadd.f32 0.0, %v6231
      %v6233 = vpop.f32.mrb[0].mxu0
      %6234 = vmatprep.mubr.bf16.mxu0 0
      %6235 = vmatmul.mubr.bf16.gmra.mrb[0].mxu0 %v6077
      %v6236 = vpop.f32.mrb[0].mxu0
      %v6237 = vadd.f32 0.0, %v6236
      %v6238 = vpop.f32.mrb[0].mxu0
      %v6239 = vpop.f32.mrb[0].mxu0
      %v6240 = vadd.f32 0.0, %v6239
      %v6241 = vpop.f32.mrb[0].mxu0
      %6242 = vdwg.mxu0
      %v6243 = vadd.f32 %v5997, %v6117
      %v6244 = vadd.f32 %v5998, %v6120
      %v6245 = vadd.f32 %v5999, %v6125
      %v6246 = vadd.f32 %v6000, %v6128
      %v6247 = vadd.f32 %v6001, %v6133
      %v6248 = vadd.f32 %v6002, %v6136
      %v6249 = vadd.f32 %v6003, %v6141
      %v6250 = vadd.f32 %v6004, %v6144
      %v6251 = vadd.f32 %v6005, %v6149
      %v6252 = vadd.f32 %v6006, %v6152
      %v6253 = vadd.f32 %v6007, %v6157
      %v6254 = vadd.f32 %v6008, %v6160
      %v6255 = vadd.f32 %v6009, %v6165
      %v6256 = vadd.f32 %v6010, %v6168
      %v6257 = vadd.f32 %v6011, %v6173
      %v6258 = vadd.f32 %v6012, %v6176
      %v6259 = vadd.f32 %v6013, %v6181
      %v6260 = vadd.f32 %v6014, %v6184
      %v6261 = vadd.f32 %v6015, %v6189
      %v6262 = vadd.f32 %v6016, %v6192
      %v6263 = vadd.f32 %v6017, %v6197
      %v6264 = vadd.f32 %v6018, %v6200
      %v6265 = vadd.f32 %v6019, %v6205
      %v6266 = vadd.f32 %v6020, %v6208
      %v6267 = vadd.f32 %v6021, %v6213
      %v6268 = vadd.f32 %v6022, %v6216
      %v6269 = vadd.f32 %v6023, %v6221
      %v6270 = vadd.f32 %v6024, %v6224
      %v6271 = vadd.f32 %v6025, %v6229
      %v6272 = vadd.f32 %v6026, %v6232
      %v6273 = vadd.f32 %v6027, %v6237
      %v6274 = vadd.f32 %v6028, %v6240
      %v6275 = vld [vmem:[#allocation3 + $0x10] sm:$0xff]
      %v6276 = vld [vmem:[#allocation3 + $0x18] sm:$0xff]
      %v6277 = vld [vmem:[#allocation3 + $0x20] sm:$0xff]
      %v6278 = vld [vmem:[#allocation3 + $0x28] sm:$0xff]
      %v6279 = vld [vmem:[#allocation3 + $0x30] sm:$0xff]
      %v6280 = vld [vmem:[#allocation3 + $0x38] sm:$0xff]
      %v6281 = vld [vmem:[#allocation3 + $0x40] sm:$0xff]
      %v6282 = vld [vmem:[#allocation3 + $0x48] sm:$0xff]
      %v6283 = vld [vmem:[#allocation3 + $0x50] sm:$0xff]
      %v6284 = vld [vmem:[#allocation3 + $0x58] sm:$0xff]
      %v6285 = vld [vmem:[#allocation3 + $0x60] sm:$0xff]
      %v6286 = vld [vmem:[#allocation3 + $0x68] sm:$0xff]
      %v6287 = vld [vmem:[#allocation3 + $0x70] sm:$0xff]
      %v6288 = vld [vmem:[#allocation3 + $0x78] sm:$0xff]
      %v6289 = vld [vmem:[#allocation3 + $0x80] sm:$0xff]
      %v6290 = vld [vmem:[#allocation3 + $0x88] sm:$0xff]
      %v6291 = vld [vmem:[#allocation3 + $0x90] sm:$0x1]
      %v6292 = vmul.bf16 %v6275, %v1842
      %v6293 = vmul.bf16 %v6276, %v1850
      %v6294 = vmul.bf16 %v6277, %v1858
      %v6295 = vmul.bf16 %v6278, %v1866
      %v6296 = vmul.bf16 %v6279, %v1874
      %v6297 = vmul.bf16 %v6280, %v1882
      %v6298 = vmul.bf16 %v6281, %v1890
      %v6299 = vmul.bf16 %v6282, %v1898
      %v6300 = vmul.bf16 %v6283, %v1906
      %v6301 = vmul.bf16 %v6284, %v1914
      %v6302 = vmul.bf16 %v6285, %v1922
      %v6303 = vmul.bf16 %v6286, %v1930
      %v6304 = vmul.bf16 %v6287, %v1938
      %v6305 = vmul.bf16 %v6288, %v1946
      %v6306 = vmul.bf16 %v6289, %v1954
      %v6307 = vmul.bf16 %v6290, %v1962
      %v6308 = vmul.bf16 %v6291, %v1958
      %s6309 = scalar_lea.vmem %s4, 10
      %v6310 = vld [vmem:[%s6309] sm:$0x3]
      %v6312 = vshrl.u32 %v6292, 16
      %v6314 = vshll.u32 %v6292, 16
      %v6316 = vrot.slane %v6314, 1
      %v6317 = vor.u32 %v6312, %v6316
      %v6319 = vshll.u32 %v6293, 16
      %v6321 = vrot.slane %v6319, 1
      %v6322 = vsel %vm1096, %v6317, %v6321
      %v6323 = vshrl.u32 %v6293, 16
      %v6325 = vor.u32 %v6323, %v6321
      %v6327 = vshll.u32 %v6294, 16
      %v6329 = vrot.slane %v6327, 1
      %v6330 = vsel %vm1096, %v6325, %v6329
      %v6331 = vshrl.u32 %v6294, 16
      %v6333 = vor.u32 %v6331, %v6329
      %v6335 = vshll.u32 %v6295, 16
      %v6337 = vrot.slane %v6335, 1
      %v6338 = vsel %vm1096, %v6333, %v6337
      %v6339 = vshrl.u32 %v6295, 16
      %v6341 = vor.u32 %v6339, %v6337
      %v6343 = vshll.u32 %v6296, 16
      %v6345 = vrot.slane %v6343, 1
      %v6346 = vsel %vm1096, %v6341, %v6345
      %v6347 = vshrl.u32 %v6296, 16
      %v6349 = vor.u32 %v6347, %v6345
      %v6351 = vshll.u32 %v6297, 16
      %v6353 = vrot.slane %v6351, 1
      %v6354 = vsel %vm1096, %v6349, %v6353
      %v6355 = vshrl.u32 %v6297, 16
      %v6357 = vor.u32 %v6355, %v6353
      %v6359 = vshll.u32 %v6298, 16
      %v6361 = vrot.slane %v6359, 1
      %v6362 = vsel %vm1096, %v6357, %v6361
      %v6363 = vshrl.u32 %v6298, 16
      %v6365 = vor.u32 %v6363, %v6361
      %v6367 = vshll.u32 %v6299, 16
      %v6369 = vrot.slane %v6367, 1
      %v6370 = vsel %vm1096, %v6365, %v6369
      %v6371 = vshrl.u32 %v6299, 16
      %v6373 = vor.u32 %v6371, %v6369
      %v6375 = vshll.u32 %v6300, 16
      %v6377 = vrot.slane %v6375, 1
      %v6378 = vsel %vm1096, %v6373, %v6377
      %v6379 = vshrl.u32 %v6300, 16
      %v6381 = vor.u32 %v6379, %v6377
      %v6383 = vshll.u32 %v6301, 16
      %v6385 = vrot.slane %v6383, 1
      %v6386 = vsel %vm1096, %v6381, %v6385
      %v6387 = vshrl.u32 %v6301, 16
      %v6389 = vor.u32 %v6387, %v6385
      %v6391 = vshll.u32 %v6302, 16
      %v6393 = vrot.slane %v6391, 1
      %v6394 = vsel %vm1096, %v6389, %v6393
      %v6395 = vshrl.u32 %v6302, 16
      %v6397 = vor.u32 %v6395, %v6393
      %v6399 = vshll.u32 %v6303, 16
      %v6401 = vrot.slane %v6399, 1
      %v6402 = vsel %vm1096, %v6397, %v6401
      %v6403 = vshrl.u32 %v6303, 16
      %v6405 = vor.u32 %v6403, %v6401
      %v6407 = vshll.u32 %v6304, 16
      %v6409 = vrot.slane %v6407, 1
      %v6410 = vsel %vm1096, %v6405, %v6409
      %v6411 = vshrl.u32 %v6304, 16
      %v6413 = vor.u32 %v6411, %v6409
      %v6415 = vshll.u32 %v6305, 16
      %v6417 = vrot.slane %v6415, 1
      %v6418 = vsel %vm1096, %v6413, %v6417
      %v6419 = vshrl.u32 %v6305, 16
      %v6421 = vor.u32 %v6419, %v6417
      %v6423 = vshll.u32 %v6306, 16
      %v6425 = vrot.slane %v6423, 1
      %v6426 = vsel %vm1096, %v6421, %v6425
      %v6427 = vshrl.u32 %v6306, 16
      %v6429 = vor.u32 %v6427, %v6425
      %v6431 = vshll.u32 %v6307, 16
      %v6433 = vrot.slane %v6431, 1
      %v6434 = vsel %vm1096, %v6429, %v6433
      %v6435 = vshrl.u32 %v6307, 16
      %v6437 = vor.u32 %v6435, %v6433
      %v6439 = vshll.u32 %v6308, 16
      %v6441 = vrot.slane %v6439, 1
      %v6442 = vsel %vm1096, %v6437, %v6441
      %v6444 = vsel %vm1062, %v6322, 0
      %v6447 = vsel %vm1062, %v6330, 0
      %v6450 = vsel %vm1062, %v6338, 0
      %v6453 = vsel %vm1062, %v6346, 0
      %v6456 = vsel %vm1062, %v6354, 0
      %v6459 = vsel %vm1062, %v6362, 0
      %v6462 = vsel %vm1062, %v6370, 0
      %v6465 = vsel %vm1062, %v6378, 0
      %v6468 = vsel %vm1062, %v6386, 0
      %v6471 = vsel %vm1062, %v6394, 0
      %v6474 = vsel %vm1062, %v6402, 0
      %v6477 = vsel %vm1062, %v6410, 0
      %v6480 = vsel %vm1062, %v6418, 0
      %v6483 = vsel %vm1062, %v6426, 0
      %v6486 = vsel %vm1062, %v6434, 0
      %v6489 = vsel %vm1062, %v6442, 0
      %v6492 = vsel %vm1309, %v6310, 0
      %6494 = vmatprep.subr.bf16.mxu0 0
      %6495 = vmatpush1.bf16.msra.mxu0 %v6492
      %6496 = vmatprep.subr.bf16.mxu0 0
      %6497 = vmatpush1.bf16.msra.mxu0 0
      %6498 = vmatprep.subr.bf16.mxu0 0
      %6499 = vmatpush1.bf16.msra.mxu0 0
      %6500 = vmatprep.subr.bf16.mxu0 0
      %6501 = vmatpush1.bf16.msra.mxu0 0
      %6502 = vmatprep.subr.bf16.mxu0 0
      %6503 = vmatpush1.bf16.msra.mxu0 0
      %6504 = vmatprep.subr.bf16.mxu0 0
      %6505 = vmatpush1.bf16.msra.mxu0 0
      %6506 = vmatprep.subr.bf16.mxu0 0
      %6507 = vmatpush1.bf16.msra.mxu0 0
      %6508 = vmatprep.subr.bf16.mxu0 0
      %6509 = vmatpush1.bf16.msra.mxu0 0
      %6510 = vmatprep.subr.bf16.mxu0 0
      %6511 = vmatpush1.bf16.msra.mxu0 0
      %6512 = vmatprep.subr.bf16.mxu0 0
      %6513 = vmatpush1.bf16.msra.mxu0 0
      %6514 = vmatprep.subr.bf16.mxu0 0
      %6515 = vmatpush1.bf16.msra.mxu0 0
      %6516 = vmatprep.subr.bf16.mxu0 0
      %6517 = vmatpush1.bf16.msra.mxu0 0
      %6518 = vmatprep.subr.bf16.mxu0 0
      %6519 = vmatpush1.bf16.msra.mxu0 0
      %6520 = vmatprep.subr.bf16.mxu0 0
      %6521 = vmatpush1.bf16.msra.mxu0 0
      %6522 = vmatprep.subr.bf16.mxu0 0
      %6523 = vmatpush1.bf16.msra.mxu0 0
      %6524 = vmatprep.subr.bf16.mxu0 0
      %6525 = vmatpush1.bf16.msra.mxu0 0
      %6526 = vmatprep.mubr.bf16.mxu0 0
      %6527 = vmatmul.mubr.bf16.gmra.mrb[0].mxu0 %v6444
      %v6528 = vpop.f32.mrb[0].mxu0
      %v6529 = vadd.f32 0.0, %v6528
      %v6530 = vpop.f32.mrb[0].mxu0
      %v6531 = vpop.f32.mrb[0].mxu0
      %v6532 = vadd.f32 0.0, %v6531
      %v6533 = vpop.f32.mrb[0].mxu0
      %6534 = vmatprep.mubr.bf16.mxu0 0
      %6535 = vmatmul.mubr.bf16.gmra.mrb[0].mxu0 %v6447
      %v6536 = vpop.f32.mrb[0].mxu0
      %v6537 = vadd.f32 0.0, %v6536
      %v6538 = vpop.f32.mrb[0].mxu0
      %v6539 = vpop.f32.mrb[0].mxu0
      %v6540 = vadd.f32 0.0, %v6539
      %v6541 = vpop.f32.mrb[0].mxu0
      %6542 = vmatprep.mubr.bf16.mxu0 0
      %6543 = vmatmul.mubr.bf16.gmra.mrb[0].mxu0 %v6450
      %v6544 = vpop.f32.mrb[0].mxu0
      %v6545 = vadd.f32 0.0, %v6544
      %v6546 = vpop.f32.mrb[0].mxu0
      %v6547 = vpop.f32.mrb[0].mxu0
      %v6548 = vadd.f32 0.0, %v6547
      %v6549 = vpop.f32.mrb[0].mxu0
      %6550 = vmatprep.mubr.bf16.mxu0 0
      %6551 = vmatmul.mubr.bf16.gmra.mrb[0].mxu0 %v6453
      %v6552 = vpop.f32.mrb[0].mxu0
      %v6553 = vadd.f32 0.0, %v6552
      %v6554 = vpop.f32.mrb[0].mxu0
      %v6555 = vpop.f32.mrb[0].mxu0
      %v6556 = vadd.f32 0.0, %v6555
      %v6557 = vpop.f32.mrb[0].mxu0
      %6558 = vmatprep.mubr.bf16.mxu0 0
      %6559 = vmatmul.mubr.bf16.gmra.mrb[0].mxu0 %v6456
      %v6560 = vpop.f32.mrb[0].mxu0
      %v6561 = vadd.f32 0.0, %v6560
      %v6562 = vpop.f32.mrb[0].mxu0
      %v6563 = vpop.f32.mrb[0].mxu0
      %v6564 = vadd.f32 0.0, %v6563
      %v6565 = vpop.f32.mrb[0].mxu0
      %6566 = vmatprep.mubr.bf16.mxu0 0
      %6567 = vmatmul.mubr.bf16.gmra.mrb[0].mxu0 %v6459
      %v6568 = vpop.f32.mrb[0].mxu0
      %v6569 = vadd.f32 0.0, %v6568
      %v6570 = vpop.f32.mrb[0].mxu0
      %v6571 = vpop.f32.mrb[0].mxu0
      %v6572 = vadd.f32 0.0, %v6571
      %v6573 = vpop.f32.mrb[0].mxu0
      %6574 = vmatprep.mubr.bf16.mxu0 0
      %6575 = vmatmul.mubr.bf16.gmra.mrb[0].mxu0 %v6462
      %v6576 = vpop.f32.mrb[0].mxu0
      %v6577 = vadd.f32 0.0, %v6576
      %v6578 = vpop.f32.mrb[0].mxu0
      %v6579 = vpop.f32.mrb[0].mxu0
      %v6580 = vadd.f32 0.0, %v6579
      %v6581 = vpop.f32.mrb[0].mxu0
      %6582 = vmatprep.mubr.bf16.mxu0 0
      %6583 = vmatmul.mubr.bf16.gmra.mrb[0].mxu0 %v6465
      %v6584 = vpop.f32.mrb[0].mxu0
      %v6585 = vadd.f32 0.0, %v6584
      %v6586 = vpop.f32.mrb[0].mxu0
      %v6587 = vpop.f32.mrb[0].mxu0
      %v6588 = vadd.f32 0.0, %v6587
      %v6589 = vpop.f32.mrb[0].mxu0
      %6590 = vmatprep.mubr.bf16.mxu0 0
      %6591 = vmatmul.mubr.bf16.gmra.mrb[0].mxu0 %v6468
      %v6592 = vpop.f32.mrb[0].mxu0
      %v6593 = vadd.f32 0.0, %v6592
      %v6594 = vpop.f32.mrb[0].mxu0
      %v6595 = vpop.f32.mrb[0].mxu0
      %v6596 = vadd.f32 0.0, %v6595
      %v6597 = vpop.f32.mrb[0].mxu0
      %6598 = vmatprep.mubr.bf16.mxu0 0
      %6599 = vmatmul.mubr.bf16.gmra.mrb[0].mxu0 %v6471
      %v6600 = vpop.f32.mrb[0].mxu0
      %v6601 = vadd.f32 0.0, %v6600
      %v6602 = vpop.f32.mrb[0].mxu0
      %v6603 = vpop.f32.mrb[0].mxu0
      %v6604 = vadd.f32 0.0, %v6603
      %v6605 = vpop.f32.mrb[0].mxu0
      %6606 = vmatprep.mubr.bf16.mxu0 0
      %6607 = vmatmul.mubr.bf16.gmra.mrb[0].mxu0 %v6474
      %v6608 = vpop.f32.mrb[0].mxu0
      %v6609 = vadd.f32 0.0, %v6608
      %v6610 = vpop.f32.mrb[0].mxu0
      %v6611 = vpop.f32.mrb[0].mxu0
      %v6612 = vadd.f32 0.0, %v6611
      %v6613 = vpop.f32.mrb[0].mxu0
      %6614 = vmatprep.mubr.bf16.mxu0 0
      %6615 = vmatmul.mubr.bf16.gmra.mrb[0].mxu0 %v6477
      %v6616 = vpop.f32.mrb[0].mxu0
      %v6617 = vadd.f32 0.0, %v6616
      %v6618 = vpop.f32.mrb[0].mxu0
      %v6619 = vpop.f32.mrb[0].mxu0
      %v6620 = vadd.f32 0.0, %v6619
      %v6621 = vpop.f32.mrb[0].mxu0
      %6622 = vmatprep.mubr.bf16.mxu0 0
      %6623 = vmatmul.mubr.bf16.gmra.mrb[0].mxu0 %v6480
      %v6624 = vpop.f32.mrb[0].mxu0
      %v6625 = vadd.f32 0.0, %v6624
      %v6626 = vpop.f32.mrb[0].mxu0
      %v6627 = vpop.f32.mrb[0].mxu0
      %v6628 = vadd.f32 0.0, %v6627
      %v6629 = vpop.f32.mrb[0].mxu0
      %6630 = vmatprep.mubr.bf16.mxu0 0
      %6631 = vmatmul.mubr.bf16.gmra.mrb[0].mxu0 %v6483
      %v6632 = vpop.f32.mrb[0].mxu0
      %v6633 = vadd.f32 0.0, %v6632
      %v6634 = vpop.f32.mrb[0].mxu0
      %v6635 = vpop.f32.mrb[0].mxu0
      %v6636 = vadd.f32 0.0, %v6635
      %v6637 = vpop.f32.mrb[0].mxu0
      %6638 = vmatprep.mubr.bf16.mxu0 0
      %6639 = vmatmul.mubr.bf16.gmra.mrb[0].mxu0 %v6486
      %v6640 = vpop.f32.mrb[0].mxu0
      %v6641 = vadd.f32 0.0, %v6640
      %v6642 = vpop.f32.mrb[0].mxu0
      %v6643 = vpop.f32.mrb[0].mxu0
      %v6644 = vadd.f32 0.0, %v6643
      %v6645 = vpop.f32.mrb[0].mxu0
      %6646 = vmatprep.mubr.bf16.mxu0 0
      %6647 = vmatmul.mubr.bf16.gmra.mrb[0].mxu0 %v6489
      %v6648 = vpop.f32.mrb[0].mxu0
      %v6649 = vadd.f32 0.0, %v6648
      %v6650 = vpop.f32.mrb[0].mxu0
      %v6651 = vpop.f32.mrb[0].mxu0
      %v6652 = vadd.f32 0.0, %v6651
      %v6653 = vpop.f32.mrb[0].mxu0
      %6654 = vdwg.mxu0
      %v6655 = vadd.f32 %v6243, %v6529
      %v6656 = vadd.f32 %v6244, %v6532
      %v6657 = vadd.f32 %v6245, %v6537
      %v6658 = vadd.f32 %v6246, %v6540
      %v6659 = vadd.f32 %v6247, %v6545
      %v6660 = vadd.f32 %v6248, %v6548
      %v6661 = vadd.f32 %v6249, %v6553
      %v6662 = vadd.f32 %v6250, %v6556
      %v6663 = vadd.f32 %v6251, %v6561
      %v6664 = vadd.f32 %v6252, %v6564
      %v6665 = vadd.f32 %v6253, %v6569
      %v6666 = vadd.f32 %v6254, %v6572
      %v6667 = vadd.f32 %v6255, %v6577
      %v6668 = vadd.f32 %v6256, %v6580
      %v6669 = vadd.f32 %v6257, %v6585
      %v6670 = vadd.f32 %v6258, %v6588
      %v6671 = vadd.f32 %v6259, %v6593
      %v6672 = vadd.f32 %v6260, %v6596
      %v6673 = vadd.f32 %v6261, %v6601
      %v6674 = vadd.f32 %v6262, %v6604
      %v6675 = vadd.f32 %v6263, %v6609
      %v6676 = vadd.f32 %v6264, %v6612
      %v6677 = vadd.f32 %v6265, %v6617
      %v6678 = vadd.f32 %v6266, %v6620
      %v6679 = vadd.f32 %v6267, %v6625
      %v6680 = vadd.f32 %v6268, %v6628
      %v6681 = vadd.f32 %v6269, %v6633
      %v6682 = vadd.f32 %v6270, %v6636
      %v6683 = vadd.f32 %v6271, %v6641
      %v6684 = vadd.f32 %v6272, %v6644
      %v6685 = vadd.f32 %v6273, %v6649
      %v6686 = vadd.f32 %v6274, %v6652
      %v6687 = vld [vmem:[#allocation3 + $0x10] sm:$0x80]
      %v6688 = vld [vmem:[#allocation3 + $0x90] sm:$0xff]
      %v6689 = vmul.bf16 %v6687, %v1100
      %v6690 = vmul.bf16 %v6276, %v1108
      %v6691 = vmul.bf16 %v6277, %v1116
      %v6692 = vmul.bf16 %v6278, %v1124
      %v6693 = vmul.bf16 %v6279, %v1132
      %v6694 = vmul.bf16 %v6280, %v1140
      %v6695 = vmul.bf16 %v6281, %v1148
      %v6696 = vmul.bf16 %v6282, %v1156
      %v6697 = vmul.bf16 %v6283, %v1164
      %v6698 = vmul.bf16 %v6284, %v1172
      %v6699 = vmul.bf16 %v6285, %v1180
      %v6700 = vmul.bf16 %v6286, %v1188
      %v6701 = vmul.bf16 %v6287, %v1196
      %v6702 = vmul.bf16 %v6288, %v1204
      %v6703 = vmul.bf16 %v6289, %v1212
      %v6704 = vmul.bf16 %v6290, %v1220
      %v6705 = vmul.bf16 %v6688, %v1223
      %s6706 = scalar_lea.vmem %s4, 12
      %v6707 = vld [vmem:[%s6706] sm:$0x3]
      %v6709 = vshrl.u32 %v6689, 16
      %v6711 = vrot.slane %v6709, 7
      %v6713 = vshrl.u32 %v6690, 16
      %v6715 = vrot.slane %v6713, 7
      %v6716 = vshll.u32 %v6690, 16
      %v6718 = vor.u32 %v6715, %v6716
      %v6719 = vsel %vm1474, %v6711, %v6718
      %v6721 = vshrl.u32 %v6691, 16
      %v6723 = vrot.slane %v6721, 7
      %v6724 = vshll.u32 %v6691, 16
      %v6726 = vor.u32 %v6723, %v6724
      %v6727 = vsel %vm1474, %v6715, %v6726
      %v6729 = vshrl.u32 %v6692, 16
      %v6731 = vrot.slane %v6729, 7
      %v6732 = vshll.u32 %v6692, 16
      %v6734 = vor.u32 %v6731, %v6732
      %v6735 = vsel %vm1474, %v6723, %v6734
      %v6737 = vshrl.u32 %v6693, 16
      %v6739 = vrot.slane %v6737, 7
      %v6740 = vshll.u32 %v6693, 16
      %v6742 = vor.u32 %v6739, %v6740
      %v6743 = vsel %vm1474, %v6731, %v6742
      %v6745 = vshrl.u32 %v6694, 16
      %v6747 = vrot.slane %v6745, 7
      %v6748 = vshll.u32 %v6694, 16
      %v6750 = vor.u32 %v6747, %v6748
      %v6751 = vsel %vm1474, %v6739, %v6750
      %v6753 = vshrl.u32 %v6695, 16
      %v6755 = vrot.slane %v6753, 7
      %v6756 = vshll.u32 %v6695, 16
      %v6758 = vor.u32 %v6755, %v6756
      %v6759 = vsel %vm1474, %v6747, %v6758
      %v6761 = vshrl.u32 %v6696, 16
      %v6763 = vrot.slane %v6761, 7
      %v6764 = vshll.u32 %v6696, 16
      %v6766 = vor.u32 %v6763, %v6764
      %v6767 = vsel %vm1474, %v6755, %v6766
      %v6769 = vshrl.u32 %v6697, 16
      %v6771 = vrot.slane %v6769, 7
      %v6772 = vshll.u32 %v6697, 16
      %v6774 = vor.u32 %v6771, %v6772
      %v6775 = vsel %vm1474, %v6763, %v6774
      %v6777 = vshrl.u32 %v6698, 16
      %v6779 = vrot.slane %v6777, 7
      %v6780 = vshll.u32 %v6698, 16
      %v6782 = vor.u32 %v6779, %v6780
      %v6783 = vsel %vm1474, %v6771, %v6782
      %v6785 = vshrl.u32 %v6699, 16
      %v6787 = vrot.slane %v6785, 7
      %v6788 = vshll.u32 %v6699, 16
      %v6790 = vor.u32 %v6787, %v6788
      %v6791 = vsel %vm1474, %v6779, %v6790
      %v6793 = vshrl.u32 %v6700, 16
      %v6795 = vrot.slane %v6793, 7
      %v6796 = vshll.u32 %v6700, 16
      %v6798 = vor.u32 %v6795, %v6796
      %v6799 = vsel %vm1474, %v6787, %v6798
      %v6801 = vshrl.u32 %v6701, 16
      %v6803 = vrot.slane %v6801, 7
      %v6804 = vshll.u32 %v6701, 16
      %v6806 = vor.u32 %v6803, %v6804
      %v6807 = vsel %vm1474, %v6795, %v6806
      %v6809 = vshrl.u32 %v6702, 16
      %v6811 = vrot.slane %v6809, 7
      %v6812 = vshll.u32 %v6702, 16
      %v6814 = vor.u32 %v6811, %v6812
      %v6815 = vsel %vm1474, %v6803, %v6814
      %v6817 = vshrl.u32 %v6703, 16
      %v6819 = vrot.slane %v6817, 7
      %v6820 = vshll.u32 %v6703, 16
      %v6822 = vor.u32 %v6819, %v6820
      %v6823 = vsel %vm1474, %v6811, %v6822
      %v6825 = vshrl.u32 %v6704, 16
      %v6827 = vrot.slane %v6825, 7
      %v6828 = vshll.u32 %v6704, 16
      %v6830 = vor.u32 %v6827, %v6828
      %v6831 = vsel %vm1474, %v6819, %v6830
      %v6833 = vshrl.u32 %v6705, 16
      %v6835 = vrot.slane %v6833, 7
      %v6836 = vshll.u32 %v6705, 16
      %v6838 = vor.u32 %v6835, %v6836
      %v6839 = vsel %vm1474, %v6827, %v6838
      %v6841 = vsel %vm1062, %v6719, 0
      %v6844 = vsel %vm1062, %v6727, 0
      %v6847 = vsel %vm1062, %v6735, 0
      %v6850 = vsel %vm1062, %v6743, 0
      %v6853 = vsel %vm1062, %v6751, 0
      %v6856 = vsel %vm1062, %v6759, 0
      %v6859 = vsel %vm1062, %v6767, 0
      %v6862 = vsel %vm1062, %v6775, 0
      %v6865 = vsel %vm1062, %v6783, 0
      %v6868 = vsel %vm1062, %v6791, 0
      %v6871 = vsel %vm1062, %v6799, 0
      %v6874 = vsel %vm1062, %v6807, 0
      %v6877 = vsel %vm1062, %v6815, 0
      %v6880 = vsel %vm1062, %v6823, 0
      %v6883 = vsel %vm1062, %v6831, 0
      %v6886 = vsel %vm1062, %v6839, 0
      %v6889 = vsel %vm1309, %v6707, 0
      %6891 = vmatprep.subr.bf16.mxu0 0
      %6892 = vmatpush1.bf16.msra.mxu0 %v6889
      %6893 = vmatprep.subr.bf16.mxu0 0
      %6894 = vmatpush1.bf16.msra.mxu0 0
      %6895 = vmatprep.subr.bf16.mxu0 0
      %6896 = vmatpush1.bf16.msra.mxu0 0
      %6897 = vmatprep.subr.bf16.mxu0 0
      %6898 = vmatpush1.bf16.msra.mxu0 0
      %6899 = vmatprep.subr.bf16.mxu0 0
      %6900 = vmatpush1.bf16.msra.mxu0 0
      %6901 = vmatprep.subr.bf16.mxu0 0
      %6902 = vmatpush1.bf16.msra.mxu0 0
      %6903 = vmatprep.subr.bf16.mxu0 0
      %6904 = vmatpush1.bf16.msra.mxu0 0
      %6905 = vmatprep.subr.bf16.mxu0 0
      %6906 = vmatpush1.bf16.msra.mxu0 0
      %6907 = vmatprep.subr.bf16.mxu0 0
      %6908 = vmatpush1.bf16.msra.mxu0 0
      %6909 = vmatprep.subr.bf16.mxu0 0
      %6910 = vmatpush1.bf16.msra.mxu0 0
      %6911 = vmatprep.subr.bf16.mxu0 0
      %6912 = vmatpush1.bf16.msra.mxu0 0
      %6913 = vmatprep.subr.bf16.mxu0 0
      %6914 = vmatpush1.bf16.msra.mxu0 0
      %6915 = vmatprep.subr.bf16.mxu0 0
      %6916 = vmatpush1.bf16.msra.mxu0 0
      %6917 = vmatprep.subr.bf16.mxu0 0
      %6918 = vmatpush1.bf16.msra.mxu0 0
      %6919 = vmatprep.subr.bf16.mxu0 0
      %6920 = vmatpush1.bf16.msra.mxu0 0
      %6921 = vmatprep.subr.bf16.mxu0 0
      %6922 = vmatpush1.bf16.msra.mxu0 0
      %6923 = vmatprep.mubr.bf16.mxu0 0
      %6924 = vmatmul.mubr.bf16.gmra.mrb[0].mxu0 %v6841
      %v6925 = vpop.f32.mrb[0].mxu0
      %v6926 = vadd.f32 0.0, %v6925
      %v6927 = vpop.f32.mrb[0].mxu0
      %v6928 = vpop.f32.mrb[0].mxu0
      %v6929 = vadd.f32 0.0, %v6928
      %v6930 = vpop.f32.mrb[0].mxu0
      %6931 = vmatprep.mubr.bf16.mxu0 0
      %6932 = vmatmul.mubr.bf16.gmra.mrb[0].mxu0 %v6844
      %v6933 = vpop.f32.mrb[0].mxu0
      %v6934 = vadd.f32 0.0, %v6933
      %v6935 = vpop.f32.mrb[0].mxu0
      %v6936 = vpop.f32.mrb[0].mxu0
      %v6937 = vadd.f32 0.0, %v6936
      %v6938 = vpop.f32.mrb[0].mxu0
      %6939 = vmatprep.mubr.bf16.mxu0 0
      %6940 = vmatmul.mubr.bf16.gmra.mrb[0].mxu0 %v6847
      %v6941 = vpop.f32.mrb[0].mxu0
      %v6942 = vadd.f32 0.0, %v6941
      %v6943 = vpop.f32.mrb[0].mxu0
      %v6944 = vpop.f32.mrb[0].mxu0
      %v6945 = vadd.f32 0.0, %v6944
      %v6946 = vpop.f32.mrb[0].mxu0
      %6947 = vmatprep.mubr.bf16.mxu0 0
      %6948 = vmatmul.mubr.bf16.gmra.mrb[0].mxu0 %v6850
      %v6949 = vpop.f32.mrb[0].mxu0
      %v6950 = vadd.f32 0.0, %v6949
      %v6951 = vpop.f32.mrb[0].mxu0
      %v6952 = vpop.f32.mrb[0].mxu0
      %v6953 = vadd.f32 0.0, %v6952
      %v6954 = vpop.f32.mrb[0].mxu0
      %6955 = vmatprep.mubr.bf16.mxu0 0
      %6956 = vmatmul.mubr.bf16.gmra.mrb[0].mxu0 %v6853
      %v6957 = vpop.f32.mrb[0].mxu0
      %v6958 = vadd.f32 0.0, %v6957
      %v6959 = vpop.f32.mrb[0].mxu0
      %v6960 = vpop.f32.mrb[0].mxu0
      %v6961 = vadd.f32 0.0, %v6960
      %v6962 = vpop.f32.mrb[0].mxu0
      %6963 = vmatprep.mubr.bf16.mxu0 0
      %6964 = vmatmul.mubr.bf16.gmra.mrb[0].mxu0 %v6856
      %v6965 = vpop.f32.mrb[0].mxu0
      %v6966 = vadd.f32 0.0, %v6965
      %v6967 = vpop.f32.mrb[0].mxu0
      %v6968 = vpop.f32.mrb[0].mxu0
      %v6969 = vadd.f32 0.0, %v6968
      %v6970 = vpop.f32.mrb[0].mxu0
      %6971 = vmatprep.mubr.bf16.mxu0 0
      %6972 = vmatmul.mubr.bf16.gmra.mrb[0].mxu0 %v6859
      %v6973 = vpop.f32.mrb[0].mxu0
      %v6974 = vadd.f32 0.0, %v6973
      %v6975 = vpop.f32.mrb[0].mxu0
      %v6976 = vpop.f32.mrb[0].mxu0
      %v6977 = vadd.f32 0.0, %v6976
      %v6978 = vpop.f32.mrb[0].mxu0
      %6979 = vmatprep.mubr.bf16.mxu0 0
      %6980 = vmatmul.mubr.bf16.gmra.mrb[0].mxu0 %v6862
      %v6981 = vpop.f32.mrb[0].mxu0
      %v6982 = vadd.f32 0.0, %v6981
      %v6983 = vpop.f32.mrb[0].mxu0
      %v6984 = vpop.f32.mrb[0].mxu0
      %v6985 = vadd.f32 0.0, %v6984
      %v6986 = vpop.f32.mrb[0].mxu0
      %6987 = vmatprep.mubr.bf16.mxu0 0
      %6988 = vmatmul.mubr.bf16.gmra.mrb[0].mxu0 %v6865
      %v6989 = vpop.f32.mrb[0].mxu0
      %v6990 = vadd.f32 0.0, %v6989
      %v6991 = vpop.f32.mrb[0].mxu0
      %v6992 = vpop.f32.mrb[0].mxu0
      %v6993 = vadd.f32 0.0, %v6992
      %v6994 = vpop.f32.mrb[0].mxu0
      %6995 = vmatprep.mubr.bf16.mxu0 0
      %6996 = vmatmul.mubr.bf16.gmra.mrb[0].mxu0 %v6868
      %v6997 = vpop.f32.mrb[0].mxu0
      %v6998 = vadd.f32 0.0, %v6997
      %v6999 = vpop.f32.mrb[0].mxu0
      %v7000 = vpop.f32.mrb[0].mxu0
      %v7001 = vadd.f32 0.0, %v7000
      %v7002 = vpop.f32.mrb[0].mxu0
      %7003 = vmatprep.mubr.bf16.mxu0 0
      %7004 = vmatmul.mubr.bf16.gmra.mrb[0].mxu0 %v6871
      %v7005 = vpop.f32.mrb[0].mxu0
      %v7006 = vadd.f32 0.0, %v7005
      %v7007 = vpop.f32.mrb[0].mxu0
      %v7008 = vpop.f32.mrb[0].mxu0
      %v7009 = vadd.f32 0.0, %v7008
      %v7010 = vpop.f32.mrb[0].mxu0
      %7011 = vmatprep.mubr.bf16.mxu0 0
      %7012 = vmatmul.mubr.bf16.gmra.mrb[0].mxu0 %v6874
      %v7013 = vpop.f32.mrb[0].mxu0
      %v7014 = vadd.f32 0.0, %v7013
      %v7015 = vpop.f32.mrb[0].mxu0
      %v7016 = vpop.f32.mrb[0].mxu0
      %v7017 = vadd.f32 0.0, %v7016
      %v7018 = vpop.f32.mrb[0].mxu0
      %7019 = vmatprep.mubr.bf16.mxu0 0
      %7020 = vmatmul.mubr.bf16.gmra.mrb[0].mxu0 %v6877
      %v7021 = vpop.f32.mrb[0].mxu0
      %v7022 = vadd.f32 0.0, %v7021
      %v7023 = vpop.f32.mrb[0].mxu0
      %v7024 = vpop.f32.mrb[0].mxu0
      %v7025 = vadd.f32 0.0, %v7024
      %v7026 = vpop.f32.mrb[0].mxu0
      %7027 = vmatprep.mubr.bf16.mxu0 0
      %7028 = vmatmul.mubr.bf16.gmra.mrb[0].mxu0 %v6880
      %v7029 = vpop.f32.mrb[0].mxu0
      %v7030 = vadd.f32 0.0, %v7029
      %v7031 = vpop.f32.mrb[0].mxu0
      %v7032 = vpop.f32.mrb[0].mxu0
      %v7033 = vadd.f32 0.0, %v7032
      %v7034 = vpop.f32.mrb[0].mxu0
      %7035 = vmatprep.mubr.bf16.mxu0 0
      %7036 = vmatmul.mubr.bf16.gmra.mrb[0].mxu0 %v6883
      %v7037 = vpop.f32.mrb[0].mxu0
      %v7038 = vadd.f32 0.0, %v7037
      %v7039 = vpop.f32.mrb[0].mxu0
      %v7040 = vpop.f32.mrb[0].mxu0
      %v7041 = vadd.f32 0.0, %v7040
      %v7042 = vpop.f32.mrb[0].mxu0
      %7043 = vmatprep.mubr.bf16.mxu0 0
      %7044 = vmatmul.mubr.bf16.gmra.mrb[0].mxu0 %v6886
      %v7045 = vpop.f32.mrb[0].mxu0
      %v7046 = vadd.f32 0.0, %v7045
      %v7047 = vpop.f32.mrb[0].mxu0
      %v7048 = vpop.f32.mrb[0].mxu0
      %v7049 = vadd.f32 0.0, %v7048
      %v7050 = vpop.f32.mrb[0].mxu0
      %7051 = vdwg.mxu0
      %v7052 = vadd.f32 %v6655, %v6926
      %v7053 = vadd.f32 %v6656, %v6929
      %v7054 = vadd.f32 %v6657, %v6934
      %v7055 = vadd.f32 %v6658, %v6937
      %v7056 = vadd.f32 %v6659, %v6942
      %v7057 = vadd.f32 %v6660, %v6945
      %v7058 = vadd.f32 %v6661, %v6950
      %v7059 = vadd.f32 %v6662, %v6953
      %v7060 = vadd.f32 %v6663, %v6958
      %v7061 = vadd.f32 %v6664, %v6961
      %v7062 = vadd.f32 %v6665, %v6966
      %v7063 = vadd.f32 %v6666, %v6969
      %v7064 = vadd.f32 %v6667, %v6974
      %v7065 = vadd.f32 %v6668, %v6977
      %v7066 = vadd.f32 %v6669, %v6982
      %v7067 = vadd.f32 %v6670, %v6985
      %v7068 = vadd.f32 %v6671, %v6990
      %v7069 = vadd.f32 %v6672, %v6993
      %v7070 = vadd.f32 %v6673, %v6998
      %v7071 = vadd.f32 %v6674, %v7001
      %v7072 = vadd.f32 %v6675, %v7006
      %v7073 = vadd.f32 %v6676, %v7009
      %v7074 = vadd.f32 %v6677, %v7014
      %v7075 = vadd.f32 %v6678, %v7017
      %v7076 = vadd.f32 %v6679, %v7022
      %v7077 = vadd.f32 %v6680, %v7025
      %v7078 = vadd.f32 %v6681, %v7030
      %v7079 = vadd.f32 %v6682, %v7033
      %v7080 = vadd.f32 %v6683, %v7038
      %v7081 = vadd.f32 %v6684, %v7041
      %v7082 = vadd.f32 %v6685, %v7046
      %v7083 = vadd.f32 %v6686, %v7049
      %s7084 = scalar_lea.vmem %s4, 14
      %v7085 = vld [vmem:[%s7084] sm:$0x3]
      %v7087 = vsel %vm1062, %v6276, 0
      %v7090 = vsel %vm1062, %v6277, 0
      %v7093 = vsel %vm1062, %v6278, 0
      %v7096 = vsel %vm1062, %v6279, 0
      %v7099 = vsel %vm1062, %v6280, 0
      %v7102 = vsel %vm1062, %v6281, 0
      %v7105 = vsel %vm1062, %v6282, 0
      %v7108 = vsel %vm1062, %v6283, 0
      %v7111 = vsel %vm1062, %v6284, 0
      %v7114 = vsel %vm1062, %v6285, 0
      %v7117 = vsel %vm1062, %v6286, 0
      %v7120 = vsel %vm1062, %v6287, 0
      %v7123 = vsel %vm1062, %v6288, 0
      %v7126 = vsel %vm1062, %v6289, 0
      %v7129 = vsel %vm1062, %v6290, 0
      %v7132 = vsel %vm1062, %v6688, 0
      %v7135 = vsel %vm1309, %v7085, 0
      %7137 = vmatprep.subr.bf16.mxu0 0
      %7138 = vmatpush1.bf16.msra.mxu0 %v7135
      %7139 = vmatprep.subr.bf16.mxu0 0
      %7140 = vmatpush1.bf16.msra.mxu0 0
      %7141 = vmatprep.subr.bf16.mxu0 0
      %7142 = vmatpush1.bf16.msra.mxu0 0
      %7143 = vmatprep.subr.bf16.mxu0 0
      %7144 = vmatpush1.bf16.msra.mxu0 0
      %7145 = vmatprep.subr.bf16.mxu0 0
      %7146 = vmatpush1.bf16.msra.mxu0 0
      %7147 = vmatprep.subr.bf16.mxu0 0
      %7148 = vmatpush1.bf16.msra.mxu0 0
      %7149 = vmatprep.subr.bf16.mxu0 0
      %7150 = vmatpush1.bf16.msra.mxu0 0
      %7151 = vmatprep.subr.bf16.mxu0 0
      %7152 = vmatpush1.bf16.msra.mxu0 0
      %7153 = vmatprep.subr.bf16.mxu0 0
      %7154 = vmatpush1.bf16.msra.mxu0 0
      %7155 = vmatprep.subr.bf16.mxu0 0
      %7156 = vmatpush1.bf16.msra.mxu0 0
      %7157 = vmatprep.subr.bf16.mxu0 0
      %7158 = vmatpush1.bf16.msra.mxu0 0
      %7159 = vmatprep.subr.bf16.mxu0 0
      %7160 = vmatpush1.bf16.msra.mxu0 0
      %7161 = vmatprep.subr.bf16.mxu0 0
      %7162 = vmatpush1.bf16.msra.mxu0 0
      %7163 = vmatprep.subr.bf16.mxu0 0
      %7164 = vmatpush1.bf16.msra.mxu0 0
      %7165 = vmatprep.subr.bf16.mxu0 0
      %7166 = vmatpush1.bf16.msra.mxu0 0
      %7167 = vmatprep.subr.bf16.mxu0 0
      %7168 = vmatpush1.bf16.msra.mxu0 0
      %7169 = vmatprep.mubr.bf16.mxu0 0
      %7170 = vmatmul.mubr.bf16.gmra.mrb[0].mxu0 %v7087
      %v7171 = vpop.f32.mrb[0].mxu0
      %v7172 = vadd.f32 0.0, %v7171
      %v7173 = vpop.f32.mrb[0].mxu0
      %v7174 = vpop.f32.mrb[0].mxu0
      %v7175 = vadd.f32 0.0, %v7174
      %v7176 = vpop.f32.mrb[0].mxu0
      %7177 = vmatprep.mubr.bf16.mxu0 0
      %7178 = vmatmul.mubr.bf16.gmra.mrb[0].mxu0 %v7090
      %v7179 = vpop.f32.mrb[0].mxu0
      %v7180 = vadd.f32 0.0, %v7179
      %v7181 = vpop.f32.mrb[0].mxu0
      %v7182 = vpop.f32.mrb[0].mxu0
      %v7183 = vadd.f32 0.0, %v7182
      %v7184 = vpop.f32.mrb[0].mxu0
      %7185 = vmatprep.mubr.bf16.mxu0 0
      %7186 = vmatmul.mubr.bf16.gmra.mrb[0].mxu0 %v7093
      %v7187 = vpop.f32.mrb[0].mxu0
      %v7188 = vadd.f32 0.0, %v7187
      %v7189 = vpop.f32.mrb[0].mxu0
      %v7190 = vpop.f32.mrb[0].mxu0
      %v7191 = vadd.f32 0.0, %v7190
      %v7192 = vpop.f32.mrb[0].mxu0
      %7193 = vmatprep.mubr.bf16.mxu0 0
      %7194 = vmatmul.mubr.bf16.gmra.mrb[0].mxu0 %v7096
      %v7195 = vpop.f32.mrb[0].mxu0
      %v7196 = vadd.f32 0.0, %v7195
      %v7197 = vpop.f32.mrb[0].mxu0
      %v7198 = vpop.f32.mrb[0].mxu0
      %v7199 = vadd.f32 0.0, %v7198
      %v7200 = vpop.f32.mrb[0].mxu0
      %7201 = vmatprep.mubr.bf16.mxu0 0
      %7202 = vmatmul.mubr.bf16.gmra.mrb[0].mxu0 %v7099
      %v7203 = vpop.f32.mrb[0].mxu0
      %v7204 = vadd.f32 0.0, %v7203
      %v7205 = vpop.f32.mrb[0].mxu0
      %v7206 = vpop.f32.mrb[0].mxu0
      %v7207 = vadd.f32 0.0, %v7206
      %v7208 = vpop.f32.mrb[0].mxu0
      %7209 = vmatprep.mubr.bf16.mxu0 0
      %7210 = vmatmul.mubr.bf16.gmra.mrb[0].mxu0 %v7102
      %v7211 = vpop.f32.mrb[0].mxu0
      %v7212 = vadd.f32 0.0, %v7211
      %v7213 = vpop.f32.mrb[0].mxu0
      %v7214 = vpop.f32.mrb[0].mxu0
      %v7215 = vadd.f32 0.0, %v7214
      %v7216 = vpop.f32.mrb[0].mxu0
      %7217 = vmatprep.mubr.bf16.mxu0 0
      %7218 = vmatmul.mubr.bf16.gmra.mrb[0].mxu0 %v7105
      %v7219 = vpop.f32.mrb[0].mxu0
      %v7220 = vadd.f32 0.0, %v7219
      %v7221 = vpop.f32.mrb[0].mxu0
      %v7222 = vpop.f32.mrb[0].mxu0
      %v7223 = vadd.f32 0.0, %v7222
      %v7224 = vpop.f32.mrb[0].mxu0
      %7225 = vmatprep.mubr.bf16.mxu0 0
      %7226 = vmatmul.mubr.bf16.gmra.mrb[0].mxu0 %v7108
      %v7227 = vpop.f32.mrb[0].mxu0
      %v7228 = vadd.f32 0.0, %v7227
      %v7229 = vpop.f32.mrb[0].mxu0
      %v7230 = vpop.f32.mrb[0].mxu0
      %v7231 = vadd.f32 0.0, %v7230
      %v7232 = vpop.f32.mrb[0].mxu0
      %7233 = vmatprep.mubr.bf16.mxu0 0
      %7234 = vmatmul.mubr.bf16.gmra.mrb[0].mxu0 %v7111
      %v7235 = vpop.f32.mrb[0].mxu0
      %v7236 = vadd.f32 0.0, %v7235
      %v7237 = vpop.f32.mrb[0].mxu0
      %v7238 = vpop.f32.mrb[0].mxu0
      %v7239 = vadd.f32 0.0, %v7238
      %v7240 = vpop.f32.mrb[0].mxu0
      %7241 = vmatprep.mubr.bf16.mxu0 0
      %7242 = vmatmul.mubr.bf16.gmra.mrb[0].mxu0 %v7114
      %v7243 = vpop.f32.mrb[0].mxu0
      %v7244 = vadd.f32 0.0, %v7243
      %v7245 = vpop.f32.mrb[0].mxu0
      %v7246 = vpop.f32.mrb[0].mxu0
      %v7247 = vadd.f32 0.0, %v7246
      %v7248 = vpop.f32.mrb[0].mxu0
      %7249 = vmatprep.mubr.bf16.mxu0 0
      %7250 = vmatmul.mubr.bf16.gmra.mrb[0].mxu0 %v7117
      %v7251 = vpop.f32.mrb[0].mxu0
      %v7252 = vadd.f32 0.0, %v7251
      %v7253 = vpop.f32.mrb[0].mxu0
      %v7254 = vpop.f32.mrb[0].mxu0
      %v7255 = vadd.f32 0.0, %v7254
      %v7256 = vpop.f32.mrb[0].mxu0
      %7257 = vmatprep.mubr.bf16.mxu0 0
      %7258 = vmatmul.mubr.bf16.gmra.mrb[0].mxu0 %v7120
      %v7259 = vpop.f32.mrb[0].mxu0
      %v7260 = vadd.f32 0.0, %v7259
      %v7261 = vpop.f32.mrb[0].mxu0
      %v7262 = vpop.f32.mrb[0].mxu0
      %v7263 = vadd.f32 0.0, %v7262
      %v7264 = vpop.f32.mrb[0].mxu0
      %7265 = vmatprep.mubr.bf16.mxu0 0
      %7266 = vmatmul.mubr.bf16.gmra.mrb[0].mxu0 %v7123
      %v7267 = vpop.f32.mrb[0].mxu0
      %v7268 = vadd.f32 0.0, %v7267
      %v7269 = vpop.f32.mrb[0].mxu0
      %v7270 = vpop.f32.mrb[0].mxu0
      %v7271 = vadd.f32 0.0, %v7270
      %v7272 = vpop.f32.mrb[0].mxu0
      %7273 = vmatprep.mubr.bf16.mxu0 0
      %7274 = vmatmul.mubr.bf16.gmra.mrb[0].mxu0 %v7126
      %v7275 = vpop.f32.mrb[0].mxu0
      %v7276 = vadd.f32 0.0, %v7275
      %v7277 = vpop.f32.mrb[0].mxu0
      %v7278 = vpop.f32.mrb[0].mxu0
      %v7279 = vadd.f32 0.0, %v7278
      %v7280 = vpop.f32.mrb[0].mxu0
      %7281 = vmatprep.mubr.bf16.mxu0 0
      %7282 = vmatmul.mubr.bf16.gmra.mrb[0].mxu0 %v7129
      %v7283 = vpop.f32.mrb[0].mxu0
      %v7284 = vadd.f32 0.0, %v7283
      %v7285 = vpop.f32.mrb[0].mxu0
      %v7286 = vpop.f32.mrb[0].mxu0
      %v7287 = vadd.f32 0.0, %v7286
      %v7288 = vpop.f32.mrb[0].mxu0
      %7289 = vmatprep.mubr.bf16.mxu0 0
      %7290 = vmatmul.mubr.bf16.gmra.mrb[0].mxu0 %v7132
      %v7291 = vpop.f32.mrb[0].mxu0
      %v7292 = vadd.f32 0.0, %v7291
      %v7293 = vpop.f32.mrb[0].mxu0
      %v7294 = vpop.f32.mrb[0].mxu0
      %v7295 = vadd.f32 0.0, %v7294
      %v7296 = vpop.f32.mrb[0].mxu0
      %7297 = vdwg.mxu0
      %v7298 = vadd.f32 %v7052, %v7172
      %v7299 = vadd.f32 %v7053, %v7175
      %v7300 = vadd.f32 %v7054, %v7180
      %v7301 = vadd.f32 %v7055, %v7183
      %v7302 = vadd.f32 %v7056, %v7188
      %v7303 = vadd.f32 %v7057, %v7191
      %v7304 = vadd.f32 %v7058, %v7196
      %v7305 = vadd.f32 %v7059, %v7199
      %v7306 = vadd.f32 %v7060, %v7204
      %v7307 = vadd.f32 %v7061, %v7207
      %v7308 = vadd.f32 %v7062, %v7212
      %v7309 = vadd.f32 %v7063, %v7215
      %v7310 = vadd.f32 %v7064, %v7220
      %v7311 = vadd.f32 %v7065, %v7223
      %v7312 = vadd.f32 %v7066, %v7228
      %v7313 = vadd.f32 %v7067, %v7231
      %v7314 = vadd.f32 %v7068, %v7236
      %v7315 = vadd.f32 %v7069, %v7239
      %v7316 = vadd.f32 %v7070, %v7244
      %v7317 = vadd.f32 %v7071, %v7247
      %v7318 = vadd.f32 %v7072, %v7252
      %v7319 = vadd.f32 %v7073, %v7255
      %v7320 = vadd.f32 %v7074, %v7260
      %v7321 = vadd.f32 %v7075, %v7263
      %v7322 = vadd.f32 %v7076, %v7268
      %v7323 = vadd.f32 %v7077, %v7271
      %v7324 = vadd.f32 %v7078, %v7276
      %v7325 = vadd.f32 %v7079, %v7279
      %v7326 = vadd.f32 %v7080, %v7284
      %v7327 = vadd.f32 %v7081, %v7287
      %v7328 = vadd.f32 %v7082, %v7292
      %v7329 = vadd.f32 %v7083, %v7295
      %v7330 = vld [vmem:[#allocation3 + $0x18] sm:$0xff]
      %v7331 = vld [vmem:[#allocation3 + $0x20] sm:$0xff]
      %v7332 = vld [vmem:[#allocation3 + $0x28] sm:$0xff]
      %v7333 = vld [vmem:[#allocation3 + $0x30] sm:$0xff]
      %v7334 = vld [vmem:[#allocation3 + $0x38] sm:$0xff]
      %v7335 = vld [vmem:[#allocation3 + $0x40] sm:$0xff]
      %v7336 = vld [vmem:[#allocation3 + $0x48] sm:$0xff]
      %v7337 = vld [vmem:[#allocation3 + $0x50] sm:$0xff]
      %v7338 = vld [vmem:[#allocation3 + $0x58] sm:$0xff]
      %v7339 = vld [vmem:[#allocation3 + $0x60] sm:$0xff]
      %v7340 = vld [vmem:[#allocation3 + $0x68] sm:$0xff]
      %v7341 = vld [vmem:[#allocation3 + $0x70] sm:$0xff]
      %v7342 = vld [vmem:[#allocation3 + $0x78] sm:$0xff]
      %v7343 = vld [vmem:[#allocation3 + $0x80] sm:$0xff]
      %v7344 = vld [vmem:[#allocation3 + $0x88] sm:$0xff]
      %v7345 = vld [vmem:[#allocation3 + $0x90] sm:$0xff]
      %v7346 = vld [vmem:[#allocation3 + $0x98] sm:$0x1]
      %v7347 = vmul.bf16 %v7330, %v1842
      %v7348 = vmul.bf16 %v7331, %v1850
      %v7349 = vmul.bf16 %v7332, %v1858
      %v7350 = vmul.bf16 %v7333, %v1866
      %v7351 = vmul.bf16 %v7334, %v1874
      %v7352 = vmul.bf16 %v7335, %v1882
      %v7353 = vmul.bf16 %v7336, %v1890
      %v7354 = vmul.bf16 %v7337, %v1898
      %v7355 = vmul.bf16 %v7338, %v1906
      %v7356 = vmul.bf16 %v7339, %v1914
      %v7357 = vmul.bf16 %v7340, %v1922
      %v7358 = vmul.bf16 %v7341, %v1930
      %v7359 = vmul.bf16 %v7342, %v1938
      %v7360 = vmul.bf16 %v7343, %v1946
      %v7361 = vmul.bf16 %v7344, %v1954
      %v7362 = vmul.bf16 %v7345, %v1962
      %v7363 = vmul.bf16 %v7346, %v1958
      %s7364 = scalar_lea.vmem %s4, 16
      %v7365 = vld [vmem:[%s7364] sm:$0x3]
      %v7367 = vshrl.u32 %v7347, 16
      %v7369 = vshll.u32 %v7347, 16
      %v7371 = vrot.slane %v7369, 1
      %v7372 = vor.u32 %v7367, %v7371
      %v7374 = vshll.u32 %v7348, 16
      %v7376 = vrot.slane %v7374, 1
      %v7377 = vsel %vm1096, %v7372, %v7376
      %v7378 = vshrl.u32 %v7348, 16
      %v7380 = vor.u32 %v7378, %v7376
      %v7382 = vshll.u32 %v7349, 16
      %v7384 = vrot.slane %v7382, 1
      %v7385 = vsel %vm1096, %v7380, %v7384
      %v7386 = vshrl.u32 %v7349, 16
      %v7388 = vor.u32 %v7386, %v7384
      %v7390 = vshll.u32 %v7350, 16
      %v7392 = vrot.slane %v7390, 1
      %v7393 = vsel %vm1096, %v7388, %v7392
      %v7394 = vshrl.u32 %v7350, 16
      %v7396 = vor.u32 %v7394, %v7392
      %v7398 = vshll.u32 %v7351, 16
      %v7400 = vrot.slane %v7398, 1
      %v7401 = vsel %vm1096, %v7396, %v7400
      %v7402 = vshrl.u32 %v7351, 16
      %v7404 = vor.u32 %v7402, %v7400
      %v7406 = vshll.u32 %v7352, 16
      %v7408 = vrot.slane %v7406, 1
      %v7409 = vsel %vm1096, %v7404, %v7408
      %v7410 = vshrl.u32 %v7352, 16
      %v7412 = vor.u32 %v7410, %v7408
      %v7414 = vshll.u32 %v7353, 16
      %v7416 = vrot.slane %v7414, 1
      %v7417 = vsel %vm1096, %v7412, %v7416
      %v7418 = vshrl.u32 %v7353, 16
      %v7420 = vor.u32 %v7418, %v7416
      %v7422 = vshll.u32 %v7354, 16
      %v7424 = vrot.slane %v7422, 1
      %v7425 = vsel %vm1096, %v7420, %v7424
      %v7426 = vshrl.u32 %v7354, 16
      %v7428 = vor.u32 %v7426, %v7424
      %v7430 = vshll.u32 %v7355, 16
      %v7432 = vrot.slane %v7430, 1
      %v7433 = vsel %vm1096, %v7428, %v7432
      %v7434 = vshrl.u32 %v7355, 16
      %v7436 = vor.u32 %v7434, %v7432
      %v7438 = vshll.u32 %v7356, 16
      %v7440 = vrot.slane %v7438, 1
      %v7441 = vsel %vm1096, %v7436, %v7440
      %v7442 = vshrl.u32 %v7356, 16
      %v7444 = vor.u32 %v7442, %v7440
      %v7446 = vshll.u32 %v7357, 16
      %v7448 = vrot.slane %v7446, 1
      %v7449 = vsel %vm1096, %v7444, %v7448
      %v7450 = vshrl.u32 %v7357, 16
      %v7452 = vor.u32 %v7450, %v7448
      %v7454 = vshll.u32 %v7358, 16
      %v7456 = vrot.slane %v7454, 1
      %v7457 = vsel %vm1096, %v7452, %v7456
      %v7458 = vshrl.u32 %v7358, 16
      %v7460 = vor.u32 %v7458, %v7456
      %v7462 = vshll.u32 %v7359, 16
      %v7464 = vrot.slane %v7462, 1
      %v7465 = vsel %vm1096, %v7460, %v7464
      %v7466 = vshrl.u32 %v7359, 16
      %v7468 = vor.u32 %v7466, %v7464
      %v7470 = vshll.u32 %v7360, 16
      %v7472 = vrot.slane %v7470, 1
      %v7473 = vsel %vm1096, %v7468, %v7472
      %v7474 = vshrl.u32 %v7360, 16
      %v7476 = vor.u32 %v7474, %v7472
      %v7478 = vshll.u32 %v7361, 16
      %v7480 = vrot.slane %v7478, 1
      %v7481 = vsel %vm1096, %v7476, %v7480
      %v7482 = vshrl.u32 %v7361, 16
      %v7484 = vor.u32 %v7482, %v7480
      %v7486 = vshll.u32 %v7362, 16
      %v7488 = vrot.slane %v7486, 1
      %v7489 = vsel %vm1096, %v7484, %v7488
      %v7490 = vshrl.u32 %v7362, 16
      %v7492 = vor.u32 %v7490, %v7488
      %v7494 = vshll.u32 %v7363, 16
      %v7496 = vrot.slane %v7494, 1
      %v7497 = vsel %vm1096, %v7492, %v7496
      %v7499 = vsel %vm1062, %v7377, 0
      %v7502 = vsel %vm1062, %v7385, 0
      %v7505 = vsel %vm1062, %v7393, 0
      %v7508 = vsel %vm1062, %v7401, 0
      %v7511 = vsel %vm1062, %v7409, 0
      %v7514 = vsel %vm1062, %v7417, 0
      %v7517 = vsel %vm1062, %v7425, 0
      %v7520 = vsel %vm1062, %v7433, 0
      %v7523 = vsel %vm1062, %v7441, 0
      %v7526 = vsel %vm1062, %v7449, 0
      %v7529 = vsel %vm1062, %v7457, 0
      %v7532 = vsel %vm1062, %v7465, 0
      %v7535 = vsel %vm1062, %v7473, 0
      %v7538 = vsel %vm1062, %v7481, 0
      %v7541 = vsel %vm1062, %v7489, 0
      %v7544 = vsel %vm1062, %v7497, 0
      %v7547 = vsel %vm1309, %v7365, 0
      %7549 = vmatprep.subr.bf16.mxu0 0
      %7550 = vmatpush1.bf16.msra.mxu0 %v7547
      %7551 = vmatprep.subr.bf16.mxu0 0
      %7552 = vmatpush1.bf16.msra.mxu0 0
      %7553 = vmatprep.subr.bf16.mxu0 0
      %7554 = vmatpush1.bf16.msra.mxu0 0
      %7555 = vmatprep.subr.bf16.mxu0 0
      %7556 = vmatpush1.bf16.msra.mxu0 0
      %7557 = vmatprep.subr.bf16.mxu0 0
      %7558 = vmatpush1.bf16.msra.mxu0 0
      %7559 = vmatprep.subr.bf16.mxu0 0
      %7560 = vmatpush1.bf16.msra.mxu0 0
      %7561 = vmatprep.subr.bf16.mxu0 0
      %7562 = vmatpush1.bf16.msra.mxu0 0
      %7563 = vmatprep.subr.bf16.mxu0 0
      %7564 = vmatpush1.bf16.msra.mxu0 0
      %7565 = vmatprep.subr.bf16.mxu0 0
      %7566 = vmatpush1.bf16.msra.mxu0 0
      %7567 = vmatprep.subr.bf16.mxu0 0
      %7568 = vmatpush1.bf16.msra.mxu0 0
      %7569 = vmatprep.subr.bf16.mxu0 0
      %7570 = vmatpush1.bf16.msra.mxu0 0
      %7571 = vmatprep.subr.bf16.mxu0 0
      %7572 = vmatpush1.bf16.msra.mxu0 0
      %7573 = vmatprep.subr.bf16.mxu0 0
      %7574 = vmatpush1.bf16.msra.mxu0 0
      %7575 = vmatprep.subr.bf16.mxu0 0
      %7576 = vmatpush1.bf16.msra.mxu0 0
      %7577 = vmatprep.subr.bf16.mxu0 0
      %7578 = vmatpush1.bf16.msra.mxu0 0
      %7579 = vmatprep.subr.bf16.mxu0 0
      %7580 = vmatpush1.bf16.msra.mxu0 0
      %7581 = vmatprep.mubr.bf16.mxu0 0
      %7582 = vmatmul.mubr.bf16.gmra.mrb[0].mxu0 %v7499
      %v7583 = vpop.f32.mrb[0].mxu0
      %v7584 = vadd.f32 0.0, %v7583
      %v7585 = vpop.f32.mrb[0].mxu0
      %v7586 = vpop.f32.mrb[0].mxu0
      %v7587 = vadd.f32 0.0, %v7586
      %v7588 = vpop.f32.mrb[0].mxu0
      %7589 = vmatprep.mubr.bf16.mxu0 0
      %7590 = vmatmul.mubr.bf16.gmra.mrb[0].mxu0 %v7502
      %v7591 = vpop.f32.mrb[0].mxu0
      %v7592 = vadd.f32 0.0, %v7591
      %v7593 = vpop.f32.mrb[0].mxu0
      %v7594 = vpop.f32.mrb[0].mxu0
      %v7595 = vadd.f32 0.0, %v7594
      %v7596 = vpop.f32.mrb[0].mxu0
      %7597 = vmatprep.mubr.bf16.mxu0 0
      %7598 = vmatmul.mubr.bf16.gmra.mrb[0].mxu0 %v7505
      %v7599 = vpop.f32.mrb[0].mxu0
      %v7600 = vadd.f32 0.0, %v7599
      %v7601 = vpop.f32.mrb[0].mxu0
      %v7602 = vpop.f32.mrb[0].mxu0
      %v7603 = vadd.f32 0.0, %v7602
      %v7604 = vpop.f32.mrb[0].mxu0
      %7605 = vmatprep.mubr.bf16.mxu0 0
      %7606 = vmatmul.mubr.bf16.gmra.mrb[0].mxu0 %v7508
      %v7607 = vpop.f32.mrb[0].mxu0
      %v7608 = vadd.f32 0.0, %v7607
      %v7609 = vpop.f32.mrb[0].mxu0
      %v7610 = vpop.f32.mrb[0].mxu0
      %v7611 = vadd.f32 0.0, %v7610
      %v7612 = vpop.f32.mrb[0].mxu0
      %7613 = vmatprep.mubr.bf16.mxu0 0
      %7614 = vmatmul.mubr.bf16.gmra.mrb[0].mxu0 %v7511
      %v7615 = vpop.f32.mrb[0].mxu0
      %v7616 = vadd.f32 0.0, %v7615
      %v7617 = vpop.f32.mrb[0].mxu0
      %v7618 = vpop.f32.mrb[0].mxu0
      %v7619 = vadd.f32 0.0, %v7618
      %v7620 = vpop.f32.mrb[0].mxu0
      %7621 = vmatprep.mubr.bf16.mxu0 0
      %7622 = vmatmul.mubr.bf16.gmra.mrb[0].mxu0 %v7514
      %v7623 = vpop.f32.mrb[0].mxu0
      %v7624 = vadd.f32 0.0, %v7623
      %v7625 = vpop.f32.mrb[0].mxu0
      %v7626 = vpop.f32.mrb[0].mxu0
      %v7627 = vadd.f32 0.0, %v7626
      %v7628 = vpop.f32.mrb[0].mxu0
      %7629 = vmatprep.mubr.bf16.mxu0 0
      %7630 = vmatmul.mubr.bf16.gmra.mrb[0].mxu0 %v7517
      %v7631 = vpop.f32.mrb[0].mxu0
      %v7632 = vadd.f32 0.0, %v7631
      %v7633 = vpop.f32.mrb[0].mxu0
      %v7634 = vpop.f32.mrb[0].mxu0
      %v7635 = vadd.f32 0.0, %v7634
      %v7636 = vpop.f32.mrb[0].mxu0
      %7637 = vmatprep.mubr.bf16.mxu0 0
      %7638 = vmatmul.mubr.bf16.gmra.mrb[0].mxu0 %v7520
      %v7639 = vpop.f32.mrb[0].mxu0
      %v7640 = vadd.f32 0.0, %v7639
      %v7641 = vpop.f32.mrb[0].mxu0
      %v7642 = vpop.f32.mrb[0].mxu0
      %v7643 = vadd.f32 0.0, %v7642
      %v7644 = vpop.f32.mrb[0].mxu0
      %7645 = vmatprep.mubr.bf16.mxu0 0
      %7646 = vmatmul.mubr.bf16.gmra.mrb[0].mxu0 %v7523
      %v7647 = vpop.f32.mrb[0].mxu0
      %v7648 = vadd.f32 0.0, %v7647
      %v7649 = vpop.f32.mrb[0].mxu0
      %v7650 = vpop.f32.mrb[0].mxu0
      %v7651 = vadd.f32 0.0, %v7650
      %v7652 = vpop.f32.mrb[0].mxu0
      %7653 = vmatprep.mubr.bf16.mxu0 0
      %7654 = vmatmul.mubr.bf16.gmra.mrb[0].mxu0 %v7526
      %v7655 = vpop.f32.mrb[0].mxu0
      %v7656 = vadd.f32 0.0, %v7655
      %v7657 = vpop.f32.mrb[0].mxu0
      %v7658 = vpop.f32.mrb[0].mxu0
      %v7659 = vadd.f32 0.0, %v7658
      %v7660 = vpop.f32.mrb[0].mxu0
      %7661 = vmatprep.mubr.bf16.mxu0 0
      %7662 = vmatmul.mubr.bf16.gmra.mrb[0].mxu0 %v7529
      %v7663 = vpop.f32.mrb[0].mxu0
      %v7664 = vadd.f32 0.0, %v7663
      %v7665 = vpop.f32.mrb[0].mxu0
      %v7666 = vpop.f32.mrb[0].mxu0
      %v7667 = vadd.f32 0.0, %v7666
      %v7668 = vpop.f32.mrb[0].mxu0
      %7669 = vmatprep.mubr.bf16.mxu0 0
      %7670 = vmatmul.mubr.bf16.gmra.mrb[0].mxu0 %v7532
      %v7671 = vpop.f32.mrb[0].mxu0
      %v7672 = vadd.f32 0.0, %v7671
      %v7673 = vpop.f32.mrb[0].mxu0
      %v7674 = vpop.f32.mrb[0].mxu0
      %v7675 = vadd.f32 0.0, %v7674
      %v7676 = vpop.f32.mrb[0].mxu0
      %7677 = vmatprep.mubr.bf16.mxu0 0
      %7678 = vmatmul.mubr.bf16.gmra.mrb[0].mxu0 %v7535
      %v7679 = vpop.f32.mrb[0].mxu0
      %v7680 = vadd.f32 0.0, %v7679
      %v7681 = vpop.f32.mrb[0].mxu0
      %v7682 = vpop.f32.mrb[0].mxu0
      %v7683 = vadd.f32 0.0, %v7682
      %v7684 = vpop.f32.mrb[0].mxu0
      %7685 = vmatprep.mubr.bf16.mxu0 0
      %7686 = vmatmul.mubr.bf16.gmra.mrb[0].mxu0 %v7538
      %v7687 = vpop.f32.mrb[0].mxu0
      %v7688 = vadd.f32 0.0, %v7687
      %v7689 = vpop.f32.mrb[0].mxu0
      %v7690 = vpop.f32.mrb[0].mxu0
      %v7691 = vadd.f32 0.0, %v7690
      %v7692 = vpop.f32.mrb[0].mxu0
      %7693 = vmatprep.mubr.bf16.mxu0 0
      %7694 = vmatmul.mubr.bf16.gmra.mrb[0].mxu0 %v7541
      %v7695 = vpop.f32.mrb[0].mxu0
      %v7696 = vadd.f32 0.0, %v7695
      %v7697 = vpop.f32.mrb[0].mxu0
      %v7698 = vpop.f32.mrb[0].mxu0
      %v7699 = vadd.f32 0.0, %v7698
      %v7700 = vpop.f32.mrb[0].mxu0
      %7701 = vmatprep.mubr.bf16.mxu0 0
      %7702 = vmatmul.mubr.bf16.gmra.mrb[0].mxu0 %v7544
      %v7703 = vpop.f32.mrb[0].mxu0
      %v7704 = vadd.f32 0.0, %v7703
      %v7705 = vpop.f32.mrb[0].mxu0
      %v7706 = vpop.f32.mrb[0].mxu0
      %v7707 = vadd.f32 0.0, %v7706
      %v7708 = vpop.f32.mrb[0].mxu0
      %7709 = vdwg.mxu0
      %v7710 = vadd.f32 %v7298, %v7584
      %v7711 = vadd.f32 %v7299, %v7587
      %v7712 = vadd.f32 %v7300, %v7592
      %v7713 = vadd.f32 %v7301, %v7595
      %v7714 = vadd.f32 %v7302, %v7600
      %v7715 = vadd.f32 %v7303, %v7603
      %v7716 = vadd.f32 %v7304, %v7608
      %v7717 = vadd.f32 %v7305, %v7611
      %v7718 = vadd.f32 %v7306, %v7616
      %v7719 = vadd.f32 %v7307, %v7619
      %v7720 = vadd.f32 %v7308, %v7624
      %v7721 = vadd.f32 %v7309, %v7627
      %v7722 = vadd.f32 %v7310, %v7632
      %v7723 = vadd.f32 %v7311, %v7635
      %v7724 = vadd.f32 %v7312, %v7640
      %v7725 = vadd.f32 %v7313, %v7643
      %v7726 = vadd.f32 %v7314, %v7648
      %v7727 = vadd.f32 %v7315, %v7651
      %v7728 = vadd.f32 %v7316, %v7656
      %v7729 = vadd.f32 %v7317, %v7659
      %v7730 = vadd.f32 %v7318, %v7664
      %v7731 = vadd.f32 %v7319, %v7667
      %v7732 = vadd.f32 %v7320, %v7672
      %v7733 = vadd.f32 %v7321, %v7675
      %v7734 = vadd.f32 %v7322, %v7680
      %v7735 = vadd.f32 %v7323, %v7683
      %v7736 = vadd.f32 %v7324, %v7688
      %v7737 = vadd.f32 %v7325, %v7691
      %v7738 = vadd.f32 %v7326, %v7696
      %v7739 = vadd.f32 %v7327, %v7699
      %v7740 = vadd.f32 %v7328, %v7704
      %v7741 = vadd.f32 %v7329, %v7707
      %v7742 = vld [vmem:[%s5] sm:$0x1]
      %v7744 = vlaneseq
      %v7745 = vshrl.u32 %v7744, 7
      %v7746 = vsub.s32 0, %v7745
      %v7747 = vrot.slane %v7742, %v7746
      %v7749 = vmul.f32 %v7710, %v7747
      %v7750 = vmul.f32 %v7711, %v7747
      %v7751 = vmul.f32 %v7712, %v7747
      %v7752 = vmul.f32 %v7713, %v7747
      %v7753 = vmul.f32 %v7714, %v7747
      %v7754 = vmul.f32 %v7715, %v7747
      %v7755 = vmul.f32 %v7716, %v7747
      %v7756 = vmul.f32 %v7717, %v7747
      %v7757 = vmul.f32 %v7718, %v7747
      %v7758 = vmul.f32 %v7719, %v7747
      %v7759 = vmul.f32 %v7720, %v7747
      %v7760 = vmul.f32 %v7721, %v7747
      %v7761 = vmul.f32 %v7722, %v7747
      %v7762 = vmul.f32 %v7723, %v7747
      %v7763 = vmul.f32 %v7724, %v7747
      %v7764 = vmul.f32 %v7725, %v7747
      %v7765 = vmul.f32 %v7726, %v7747
      %v7766 = vmul.f32 %v7727, %v7747
      %v7767 = vmul.f32 %v7728, %v7747
      %v7768 = vmul.f32 %v7729, %v7747
      %v7769 = vmul.f32 %v7730, %v7747
      %v7770 = vmul.f32 %v7731, %v7747
      %v7771 = vmul.f32 %v7732, %v7747
      %v7772 = vmul.f32 %v7733, %v7747
      %v7773 = vmul.f32 %v7734, %v7747
      %v7774 = vmul.f32 %v7735, %v7747
      %v7775 = vmul.f32 %v7736, %v7747
      %v7776 = vmul.f32 %v7737, %v7747
      %v7777 = vmul.f32 %v7738, %v7747
      %v7778 = vmul.f32 %v7739, %v7747
      %v7779 = vmul.f32 %v7740, %v7747
      %v7780 = vmul.f32 %v7741, %v7747
      %v7781 = vld [vmem:[%s6] sm:$0x1]
      %v7783 = vlaneseq
      %v7784 = vshrl.u32 %v7783, 7
      %v7785 = vsub.s32 0, %v7784
      %v7786 = vrot.slane %v7781, %v7785
      %v7788 = vadd.f32 %v7749, %v7786
      %v7789 = vadd.f32 %v7750, %v7786
      %v7790 = vadd.f32 %v7751, %v7786
      %v7791 = vadd.f32 %v7752, %v7786
      %v7792 = vadd.f32 %v7753, %v7786
      %v7793 = vadd.f32 %v7754, %v7786
      %v7794 = vadd.f32 %v7755, %v7786
      %v7795 = vadd.f32 %v7756, %v7786
      %v7796 = vadd.f32 %v7757, %v7786
      %v7797 = vadd.f32 %v7758, %v7786
      %v7798 = vadd.f32 %v7759, %v7786
      %v7799 = vadd.f32 %v7760, %v7786
      %v7800 = vadd.f32 %v7761, %v7786
      %v7801 = vadd.f32 %v7762, %v7786
      %v7802 = vadd.f32 %v7763, %v7786
      %v7803 = vadd.f32 %v7764, %v7786
      %v7804 = vadd.f32 %v7765, %v7786
      %v7805 = vadd.f32 %v7766, %v7786
      %v7806 = vadd.f32 %v7767, %v7786
      %v7807 = vadd.f32 %v7768, %v7786
      %v7808 = vadd.f32 %v7769, %v7786
      %v7809 = vadd.f32 %v7770, %v7786
      %v7810 = vadd.f32 %v7771, %v7786
      %v7811 = vadd.f32 %v7772, %v7786
      %v7812 = vadd.f32 %v7773, %v7786
      %v7813 = vadd.f32 %v7774, %v7786
      %v7814 = vadd.f32 %v7775, %v7786
      %v7815 = vadd.f32 %v7776, %v7786
      %v7816 = vadd.f32 %v7777, %v7786
      %v7817 = vadd.f32 %v7778, %v7786
      %v7818 = vadd.f32 %v7779, %v7786
      %v7819 = vadd.f32 %v7780, %v7786
      %v7820 = vunpack.c.l.bf16 %v934
      %v7821 = vunpack.c.l.bf16 %v935
      %v7822 = vunpack.c.l.bf16 %v936
      %v7823 = vunpack.c.l.bf16 %v937
      %v7824 = vunpack.c.l.bf16 %v938
      %v7825 = vunpack.c.l.bf16 %v939
      %v7826 = vunpack.c.l.bf16 %v940
      %v7827 = vunpack.c.l.bf16 %v941
      %v7828 = vunpack.c.l.bf16 %v942
      %v7829 = vunpack.c.l.bf16 %v943
      %v7830 = vunpack.c.l.bf16 %v944
      %v7831 = vunpack.c.l.bf16 %v945
      %v7832 = vunpack.c.l.bf16 %v946
      %v7833 = vunpack.c.l.bf16 %v947
      %v7834 = vunpack.c.l.bf16 %v948
      %v7835 = vunpack.c.l.bf16 %v949
      %v7836 = vunpack.c.l.bf16 %v950
      %v7837 = vunpack.c.l.bf16 %v951
      %v7838 = vunpack.c.l.bf16 %v952
      %v7839 = vunpack.c.l.bf16 %v953
      %v7840 = vunpack.c.l.bf16 %v954
      %v7841 = vunpack.c.l.bf16 %v955
      %v7842 = vunpack.c.l.bf16 %v956
      %v7843 = vunpack.c.l.bf16 %v957
      %v7844 = vunpack.c.l.bf16 %v958
      %v7845 = vunpack.c.l.bf16 %v959
      %v7846 = vunpack.c.l.bf16 %v960
      %v7847 = vunpack.c.l.bf16 %v961
      %v7848 = vunpack.c.l.bf16 %v962
      %v7849 = vunpack.c.l.bf16 %v963
      %v7850 = vunpack.c.l.bf16 %v964
      %v7851 = vunpack.c.l.bf16 %v965
      %v7852 = vadd.f32 %v7788, %v7820
      %v7853 = vadd.f32 %v7789, %v7821
      %v7854 = vadd.f32 %v7790, %v7822
      %v7855 = vadd.f32 %v7791, %v7823
      %v7856 = vadd.f32 %v7792, %v7824
      %v7857 = vadd.f32 %v7793, %v7825
      %v7858 = vadd.f32 %v7794, %v7826
      %v7859 = vadd.f32 %v7795, %v7827
      %v7860 = vadd.f32 %v7796, %v7828
      %v7861 = vadd.f32 %v7797, %v7829
      %v7862 = vadd.f32 %v7798, %v7830
      %v7863 = vadd.f32 %v7799, %v7831
      %v7864 = vadd.f32 %v7800, %v7832
      %v7865 = vadd.f32 %v7801, %v7833
      %v7866 = vadd.f32 %v7802, %v7834
      %v7867 = vadd.f32 %v7803, %v7835
      %v7868 = vadd.f32 %v7804, %v7836
      %v7869 = vadd.f32 %v7805, %v7837
      %v7870 = vadd.f32 %v7806, %v7838
      %v7871 = vadd.f32 %v7807, %v7839
      %v7872 = vadd.f32 %v7808, %v7840
      %v7873 = vadd.f32 %v7809, %v7841
      %v7874 = vadd.f32 %v7810, %v7842
      %v7875 = vadd.f32 %v7811, %v7843
      %v7876 = vadd.f32 %v7812, %v7844
      %v7877 = vadd.f32 %v7813, %v7845
      %v7878 = vadd.f32 %v7814, %v7846
      %v7879 = vadd.f32 %v7815, %v7847
      %v7880 = vadd.f32 %v7816, %v7848
      %v7881 = vadd.f32 %v7817, %v7849
      %v7882 = vadd.f32 %v7818, %v7850
      %v7883 = vadd.f32 %v7819, %v7851
      %v7884 = vmax.f32 %v7852, 0.0
      %v7885 = vmax.f32 %v7853, 0.0
      %v7886 = vmax.f32 %v7854, 0.0
      %v7887 = vmax.f32 %v7855, 0.0
      %v7888 = vmax.f32 %v7856, 0.0
      %v7889 = vmax.f32 %v7857, 0.0
      %v7890 = vmax.f32 %v7858, 0.0
      %v7891 = vmax.f32 %v7859, 0.0
      %v7892 = vmax.f32 %v7860, 0.0
      %v7893 = vmax.f32 %v7861, 0.0
      %v7894 = vmax.f32 %v7862, 0.0
      %v7895 = vmax.f32 %v7863, 0.0
      %v7896 = vmax.f32 %v7864, 0.0
      %v7897 = vmax.f32 %v7865, 0.0
      %v7898 = vmax.f32 %v7866, 0.0
      %v7899 = vmax.f32 %v7867, 0.0
      %v7900 = vmax.f32 %v7868, 0.0
      %v7901 = vmax.f32 %v7869, 0.0
      %v7902 = vmax.f32 %v7870, 0.0
      %v7903 = vmax.f32 %v7871, 0.0
      %v7904 = vmax.f32 %v7872, 0.0
      %v7905 = vmax.f32 %v7873, 0.0
      %v7906 = vmax.f32 %v7874, 0.0
      %v7907 = vmax.f32 %v7875, 0.0
      %v7908 = vmax.f32 %v7876, 0.0
      %v7909 = vmax.f32 %v7877, 0.0
      %v7910 = vmax.f32 %v7878, 0.0
      %v7911 = vmax.f32 %v7879, 0.0
      %v7912 = vmax.f32 %v7880, 0.0
      %v7913 = vmax.f32 %v7881, 0.0
      %v7914 = vmax.f32 %v7882, 0.0
      %v7915 = vmax.f32 %v7883, 0.0
      %v7916 = vpack.c.bf16 %v7885, %v7884
      %v7917 = vpack.c.bf16 %v7887, %v7886
      %v7918 = vpack.c.bf16 %v7889, %v7888
      %v7919 = vpack.c.bf16 %v7891, %v7890
      %v7920 = vpack.c.bf16 %v7893, %v7892
      %v7921 = vpack.c.bf16 %v7895, %v7894
      %v7922 = vpack.c.bf16 %v7897, %v7896
      %v7923 = vpack.c.bf16 %v7899, %v7898
      %v7924 = vpack.c.bf16 %v7901, %v7900
      %v7925 = vpack.c.bf16 %v7903, %v7902
      %v7926 = vpack.c.bf16 %v7905, %v7904
      %v7927 = vpack.c.bf16 %v7907, %v7906
      %v7928 = vpack.c.bf16 %v7909, %v7908
      %v7929 = vpack.c.bf16 %v7911, %v7910
      %v7930 = vpack.c.bf16 %v7913, %v7912
      %v7931 = vpack.c.bf16 %v7915, %v7914
      %v7948 = vunpack.c.l.b16 %v7916
      %v7949 = vunpack.c.h.b16 %v7916
      %v7950 = vunpack.c.l.b16 %v7917
      %v7951 = vunpack.c.h.b16 %v7917
      %v7952 = vunpack.c.l.b16 %v7918
      %v7953 = vunpack.c.h.b16 %v7918
      %v7954 = vunpack.c.l.b16 %v7919
      %v7955 = vunpack.c.h.b16 %v7919
      %v7956 = vunpack.c.l.b16 %v7920
      %v7957 = vunpack.c.h.b16 %v7920
      %v7958 = vunpack.c.l.b16 %v7921
      %v7959 = vunpack.c.h.b16 %v7921
      %v7960 = vunpack.c.l.b16 %v7922
      %v7961 = vunpack.c.h.b16 %v7922
      %v7962 = vunpack.c.l.b16 %v7923
      %v7963 = vunpack.c.h.b16 %v7923
      %v7964 = vunpack.c.l.b16 %v7924
      %v7965 = vunpack.c.h.b16 %v7924
      %v7966 = vunpack.c.l.b16 %v7925
      %v7967 = vunpack.c.h.b16 %v7925
      %v7968 = vunpack.c.l.b16 %v7926
      %v7969 = vunpack.c.h.b16 %v7926
      %v7970 = vunpack.c.l.b16 %v7927
      %v7971 = vunpack.c.h.b16 %v7927
      %v7972 = vunpack.c.l.b16 %v7928
      %v7973 = vunpack.c.h.b16 %v7928
      %v7974 = vunpack.c.l.b16 %v7929
      %v7975 = vunpack.c.h.b16 %v7929
      %v7976 = vunpack.c.l.b16 %v7930
      %v7977 = vunpack.c.h.b16 %v7930
      %v7978 = vunpack.c.l.b16 %v7931
      %v7979 = vunpack.c.h.b16 %v7931
      %v7980 = vpack.c.b16 %v7948, %v7948
      %v7981 = vpack.c.b16 %v7949, %v7949
      %v7982 = vpack.c.b16 %v7950, %v7950
      %v7983 = vpack.c.b16 %v7951, %v7951
      %v7984 = vpack.c.b16 %v7952, %v7952
      %v7985 = vpack.c.b16 %v7953, %v7953
      %v7986 = vpack.c.b16 %v7954, %v7954
      %v7987 = vpack.c.b16 %v7955, %v7955
      %v7988 = vpack.c.b16 %v7956, %v7956
      %v7989 = vpack.c.b16 %v7957, %v7957
      %v7990 = vpack.c.b16 %v7958, %v7958
      %v7991 = vpack.c.b16 %v7959, %v7959
      %v7992 = vpack.c.b16 %v7960, %v7960
      %v7993 = vpack.c.b16 %v7961, %v7961
      %v7994 = vpack.c.b16 %v7962, %v7962
      %v7995 = vpack.c.b16 %v7963, %v7963
      %v7996 = vpack.c.b16 %v7964, %v7964
      %v7997 = vpack.c.b16 %v7965, %v7965
      %v7998 = vpack.c.b16 %v7966, %v7966
      %v7999 = vpack.c.b16 %v7967, %v7967
      %v8000 = vpack.c.b16 %v7968, %v7968
      %v8001 = vpack.c.b16 %v7969, %v7969
      %v8002 = vpack.c.b16 %v7970, %v7970
      %v8003 = vpack.c.b16 %v7971, %v7971
      %v8004 = vpack.c.b16 %v7972, %v7972
      %v8005 = vpack.c.b16 %v7973, %v7973
      %v8006 = vpack.c.b16 %v7974, %v7974
      %v8007 = vpack.c.b16 %v7975, %v7975
      %v8008 = vpack.c.b16 %v7976, %v7976
      %v8009 = vpack.c.b16 %v7977, %v7977
      %v8010 = vpack.c.b16 %v7978, %v7978
      %v8011 = vpack.c.b16 %v7979, %v7979
      %vm8044 = vcmask 27648
      %8045 = vst.msk [vmem:[%s278] sm:$0xf] %vm8044, %v7980
      %8046 = vst.msk [vmem:[%s278 + $0x4] sm:$0xf] %vm8044, %v7981
      %8047 = vst.msk [vmem:[%s278 + $0x8] sm:$0xf] %vm8044, %v7982
      %8048 = vst.msk [vmem:[%s278 + $0xc] sm:$0xf] %vm8044, %v7983
      %8049 = vst.msk [vmem:[%s278 + $0x10] sm:$0xf] %vm8044, %v7984
      %8050 = vst.msk [vmem:[%s278 + $0x14] sm:$0xf] %vm8044, %v7985
      %8051 = vst.msk [vmem:[%s278 + $0x18] sm:$0xf] %vm8044, %v7986
      %8052 = vst.msk [vmem:[%s278 + $0x1c] sm:$0xf] %vm8044, %v7987
      %8053 = vst.msk [vmem:[%s278 + $0x20] sm:$0xf] %vm8044, %v7988
      %8054 = vst.msk [vmem:[%s278 + $0x24] sm:$0xf] %vm8044, %v7989
      %8055 = vst.msk [vmem:[%s278 + $0x28] sm:$0xf] %vm8044, %v7990
      %8056 = vst.msk [vmem:[%s278 + $0x2c] sm:$0xf] %vm8044, %v7991
      %8057 = vst.msk [vmem:[%s278 + $0x30] sm:$0xf] %vm8044, %v7992
      %8058 = vst.msk [vmem:[%s278 + $0x34] sm:$0xf] %vm8044, %v7993
      %8059 = vst.msk [vmem:[%s278 + $0x38] sm:$0xf] %vm8044, %v7994
      %8060 = vst.msk [vmem:[%s278 + $0x3c] sm:$0xf] %vm8044, %v7995
      %8061 = vst.msk [vmem:[%s278 + $0x40] sm:$0xf] %vm8044, %v7996
      %8062 = vst.msk [vmem:[%s278 + $0x44] sm:$0xf] %vm8044, %v7997
      %8063 = vst.msk [vmem:[%s278 + $0x48] sm:$0xf] %vm8044, %v7998
      %8064 = vst.msk [vmem:[%s278 + $0x4c] sm:$0xf] %vm8044, %v7999
      %8065 = vst.msk [vmem:[%s278 + $0x50] sm:$0xf] %vm8044, %v8000
      %8066 = vst.msk [vmem:[%s278 + $0x54] sm:$0xf] %vm8044, %v8001
      %8067 = vst.msk [vmem:[%s278 + $0x58] sm:$0xf] %vm8044, %v8002
      %8068 = vst.msk [vmem:[%s278 + $0x5c] sm:$0xf] %vm8044, %v8003
      %8069 = vst.msk [vmem:[%s278 + $0x60] sm:$0xf] %vm8044, %v8004
      %8070 = vst.msk [vmem:[%s278 + $0x64] sm:$0xf] %vm8044, %v8005
      %8071 = vst.msk [vmem:[%s278 + $0x68] sm:$0xf] %vm8044, %v8006
      %8072 = vst.msk [vmem:[%s278 + $0x6c] sm:$0xf] %vm8044, %v8007
      %8073 = vst.msk [vmem:[%s278 + $0x70] sm:$0xf] %vm8044, %v8008
      %8074 = vst.msk [vmem:[%s278 + $0x74] sm:$0xf] %vm8044, %v8009
      %8075 = vst.msk [vmem:[%s278 + $0x78] sm:$0xf] %vm8044, %v8010
      %8076 = vst.msk [vmem:[%s278 + $0x7c] sm:$0xf] %vm8044, %v8011
      %p8077 = scmp.lt.s32.totalorder %s18, 1
      %s8078 = scalar_select %p8077, %s18, 1
      %s8079 = smul.addr %s8078, 32
      %s8080 = smul.addr %s8079, 4
      %s8081 = scalar_lea.vmem %s7, %s8080
      // Predicated region
      $region53: #{_lambda_.4} parent=47 // pred_check
        %p8082 = pneg %p188
      $region54: #{_lambda_.4} parent=47 // pred_check_branch
        %8084 = sbr.rel (%p8082) target = $region56
      $region55: #{_lambda_.4} parent=47 // pred_region
        _
      $region56: #{_lambda_.4} parent=47 // pred_fallthru
        _
    $region48: #{_lambda_.4} parent=5 // pred_fallthru
      _
    %p8085 = scmp.le.s32.totalorder 2, %s13
    // Predicated region
    $region57: #{_lambda_.4} parent=5 // pred_check
      %p8086 = pneg %p8085
    $region58: #{_lambda_.4} parent=5 // pred_check_branch
      %8088 = sbr.rel (%p8086) target = $region60
    $region59: #{_lambda_.4} parent=5 // pred_region
      %s8089 = ssub.s32 %s13, 2
      // Predicated region
      $region61: #{_lambda_.4} parent=59 // pred_check
        %p8090 = pneg %p194
      $region62: #{_lambda_.4} parent=59 // pred_check_branch
        %8092 = sbr.rel (%p8090) target = $region64
      $region63: #{_lambda_.4} parent=59 // pred_region
        %p8093 = scmp.lt.s32.totalorder %s19, 1
        %s8094 = scalar_select %p8093, %s19, 1
        %s8095 = smul.addr %s8094, 32
        %s8096 = smul.addr %s8095, 4
        %s8097 = scalar_lea.vmem %s7, %s8096
      $region64: #{_lambda_.4} parent=59 // pred_fallthru
        _
    $region60: #{_lambda_.4} parent=5 // pred_fallthru
      _
  $region6: #{_lambda_.4} parent=0 // loop_footer
    %s17 = sadd.s32 1, %s13
  $region7: #{_lambda_.4} parent=0 // loop_footer_branch
    %12 = sbr.rel target = $region3
  $region8: #{_lambda_.4} parent=0 // loop_exit
    _

</llo_original>
